<compile_context>
chip_gen: v6e
topology: v6e:2x2x1
jax: 0.10.0
libtpu: 0.0.40
codegen_flags: <defaults>
</compile_context>

<pallas_src>
import functools

import jax
import jax.numpy as jnp
from jax.experimental import pallas as pl
from jax.experimental.pallas import tpu as pltpu


# ----------------------------- Pallas kernel ---------------------------------
def _conv_taps_kernel(x_ref, w_ref, b_ref, o_ref, *,
                      kh_count, kw_count, stride, h_out, w_out, w_out_pad):
    """One grid step: nb images x all (kh, kw) taps x one C_out tile.

    x_ref : (nb, H_p, W_p, C_in)      padded NHWC input block (bf16/f32)
    w_ref : (KH, KW, C_in, tn)        weights, tap-major, (kh, kw, c) order
    b_ref : (1, tn)                   f32 bias tile
    o_ref : (nb, H_out, W_out, tn)    output block
    """
    nb = x_ref.shape[0]
    c_in = x_ref.shape[3]
    tn = o_ref.shape[3]
    mb = nb * h_out * w_out_pad

    acc = jnp.zeros((mb, tn), jnp.float32)
    for kh in range(kh_count):            # static unroll: KH*KW MXU matmuls
        for kw in range(kw_count):
            if stride == 1:
                tap = x_ref[:, kh:kh + h_out, kw:kw + w_out_pad, :]
            else:
                tap = x_ref[:, pl.ds(kh, h_out, stride=stride),
                            pl.ds(kw, w_out_pad, stride=stride), :]
            # (nb, H_out, W_out_pad, C_in) -> (mb, C_in):  W_out_pad % 8 == 0,
            # so this collapse is a layout-preserving shape cast (no relayout).
            acc += jnp.dot(tap.reshape(mb, c_in), w_ref[kh, kw],
                           preferred_element_type=jnp.float32)
    acc += b_ref[...]                     # f32 bias epilogue
    out = acc.reshape(nb, h_out, w_out_pad, tn)[:, :, :w_out, :]
    o_ref[...] = out.astype(o_ref.dtype)


# ------------------------------ conv wrapper ----------------------------------
def conv2d_nhwc(xh, weight, bias=None, *, stride=1, padding=0, dilation=1,
                out_dtype=jnp.float32, compute_dtype=jnp.bfloat16):
    """Fused-im2col Conv2d on an NHWC activation.

    xh: (N, H, W, C_in); weight: (C_out, C_in, KH, KW); bias: (C_out,) or None.
    Returns (N, H_out, W_out, C_out) in `out_dtype`.
    """
    if dilation != 1:
        # TODO(synk): the reference unfold/.view() semantics only coincide for
        # dilation == 1; other dilations are not implemented.
        raise NotImplementedError("conv2d_nhwc supports dilation == 1 only")

    N, H, W, C_in = xh.shape
    C_out, C_in_w, KH, KW = weight.shape
    assert C_in == C_in_w, (C_in, C_in_w)

    H_out = (H + 2 * padding - KH) // stride + 1
    W_out = (W + 2 * padding - KW) // stride + 1
    W_out_pad = -(-W_out // 8) * 8                    # sublane-aligned M collapse
    W_need = KW + stride * (W_out_pad - 1)            # width the kernel reads

    # bf16 before any padding/copy (halves HBM traffic for the cast copy too).
    xh = xh.astype(compute_dtype)
    pad_r = max(0, W_need - (W + 2 * padding))
    if padding or pad_r:
        xh = jnp.pad(
            xh, ((0, 0), (padding, padding), (padding, padding + pad_r), (0, 0)))
    H_p = H + 2 * padding
    W_p = W + 2 * padding + pad_r

    # Weights in (kh, kw, c, cout) order, matching the in-kernel tap loop.
    w_k = jnp.transpose(weight, (2, 3, 1, 0)).astype(compute_dtype)
    if bias is None:
        bias = jnp.zeros((C_out,), jnp.float32)
    b2 = bias.reshape(1, C_out).astype(jnp.float32)

    # ---- tiling --------------------------------------------------------------
    tn = C_out if C_out <= 256 else 256               # 256 = MXU N width (v6e/v7x)
    gn = pl.cdiv(C_out, tn)
    rows_pad = H_out * W_out_pad

    in_isize = jnp.dtype(compute_dtype).itemsize
    out_isize = jnp.dtype(out_dtype).itemsize

    def vmem_bytes(nb_):
        blk_in = nb_ * H_p * W_p * C_in * in_isize
        blk_w = KH * KW * C_in * tn * in_isize
        blk_b = tn * 4
        blk_out = nb_ * H_out * W_out * tn * out_isize
        tmp = nb_ * rows_pad * (C_in * in_isize + tn * 4) * 2   # tap + acc headroom
        return 2 * (blk_in + blk_w + blk_b + blk_out) + tmp     # double-buffered

    nb = max(1, min(N, max(1, 512 // max(1, rows_pad))))
    # Keep >= 2 parallel grid blocks when possible (v7x has 2 TensorCores).
    while nb > 1 and pl.cdiv(N, nb) * gn < 2:
        nb = max(1, nb // 2)
    # Bound per-step VMEM (~24 MiB budget, fits v7x's 32 MiB scoped default).
    while nb > 1 and vmem_bytes(nb) > 24 * 1024 * 1024:
        nb = max(1, nb // 2)
    gb = pl.cdiv(N, nb)

    kern = functools.partial(
        _conv_taps_kernel, kh_count=KH, kw_count=KW, stride=stride,
        h_out=H_out, w_out=W_out, w_out_pad=W_out_pad)

    flops = 2 * N * H_out * W_out * KH * KW * C_in * C_out
    bytes_accessed = (xh.size * in_isize + w_k.size * in_isize + b2.size * 4
                      + N * H_out * W_out * C_out * out_isize)

    cp = dict(dimension_semantics=("parallel", "parallel"))
    est = vmem_bytes(nb)
    if est > 30 * 1024 * 1024:
        cp["vmem_limit_bytes"] = int(min(est * 1.25, 120 * 1024 * 1024))

    # Partial batch / C_out blocks read OOB garbage, but those rows/cols are
    # never written back (Pallas partial output blocks) -- safe by construction.
    out = pl.pallas_call(
        kern,
        out_shape=jax.ShapeDtypeStruct((N, H_out, W_out, C_out), out_dtype),
        grid_spec=pltpu.PrefetchScalarGridSpec(
            num_scalar_prefetch=0,
            grid=(gb, gn),
            in_specs=[
                pl.BlockSpec((nb, H_p, W_p, C_in), lambda b, j: (b, 0, 0, 0)),
                pl.BlockSpec((KH, KW, C_in, tn), lambda b, j: (0, 0, 0, j)),
                pl.BlockSpec((1, tn), lambda b, j: (0, j)),
            ],
            out_specs=pl.BlockSpec((nb, H_out, W_out, tn),
                                   lambda b, j: (b, 0, 0, j)),
        ),
        compiler_params=pltpu.CompilerParams(**cp),
        cost_estimate=pl.CostEstimate(flops=flops, transcendentals=0,
                                      bytes_accessed=bytes_accessed),
    )(xh, w_k, b2)
    return out


# --------------------- Module / Sequential (spec semantics) -------------------
class Module:
    def __call__(self, x):
        return self.forward(x)

    def forward(self, x):
        return x

    def params(self):
        return []


class Conv2d(Module):
    """NCHW Conv2d whose forward runs the fused Pallas kernel."""

    def __init__(self, weight, bias=None, stride=1, padding=0, dilation=1):
        self.weight = weight
        self.bias = bias
        self.stride = stride
        self.padding = padding
        self.dilation = dilation

    def forward(self, x):                               # NCHW -> NCHW, f32
        xh = jnp.transpose(x, (0, 2, 3, 1))
        yh = self.forward_nhwc(xh, out_dtype=jnp.float32)
        return jnp.transpose(yh, (0, 3, 1, 2))

    def forward_nhwc(self, xh, out_dtype=jnp.float32):  # NHWC fast path
        return conv2d_nhwc(
            xh, self.weight, self.bias, stride=self.stride,
            padding=self.padding, dilation=self.dilation, out_dtype=out_dtype)

    def params(self):
        return [self.weight, self.bias]


class Sequential(Module):
    """Matches the reference Sequential: chains forward calls.

    When every stage exposes an NHWC fast path (Conv2d), the activation stays
    in NHWC / bf16 between layers and is converted to NCHW only at the model
    boundary (numerically identical: each conv casts its input to bf16 anyway).
    """

    def __init__(self, *functions):
        self.functions = functions

    def forward(self, x):
        fns = self.functions
        if fns and all(hasattr(f, "forward_nhwc") for f in fns) and x.ndim == 4:
            xh = jnp.transpose(x, (0, 2, 3, 1))
            last = len(fns) - 1
            for i, func in enumerate(fns):
                dt = jnp.float32 if i == last else jnp.bfloat16
                xh = func.forward_nhwc(xh, out_dtype=dt)
            return jnp.transpose(xh, (0, 3, 1, 2))
        for func in fns:
            x = func.forward(x)
        return x

    def params(self):
        parameters = []
        for func in self.functions:
            parameters += func.params()
        return parameters


# ------------------------------------ main ------------------------------------
if __name__ == "__main__":
    key = jax.random.PRNGKey(0)
    k_x, k_w1, k_b1, k_w2, k_b2 = jax.random.split(key, 5)

    N, C_in, H, W = 2, 4, 16, 16
    C_mid, C_out, KH, KW = 8, 8, 3, 3

    xb1 = 2.0 / (C_mid + C_in) ** 0.5
    w1 = jax.random.uniform(k_w1, (C_mid, C_in, KH, KW), jnp.float32, -xb1, xb1)
    b1 = jax.random.uniform(k_b1, (C_mid,), jnp.float32, -xb1, xb1)
    xb2 = 2.0 / (C_out + C_mid) ** 0.5
    w2 = jax.random.uniform(k_w2, (C_out, C_mid, KH, KW), jnp.float32, -xb2, xb2)
    b2 = jax.random.uniform(k_b2, (C_out,), jnp.float32, -xb2, xb2)

    x = jax.random.normal(k_x, (N, C_in, H, W), jnp.float32)

    model = Sequential(Conv2d(w1, b1), Conv2d(w2, b2))
    out = jax.block_until_ready(jax.jit(model.forward)(x))

    # Reference: lax conv on bf16-cast inputs per layer (same compute dtype as
    # the kernel, f32 accumulation), chained.
    def ref_conv(xx, w, b):
        xf = xx.astype(jnp.bfloat16).astype(jnp.float32)
        wf = w.astype(jnp.bfloat16).astype(jnp.float32)
        y = jax.lax.conv_general_dilated(
            xf, wf, window_strides=(1, 1), padding="VALID",
            dimension_numbers=("NCHW", "OIHW", "NCHW"))
        return y + b.reshape(1, -1, 1, 1)

    ref = ref_conv(ref_conv(x, w1, b1), w2, b2)

    assert out.shape == (N, C_out, 12, 12), out.shape
    max_err = float(jnp.max(jnp.abs(out - ref)))
    assert jnp.allclose(out, ref, atol=3e-2, rtol=3e-2), max_err

    print("KERNEL_OK")
</pallas_src>

<mosaic_0001>
module attributes {stable_mosaic.version = 11 : i64} {
  func.func @_conv_taps_kernel(%arg0: i32, %arg1: i32, %arg2: memref<1x16x18x4xbf16, #tpu.memory_space<vmem>>, %arg3: memref<3x3x4x8xbf16, #tpu.memory_space<vmem>>, %arg4: memref<1x8xf32, #tpu.memory_space<vmem>>, %arg5: memref<1x14x14x8xbf16, #tpu.memory_space<vmem>>) attributes {dimension_semantics = [#tpu.dimension_semantics<parallel>, #tpu.dimension_semantics<parallel>], iteration_bounds = array<i64: 2, 1>, scalar_prefetch = 0 : i64, scratch_operands = 0 : i64, tpu.core_type = #tpu.core_type<tc>, window_params = [{transform_indices = @transform_0, window_bounds = array<i64: 1, 16, 18, 4>}, {transform_indices = @transform_1, window_bounds = array<i64: 3, 3, 4, 8>}, {transform_indices = @transform_2, window_bounds = array<i64: 1, 8>}, {transform_indices = @transform_3, window_bounds = array<i64: 1, 14, 14, 8>}]} {
    %cst = arith.constant 0.000000e+00 : f32
    %0 = vector.broadcast %cst : f32 to vector<224x8xf32>
    %c0 = arith.constant 0 : index
    %c0_0 = arith.constant 0 : index
    %c0_1 = arith.constant 0 : index
    %c0_2 = arith.constant 0 : index
    %1 = vector.load %arg2[%c0, %c0_0, %c0_1, %c0_2] : memref<1x16x18x4xbf16, #tpu.memory_space<vmem>>, vector<1x14x16x4xbf16>
    %2 = vector.shape_cast %1 : vector<1x14x16x4xbf16> to vector<224x4xbf16>
    %c0_3 = arith.constant 0 : index
    %c0_4 = arith.constant 0 : index
    %c0_5 = arith.constant 0 : index
    %c0_6 = arith.constant 0 : index
    %3 = vector.load %arg3[%c0_3, %c0_4, %c0_5, %c0_6] : memref<3x3x4x8xbf16, #tpu.memory_space<vmem>>, vector<1x1x4x8xbf16>
    %4 = vector.shape_cast %3 : vector<1x1x4x8xbf16> to vector<4x8xbf16>
    %cst_7 = arith.constant dense<0.000000e+00> : vector<224x8xf32>
    %5 = tpu.matmul %2, %4, %cst_7 {dimension_numbers = #tpu.dot_dimension_numbers<[1], [0], [0], [1], [0, 0, 1, 1], [], []>} : vector<224x4xbf16>, vector<4x8xbf16>, vector<224x8xf32> -> vector<224x8xf32>
    %6 = arith.addf %0, %5 : vector<224x8xf32>
    %c0_8 = arith.constant 0 : index
    %c0_9 = arith.constant 0 : index
    %c1 = arith.constant 1 : index
    %c0_10 = arith.constant 0 : index
    %7 = vector.load %arg2[%c0_8, %c0_9, %c1, %c0_10] : memref<1x16x18x4xbf16, #tpu.memory_space<vmem>>, vector<1x14x16x4xbf16>
    %8 = vector.shape_cast %7 : vector<1x14x16x4xbf16> to vector<224x4xbf16>
    %c0_11 = arith.constant 0 : index
    %c1_12 = arith.constant 1 : index
    %c0_13 = arith.constant 0 : index
    %c0_14 = arith.constant 0 : index
    %9 = vector.load %arg3[%c0_11, %c1_12, %c0_13, %c0_14] : memref<3x3x4x8xbf16, #tpu.memory_space<vmem>>, vector<1x1x4x8xbf16>
    %10 = vector.shape_cast %9 : vector<1x1x4x8xbf16> to vector<4x8xbf16>
    %cst_15 = arith.constant dense<0.000000e+00> : vector<224x8xf32>
    %11 = tpu.matmul %8, %10, %cst_15 {dimension_numbers = #tpu.dot_dimension_numbers<[1], [0], [0], [1], [0, 0, 1, 1], [], []>} : vector<224x4xbf16>, vector<4x8xbf16>, vector<224x8xf32> -> vector<224x8xf32>
    %12 = arith.addf %6, %11 : vector<224x8xf32>
    %c0_16 = arith.constant 0 : index
    %c0_17 = arith.constant 0 : index
    %c2 = arith.constant 2 : index
    %c0_18 = arith.constant 0 : index
    %13 = vector.load %arg2[%c0_16, %c0_17, %c2, %c0_18] : memref<1x16x18x4xbf16, #tpu.memory_space<vmem>>, vector<1x14x16x4xbf16>
    %14 = vector.shape_cast %13 : vector<1x14x16x4xbf16> to vector<224x4xbf16>
    %c0_19 = arith.constant 0 : index
    %c2_20 = arith.constant 2 : index
    %c0_21 = arith.constant 0 : index
    %c0_22 = arith.constant 0 : index
    %15 = vector.load %arg3[%c0_19, %c2_20, %c0_21, %c0_22] : memref<3x3x4x8xbf16, #tpu.memory_space<vmem>>, vector<1x1x4x8xbf16>
    %16 = vector.shape_cast %15 : vector<1x1x4x8xbf16> to vector<4x8xbf16>
    %cst_23 = arith.constant dense<0.000000e+00> : vector<224x8xf32>
    %17 = tpu.matmul %14, %16, %cst_23 {dimension_numbers = #tpu.dot_dimension_numbers<[1], [0], [0], [1], [0, 0, 1, 1], [], []>} : vector<224x4xbf16>, vector<4x8xbf16>, vector<224x8xf32> -> vector<224x8xf32>
    %18 = arith.addf %12, %17 : vector<224x8xf32>
    %c0_24 = arith.constant 0 : index
    %c1_25 = arith.constant 1 : index
    %c0_26 = arith.constant 0 : index
    %c0_27 = arith.constant 0 : index
    %19 = vector.load %arg2[%c0_24, %c1_25, %c0_26, %c0_27] : memref<1x16x18x4xbf16, #tpu.memory_space<vmem>>, vector<1x14x16x4xbf16>
    %20 = vector.shape_cast %19 : vector<1x14x16x4xbf16> to vector<224x4xbf16>
    %c1_28 = arith.constant 1 : index
    %c0_29 = arith.constant 0 : index
    %c0_30 = arith.constant 0 : index
    %c0_31 = arith.constant 0 : index
    %21 = vector.load %arg3[%c1_28, %c0_29, %c0_30, %c0_31] : memref<3x3x4x8xbf16, #tpu.memory_space<vmem>>, vector<1x1x4x8xbf16>
    %22 = vector.shape_cast %21 : vector<1x1x4x8xbf16> to vector<4x8xbf16>
    %cst_32 = arith.constant dense<0.000000e+00> : vector<224x8xf32>
    %23 = tpu.matmul %20, %22, %cst_32 {dimension_numbers = #tpu.dot_dimension_numbers<[1], [0], [0], [1], [0, 0, 1, 1], [], []>} : vector<224x4xbf16>, vector<4x8xbf16>, vector<224x8xf32> -> vector<224x8xf32>
    %24 = arith.addf %18, %23 : vector<224x8xf32>
    %c0_33 = arith.constant 0 : index
    %c1_34 = arith.constant 1 : index
    %c1_35 = arith.constant 1 : index
    %c0_36 = arith.constant 0 : index
    %25 = vector.load %arg2[%c0_33, %c1_34, %c1_35, %c0_36] : memref<1x16x18x4xbf16, #tpu.memory_space<vmem>>, vector<1x14x16x4xbf16>
    %26 = vector.shape_cast %25 : vector<1x14x16x4xbf16> to vector<224x4xbf16>
    %c1_37 = arith.constant 1 : index
    %c1_38 = arith.constant 1 : index
    %c0_39 = arith.constant 0 : index
    %c0_40 = arith.constant 0 : index
    %27 = vector.load %arg3[%c1_37, %c1_38, %c0_39, %c0_40] : memref<3x3x4x8xbf16, #tpu.memory_space<vmem>>, vector<1x1x4x8xbf16>
    %28 = vector.shape_cast %27 : vector<1x1x4x8xbf16> to vector<4x8xbf16>
    %cst_41 = arith.constant dense<0.000000e+00> : vector<224x8xf32>
    %29 = tpu.matmul %26, %28, %cst_41 {dimension_numbers = #tpu.dot_dimension_numbers<[1], [0], [0], [1], [0, 0, 1, 1], [], []>} : vector<224x4xbf16>, vector<4x8xbf16>, vector<224x8xf32> -> vector<224x8xf32>
    %30 = arith.addf %24, %29 : vector<224x8xf32>
    %c0_42 = arith.constant 0 : index
    %c1_43 = arith.constant 1 : index
    %c2_44 = arith.constant 2 : index
    %c0_45 = arith.constant 0 : index
    %31 = vector.load %arg2[%c0_42, %c1_43, %c2_44, %c0_45] : memref<1x16x18x4xbf16, #tpu.memory_space<vmem>>, vector<1x14x16x4xbf16>
    %32 = vector.shape_cast %31 : vector<1x14x16x4xbf16> to vector<224x4xbf16>
    %c1_46 = arith.constant 1 : index
    %c2_47 = arith.constant 2 : index
    %c0_48 = arith.constant 0 : index
    %c0_49 = arith.constant 0 : index
    %33 = vector.load %arg3[%c1_46, %c2_47, %c0_48, %c0_49] : memref<3x3x4x8xbf16, #tpu.memory_space<vmem>>, vector<1x1x4x8xbf16>
    %34 = vector.shape_cast %33 : vector<1x1x4x8xbf16> to vector<4x8xbf16>
    %cst_50 = arith.constant dense<0.000000e+00> : vector<224x8xf32>
    %35 = tpu.matmul %32, %34, %cst_50 {dimension_numbers = #tpu.dot_dimension_numbers<[1], [0], [0], [1], [0, 0, 1, 1], [], []>} : vector<224x4xbf16>, vector<4x8xbf16>, vector<224x8xf32> -> vector<224x8xf32>
    %36 = arith.addf %30, %35 : vector<224x8xf32>
    %c0_51 = arith.constant 0 : index
    %c2_52 = arith.constant 2 : index
    %c0_53 = arith.constant 0 : index
    %c0_54 = arith.constant 0 : index
    %37 = vector.load %arg2[%c0_51, %c2_52, %c0_53, %c0_54] : memref<1x16x18x4xbf16, #tpu.memory_space<vmem>>, vector<1x14x16x4xbf16>
    %38 = vector.shape_cast %37 : vector<1x14x16x4xbf16> to vector<224x4xbf16>
    %c2_55 = arith.constant 2 : index
    %c0_56 = arith.constant 0 : index
    %c0_57 = arith.constant 0 : index
    %c0_58 = arith.constant 0 : index
    %39 = vector.load %arg3[%c2_55, %c0_56, %c0_57, %c0_58] : memref<3x3x4x8xbf16, #tpu.memory_space<vmem>>, vector<1x1x4x8xbf16>
    %40 = vector.shape_cast %39 : vector<1x1x4x8xbf16> to vector<4x8xbf16>
    %cst_59 = arith.constant dense<0.000000e+00> : vector<224x8xf32>
    %41 = tpu.matmul %38, %40, %cst_59 {dimension_numbers = #tpu.dot_dimension_numbers<[1], [0], [0], [1], [0, 0, 1, 1], [], []>} : vector<224x4xbf16>, vector<4x8xbf16>, vector<224x8xf32> -> vector<224x8xf32>
    %42 = arith.addf %36, %41 : vector<224x8xf32>
    %c0_60 = arith.constant 0 : index
    %c2_61 = arith.constant 2 : index
    %c1_62 = arith.constant 1 : index
    %c0_63 = arith.constant 0 : index
    %43 = vector.load %arg2[%c0_60, %c2_61, %c1_62, %c0_63] : memref<1x16x18x4xbf16, #tpu.memory_space<vmem>>, vector<1x14x16x4xbf16>
    %44 = vector.shape_cast %43 : vector<1x14x16x4xbf16> to vector<224x4xbf16>
    %c2_64 = arith.constant 2 : index
    %c1_65 = arith.constant 1 : index
    %c0_66 = arith.constant 0 : index
    %c0_67 = arith.constant 0 : index
    %45 = vector.load %arg3[%c2_64, %c1_65, %c0_66, %c0_67] : memref<3x3x4x8xbf16, #tpu.memory_space<vmem>>, vector<1x1x4x8xbf16>
    %46 = vector.shape_cast %45 : vector<1x1x4x8xbf16> to vector<4x8xbf16>
    %cst_68 = arith.constant dense<0.000000e+00> : vector<224x8xf32>
    %47 = tpu.matmul %44, %46, %cst_68 {dimension_numbers = #tpu.dot_dimension_numbers<[1], [0], [0], [1], [0, 0, 1, 1], [], []>} : vector<224x4xbf16>, vector<4x8xbf16>, vector<224x8xf32> -> vector<224x8xf32>
    %48 = arith.addf %42, %47 : vector<224x8xf32>
    %c0_69 = arith.constant 0 : index
    %c2_70 = arith.constant 2 : index
    %c2_71 = arith.constant 2 : index
    %c0_72 = arith.constant 0 : index
    %49 = vector.load %arg2[%c0_69, %c2_70, %c2_71, %c0_72] : memref<1x16x18x4xbf16, #tpu.memory_space<vmem>>, vector<1x14x16x4xbf16>
    %50 = vector.shape_cast %49 : vector<1x14x16x4xbf16> to vector<224x4xbf16>
    %c2_73 = arith.constant 2 : index
    %c2_74 = arith.constant 2 : index
    %c0_75 = arith.constant 0 : index
    %c0_76 = arith.constant 0 : index
    %51 = vector.load %arg3[%c2_73, %c2_74, %c0_75, %c0_76] : memref<3x3x4x8xbf16, #tpu.memory_space<vmem>>, vector<1x1x4x8xbf16>
    %52 = vector.shape_cast %51 : vector<1x1x4x8xbf16> to vector<4x8xbf16>
    %cst_77 = arith.constant dense<0.000000e+00> : vector<224x8xf32>
    %53 = tpu.matmul %50, %52, %cst_77 {dimension_numbers = #tpu.dot_dimension_numbers<[1], [0], [0], [1], [0, 0, 1, 1], [], []>} : vector<224x4xbf16>, vector<4x8xbf16>, vector<224x8xf32> -> vector<224x8xf32>
    %54 = arith.addf %48, %53 : vector<224x8xf32>
    %c0_78 = arith.constant 0 : index
    %c0_79 = arith.constant 0 : index
    %55 = vector.load %arg4[%c0_78, %c0_79] : memref<1x8xf32, #tpu.memory_space<vmem>>, vector<1x8xf32>
    %56 = vector.broadcast %55 : vector<1x8xf32> to vector<224x8xf32>
    %57 = arith.addf %54, %56 : vector<224x8xf32>
    %58 = vector.shape_cast %57 : vector<224x8xf32> to vector<1x14x16x8xf32>
    %59 = vector.extract_strided_slice %58 {offsets = [0, 0, 0, 0], sizes = [1, 14, 14, 8], strides = [1, 1, 1, 1]} : vector<1x14x16x8xf32> to vector<1x14x14x8xf32>
    %60 = arith.truncf %59 : vector<1x14x14x8xf32> to vector<1x14x14x8xbf16>
    %c0_80 = arith.constant 0 : index
    %c0_81 = arith.constant 0 : index
    %c0_82 = arith.constant 0 : index
    %c0_83 = arith.constant 0 : index
    %61 = vector.load %arg5[%c0_80, %c0_81, %c0_82, %c0_83] : memref<1x14x14x8xbf16, #tpu.memory_space<vmem>>, vector<1x14x14x8xbf16>
    tpu.vector_store %arg5[%c0_80, %c0_81, %c0_82, %c0_83], %60 {strides = array<i32>} : memref<1x14x14x8xbf16, #tpu.memory_space<vmem>>, vector<1x14x14x8xbf16>,
    return
  }
  func.func @transform_0(%arg0: i32, %arg1: i32) -> (i32, i32, i32, i32) {
    %c0_i32 = arith.constant 0 : i32
    %c0_i32_0 = arith.constant 0 : i32
    %c0_i32_1 = arith.constant 0 : i32
    %c0_i32_2 = arith.constant 0 : i32
    return %arg0, %c0_i32, %c0_i32_0, %c0_i32_1 : i32, i32, i32, i32
  }
  func.func @transform_1(%arg0: i32, %arg1: i32) -> (i32, i32, i32, i32) {
    %c0_i32 = arith.constant 0 : i32
    %c0_i32_0 = arith.constant 0 : i32
    %c0_i32_1 = arith.constant 0 : i32
    %c0_i32_2 = arith.constant 0 : i32
    return %c0_i32, %c0_i32_0, %c0_i32_1, %arg1 : i32, i32, i32, i32
  }
  func.func @transform_2(%arg0: i32, %arg1: i32) -> (i32, i32) {
    %c0_i32 = arith.constant 0 : i32
    %c0_i32_0 = arith.constant 0 : i32
    return %c0_i32, %arg1 : i32, i32
  }
  func.func @transform_3(%arg0: i32, %arg1: i32) -> (i32, i32, i32, i32) {
    %c0_i32 = arith.constant 0 : i32
    %c0_i32_0 = arith.constant 0 : i32
    %c0_i32_1 = arith.constant 0 : i32
    return %arg0, %c0_i32, %c0_i32_0, %arg1 : i32, i32, i32, i32
  }
}

module attributes {stable_mosaic.version = 11 : i64} {
  func.func @_conv_taps_kernel(%arg0: i32, %arg1: i32, %arg2: memref<1x14x18x8xbf16, #tpu.memory_space<vmem>>, %arg3: memref<3x3x8x8xbf16, #tpu.memory_space<vmem>>, %arg4: memref<1x8xf32, #tpu.memory_space<vmem>>, %arg5: memref<1x12x12x8xf32, #tpu.memory_space<vmem>>) attributes {dimension_semantics = [#tpu.dimension_semantics<parallel>, #tpu.dimension_semantics<parallel>], iteration_bounds = array<i64: 2, 1>, scalar_prefetch = 0 : i64, scratch_operands = 0 : i64, tpu.core_type = #tpu.core_type<tc>, window_params = [{transform_indices = @transform_0, window_bounds = array<i64: 1, 14, 18, 8>}, {transform_indices = @transform_1, window_bounds = array<i64: 3, 3, 8, 8>}, {transform_indices = @transform_2, window_bounds = array<i64: 1, 8>}, {transform_indices = @transform_3, window_bounds = array<i64: 1, 12, 12, 8>}]} {
    %cst = arith.constant 0.000000e+00 : f32
    %0 = vector.broadcast %cst : f32 to vector<192x8xf32>
    %c0 = arith.constant 0 : index
    %c0_0 = arith.constant 0 : index
    %c0_1 = arith.constant 0 : index
    %c0_2 = arith.constant 0 : index
    %1 = vector.load %arg2[%c0, %c0_0, %c0_1, %c0_2] : memref<1x14x18x8xbf16, #tpu.memory_space<vmem>>, vector<1x12x16x8xbf16>
    %2 = vector.shape_cast %1 : vector<1x12x16x8xbf16> to vector<192x8xbf16>
    %c0_3 = arith.constant 0 : index
    %c0_4 = arith.constant 0 : index
    %c0_5 = arith.constant 0 : index
    %c0_6 = arith.constant 0 : index
    %3 = vector.load %arg3[%c0_3, %c0_4, %c0_5, %c0_6] : memref<3x3x8x8xbf16, #tpu.memory_space<vmem>>, vector<1x1x8x8xbf16>
    %4 = vector.shape_cast %3 : vector<1x1x8x8xbf16> to vector<8x8xbf16>
    %cst_7 = arith.constant dense<0.000000e+00> : vector<192x8xf32>
    %5 = tpu.matmul %2, %4, %cst_7 {dimension_numbers = #tpu.dot_dimension_numbers<[1], [0], [0], [1], [0, 0, 1, 1], [], []>} : vector<192x8xbf16>, vector<8x8xbf16>, vector<192x8xf32> -> vector<192x8xf32>
    %6 = arith.addf %0, %5 : vector<192x8xf32>
    %c0_8 = arith.constant 0 : index
    %c0_9 = arith.constant 0 : index
    %c1 = arith.constant 1 : index
    %c0_10 = arith.constant 0 : index
    %7 = vector.load %arg2[%c0_8, %c0_9, %c1, %c0_10] : memref<1x14x18x8xbf16, #tpu.memory_space<vmem>>, vector<1x12x16x8xbf16>
    %8 = vector.shape_cast %7 : vector<1x12x16x8xbf16> to vector<192x8xbf16>
    %c0_11 = arith.constant 0 : index
    %c1_12 = arith.constant 1 : index
    %c0_13 = arith.constant 0 : index
    %c0_14 = arith.constant 0 : index
    %9 = vector.load %arg3[%c0_11, %c1_12, %c0_13, %c0_14] : memref<3x3x8x8xbf16, #tpu.memory_space<vmem>>, vector<1x1x8x8xbf16>
    %10 = vector.shape_cast %9 : vector<1x1x8x8xbf16> to vector<8x8xbf16>
    %cst_15 = arith.constant dense<0.000000e+00> : vector<192x8xf32>
    %11 = tpu.matmul %8, %10, %cst_15 {dimension_numbers = #tpu.dot_dimension_numbers<[1], [0], [0], [1], [0, 0, 1, 1], [], []>} : vector<192x8xbf16>, vector<8x8xbf16>, vector<192x8xf32> -> vector<192x8xf32>
    %12 = arith.addf %6, %11 : vector<192x8xf32>
    %c0_16 = arith.constant 0 : index
    %c0_17 = arith.constant 0 : index
    %c2 = arith.constant 2 : index
    %c0_18 = arith.constant 0 : index
    %13 = vector.load %arg2[%c0_16, %c0_17, %c2, %c0_18] : memref<1x14x18x8xbf16, #tpu.memory_space<vmem>>, vector<1x12x16x8xbf16>
    %14 = vector.shape_cast %13 : vector<1x12x16x8xbf16> to vector<192x8xbf16>
    %c0_19 = arith.constant 0 : index
    %c2_20 = arith.constant 2 : index
    %c0_21 = arith.constant 0 : index
    %c0_22 = arith.constant 0 : index
    %15 = vector.load %arg3[%c0_19, %c2_20, %c0_21, %c0_22] : memref<3x3x8x8xbf16, #tpu.memory_space<vmem>>, vector<1x1x8x8xbf16>
    %16 = vector.shape_cast %15 : vector<1x1x8x8xbf16> to vector<8x8xbf16>
    %cst_23 = arith.constant dense<0.000000e+00> : vector<192x8xf32>
    %17 = tpu.matmul %14, %16, %cst_23 {dimension_numbers = #tpu.dot_dimension_numbers<[1], [0], [0], [1], [0, 0, 1, 1], [], []>} : vector<192x8xbf16>, vector<8x8xbf16>, vector<192x8xf32> -> vector<192x8xf32>
    %18 = arith.addf %12, %17 : vector<192x8xf32>
    %c0_24 = arith.constant 0 : index
    %c1_25 = arith.constant 1 : index
    %c0_26 = arith.constant 0 : index
    %c0_27 = arith.constant 0 : index
    %19 = vector.load %arg2[%c0_24, %c1_25, %c0_26, %c0_27] : memref<1x14x18x8xbf16, #tpu.memory_space<vmem>>, vector<1x12x16x8xbf16>
    %20 = vector.shape_cast %19 : vector<1x12x16x8xbf16> to vector<192x8xbf16>
    %c1_28 = arith.constant 1 : index
    %c0_29 = arith.constant 0 : index
    %c0_30 = arith.constant 0 : index
    %c0_31 = arith.constant 0 : index
    %21 = vector.load %arg3[%c1_28, %c0_29, %c0_30, %c0_31] : memref<3x3x8x8xbf16, #tpu.memory_space<vmem>>, vector<1x1x8x8xbf16>
    %22 = vector.shape_cast %21 : vector<1x1x8x8xbf16> to vector<8x8xbf16>
    %cst_32 = arith.constant dense<0.000000e+00> : vector<192x8xf32>
    %23 = tpu.matmul %20, %22, %cst_32 {dimension_numbers = #tpu.dot_dimension_numbers<[1], [0], [0], [1], [0, 0, 1, 1], [], []>} : vector<192x8xbf16>, vector<8x8xbf16>, vector<192x8xf32> -> vector<192x8xf32>
    %24 = arith.addf %18, %23 : vector<192x8xf32>
    %c0_33 = arith.constant 0 : index
    %c1_34 = arith.constant 1 : index
    %c1_35 = arith.constant 1 : index
    %c0_36 = arith.constant 0 : index
    %25 = vector.load %arg2[%c0_33, %c1_34, %c1_35, %c0_36] : memref<1x14x18x8xbf16, #tpu.memory_space<vmem>>, vector<1x12x16x8xbf16>
    %26 = vector.shape_cast %25 : vector<1x12x16x8xbf16> to vector<192x8xbf16>
    %c1_37 = arith.constant 1 : index
    %c1_38 = arith.constant 1 : index
    %c0_39 = arith.constant 0 : index
    %c0_40 = arith.constant 0 : index
    %27 = vector.load %arg3[%c1_37, %c1_38, %c0_39, %c0_40] : memref<3x3x8x8xbf16, #tpu.memory_space<vmem>>, vector<1x1x8x8xbf16>
    %28 = vector.shape_cast %27 : vector<1x1x8x8xbf16> to vector<8x8xbf16>
    %cst_41 = arith.constant dense<0.000000e+00> : vector<192x8xf32>
    %29 = tpu.matmul %26, %28, %cst_41 {dimension_numbers = #tpu.dot_dimension_numbers<[1], [0], [0], [1], [0, 0, 1, 1], [], []>} : vector<192x8xbf16>, vector<8x8xbf16>, vector<192x8xf32> -> vector<192x8xf32>
    %30 = arith.addf %24, %29 : vector<192x8xf32>
    %c0_42 = arith.constant 0 : index
    %c1_43 = arith.constant 1 : index
    %c2_44 = arith.constant 2 : index
    %c0_45 = arith.constant 0 : index
    %31 = vector.load %arg2[%c0_42, %c1_43, %c2_44, %c0_45] : memref<1x14x18x8xbf16, #tpu.memory_space<vmem>>, vector<1x12x16x8xbf16>
    %32 = vector.shape_cast %31 : vector<1x12x16x8xbf16> to vector<192x8xbf16>
    %c1_46 = arith.constant 1 : index
    %c2_47 = arith.constant 2 : index
    %c0_48 = arith.constant 0 : index
    %c0_49 = arith.constant 0 : index
    %33 = vector.load %arg3[%c1_46, %c2_47, %c0_48, %c0_49] : memref<3x3x8x8xbf16, #tpu.memory_space<vmem>>, vector<1x1x8x8xbf16>
    %34 = vector.shape_cast %33 : vector<1x1x8x8xbf16> to vector<8x8xbf16>
    %cst_50 = arith.constant dense<0.000000e+00> : vector<192x8xf32>
    %35 = tpu.matmul %32, %34, %cst_50 {dimension_numbers = #tpu.dot_dimension_numbers<[1], [0], [0], [1], [0, 0, 1, 1], [], []>} : vector<192x8xbf16>, vector<8x8xbf16>, vector<192x8xf32> -> vector<192x8xf32>
    %36 = arith.addf %30, %35 : vector<192x8xf32>
    %c0_51 = arith.constant 0 : index
    %c2_52 = arith.constant 2 : index
    %c0_53 = arith.constant 0 : index
    %c0_54 = arith.constant 0 : index
    %37 = vector.load %arg2[%c0_51, %c2_52, %c0_53, %c0_54] : memref<1x14x18x8xbf16, #tpu.memory_space<vmem>>, vector<1x12x16x8xbf16>
    %38 = vector.shape_cast %37 : vector<1x12x16x8xbf16> to vector<192x8xbf16>
    %c2_55 = arith.constant 2 : index
    %c0_56 = arith.constant 0 : index
    %c0_57 = arith.constant 0 : index
    %c0_58 = arith.constant 0 : index
    %39 = vector.load %arg3[%c2_55, %c0_56, %c0_57, %c0_58] : memref<3x3x8x8xbf16, #tpu.memory_space<vmem>>, vector<1x1x8x8xbf16>
    %40 = vector.shape_cast %39 : vector<1x1x8x8xbf16> to vector<8x8xbf16>
    %cst_59 = arith.constant dense<0.000000e+00> : vector<192x8xf32>
    %41 = tpu.matmul %38, %40, %cst_59 {dimension_numbers = #tpu.dot_dimension_numbers<[1], [0], [0], [1], [0, 0, 1, 1], [], []>} : vector<192x8xbf16>, vector<8x8xbf16>, vector<192x8xf32> -> vector<192x8xf32>
    %42 = arith.addf %36, %41 : vector<192x8xf32>
    %c0_60 = arith.constant 0 : index
    %c2_61 = arith.constant 2 : index
    %c1_62 = arith.constant 1 : index
    %c0_63 = arith.constant 0 : index
    %43 = vector.load %arg2[%c0_60, %c2_61, %c1_62, %c0_63] : memref<1x14x18x8xbf16, #tpu.memory_space<vmem>>, vector<1x12x16x8xbf16>
    %44 = vector.shape_cast %43 : vector<1x12x16x8xbf16> to vector<192x8xbf16>
    %c2_64 = arith.constant 2 : index
    %c1_65 = arith.constant 1 : index
    %c0_66 = arith.constant 0 : index
    %c0_67 = arith.constant 0 : index
    %45 = vector.load %arg3[%c2_64, %c1_65, %c0_66, %c0_67] : memref<3x3x8x8xbf16, #tpu.memory_space<vmem>>, vector<1x1x8x8xbf16>
    %46 = vector.shape_cast %45 : vector<1x1x8x8xbf16> to vector<8x8xbf16>
    %cst_68 = arith.constant dense<0.000000e+00> : vector<192x8xf32>
    %47 = tpu.matmul %44, %46, %cst_68 {dimension_numbers = #tpu.dot_dimension_numbers<[1], [0], [0], [1], [0, 0, 1, 1], [], []>} : vector<192x8xbf16>, vector<8x8xbf16>, vector<192x8xf32> -> vector<192x8xf32>
    %48 = arith.addf %42, %47 : vector<192x8xf32>
    %c0_69 = arith.constant 0 : index
    %c2_70 = arith.constant 2 : index
    %c2_71 = arith.constant 2 : index
    %c0_72 = arith.constant 0 : index
    %49 = vector.load %arg2[%c0_69, %c2_70, %c2_71, %c0_72] : memref<1x14x18x8xbf16, #tpu.memory_space<vmem>>, vector<1x12x16x8xbf16>
    %50 = vector.shape_cast %49 : vector<1x12x16x8xbf16> to vector<192x8xbf16>
    %c2_73 = arith.constant 2 : index
    %c2_74 = arith.constant 2 : index
    %c0_75 = arith.constant 0 : index
    %c0_76 = arith.constant 0 : index
    %51 = vector.load %arg3[%c2_73, %c2_74, %c0_75, %c0_76] : memref<3x3x8x8xbf16, #tpu.memory_space<vmem>>, vector<1x1x8x8xbf16>
    %52 = vector.shape_cast %51 : vector<1x1x8x8xbf16> to vector<8x8xbf16>
    %cst_77 = arith.constant dense<0.000000e+00> : vector<192x8xf32>
    %53 = tpu.matmul %50, %52, %cst_77 {dimension_numbers = #tpu.dot_dimension_numbers<[1], [0], [0], [1], [0, 0, 1, 1], [], []>} : vector<192x8xbf16>, vector<8x8xbf16>, vector<192x8xf32> -> vector<192x8xf32>
    %54 = arith.addf %48, %53 : vector<192x8xf32>
    %c0_78 = arith.constant 0 : index
    %c0_79 = arith.constant 0 : index
    %55 = vector.load %arg4[%c0_78, %c0_79] : memref<1x8xf32, #tpu.memory_space<vmem>>, vector<1x8xf32>
    %56 = vector.broadcast %55 : vector<1x8xf32> to vector<192x8xf32>
    %57 = arith.addf %54, %56 : vector<192x8xf32>
    %58 = vector.shape_cast %57 : vector<192x8xf32> to vector<1x12x16x8xf32>
    %59 = vector.extract_strided_slice %58 {offsets = [0, 0, 0, 0], sizes = [1, 12, 12, 8], strides = [1, 1, 1, 1]} : vector<1x12x16x8xf32> to vector<1x12x12x8xf32>
    %c0_80 = arith.constant 0 : index
    %c0_81 = arith.constant 0 : index
    %c0_82 = arith.constant 0 : index
    %c0_83 = arith.constant 0 : index
    %60 = vector.load %arg5[%c0_80, %c0_81, %c0_82, %c0_83] : memref<1x12x12x8xf32, #tpu.memory_space<vmem>>, vector<1x12x12x8xf32>
    tpu.vector_store %arg5[%c0_80, %c0_81, %c0_82, %c0_83], %59 {strides = array<i32>} : memref<1x12x12x8xf32, #tpu.memory_space<vmem>>, vector<1x12x12x8xf32>,
    return
  }
  func.func @transform_0(%arg0: i32, %arg1: i32) -> (i32, i32, i32, i32) {
    %c0_i32 = arith.constant 0 : i32
    %c0_i32_0 = arith.constant 0 : i32
    %c0_i32_1 = arith.constant 0 : i32
    %c0_i32_2 = arith.constant 0 : i32
    return %arg0, %c0_i32, %c0_i32_0, %c0_i32_1 : i32, i32, i32, i32
  }
  func.func @transform_1(%arg0: i32, %arg1: i32) -> (i32, i32, i32, i32) {
    %c0_i32 = arith.constant 0 : i32
    %c0_i32_0 = arith.constant 0 : i32
    %c0_i32_1 = arith.constant 0 : i32
    %c0_i32_2 = arith.constant 0 : i32
    return %c0_i32, %c0_i32_0, %c0_i32_1, %arg1 : i32, i32, i32, i32
  }
  func.func @transform_2(%arg0: i32, %arg1: i32) -> (i32, i32) {
    %c0_i32 = arith.constant 0 : i32
    %c0_i32_0 = arith.constant 0 : i32
    return %c0_i32, %arg1 : i32, i32
  }
  func.func @transform_3(%arg0: i32, %arg1: i32) -> (i32, i32, i32, i32) {
    %c0_i32 = arith.constant 0 : i32
    %c0_i32_0 = arith.constant 0 : i32
    %c0_i32_1 = arith.constant 0 : i32
    return %arg0, %c0_i32, %c0_i32_0, %arg1 : i32, i32, i32, i32
  }
}

</mosaic_0001>

<llo_original>
// kernel: forward.2
$region0: #{forward.2}
  #allocation0 [shape = 'u32[]', space=smem, size = 0x4, offset = 0x4, fixed_abs, tag = 'smem constant byte address 0x4 - core index']
  #allocation1 [shape = 'u32[144,128]{1,0:T(1,128)}', space=vmem, size = 0x12000, scoped, tag = 'internal scratch']
  %s0 = inlined_call_operand.vmem [shape: bf16[2,16,18,4], index: 0, kind: input, shape index: {}]
  %s1 = inlined_call_operand.vmem [shape: bf16[3,3,4,8], index: 1, kind: input, shape index: {}]
  %s2 = inlined_call_operand.vmem [shape: f32[1,8], index: 2, kind: input, shape index: {}]
  %s3 = inlined_call_operand.vmem [shape: bf16[2,14,14,8], index: 3, kind: output, shape index: {}]
  %s4 = sld [smem:[#allocation0]]
  $region45: #{forward.2} parent=0
    _
  %s6 = ssub.s32 1, %s4
  %s7 = scalar_select 0, %s6, %s4
  loop: start=0, step=1, limit=4
  $region2: #{forward.2} parent=0 // loop_pre_header
    _
  $region3: #{forward.2} parent=0 // loop_header
    %s9 = sphi 0, %s13
    %p10 = scmp.ge.s32.totalorder %s9, 4
    %s16 = sphi 0, %s28
    %s17 = sphi 0, %s24
    %s18 = sphi 0, %s16
    %s19 = sphi 0, %s17
    %s20 = sphi 0, %s18
    %s21 = sphi 0, %s19
    %s31 = sphi 0, %s33
    %s34 = sphi 0, %s31
    %s35 = sphi 0, %s34
    %s51 = sphi 0, %s35
    %s57 = sphi 0, %s59
    %s60 = sphi 0, %s57
    %s61 = sphi 0, %s60
    %s77 = sphi 0, %s61
    %s83 = sphi 0, %s85
    %s86 = sphi 0, %s83
    %s87 = sphi 0, %s86
    %s103 = sphi 0, %s87
    %s111 = sphi 0, %s113
    %s114 = sphi 0, %s111
    %s115 = sphi 0, %s114
    %s131 = sphi 0, %s115
  $region4: #{forward.2} parent=0 // loop_header_branch
    %12 = sbr.rel (%p10) target = $region8
  $region5: #{forward.2} parent=0 // loop_body
    %s14 = ssub.s32 %s9, 1
    %s15 = ssub.s32 %s9, 2
    %s22 = sadd.s32 1, %s17
    %p23 = scmp.ge.s32.totalorder %s22, 1
    %s24 = scalar_select %p23, 0, %s22
    %s25 = sadd.s32 1, %s16
    %s26 = scalar_select %p23, %s25, %s16
    %p27 = scmp.ge.s32.totalorder %s26, 2
    %s28 = scalar_select %p27, 0, %s26
    %s29 = ssub.s32 %s16, %s28
    %p30 = scmp.eq.s32.totalorder %s29, 0
    %s32 = sadd.s32 %s31, 1
    %s33 = scalar_select %p30, %s31, %s32
    %p36 = pneg %p30
    %p37 = scmp.eq.s32.totalorder %s9, 1
    %p38 = por %p36, %p37
    %p39 = scmp.ne.s32.totalorder %s31, %s34
    %p40 = scmp.eq.s32.totalorder %s9, 0
    %p41 = por %p39, %p40
    %p42 = scmp.ne.s32.totalorder %s31, %s34
    %p43 = scmp.eq.s32.totalorder %s14, 1
    %p44 = por %p42, %p43
    %p45 = scmp.ne.s32.totalorder %s34, %s35
    %p46 = scmp.eq.s32.totalorder %s14, 0
    %p47 = por %p45, %p46
    %p48 = scmp.ne.s32.totalorder %s34, %s35
    %p49 = scmp.eq.s32.totalorder %s15, 1
    %p50 = por %p48, %p49
    %p52 = scmp.ne.s32.totalorder %s35, %s51
    %p53 = scmp.eq.s32.totalorder %s15, 0
    %p54 = por %p52, %p53
    %s55 = ssub.s32 %s17, %s24
    %p56 = scmp.eq.s32.totalorder %s55, 0
    %s58 = sadd.s32 %s57, 1
    %s59 = scalar_select %p56, %s57, %s58
    %p62 = pneg %p56
    %p63 = scmp.eq.s32.totalorder %s9, 1
    %p64 = por %p62, %p63
    %p65 = scmp.ne.s32.totalorder %s57, %s60
    %p66 = scmp.eq.s32.totalorder %s9, 0
    %p67 = por %p65, %p66
    %p68 = scmp.ne.s32.totalorder %s57, %s60
    %p69 = scmp.eq.s32.totalorder %s14, 1
    %p70 = por %p68, %p69
    %p71 = scmp.ne.s32.totalorder %s60, %s61
    %p72 = scmp.eq.s32.totalorder %s14, 0
    %p73 = por %p71, %p72
    %p74 = scmp.ne.s32.totalorder %s60, %s61
    %p75 = scmp.eq.s32.totalorder %s15, 1
    %p76 = por %p74, %p75
    %p78 = scmp.ne.s32.totalorder %s61, %s77
    %p79 = scmp.eq.s32.totalorder %s15, 0
    %p80 = por %p78, %p79
    %s81 = ssub.s32 %s17, %s24
    %p82 = scmp.eq.s32.totalorder %s81, 0
    %s84 = sadd.s32 %s83, 1
    %s85 = scalar_select %p82, %s83, %s84
    %p88 = pneg %p82
    %p89 = scmp.eq.s32.totalorder %s9, 1
    %p90 = por %p88, %p89
    %p91 = scmp.ne.s32.totalorder %s83, %s86
    %p92 = scmp.eq.s32.totalorder %s9, 0
    %p93 = por %p91, %p92
    %p94 = scmp.ne.s32.totalorder %s83, %s86
    %p95 = scmp.eq.s32.totalorder %s14, 1
    %p96 = por %p94, %p95
    %p97 = scmp.ne.s32.totalorder %s86, %s87
    %p98 = scmp.eq.s32.totalorder %s14, 0
    %p99 = por %p97, %p98
    %p100 = scmp.ne.s32.totalorder %s86, %s87
    %p101 = scmp.eq.s32.totalorder %s15, 1
    %p102 = por %p100, %p101
    %p104 = scmp.ne.s32.totalorder %s87, %s103
    %p105 = scmp.eq.s32.totalorder %s15, 0
    %p106 = por %p104, %p105
    %s107 = ssub.s32 %s16, %s28
    %s108 = ssub.s32 %s17, %s24
    %s109 = sor.u32 %s107, %s108
    %p110 = scmp.eq.s32.totalorder %s109, 0
    %s112 = sadd.s32 %s111, 1
    %s113 = scalar_select %p110, %s111, %s112
    %p116 = pneg %p110
    %p117 = scmp.eq.s32.totalorder %s9, 1
    %p118 = por %p116, %p117
    %p119 = scmp.ne.s32.totalorder %s111, %s114
    %p120 = scmp.eq.s32.totalorder %s9, 0
    %p121 = por %p119, %p120
    %p122 = scmp.ne.s32.totalorder %s111, %s114
    %p123 = scmp.eq.s32.totalorder %s14, 1
    %p124 = por %p122, %p123
    %p125 = scmp.ne.s32.totalorder %s114, %s115
    %p126 = scmp.eq.s32.totalorder %s14, 0
    %p127 = por %p125, %p126
    %p128 = scmp.ne.s32.totalorder %s114, %s115
    %p129 = scmp.eq.s32.totalorder %s15, 1
    %p130 = por %p128, %p129
    %p132 = scmp.ne.s32.totalorder %s115, %s131
    %p133 = scmp.eq.s32.totalorder %s15, 0
    %p134 = por %p132, %p133
    %p135 = scmp.le.s32.totalorder 1, %s9
    %p136 = scmp.lt.s32.totalorder %s9, 3
    %p137 = pnand %p135, %p136
    %p138 = pneg %p137
    // Predicated region
    $region9: #{forward.2} parent=5 // pred_check
      _
    $region10: #{forward.2} parent=5 // pred_check_branch
      %140 = sbr.rel (%p137) target = $region12
    $region11: #{forward.2} parent=5 // pred_region
      %s141 = ssub.s32 %s9, 1
      // Predicated region
      $region13: #{forward.2} parent=11 // pred_check
        %p142 = pneg %p73
      $region14: #{forward.2} parent=11 // pred_check_branch
        %144 = sbr.rel (%p142) target = $region16
      $region15: #{forward.2} parent=11 // pred_region
        %p145 = scmp.lt.s32.totalorder %s19, 0
        %s146 = scalar_select %p145, %s19, 0
        %s147 = smul.addr %s146, 2
        %s148 = scalar_lea.vmem %s1, %s147
      $region16: #{forward.2} parent=11 // pred_fallthru
        _
      // Predicated region
      $region17: #{forward.2} parent=11 // pred_check
        %p149 = pneg %p99
      $region18: #{forward.2} parent=11 // pred_check_branch
        %151 = sbr.rel (%p149) target = $region20
      $region19: #{forward.2} parent=11 // pred_region
        %p152 = scmp.lt.s32.totalorder %s19, 0
        %s153 = scalar_select %p152, %s19, 0
        %s154 = scalar_lea.vmem %s2, %s153
      $region20: #{forward.2} parent=11 // pred_fallthru
        _
    $region12: #{forward.2} parent=5 // pred_fallthru
      _
    %p155 = scmp.lt.s32.totalorder %s9, 2
    // Predicated region
    $region21: #{forward.2} parent=5 // pred_check
      %p156 = pneg %p155
    $region22: #{forward.2} parent=5 // pred_check_branch
      %158 = sbr.rel (%p156) target = $region24
    $region23: #{forward.2} parent=5 // pred_region
      // Predicated region
      $region25: #{forward.2} parent=23 // pred_check
        %p159 = pneg %p41
      $region26: #{forward.2} parent=23 // pred_check_branch
        %161 = sbr.rel (%p159) target = $region28
      $region27: #{forward.2} parent=23 // pred_region
        %p162 = scmp.lt.s32.totalorder %s16, 1
        %s163 = scalar_select %p162, %s16, 1
        %s164 = smul.addr %s163, 48
        %s165 = smul.addr %s164, 4
        %s166 = scalar_lea.vmem %s0, %s165
      $region28: #{forward.2} parent=23 // pred_fallthru
        _
    $region24: #{forward.2} parent=5 // pred_fallthru
      _
    %p167 = scmp.le.s32.totalorder 1, %s9
    %p168 = scmp.lt.s32.totalorder %s9, 3
    %p169 = pnand %p167, %p168
    %p170 = pneg %p169
    // Predicated region
    $region29: #{forward.2} parent=5 // pred_check
      _
    $region30: #{forward.2} parent=5 // pred_check_branch
      %172 = sbr.rel (%p169) target = $region32
    $region31: #{forward.2} parent=5 // pred_region
      %s173 = ssub.s32 %s9, 1
      %p174 = scmp.lt.s32.totalorder %s18, 1
      %s175 = scalar_select %p174, %s18, 1
      %s176 = smul.addr %s175, 48
      %s177 = smul.addr %s176, 4
      %s178 = scalar_lea.vmem %s0, %s177
      %p179 = pneg %p47
      %p180 = pneg %p44
      %p181 = scmp.lt.s32.totalorder %s19, 0
      %s182 = scalar_select %p181, %s19, 0
      %s183 = smul.addr %s182, 2
      %s184 = scalar_lea.vmem %s1, %s183
      %p185 = pneg %p73
      %p186 = pneg %p70
      %p187 = scmp.lt.s32.totalorder %s19, 0
      %s188 = scalar_select %p187, %s19, 0
      %s189 = scalar_lea.vmem %s2, %s188
      %p190 = pneg %p99
      %p191 = pneg %p96
      %p192 = pneg %p127
      %p193 = pneg %p124
      %p194 = scmp.lt.s32.totalorder %s18, 1
      %s195 = scalar_select %p194, %s18, 1
      %p196 = scmp.lt.s32.totalorder %s19, 0
      %s197 = scalar_select %p196, %s19, 0
      %s198 = smul.addr %s195, 28
      %s199 = sadd.s32 %s197, %s198
      %s200 = smul.addr %s199, 4
      %s201 = scalar_lea.vmem %s3, %s200
      %p202 = scmp.lt.s32.totalorder %s18, 1
      %s203 = scalar_select %p202, %s18, 1
      %s204 = smul.addr %s203, 48
      %s205 = smul.addr %s204, 4
      %s206 = scalar_lea.vmem %s0, %s205
      %p207 = scmp.lt.s32.totalorder %s19, 0
      %s208 = scalar_select %p207, %s19, 0
      %s209 = smul.addr %s208, 2
      %s210 = scalar_lea.vmem %s1, %s209
      %p211 = scmp.lt.s32.totalorder %s19, 0
      %s212 = scalar_select %p211, %s19, 0
      %s213 = scalar_lea.vmem %s2, %s212
      %p214 = scmp.lt.s32.totalorder %s18, 1
      %s215 = scalar_select %p214, %s18, 1
      %p216 = scmp.lt.s32.totalorder %s19, 0
      %s217 = scalar_select %p216, %s19, 0
      %s218 = smul.addr %s215, 28
      %s219 = sadd.s32 %s217, %s218
      %s220 = smul.addr %s219, 4
      %s221 = scalar_lea.vmem %s3, %s220
      %v223 = vld [vmem:[%s206] sm:$0xf]
      %v224 = vld [vmem:[%s206 + $0x4] sm:$0xf]
      %v225 = vld [vmem:[%s206 + $0xc] sm:$0xf]
      %v226 = vld [vmem:[%s206 + $0x10] sm:$0xf]
      %v227 = vld [vmem:[%s206 + $0x18] sm:$0xf]
      %v228 = vld [vmem:[%s206 + $0x1c] sm:$0xf]
      %v229 = vld [vmem:[%s206 + $0x24] sm:$0xf]
      %v230 = vld [vmem:[%s206 + $0x28] sm:$0xf]
      %v231 = vld [vmem:[%s206 + $0x30] sm:$0xf]
      %v232 = vld [vmem:[%s206 + $0x34] sm:$0xf]
      %v233 = vld [vmem:[%s206 + $0x3c] sm:$0xf]
      %v234 = vld [vmem:[%s206 + $0x40] sm:$0xf]
      %v235 = vld [vmem:[%s206 + $0x48] sm:$0xf]
      %v236 = vld [vmem:[%s206 + $0x4c] sm:$0xf]
      %v237 = vld [vmem:[%s206 + $0x54] sm:$0xf]
      %v238 = vld [vmem:[%s206 + $0x58] sm:$0xf]
      %v239 = vld [vmem:[%s206 + $0x60] sm:$0xf]
      %v240 = vld [vmem:[%s206 + $0x64] sm:$0xf]
      %v241 = vld [vmem:[%s206 + $0x6c] sm:$0xf]
      %v242 = vld [vmem:[%s206 + $0x70] sm:$0xf]
      %v243 = vld [vmem:[%s206 + $0x78] sm:$0xf]
      %v244 = vld [vmem:[%s206 + $0x7c] sm:$0xf]
      %v245 = vld [vmem:[%s206 + $0x84] sm:$0xf]
      %v246 = vld [vmem:[%s206 + $0x88] sm:$0xf]
      %v247 = vld [vmem:[%s206 + $0x90] sm:$0xf]
      %v248 = vld [vmem:[%s206 + $0x94] sm:$0xf]
      %v249 = vld [vmem:[%s206 + $0x9c] sm:$0xf]
      %v250 = vld [vmem:[%s206 + $0xa0] sm:$0xf]
      %v251 = vld [vmem:[%s210] sm:$0x3]
      %v252 = vld [vmem:[%s206 + $0x8] sm:$0x1]
      %v253 = vld [vmem:[%s206 + $0x14] sm:$0x1]
      %v254 = vld [vmem:[%s206 + $0x20] sm:$0x1]
      %v255 = vld [vmem:[%s206 + $0x2c] sm:$0x1]
      %v256 = vld [vmem:[%s206 + $0x38] sm:$0x1]
      %v257 = vld [vmem:[%s206 + $0x44] sm:$0x1]
      %v258 = vld [vmem:[%s206 + $0x50] sm:$0x1]
      %v259 = vld [vmem:[%s206 + $0x5c] sm:$0x1]
      %v260 = vld [vmem:[%s206 + $0x68] sm:$0x1]
      %v261 = vld [vmem:[%s206 + $0x74] sm:$0x1]
      %v262 = vld [vmem:[%s206 + $0x80] sm:$0x1]
      %v263 = vld [vmem:[%s206 + $0x8c] sm:$0x1]
      %v264 = vld [vmem:[%s206 + $0x98] sm:$0x1]
      %v265 = vld [vmem:[%s206 + $0xa4] sm:$0x1]
      %vm266 = vsmask.f32 3328
      %vm267 = vsmask.f32 7440
      %vm268 = vmor %vm266, %vm267
      %v270 = vshrl.u32 %v223, 16
      %v272 = vrot.slane %v270, 4
      %v273 = vshll.u32 %v223, 16
      %v275 = vrot.slane %v273, 5
      %v276 = vor.u32 %v272, %v275
      %v277 = vrot.slane %v276, 4
      %v279 = vshll.u32 %v224, 16
      %v281 = vrot.slane %v279, 5
      %v282 = vsel %vm268, %v277, %v281
      %v283 = vshrl.u32 %v224, 16
      %v285 = vrot.slane %v283, 4
      %v286 = vor.u32 %v285, %v281
      %v287 = vrot.slane %v286, 4
      %v289 = vshll.u32 %v252, 16
      %v291 = vrot.slane %v289, 5
      %v292 = vsel %vm268, %v287, %v291
      %v294 = vshrl.u32 %v225, 16
      %v296 = vrot.slane %v294, 4
      %v297 = vshll.u32 %v225, 16
      %v299 = vrot.slane %v297, 5
      %v300 = vor.u32 %v296, %v299
      %v301 = vrot.slane %v300, 4
      %v303 = vshll.u32 %v226, 16
      %v305 = vrot.slane %v303, 5
      %v306 = vsel %vm268, %v301, %v305
      %v307 = vshrl.u32 %v226, 16
      %v309 = vrot.slane %v307, 4
      %v310 = vor.u32 %v309, %v305
      %v311 = vrot.slane %v310, 4
      %v313 = vshll.u32 %v253, 16
      %v315 = vrot.slane %v313, 5
      %v316 = vsel %vm268, %v311, %v315
      %v318 = vshrl.u32 %v227, 16
      %v320 = vrot.slane %v318, 4
      %v321 = vshll.u32 %v227, 16
      %v323 = vrot.slane %v321, 5
      %v324 = vor.u32 %v320, %v323
      %v325 = vrot.slane %v324, 4
      %v327 = vshll.u32 %v228, 16
      %v329 = vrot.slane %v327, 5
      %v330 = vsel %vm268, %v325, %v329
      %v331 = vshrl.u32 %v228, 16
      %v333 = vrot.slane %v331, 4
      %v334 = vor.u32 %v333, %v329
      %v335 = vrot.slane %v334, 4
      %v337 = vshll.u32 %v254, 16
      %v339 = vrot.slane %v337, 5
      %v340 = vsel %vm268, %v335, %v339
      %v342 = vshrl.u32 %v229, 16
      %v344 = vrot.slane %v342, 4
      %v345 = vshll.u32 %v229, 16
      %v347 = vrot.slane %v345, 5
      %v348 = vor.u32 %v344, %v347
      %v349 = vrot.slane %v348, 4
      %v351 = vshll.u32 %v230, 16
      %v353 = vrot.slane %v351, 5
      %v354 = vsel %vm268, %v349, %v353
      %v355 = vshrl.u32 %v230, 16
      %v357 = vrot.slane %v355, 4
      %v358 = vor.u32 %v357, %v353
      %v359 = vrot.slane %v358, 4
      %v361 = vshll.u32 %v255, 16
      %v363 = vrot.slane %v361, 5
      %v364 = vsel %vm268, %v359, %v363
      %v366 = vshrl.u32 %v231, 16
      %v368 = vrot.slane %v366, 4
      %v369 = vshll.u32 %v231, 16
      %v371 = vrot.slane %v369, 5
      %v372 = vor.u32 %v368, %v371
      %v373 = vrot.slane %v372, 4
      %v375 = vshll.u32 %v232, 16
      %v377 = vrot.slane %v375, 5
      %v378 = vsel %vm268, %v373, %v377
      %v379 = vshrl.u32 %v232, 16
      %v381 = vrot.slane %v379, 4
      %v382 = vor.u32 %v381, %v377
      %v383 = vrot.slane %v382, 4
      %v385 = vshll.u32 %v256, 16
      %v387 = vrot.slane %v385, 5
      %v388 = vsel %vm268, %v383, %v387
      %v390 = vshrl.u32 %v233, 16
      %v392 = vrot.slane %v390, 4
      %v393 = vshll.u32 %v233, 16
      %v395 = vrot.slane %v393, 5
      %v396 = vor.u32 %v392, %v395
      %v397 = vrot.slane %v396, 4
      %v399 = vshll.u32 %v234, 16
      %v401 = vrot.slane %v399, 5
      %v402 = vsel %vm268, %v397, %v401
      %v403 = vshrl.u32 %v234, 16
      %v405 = vrot.slane %v403, 4
      %v406 = vor.u32 %v405, %v401
      %v407 = vrot.slane %v406, 4
      %v409 = vshll.u32 %v257, 16
      %v411 = vrot.slane %v409, 5
      %v412 = vsel %vm268, %v407, %v411
      %v414 = vshrl.u32 %v235, 16
      %v416 = vrot.slane %v414, 4
      %v417 = vshll.u32 %v235, 16
      %v419 = vrot.slane %v417, 5
      %v420 = vor.u32 %v416, %v419
      %v421 = vrot.slane %v420, 4
      %v423 = vshll.u32 %v236, 16
      %v425 = vrot.slane %v423, 5
      %v426 = vsel %vm268, %v421, %v425
      %v427 = vshrl.u32 %v236, 16
      %v429 = vrot.slane %v427, 4
      %v430 = vor.u32 %v429, %v425
      %v431 = vrot.slane %v430, 4
      %v433 = vshll.u32 %v258, 16
      %v435 = vrot.slane %v433, 5
      %v436 = vsel %vm268, %v431, %v435
      %v438 = vshrl.u32 %v237, 16
      %v440 = vrot.slane %v438, 4
      %v441 = vshll.u32 %v237, 16
      %v443 = vrot.slane %v441, 5
      %v444 = vor.u32 %v440, %v443
      %v445 = vrot.slane %v444, 4
      %v447 = vshll.u32 %v238, 16
      %v449 = vrot.slane %v447, 5
      %v450 = vsel %vm268, %v445, %v449
      %v451 = vshrl.u32 %v238, 16
      %v453 = vrot.slane %v451, 4
      %v454 = vor.u32 %v453, %v449
      %v455 = vrot.slane %v454, 4
      %v457 = vshll.u32 %v259, 16
      %v459 = vrot.slane %v457, 5
      %v460 = vsel %vm268, %v455, %v459
      %v462 = vshrl.u32 %v239, 16
      %v464 = vrot.slane %v462, 4
      %v465 = vshll.u32 %v239, 16
      %v467 = vrot.slane %v465, 5
      %v468 = vor.u32 %v464, %v467
      %v469 = vrot.slane %v468, 4
      %v471 = vshll.u32 %v240, 16
      %v473 = vrot.slane %v471, 5
      %v474 = vsel %vm268, %v469, %v473
      %v475 = vshrl.u32 %v240, 16
      %v477 = vrot.slane %v475, 4
      %v478 = vor.u32 %v477, %v473
      %v479 = vrot.slane %v478, 4
      %v481 = vshll.u32 %v260, 16
      %v483 = vrot.slane %v481, 5
      %v484 = vsel %vm268, %v479, %v483
      %v486 = vshrl.u32 %v241, 16
      %v488 = vrot.slane %v486, 4
      %v489 = vshll.u32 %v241, 16
      %v491 = vrot.slane %v489, 5
      %v492 = vor.u32 %v488, %v491
      %v493 = vrot.slane %v492, 4
      %v495 = vshll.u32 %v242, 16
      %v497 = vrot.slane %v495, 5
      %v498 = vsel %vm268, %v493, %v497
      %v499 = vshrl.u32 %v242, 16
      %v501 = vrot.slane %v499, 4
      %v502 = vor.u32 %v501, %v497
      %v503 = vrot.slane %v502, 4
      %v505 = vshll.u32 %v261, 16
      %v507 = vrot.slane %v505, 5
      %v508 = vsel %vm268, %v503, %v507
      %v510 = vshrl.u32 %v243, 16
      %v512 = vrot.slane %v510, 4
      %v513 = vshll.u32 %v243, 16
      %v515 = vrot.slane %v513, 5
      %v516 = vor.u32 %v512, %v515
      %v517 = vrot.slane %v516, 4
      %v519 = vshll.u32 %v244, 16
      %v521 = vrot.slane %v519, 5
      %v522 = vsel %vm268, %v517, %v521
      %v523 = vshrl.u32 %v244, 16
      %v525 = vrot.slane %v523, 4
      %v526 = vor.u32 %v525, %v521
      %v527 = vrot.slane %v526, 4
      %v529 = vshll.u32 %v262, 16
      %v531 = vrot.slane %v529, 5
      %v532 = vsel %vm268, %v527, %v531
      %v534 = vshrl.u32 %v245, 16
      %v536 = vrot.slane %v534, 4
      %v537 = vshll.u32 %v245, 16
      %v539 = vrot.slane %v537, 5
      %v540 = vor.u32 %v536, %v539
      %v541 = vrot.slane %v540, 4
      %v543 = vshll.u32 %v246, 16
      %v545 = vrot.slane %v543, 5
      %v546 = vsel %vm268, %v541, %v545
      %v547 = vshrl.u32 %v246, 16
      %v549 = vrot.slane %v547, 4
      %v550 = vor.u32 %v549, %v545
      %v551 = vrot.slane %v550, 4
      %v553 = vshll.u32 %v263, 16
      %v555 = vrot.slane %v553, 5
      %v556 = vsel %vm268, %v551, %v555
      %v558 = vshrl.u32 %v247, 16
      %v560 = vrot.slane %v558, 4
      %v561 = vshll.u32 %v247, 16
      %v563 = vrot.slane %v561, 5
      %v564 = vor.u32 %v560, %v563
      %v565 = vrot.slane %v564, 4
      %v567 = vshll.u32 %v248, 16
      %v569 = vrot.slane %v567, 5
      %v570 = vsel %vm268, %v565, %v569
      %v571 = vshrl.u32 %v248, 16
      %v573 = vrot.slane %v571, 4
      %v574 = vor.u32 %v573, %v569
      %v575 = vrot.slane %v574, 4
      %v577 = vshll.u32 %v264, 16
      %v579 = vrot.slane %v577, 5
      %v580 = vsel %vm268, %v575, %v579
      %v582 = vshrl.u32 %v249, 16
      %v584 = vrot.slane %v582, 4
      %v585 = vshll.u32 %v249, 16
      %v587 = vrot.slane %v585, 5
      %v588 = vor.u32 %v584, %v587
      %v589 = vrot.slane %v588, 4
      %v591 = vshll.u32 %v250, 16
      %v593 = vrot.slane %v591, 5
      %v594 = vsel %vm268, %v589, %v593
      %v595 = vshrl.u32 %v250, 16
      %v597 = vrot.slane %v595, 4
      %v598 = vor.u32 %v597, %v593
      %v599 = vrot.slane %v598, 4
      %v601 = vshll.u32 %v265, 16
      %v603 = vrot.slane %v601, 5
      %v604 = vsel %vm268, %v599, %v603
      %s605 = scalar_lea.vmem %s210, 2
      %v606 = vld [vmem:[%s605] sm:$0x3]
      %v607 = vunpack.c.l.b16 %v282
      %v608 = vunpack.c.l.b16 %v292
      %v609 = vunpack.c.l.b16 %v306
      %v610 = vunpack.c.l.b16 %v316
      %v611 = vunpack.c.l.b16 %v330
      %v612 = vunpack.c.l.b16 %v340
      %v613 = vunpack.c.l.b16 %v354
      %v614 = vunpack.c.l.b16 %v364
      %v615 = vunpack.c.l.b16 %v378
      %v616 = vunpack.c.l.b16 %v388
      %v617 = vunpack.c.l.b16 %v402
      %v618 = vunpack.c.l.b16 %v412
      %v619 = vunpack.c.l.b16 %v426
      %v620 = vunpack.c.l.b16 %v436
      %v621 = vunpack.c.l.b16 %v450
      %v622 = vunpack.c.l.b16 %v460
      %v623 = vunpack.c.l.b16 %v474
      %v624 = vunpack.c.l.b16 %v484
      %v625 = vunpack.c.l.b16 %v498
      %v626 = vunpack.c.l.b16 %v508
      %v627 = vunpack.c.l.b16 %v522
      %v628 = vunpack.c.l.b16 %v532
      %v629 = vunpack.c.l.b16 %v546
      %v630 = vunpack.c.l.b16 %v556
      %v631 = vunpack.c.l.b16 %v570
      %v632 = vunpack.c.l.b16 %v580
      %v633 = vunpack.c.l.b16 %v594
      %v634 = vunpack.c.l.b16 %v604
      %v635 = vpack.c.b16 %v608, %v607
      %v636 = vpack.c.b16 %v610, %v609
      %v637 = vpack.c.b16 %v612, %v611
      %v638 = vpack.c.b16 %v614, %v613
      %v639 = vpack.c.b16 %v616, %v615
      %v640 = vpack.c.b16 %v618, %v617
      %v641 = vpack.c.b16 %v620, %v619
      %v642 = vpack.c.b16 %v622, %v621
      %v643 = vpack.c.b16 %v624, %v623
      %v644 = vpack.c.b16 %v626, %v625
      %v645 = vpack.c.b16 %v628, %v627
      %v646 = vpack.c.b16 %v630, %v629
      %v647 = vpack.c.b16 %v632, %v631
      %v648 = vpack.c.b16 %v634, %v633
      %vm649 = vcmask 31744
      %v651 = vsel %vm649, %v635, 0
      %v654 = vsel %vm649, %v636, 0
      %v657 = vsel %vm649, %v637, 0
      %v660 = vsel %vm649, %v638, 0
      %v663 = vsel %vm649, %v639, 0
      %v666 = vsel %vm649, %v640, 0
      %v669 = vsel %vm649, %v641, 0
      %v672 = vsel %vm649, %v642, 0
      %v675 = vsel %vm649, %v643, 0
      %v678 = vsel %vm649, %v644, 0
      %v681 = vsel %vm649, %v645, 0
      %v684 = vsel %vm649, %v646, 0
      %v687 = vsel %vm649, %v647, 0
      %v690 = vsel %vm649, %v648, 0
      %vm692 = vcmask 1041408
      %v694 = vsel %vm692, %v606, 0
      %696 = vmatprep.subr.bf16.mxu0 0
      %697 = vmatpush1.bf16.msra.mxu0 0
      %698 = vmatprep.subr.bf16.mxu0 0
      %699 = vmatpush1.bf16.msra.mxu0 0
      %700 = vmatprep.subr.bf16.mxu0 0
      %701 = vmatpush1.bf16.msra.mxu0 0
      %702 = vmatprep.subr.bf16.mxu0 0
      %703 = vmatpush1.bf16.msra.mxu0 0
      %704 = vmatprep.subr.bf16.mxu0 0
      %705 = vmatpush1.bf16.msra.mxu0 0
      %706 = vmatprep.subr.bf16.mxu0 0
      %707 = vmatpush1.bf16.msra.mxu0 0
      %708 = vmatprep.subr.bf16.mxu0 0
      %709 = vmatpush1.bf16.msra.mxu0 0
      %710 = vmatprep.subr.bf16.mxu0 0
      %711 = vmatpush1.bf16.msra.mxu0 %v694
      %712 = vmatprep.subr.bf16.mxu0 0
      %713 = vmatpush2.bf16.msra.mxu0 0
      %714 = vmatprep.subr.bf16.mxu0 0
      %715 = vmatpush2.bf16.msra.mxu0 0
      %716 = vmatprep.subr.bf16.mxu0 0
      %717 = vmatpush2.bf16.msra.mxu0 0
      %718 = vmatprep.subr.bf16.mxu0 0
      %719 = vmatpush2.bf16.msra.mxu0 0
      %720 = vmatprep.subr.bf16.mxu0 0
      %721 = vmatpush2.bf16.msra.mxu0 0
      %722 = vmatprep.subr.bf16.mxu0 0
      %723 = vmatpush2.bf16.msra.mxu0 0
      %724 = vmatprep.subr.bf16.mxu0 0
      %725 = vmatpush2.bf16.msra.mxu0 0
      %726 = vmatprep.subr.bf16.mxu0 0
      %727 = vmatpush2.bf16.msra.mxu0 0
      %728 = vmatprep.mubr.bf16.mxu0 0
      %729 = vmatmul.mubr.bf16.gmra.mxu0 %v651
      %v730 = vpop.f32.mrf.mxu0
      %v731 = vadd.f32 0.0, %v730
      %v732 = vpop.f32.mrf.mxu0
      %v733 = vpop.f32.mrf.mxu0
      %v734 = vadd.f32 0.0, %v733
      %v735 = vpop.f32.mrf.mxu0
      %736 = vmatprep.mubr.bf16.mxu0 0
      %737 = vmatmul.mubr.bf16.gmra.mxu0 %v654
      %v738 = vpop.f32.mrf.mxu0
      %v739 = vadd.f32 0.0, %v738
      %v740 = vpop.f32.mrf.mxu0
      %v741 = vpop.f32.mrf.mxu0
      %v742 = vadd.f32 0.0, %v741
      %v743 = vpop.f32.mrf.mxu0
      %744 = vmatprep.mubr.bf16.mxu0 0
      %745 = vmatmul.mubr.bf16.gmra.mxu0 %v657
      %v746 = vpop.f32.mrf.mxu0
      %v747 = vadd.f32 0.0, %v746
      %v748 = vpop.f32.mrf.mxu0
      %v749 = vpop.f32.mrf.mxu0
      %v750 = vadd.f32 0.0, %v749
      %v751 = vpop.f32.mrf.mxu0
      %752 = vmatprep.mubr.bf16.mxu0 0
      %753 = vmatmul.mubr.bf16.gmra.mxu0 %v660
      %v754 = vpop.f32.mrf.mxu0
      %v755 = vadd.f32 0.0, %v754
      %v756 = vpop.f32.mrf.mxu0
      %v757 = vpop.f32.mrf.mxu0
      %v758 = vadd.f32 0.0, %v757
      %v759 = vpop.f32.mrf.mxu0
      %760 = vmatprep.mubr.bf16.mxu0 0
      %761 = vmatmul.mubr.bf16.gmra.mxu0 %v663
      %v762 = vpop.f32.mrf.mxu0
      %v763 = vadd.f32 0.0, %v762
      %v764 = vpop.f32.mrf.mxu0
      %v765 = vpop.f32.mrf.mxu0
      %v766 = vadd.f32 0.0, %v765
      %v767 = vpop.f32.mrf.mxu0
      %768 = vmatprep.mubr.bf16.mxu0 0
      %769 = vmatmul.mubr.bf16.gmra.mxu0 %v666
      %v770 = vpop.f32.mrf.mxu0
      %v771 = vadd.f32 0.0, %v770
      %v772 = vpop.f32.mrf.mxu0
      %v773 = vpop.f32.mrf.mxu0
      %v774 = vadd.f32 0.0, %v773
      %v775 = vpop.f32.mrf.mxu0
      %776 = vmatprep.mubr.bf16.mxu0 0
      %777 = vmatmul.mubr.bf16.gmra.mxu0 %v669
      %v778 = vpop.f32.mrf.mxu0
      %v779 = vadd.f32 0.0, %v778
      %v780 = vpop.f32.mrf.mxu0
      %v781 = vpop.f32.mrf.mxu0
      %v782 = vadd.f32 0.0, %v781
      %v783 = vpop.f32.mrf.mxu0
      %784 = vmatprep.mubr.bf16.mxu0 0
      %785 = vmatmul.mubr.bf16.gmra.mxu0 %v672
      %v786 = vpop.f32.mrf.mxu0
      %v787 = vadd.f32 0.0, %v786
      %v788 = vpop.f32.mrf.mxu0
      %v789 = vpop.f32.mrf.mxu0
      %v790 = vadd.f32 0.0, %v789
      %v791 = vpop.f32.mrf.mxu0
      %792 = vmatprep.mubr.bf16.mxu0 0
      %793 = vmatmul.mubr.bf16.gmra.mxu0 %v675
      %v794 = vpop.f32.mrf.mxu0
      %v795 = vadd.f32 0.0, %v794
      %v796 = vpop.f32.mrf.mxu0
      %v797 = vpop.f32.mrf.mxu0
      %v798 = vadd.f32 0.0, %v797
      %v799 = vpop.f32.mrf.mxu0
      %800 = vmatprep.mubr.bf16.mxu0 0
      %801 = vmatmul.mubr.bf16.gmra.mxu0 %v678
      %v802 = vpop.f32.mrf.mxu0
      %v803 = vadd.f32 0.0, %v802
      %v804 = vpop.f32.mrf.mxu0
      %v805 = vpop.f32.mrf.mxu0
      %v806 = vadd.f32 0.0, %v805
      %v807 = vpop.f32.mrf.mxu0
      %808 = vmatprep.mubr.bf16.mxu0 0
      %809 = vmatmul.mubr.bf16.gmra.mxu0 %v681
      %v810 = vpop.f32.mrf.mxu0
      %v811 = vadd.f32 0.0, %v810
      %v812 = vpop.f32.mrf.mxu0
      %v813 = vpop.f32.mrf.mxu0
      %v814 = vadd.f32 0.0, %v813
      %v815 = vpop.f32.mrf.mxu0
      %816 = vmatprep.mubr.bf16.mxu0 0
      %817 = vmatmul.mubr.bf16.gmra.mxu0 %v684
      %v818 = vpop.f32.mrf.mxu0
      %v819 = vadd.f32 0.0, %v818
      %v820 = vpop.f32.mrf.mxu0
      %v821 = vpop.f32.mrf.mxu0
      %v822 = vadd.f32 0.0, %v821
      %v823 = vpop.f32.mrf.mxu0
      %824 = vmatprep.mubr.bf16.mxu0 0
      %825 = vmatmul.mubr.bf16.gmra.mxu0 %v687
      %v826 = vpop.f32.mrf.mxu0
      %v827 = vadd.f32 0.0, %v826
      %v828 = vpop.f32.mrf.mxu0
      %v829 = vpop.f32.mrf.mxu0
      %v830 = vadd.f32 0.0, %v829
      %v831 = vpop.f32.mrf.mxu0
      %832 = vmatprep.mubr.bf16.mxu0 0
      %833 = vmatmul.mubr.bf16.gmra.mxu0 %v690
      %v834 = vpop.f32.mrf.mxu0
      %v835 = vadd.f32 0.0, %v834
      %v836 = vpop.f32.mrf.mxu0
      %v837 = vpop.f32.mrf.mxu0
      %v838 = vadd.f32 0.0, %v837
      %v839 = vpop.f32.mrf.mxu0
      %840 = vdwg.mxu0
      %v869 = vunpack.c.l.b16 %v223
      %v870 = vunpack.c.l.b16 %v224
      %v871 = vunpack.c.l.b16 %v225
      %v872 = vunpack.c.l.b16 %v226
      %v873 = vunpack.c.l.b16 %v227
      %v874 = vunpack.c.l.b16 %v228
      %v875 = vunpack.c.l.b16 %v229
      %v876 = vunpack.c.l.b16 %v230
      %v877 = vunpack.c.l.b16 %v231
      %v878 = vunpack.c.l.b16 %v232
      %v879 = vunpack.c.l.b16 %v233
      %v880 = vunpack.c.l.b16 %v234
      %v881 = vunpack.c.l.b16 %v235
      %v882 = vunpack.c.l.b16 %v236
      %v883 = vunpack.c.l.b16 %v237
      %v884 = vunpack.c.l.b16 %v238
      %v885 = vunpack.c.l.b16 %v239
      %v886 = vunpack.c.l.b16 %v240
      %v887 = vunpack.c.l.b16 %v241
      %v888 = vunpack.c.l.b16 %v242
      %v889 = vunpack.c.l.b16 %v243
      %v890 = vunpack.c.l.b16 %v244
      %v891 = vunpack.c.l.b16 %v245
      %v892 = vunpack.c.l.b16 %v246
      %v893 = vunpack.c.l.b16 %v247
      %v894 = vunpack.c.l.b16 %v248
      %v895 = vunpack.c.l.b16 %v249
      %v896 = vunpack.c.l.b16 %v250
      %v897 = vpack.c.b16 %v870, %v869
      %v898 = vpack.c.b16 %v872, %v871
      %v899 = vpack.c.b16 %v874, %v873
      %v900 = vpack.c.b16 %v876, %v875
      %v901 = vpack.c.b16 %v878, %v877
      %v902 = vpack.c.b16 %v880, %v879
      %v903 = vpack.c.b16 %v882, %v881
      %v904 = vpack.c.b16 %v884, %v883
      %v905 = vpack.c.b16 %v886, %v885
      %v906 = vpack.c.b16 %v888, %v887
      %v907 = vpack.c.b16 %v890, %v889
      %v908 = vpack.c.b16 %v892, %v891
      %v909 = vpack.c.b16 %v894, %v893
      %v910 = vpack.c.b16 %v896, %v895
      %v912 = vsel %vm649, %v897, 0
      %v915 = vsel %vm649, %v898, 0
      %v918 = vsel %vm649, %v899, 0
      %v921 = vsel %vm649, %v900, 0
      %v924 = vsel %vm649, %v901, 0
      %v927 = vsel %vm649, %v902, 0
      %v930 = vsel %vm649, %v903, 0
      %v933 = vsel %vm649, %v904, 0
      %v936 = vsel %vm649, %v905, 0
      %v939 = vsel %vm649, %v906, 0
      %v942 = vsel %vm649, %v907, 0
      %v945 = vsel %vm649, %v908, 0
      %v948 = vsel %vm649, %v909, 0
      %v951 = vsel %vm649, %v910, 0
      %v954 = vsel %vm692, %v251, 0
      %956 = vmatprep.subr.bf16.mxu0 0
      %957 = vmatpush1.bf16.msra.mxu0 0
      %958 = vmatprep.subr.bf16.mxu0 0
      %959 = vmatpush1.bf16.msra.mxu0 0
      %960 = vmatprep.subr.bf16.mxu0 0
      %961 = vmatpush1.bf16.msra.mxu0 0
      %962 = vmatprep.subr.bf16.mxu0 0
      %963 = vmatpush1.bf16.msra.mxu0 0
      %964 = vmatprep.subr.bf16.mxu0 0
      %965 = vmatpush1.bf16.msra.mxu0 0
      %966 = vmatprep.subr.bf16.mxu0 0
      %967 = vmatpush1.bf16.msra.mxu0 0
      %968 = vmatprep.subr.bf16.mxu0 0
      %969 = vmatpush1.bf16.msra.mxu0 0
      %970 = vmatprep.subr.bf16.mxu0 0
      %971 = vmatpush1.bf16.msra.mxu0 %v954
      %972 = vmatprep.subr.bf16.mxu0 0
      %973 = vmatpush2.bf16.msra.mxu0 0
      %974 = vmatprep.subr.bf16.mxu0 0
      %975 = vmatpush2.bf16.msra.mxu0 0
      %976 = vmatprep.subr.bf16.mxu0 0
      %977 = vmatpush2.bf16.msra.mxu0 0
      %978 = vmatprep.subr.bf16.mxu0 0
      %979 = vmatpush2.bf16.msra.mxu0 0
      %980 = vmatprep.subr.bf16.mxu0 0
      %981 = vmatpush2.bf16.msra.mxu0 0
      %982 = vmatprep.subr.bf16.mxu0 0
      %983 = vmatpush2.bf16.msra.mxu0 0
      %984 = vmatprep.subr.bf16.mxu0 0
      %985 = vmatpush2.bf16.msra.mxu0 0
      %986 = vmatprep.subr.bf16.mxu0 0
      %987 = vmatpush2.bf16.msra.mxu0 0
      %988 = vmatprep.mubr.bf16.mxu0 0
      %989 = vmatmul.mubr.bf16.gmra.mxu0 %v912
      %v990 = vpop.f32.mrf.mxu0
      %v991 = vadd.f32 %v731, %v990
      %v992 = vpop.f32.mrf.mxu0
      %v993 = vpop.f32.mrf.mxu0
      %v994 = vadd.f32 %v734, %v993
      %v995 = vpop.f32.mrf.mxu0
      %996 = vmatprep.mubr.bf16.mxu0 0
      %997 = vmatmul.mubr.bf16.gmra.mxu0 %v915
      %v998 = vpop.f32.mrf.mxu0
      %v999 = vadd.f32 %v739, %v998
      %v1000 = vpop.f32.mrf.mxu0
      %v1001 = vpop.f32.mrf.mxu0
      %v1002 = vadd.f32 %v742, %v1001
      %v1003 = vpop.f32.mrf.mxu0
      %1004 = vmatprep.mubr.bf16.mxu0 0
      %1005 = vmatmul.mubr.bf16.gmra.mxu0 %v918
      %v1006 = vpop.f32.mrf.mxu0
      %v1007 = vadd.f32 %v747, %v1006
      %v1008 = vpop.f32.mrf.mxu0
      %v1009 = vpop.f32.mrf.mxu0
      %v1010 = vadd.f32 %v750, %v1009
      %v1011 = vpop.f32.mrf.mxu0
      %1012 = vmatprep.mubr.bf16.mxu0 0
      %1013 = vmatmul.mubr.bf16.gmra.mxu0 %v921
      %v1014 = vpop.f32.mrf.mxu0
      %v1015 = vadd.f32 %v755, %v1014
      %v1016 = vpop.f32.mrf.mxu0
      %v1017 = vpop.f32.mrf.mxu0
      %v1018 = vadd.f32 %v758, %v1017
      %v1019 = vpop.f32.mrf.mxu0
      %1020 = vmatprep.mubr.bf16.mxu0 0
      %1021 = vmatmul.mubr.bf16.gmra.mxu0 %v924
      %v1022 = vpop.f32.mrf.mxu0
      %v1023 = vadd.f32 %v763, %v1022
      %v1024 = vpop.f32.mrf.mxu0
      %v1025 = vpop.f32.mrf.mxu0
      %v1026 = vadd.f32 %v766, %v1025
      %v1027 = vpop.f32.mrf.mxu0
      %1028 = vmatprep.mubr.bf16.mxu0 0
      %1029 = vmatmul.mubr.bf16.gmra.mxu0 %v927
      %v1030 = vpop.f32.mrf.mxu0
      %v1031 = vadd.f32 %v771, %v1030
      %v1032 = vpop.f32.mrf.mxu0
      %v1033 = vpop.f32.mrf.mxu0
      %v1034 = vadd.f32 %v774, %v1033
      %v1035 = vpop.f32.mrf.mxu0
      %1036 = vmatprep.mubr.bf16.mxu0 0
      %1037 = vmatmul.mubr.bf16.gmra.mxu0 %v930
      %v1038 = vpop.f32.mrf.mxu0
      %v1039 = vadd.f32 %v779, %v1038
      %v1040 = vpop.f32.mrf.mxu0
      %v1041 = vpop.f32.mrf.mxu0
      %v1042 = vadd.f32 %v782, %v1041
      %v1043 = vpop.f32.mrf.mxu0
      %1044 = vmatprep.mubr.bf16.mxu0 0
      %1045 = vmatmul.mubr.bf16.gmra.mxu0 %v933
      %v1046 = vpop.f32.mrf.mxu0
      %v1047 = vadd.f32 %v787, %v1046
      %v1048 = vpop.f32.mrf.mxu0
      %v1049 = vpop.f32.mrf.mxu0
      %v1050 = vadd.f32 %v790, %v1049
      %v1051 = vpop.f32.mrf.mxu0
      %1052 = vmatprep.mubr.bf16.mxu0 0
      %1053 = vmatmul.mubr.bf16.gmra.mxu0 %v936
      %v1054 = vpop.f32.mrf.mxu0
      %v1055 = vadd.f32 %v795, %v1054
      %v1056 = vpop.f32.mrf.mxu0
      %v1057 = vpop.f32.mrf.mxu0
      %v1058 = vadd.f32 %v798, %v1057
      %v1059 = vpop.f32.mrf.mxu0
      %1060 = vmatprep.mubr.bf16.mxu0 0
      %1061 = vmatmul.mubr.bf16.gmra.mxu0 %v939
      %v1062 = vpop.f32.mrf.mxu0
      %v1063 = vadd.f32 %v803, %v1062
      %v1064 = vpop.f32.mrf.mxu0
      %v1065 = vpop.f32.mrf.mxu0
      %v1066 = vadd.f32 %v806, %v1065
      %v1067 = vpop.f32.mrf.mxu0
      %1068 = vmatprep.mubr.bf16.mxu0 0
      %1069 = vmatmul.mubr.bf16.gmra.mxu0 %v942
      %v1070 = vpop.f32.mrf.mxu0
      %v1071 = vadd.f32 %v811, %v1070
      %v1072 = vpop.f32.mrf.mxu0
      %v1073 = vpop.f32.mrf.mxu0
      %v1074 = vadd.f32 %v814, %v1073
      %v1075 = vpop.f32.mrf.mxu0
      %1076 = vmatprep.mubr.bf16.mxu0 0
      %1077 = vmatmul.mubr.bf16.gmra.mxu0 %v945
      %v1078 = vpop.f32.mrf.mxu0
      %v1079 = vadd.f32 %v819, %v1078
      %v1080 = vpop.f32.mrf.mxu0
      %v1081 = vpop.f32.mrf.mxu0
      %v1082 = vadd.f32 %v822, %v1081
      %v1083 = vpop.f32.mrf.mxu0
      %1084 = vmatprep.mubr.bf16.mxu0 0
      %1085 = vmatmul.mubr.bf16.gmra.mxu0 %v948
      %v1086 = vpop.f32.mrf.mxu0
      %v1087 = vadd.f32 %v827, %v1086
      %v1088 = vpop.f32.mrf.mxu0
      %v1089 = vpop.f32.mrf.mxu0
      %v1090 = vadd.f32 %v830, %v1089
      %v1091 = vpop.f32.mrf.mxu0
      %1092 = vmatprep.mubr.bf16.mxu0 0
      %1093 = vmatmul.mubr.bf16.gmra.mxu0 %v951
      %v1094 = vpop.f32.mrf.mxu0
      %v1095 = vadd.f32 %v835, %v1094
      %v1096 = vpop.f32.mrf.mxu0
      %v1097 = vpop.f32.mrf.mxu0
      %v1098 = vadd.f32 %v838, %v1097
      %v1099 = vpop.f32.mrf.mxu0
      %1100 = vdwg.mxu0
      %v1101 = vld [vmem:[%s206] sm:$0xe]
      %v1102 = vld [vmem:[%s206 + $0xc] sm:$0xe]
      %v1103 = vld [vmem:[%s206 + $0x18] sm:$0xe]
      %v1104 = vld [vmem:[%s206 + $0x24] sm:$0xe]
      %v1105 = vld [vmem:[%s206 + $0x30] sm:$0xe]
      %v1106 = vld [vmem:[%s206 + $0x3c] sm:$0xe]
      %v1107 = vld [vmem:[%s206 + $0x48] sm:$0xe]
      %v1108 = vld [vmem:[%s206 + $0x54] sm:$0xe]
      %v1109 = vld [vmem:[%s206 + $0x60] sm:$0xe]
      %v1110 = vld [vmem:[%s206 + $0x6c] sm:$0xe]
      %v1111 = vld [vmem:[%s206 + $0x78] sm:$0xe]
      %v1112 = vld [vmem:[%s206 + $0x84] sm:$0xe]
      %v1113 = vld [vmem:[%s206 + $0x90] sm:$0xe]
      %v1114 = vld [vmem:[%s206 + $0x9c] sm:$0xe]
      %vm1143 = vcmask 1042432
      %vm1144 = vcmask 1046532
      %vm1145 = vmor %vm1143, %vm1144
      %v1146 = vrot.slane %v1101, 5
      %v1147 = vrot.slane %v1146, 4
      %v1148 = vrot.slane %v224, 5
      %v1149 = vsel %vm1145, %v1147, %v1148
      %v1150 = vrot.slane %v1148, 4
      %v1151 = vrot.slane %v252, 5
      %v1152 = vsel %vm1145, %v1150, %v1151
      %v1153 = vrot.slane %v1102, 5
      %v1154 = vrot.slane %v1153, 4
      %v1155 = vrot.slane %v226, 5
      %v1156 = vsel %vm1145, %v1154, %v1155
      %v1157 = vrot.slane %v1155, 4
      %v1158 = vrot.slane %v253, 5
      %v1159 = vsel %vm1145, %v1157, %v1158
      %v1160 = vrot.slane %v1103, 5
      %v1161 = vrot.slane %v1160, 4
      %v1162 = vrot.slane %v228, 5
      %v1163 = vsel %vm1145, %v1161, %v1162
      %v1164 = vrot.slane %v1162, 4
      %v1165 = vrot.slane %v254, 5
      %v1166 = vsel %vm1145, %v1164, %v1165
      %v1167 = vrot.slane %v1104, 5
      %v1168 = vrot.slane %v1167, 4
      %v1169 = vrot.slane %v230, 5
      %v1170 = vsel %vm1145, %v1168, %v1169
      %v1171 = vrot.slane %v1169, 4
      %v1172 = vrot.slane %v255, 5
      %v1173 = vsel %vm1145, %v1171, %v1172
      %v1174 = vrot.slane %v1105, 5
      %v1175 = vrot.slane %v1174, 4
      %v1176 = vrot.slane %v232, 5
      %v1177 = vsel %vm1145, %v1175, %v1176
      %v1178 = vrot.slane %v1176, 4
      %v1179 = vrot.slane %v256, 5
      %v1180 = vsel %vm1145, %v1178, %v1179
      %v1181 = vrot.slane %v1106, 5
      %v1182 = vrot.slane %v1181, 4
      %v1183 = vrot.slane %v234, 5
      %v1184 = vsel %vm1145, %v1182, %v1183
      %v1185 = vrot.slane %v1183, 4
      %v1186 = vrot.slane %v257, 5
      %v1187 = vsel %vm1145, %v1185, %v1186
      %v1188 = vrot.slane %v1107, 5
      %v1189 = vrot.slane %v1188, 4
      %v1190 = vrot.slane %v236, 5
      %v1191 = vsel %vm1145, %v1189, %v1190
      %v1192 = vrot.slane %v1190, 4
      %v1193 = vrot.slane %v258, 5
      %v1194 = vsel %vm1145, %v1192, %v1193
      %v1195 = vrot.slane %v1108, 5
      %v1196 = vrot.slane %v1195, 4
      %v1197 = vrot.slane %v238, 5
      %v1198 = vsel %vm1145, %v1196, %v1197
      %v1199 = vrot.slane %v1197, 4
      %v1200 = vrot.slane %v259, 5
      %v1201 = vsel %vm1145, %v1199, %v1200
      %v1202 = vrot.slane %v1109, 5
      %v1203 = vrot.slane %v1202, 4
      %v1204 = vrot.slane %v240, 5
      %v1205 = vsel %vm1145, %v1203, %v1204
      %v1206 = vrot.slane %v1204, 4
      %v1207 = vrot.slane %v260, 5
      %v1208 = vsel %vm1145, %v1206, %v1207
      %v1209 = vrot.slane %v1110, 5
      %v1210 = vrot.slane %v1209, 4
      %v1211 = vrot.slane %v242, 5
      %v1212 = vsel %vm1145, %v1210, %v1211
      %v1213 = vrot.slane %v1211, 4
      %v1214 = vrot.slane %v261, 5
      %v1215 = vsel %vm1145, %v1213, %v1214
      %v1216 = vrot.slane %v1111, 5
      %v1217 = vrot.slane %v1216, 4
      %v1218 = vrot.slane %v244, 5
      %v1219 = vsel %vm1145, %v1217, %v1218
      %v1220 = vrot.slane %v1218, 4
      %v1221 = vrot.slane %v262, 5
      %v1222 = vsel %vm1145, %v1220, %v1221
      %v1223 = vrot.slane %v1112, 5
      %v1224 = vrot.slane %v1223, 4
      %v1225 = vrot.slane %v246, 5
      %v1226 = vsel %vm1145, %v1224, %v1225
      %v1227 = vrot.slane %v1225, 4
      %v1228 = vrot.slane %v263, 5
      %v1229 = vsel %vm1145, %v1227, %v1228
      %v1230 = vrot.slane %v1113, 5
      %v1231 = vrot.slane %v1230, 4
      %v1232 = vrot.slane %v248, 5
      %v1233 = vsel %vm1145, %v1231, %v1232
      %v1234 = vrot.slane %v1232, 4
      %v1235 = vrot.slane %v264, 5
      %v1236 = vsel %vm1145, %v1234, %v1235
      %v1237 = vrot.slane %v1114, 5
      %v1238 = vrot.slane %v1237, 4
      %v1239 = vrot.slane %v250, 5
      %v1240 = vsel %vm1145, %v1238, %v1239
      %v1241 = vrot.slane %v1239, 4
      %v1242 = vrot.slane %v265, 5
      %v1243 = vsel %vm1145, %v1241, %v1242
      %s1244 = scalar_lea.vmem %s210, 4
      %v1245 = vld [vmem:[%s1244] sm:$0x3]
      %v1246 = vunpack.c.l.b16 %v1149
      %v1247 = vunpack.c.l.b16 %v1152
      %v1248 = vunpack.c.l.b16 %v1156
      %v1249 = vunpack.c.l.b16 %v1159
      %v1250 = vunpack.c.l.b16 %v1163
      %v1251 = vunpack.c.l.b16 %v1166
      %v1252 = vunpack.c.l.b16 %v1170
      %v1253 = vunpack.c.l.b16 %v1173
      %v1254 = vunpack.c.l.b16 %v1177
      %v1255 = vunpack.c.l.b16 %v1180
      %v1256 = vunpack.c.l.b16 %v1184
      %v1257 = vunpack.c.l.b16 %v1187
      %v1258 = vunpack.c.l.b16 %v1191
      %v1259 = vunpack.c.l.b16 %v1194
      %v1260 = vunpack.c.l.b16 %v1198
      %v1261 = vunpack.c.l.b16 %v1201
      %v1262 = vunpack.c.l.b16 %v1205
      %v1263 = vunpack.c.l.b16 %v1208
      %v1264 = vunpack.c.l.b16 %v1212
      %v1265 = vunpack.c.l.b16 %v1215
      %v1266 = vunpack.c.l.b16 %v1219
      %v1267 = vunpack.c.l.b16 %v1222
      %v1268 = vunpack.c.l.b16 %v1226
      %v1269 = vunpack.c.l.b16 %v1229
      %v1270 = vunpack.c.l.b16 %v1233
      %v1271 = vunpack.c.l.b16 %v1236
      %v1272 = vunpack.c.l.b16 %v1240
      %v1273 = vunpack.c.l.b16 %v1243
      %v1274 = vpack.c.b16 %v1247, %v1246
      %v1275 = vpack.c.b16 %v1249, %v1248
      %v1276 = vpack.c.b16 %v1251, %v1250
      %v1277 = vpack.c.b16 %v1253, %v1252
      %v1278 = vpack.c.b16 %v1255, %v1254
      %v1279 = vpack.c.b16 %v1257, %v1256
      %v1280 = vpack.c.b16 %v1259, %v1258
      %v1281 = vpack.c.b16 %v1261, %v1260
      %v1282 = vpack.c.b16 %v1263, %v1262
      %v1283 = vpack.c.b16 %v1265, %v1264
      %v1284 = vpack.c.b16 %v1267, %v1266
      %v1285 = vpack.c.b16 %v1269, %v1268
      %v1286 = vpack.c.b16 %v1271, %v1270
      %v1287 = vpack.c.b16 %v1273, %v1272
      %v1289 = vsel %vm649, %v1274, 0
      %v1292 = vsel %vm649, %v1275, 0
      %v1295 = vsel %vm649, %v1276, 0
      %v1298 = vsel %vm649, %v1277, 0
      %v1301 = vsel %vm649, %v1278, 0
      %v1304 = vsel %vm649, %v1279, 0
      %v1307 = vsel %vm649, %v1280, 0
      %v1310 = vsel %vm649, %v1281, 0
      %v1313 = vsel %vm649, %v1282, 0
      %v1316 = vsel %vm649, %v1283, 0
      %v1319 = vsel %vm649, %v1284, 0
      %v1322 = vsel %vm649, %v1285, 0
      %v1325 = vsel %vm649, %v1286, 0
      %v1328 = vsel %vm649, %v1287, 0
      %v1331 = vsel %vm692, %v1245, 0
      %1333 = vmatprep.subr.bf16.mxu0 0
      %1334 = vmatpush1.bf16.msra.mxu0 0
      %1335 = vmatprep.subr.bf16.mxu0 0
      %1336 = vmatpush1.bf16.msra.mxu0 0
      %1337 = vmatprep.subr.bf16.mxu0 0
      %1338 = vmatpush1.bf16.msra.mxu0 0
      %1339 = vmatprep.subr.bf16.mxu0 0
      %1340 = vmatpush1.bf16.msra.mxu0 0
      %1341 = vmatprep.subr.bf16.mxu0 0
      %1342 = vmatpush1.bf16.msra.mxu0 0
      %1343 = vmatprep.subr.bf16.mxu0 0
      %1344 = vmatpush1.bf16.msra.mxu0 0
      %1345 = vmatprep.subr.bf16.mxu0 0
      %1346 = vmatpush1.bf16.msra.mxu0 0
      %1347 = vmatprep.subr.bf16.mxu0 0
      %1348 = vmatpush1.bf16.msra.mxu0 %v1331
      %1349 = vmatprep.subr.bf16.mxu0 0
      %1350 = vmatpush2.bf16.msra.mxu0 0
      %1351 = vmatprep.subr.bf16.mxu0 0
      %1352 = vmatpush2.bf16.msra.mxu0 0
      %1353 = vmatprep.subr.bf16.mxu0 0
      %1354 = vmatpush2.bf16.msra.mxu0 0
      %1355 = vmatprep.subr.bf16.mxu0 0
      %1356 = vmatpush2.bf16.msra.mxu0 0
      %1357 = vmatprep.subr.bf16.mxu0 0
      %1358 = vmatpush2.bf16.msra.mxu0 0
      %1359 = vmatprep.subr.bf16.mxu0 0
      %1360 = vmatpush2.bf16.msra.mxu0 0
      %1361 = vmatprep.subr.bf16.mxu0 0
      %1362 = vmatpush2.bf16.msra.mxu0 0
      %1363 = vmatprep.subr.bf16.mxu0 0
      %1364 = vmatpush2.bf16.msra.mxu0 0
      %1365 = vmatprep.mubr.bf16.mxu0 0
      %1366 = vmatmul.mubr.bf16.gmra.mxu0 %v1289
      %v1367 = vpop.f32.mrf.mxu0
      %v1368 = vadd.f32 0.0, %v1367
      %v1369 = vpop.f32.mrf.mxu0
      %v1370 = vpop.f32.mrf.mxu0
      %v1371 = vadd.f32 0.0, %v1370
      %v1372 = vpop.f32.mrf.mxu0
      %1373 = vmatprep.mubr.bf16.mxu0 0
      %1374 = vmatmul.mubr.bf16.gmra.mxu0 %v1292
      %v1375 = vpop.f32.mrf.mxu0
      %v1376 = vadd.f32 0.0, %v1375
      %v1377 = vpop.f32.mrf.mxu0
      %v1378 = vpop.f32.mrf.mxu0
      %v1379 = vadd.f32 0.0, %v1378
      %v1380 = vpop.f32.mrf.mxu0
      %1381 = vmatprep.mubr.bf16.mxu0 0
      %1382 = vmatmul.mubr.bf16.gmra.mxu0 %v1295
      %v1383 = vpop.f32.mrf.mxu0
      %v1384 = vadd.f32 0.0, %v1383
      %v1385 = vpop.f32.mrf.mxu0
      %v1386 = vpop.f32.mrf.mxu0
      %v1387 = vadd.f32 0.0, %v1386
      %v1388 = vpop.f32.mrf.mxu0
      %1389 = vmatprep.mubr.bf16.mxu0 0
      %1390 = vmatmul.mubr.bf16.gmra.mxu0 %v1298
      %v1391 = vpop.f32.mrf.mxu0
      %v1392 = vadd.f32 0.0, %v1391
      %v1393 = vpop.f32.mrf.mxu0
      %v1394 = vpop.f32.mrf.mxu0
      %v1395 = vadd.f32 0.0, %v1394
      %v1396 = vpop.f32.mrf.mxu0
      %1397 = vmatprep.mubr.bf16.mxu0 0
      %1398 = vmatmul.mubr.bf16.gmra.mxu0 %v1301
      %v1399 = vpop.f32.mrf.mxu0
      %v1400 = vadd.f32 0.0, %v1399
      %v1401 = vpop.f32.mrf.mxu0
      %v1402 = vpop.f32.mrf.mxu0
      %v1403 = vadd.f32 0.0, %v1402
      %v1404 = vpop.f32.mrf.mxu0
      %1405 = vmatprep.mubr.bf16.mxu0 0
      %1406 = vmatmul.mubr.bf16.gmra.mxu0 %v1304
      %v1407 = vpop.f32.mrf.mxu0
      %v1408 = vadd.f32 0.0, %v1407
      %v1409 = vpop.f32.mrf.mxu0
      %v1410 = vpop.f32.mrf.mxu0
      %v1411 = vadd.f32 0.0, %v1410
      %v1412 = vpop.f32.mrf.mxu0
      %1413 = vmatprep.mubr.bf16.mxu0 0
      %1414 = vmatmul.mubr.bf16.gmra.mxu0 %v1307
      %v1415 = vpop.f32.mrf.mxu0
      %v1416 = vadd.f32 0.0, %v1415
      %v1417 = vpop.f32.mrf.mxu0
      %v1418 = vpop.f32.mrf.mxu0
      %v1419 = vadd.f32 0.0, %v1418
      %v1420 = vpop.f32.mrf.mxu0
      %1421 = vmatprep.mubr.bf16.mxu0 0
      %1422 = vmatmul.mubr.bf16.gmra.mxu0 %v1310
      %v1423 = vpop.f32.mrf.mxu0
      %v1424 = vadd.f32 0.0, %v1423
      %v1425 = vpop.f32.mrf.mxu0
      %v1426 = vpop.f32.mrf.mxu0
      %v1427 = vadd.f32 0.0, %v1426
      %v1428 = vpop.f32.mrf.mxu0
      %1429 = vmatprep.mubr.bf16.mxu0 0
      %1430 = vmatmul.mubr.bf16.gmra.mxu0 %v1313
      %v1431 = vpop.f32.mrf.mxu0
      %v1432 = vadd.f32 0.0, %v1431
      %v1433 = vpop.f32.mrf.mxu0
      %v1434 = vpop.f32.mrf.mxu0
      %v1435 = vadd.f32 0.0, %v1434
      %v1436 = vpop.f32.mrf.mxu0
      %1437 = vmatprep.mubr.bf16.mxu0 0
      %1438 = vmatmul.mubr.bf16.gmra.mxu0 %v1316
      %v1439 = vpop.f32.mrf.mxu0
      %v1440 = vadd.f32 0.0, %v1439
      %v1441 = vpop.f32.mrf.mxu0
      %v1442 = vpop.f32.mrf.mxu0
      %v1443 = vadd.f32 0.0, %v1442
      %v1444 = vpop.f32.mrf.mxu0
      %1445 = vmatprep.mubr.bf16.mxu0 0
      %1446 = vmatmul.mubr.bf16.gmra.mxu0 %v1319
      %v1447 = vpop.f32.mrf.mxu0
      %v1448 = vadd.f32 0.0, %v1447
      %v1449 = vpop.f32.mrf.mxu0
      %v1450 = vpop.f32.mrf.mxu0
      %v1451 = vadd.f32 0.0, %v1450
      %v1452 = vpop.f32.mrf.mxu0
      %1453 = vmatprep.mubr.bf16.mxu0 0
      %1454 = vmatmul.mubr.bf16.gmra.mxu0 %v1322
      %v1455 = vpop.f32.mrf.mxu0
      %v1456 = vadd.f32 0.0, %v1455
      %v1457 = vpop.f32.mrf.mxu0
      %v1458 = vpop.f32.mrf.mxu0
      %v1459 = vadd.f32 0.0, %v1458
      %v1460 = vpop.f32.mrf.mxu0
      %1461 = vmatprep.mubr.bf16.mxu0 0
      %1462 = vmatmul.mubr.bf16.gmra.mxu0 %v1325
      %v1463 = vpop.f32.mrf.mxu0
      %v1464 = vadd.f32 0.0, %v1463
      %v1465 = vpop.f32.mrf.mxu0
      %v1466 = vpop.f32.mrf.mxu0
      %v1467 = vadd.f32 0.0, %v1466
      %v1468 = vpop.f32.mrf.mxu0
      %1469 = vmatprep.mubr.bf16.mxu0 0
      %1470 = vmatmul.mubr.bf16.gmra.mxu0 %v1328
      %v1471 = vpop.f32.mrf.mxu0
      %v1472 = vadd.f32 0.0, %v1471
      %v1473 = vpop.f32.mrf.mxu0
      %v1474 = vpop.f32.mrf.mxu0
      %v1475 = vadd.f32 0.0, %v1474
      %v1476 = vpop.f32.mrf.mxu0
      %1477 = vdwg.mxu0
      %v1478 = vadd.f32 %v991, %v1368
      %v1479 = vadd.f32 %v994, %v1371
      %v1480 = vadd.f32 %v999, %v1376
      %v1481 = vadd.f32 %v1002, %v1379
      %v1482 = vadd.f32 %v1007, %v1384
      %v1483 = vadd.f32 %v1010, %v1387
      %v1484 = vadd.f32 %v1015, %v1392
      %v1485 = vadd.f32 %v1018, %v1395
      %v1486 = vadd.f32 %v1023, %v1400
      %v1487 = vadd.f32 %v1026, %v1403
      %v1488 = vadd.f32 %v1031, %v1408
      %v1489 = vadd.f32 %v1034, %v1411
      %v1490 = vadd.f32 %v1039, %v1416
      %v1491 = vadd.f32 %v1042, %v1419
      %v1492 = vadd.f32 %v1047, %v1424
      %v1493 = vadd.f32 %v1050, %v1427
      %v1494 = vadd.f32 %v1055, %v1432
      %v1495 = vadd.f32 %v1058, %v1435
      %v1496 = vadd.f32 %v1063, %v1440
      %v1497 = vadd.f32 %v1066, %v1443
      %v1498 = vadd.f32 %v1071, %v1448
      %v1499 = vadd.f32 %v1074, %v1451
      %v1500 = vadd.f32 %v1079, %v1456
      %v1501 = vadd.f32 %v1082, %v1459
      %v1502 = vadd.f32 %v1087, %v1464
      %v1503 = vadd.f32 %v1090, %v1467
      %v1504 = vadd.f32 %v1095, %v1472
      %v1505 = vadd.f32 %v1098, %v1475
      %s1506 = scalar_lea.vmem %s206, 12
      %v1507 = vld [vmem:[%s1506] sm:$0xf]
      %v1508 = vld [vmem:[%s1506 + $0x4] sm:$0xf]
      %v1509 = vld [vmem:[%s1506 + $0xc] sm:$0xf]
      %v1510 = vld [vmem:[%s1506 + $0x10] sm:$0xf]
      %v1511 = vld [vmem:[%s1506 + $0x18] sm:$0xf]
      %v1512 = vld [vmem:[%s1506 + $0x1c] sm:$0xf]
      %v1513 = vld [vmem:[%s1506 + $0x24] sm:$0xf]
      %v1514 = vld [vmem:[%s1506 + $0x28] sm:$0xf]
      %v1515 = vld [vmem:[%s1506 + $0x30] sm:$0xf]
      %v1516 = vld [vmem:[%s1506 + $0x34] sm:$0xf]
      %v1517 = vld [vmem:[%s1506 + $0x3c] sm:$0xf]
      %v1518 = vld [vmem:[%s1506 + $0x40] sm:$0xf]
      %v1519 = vld [vmem:[%s1506 + $0x48] sm:$0xf]
      %v1520 = vld [vmem:[%s1506 + $0x4c] sm:$0xf]
      %v1521 = vld [vmem:[%s1506 + $0x54] sm:$0xf]
      %v1522 = vld [vmem:[%s1506 + $0x58] sm:$0xf]
      %v1523 = vld [vmem:[%s1506 + $0x60] sm:$0xf]
      %v1524 = vld [vmem:[%s1506 + $0x64] sm:$0xf]
      %v1525 = vld [vmem:[%s1506 + $0x6c] sm:$0xf]
      %v1526 = vld [vmem:[%s1506 + $0x70] sm:$0xf]
      %v1527 = vld [vmem:[%s1506 + $0x78] sm:$0xf]
      %v1528 = vld [vmem:[%s1506 + $0x7c] sm:$0xf]
      %v1529 = vld [vmem:[%s1506 + $0x84] sm:$0xf]
      %v1530 = vld [vmem:[%s1506 + $0x88] sm:$0xf]
      %v1531 = vld [vmem:[%s1506 + $0x90] sm:$0xf]
      %v1532 = vld [vmem:[%s1506 + $0x94] sm:$0xf]
      %v1533 = vld [vmem:[%s1506 + $0x9c] sm:$0xf]
      %v1534 = vld [vmem:[%s1506 + $0xa0] sm:$0xf]
      %s1535 = scalar_lea.vmem %s210, 6
      %v1536 = vld [vmem:[%s1535] sm:$0x3]
      %v1565 = vunpack.c.l.b16 %v1507
      %v1566 = vunpack.c.l.b16 %v1508
      %v1567 = vunpack.c.l.b16 %v1509
      %v1568 = vunpack.c.l.b16 %v1510
      %v1569 = vunpack.c.l.b16 %v1511
      %v1570 = vunpack.c.l.b16 %v1512
      %v1571 = vunpack.c.l.b16 %v1513
      %v1572 = vunpack.c.l.b16 %v1514
      %v1573 = vunpack.c.l.b16 %v1515
      %v1574 = vunpack.c.l.b16 %v1516
      %v1575 = vunpack.c.l.b16 %v1517
      %v1576 = vunpack.c.l.b16 %v1518
      %v1577 = vunpack.c.l.b16 %v1519
      %v1578 = vunpack.c.l.b16 %v1520
      %v1579 = vunpack.c.l.b16 %v1521
      %v1580 = vunpack.c.l.b16 %v1522
      %v1581 = vunpack.c.l.b16 %v1523
      %v1582 = vunpack.c.l.b16 %v1524
      %v1583 = vunpack.c.l.b16 %v1525
      %v1584 = vunpack.c.l.b16 %v1526
      %v1585 = vunpack.c.l.b16 %v1527
      %v1586 = vunpack.c.l.b16 %v1528
      %v1587 = vunpack.c.l.b16 %v1529
      %v1588 = vunpack.c.l.b16 %v1530
      %v1589 = vunpack.c.l.b16 %v1531
      %v1590 = vunpack.c.l.b16 %v1532
      %v1591 = vunpack.c.l.b16 %v1533
      %v1592 = vunpack.c.l.b16 %v1534
      %v1593 = vpack.c.b16 %v1566, %v1565
      %v1594 = vpack.c.b16 %v1568, %v1567
      %v1595 = vpack.c.b16 %v1570, %v1569
      %v1596 = vpack.c.b16 %v1572, %v1571
      %v1597 = vpack.c.b16 %v1574, %v1573
      %v1598 = vpack.c.b16 %v1576, %v1575
      %v1599 = vpack.c.b16 %v1578, %v1577
      %v1600 = vpack.c.b16 %v1580, %v1579
      %v1601 = vpack.c.b16 %v1582, %v1581
      %v1602 = vpack.c.b16 %v1584, %v1583
      %v1603 = vpack.c.b16 %v1586, %v1585
      %v1604 = vpack.c.b16 %v1588, %v1587
      %v1605 = vpack.c.b16 %v1590, %v1589
      %v1606 = vpack.c.b16 %v1592, %v1591
      %v1608 = vsel %vm649, %v1593, 0
      %v1611 = vsel %vm649, %v1594, 0
      %v1614 = vsel %vm649, %v1595, 0
      %v1617 = vsel %vm649, %v1596, 0
      %v1620 = vsel %vm649, %v1597, 0
      %v1623 = vsel %vm649, %v1598, 0
      %v1626 = vsel %vm649, %v1599, 0
      %v1629 = vsel %vm649, %v1600, 0
      %v1632 = vsel %vm649, %v1601, 0
      %v1635 = vsel %vm649, %v1602, 0
      %v1638 = vsel %vm649, %v1603, 0
      %v1641 = vsel %vm649, %v1604, 0
      %v1644 = vsel %vm649, %v1605, 0
      %v1647 = vsel %vm649, %v1606, 0
      %v1650 = vsel %vm692, %v1536, 0
      %1652 = vmatprep.subr.bf16.mxu0 0
      %1653 = vmatpush1.bf16.msra.mxu0 0
      %1654 = vmatprep.subr.bf16.mxu0 0
      %1655 = vmatpush1.bf16.msra.mxu0 0
      %1656 = vmatprep.subr.bf16.mxu0 0
      %1657 = vmatpush1.bf16.msra.mxu0 0
      %1658 = vmatprep.subr.bf16.mxu0 0
      %1659 = vmatpush1.bf16.msra.mxu0 0
      %1660 = vmatprep.subr.bf16.mxu0 0
      %1661 = vmatpush1.bf16.msra.mxu0 0
      %1662 = vmatprep.subr.bf16.mxu0 0
      %1663 = vmatpush1.bf16.msra.mxu0 0
      %1664 = vmatprep.subr.bf16.mxu0 0
      %1665 = vmatpush1.bf16.msra.mxu0 0
      %1666 = vmatprep.subr.bf16.mxu0 0
      %1667 = vmatpush1.bf16.msra.mxu0 %v1650
      %1668 = vmatprep.subr.bf16.mxu0 0
      %1669 = vmatpush2.bf16.msra.mxu0 0
      %1670 = vmatprep.subr.bf16.mxu0 0
      %1671 = vmatpush2.bf16.msra.mxu0 0
      %1672 = vmatprep.subr.bf16.mxu0 0
      %1673 = vmatpush2.bf16.msra.mxu0 0
      %1674 = vmatprep.subr.bf16.mxu0 0
      %1675 = vmatpush2.bf16.msra.mxu0 0
      %1676 = vmatprep.subr.bf16.mxu0 0
      %1677 = vmatpush2.bf16.msra.mxu0 0
      %1678 = vmatprep.subr.bf16.mxu0 0
      %1679 = vmatpush2.bf16.msra.mxu0 0
      %1680 = vmatprep.subr.bf16.mxu0 0
      %1681 = vmatpush2.bf16.msra.mxu0 0
      %1682 = vmatprep.subr.bf16.mxu0 0
      %1683 = vmatpush2.bf16.msra.mxu0 0
      %1684 = vmatprep.mubr.bf16.mxu0 0
      %1685 = vmatmul.mubr.bf16.gmra.mxu0 %v1608
      %v1686 = vpop.f32.mrf.mxu0
      %v1687 = vadd.f32 0.0, %v1686
      %v1688 = vpop.f32.mrf.mxu0
      %v1689 = vpop.f32.mrf.mxu0
      %v1690 = vadd.f32 0.0, %v1689
      %v1691 = vpop.f32.mrf.mxu0
      %1692 = vmatprep.mubr.bf16.mxu0 0
      %1693 = vmatmul.mubr.bf16.gmra.mxu0 %v1611
      %v1694 = vpop.f32.mrf.mxu0
      %v1695 = vadd.f32 0.0, %v1694
      %v1696 = vpop.f32.mrf.mxu0
      %v1697 = vpop.f32.mrf.mxu0
      %v1698 = vadd.f32 0.0, %v1697
      %v1699 = vpop.f32.mrf.mxu0
      %1700 = vmatprep.mubr.bf16.mxu0 0
      %1701 = vmatmul.mubr.bf16.gmra.mxu0 %v1614
      %v1702 = vpop.f32.mrf.mxu0
      %v1703 = vadd.f32 0.0, %v1702
      %v1704 = vpop.f32.mrf.mxu0
      %v1705 = vpop.f32.mrf.mxu0
      %v1706 = vadd.f32 0.0, %v1705
      %v1707 = vpop.f32.mrf.mxu0
      %1708 = vmatprep.mubr.bf16.mxu0 0
      %1709 = vmatmul.mubr.bf16.gmra.mxu0 %v1617
      %v1710 = vpop.f32.mrf.mxu0
      %v1711 = vadd.f32 0.0, %v1710
      %v1712 = vpop.f32.mrf.mxu0
      %v1713 = vpop.f32.mrf.mxu0
      %v1714 = vadd.f32 0.0, %v1713
      %v1715 = vpop.f32.mrf.mxu0
      %1716 = vmatprep.mubr.bf16.mxu0 0
      %1717 = vmatmul.mubr.bf16.gmra.mxu0 %v1620
      %v1718 = vpop.f32.mrf.mxu0
      %v1719 = vadd.f32 0.0, %v1718
      %v1720 = vpop.f32.mrf.mxu0
      %v1721 = vpop.f32.mrf.mxu0
      %v1722 = vadd.f32 0.0, %v1721
      %v1723 = vpop.f32.mrf.mxu0
      %1724 = vmatprep.mubr.bf16.mxu0 0
      %1725 = vmatmul.mubr.bf16.gmra.mxu0 %v1623
      %v1726 = vpop.f32.mrf.mxu0
      %v1727 = vadd.f32 0.0, %v1726
      %v1728 = vpop.f32.mrf.mxu0
      %v1729 = vpop.f32.mrf.mxu0
      %v1730 = vadd.f32 0.0, %v1729
      %v1731 = vpop.f32.mrf.mxu0
      %1732 = vmatprep.mubr.bf16.mxu0 0
      %1733 = vmatmul.mubr.bf16.gmra.mxu0 %v1626
      %v1734 = vpop.f32.mrf.mxu0
      %v1735 = vadd.f32 0.0, %v1734
      %v1736 = vpop.f32.mrf.mxu0
      %v1737 = vpop.f32.mrf.mxu0
      %v1738 = vadd.f32 0.0, %v1737
      %v1739 = vpop.f32.mrf.mxu0
      %1740 = vmatprep.mubr.bf16.mxu0 0
      %1741 = vmatmul.mubr.bf16.gmra.mxu0 %v1629
      %v1742 = vpop.f32.mrf.mxu0
      %v1743 = vadd.f32 0.0, %v1742
      %v1744 = vpop.f32.mrf.mxu0
      %v1745 = vpop.f32.mrf.mxu0
      %v1746 = vadd.f32 0.0, %v1745
      %v1747 = vpop.f32.mrf.mxu0
      %1748 = vmatprep.mubr.bf16.mxu0 0
      %1749 = vmatmul.mubr.bf16.gmra.mxu0 %v1632
      %v1750 = vpop.f32.mrf.mxu0
      %v1751 = vadd.f32 0.0, %v1750
      %v1752 = vpop.f32.mrf.mxu0
      %v1753 = vpop.f32.mrf.mxu0
      %v1754 = vadd.f32 0.0, %v1753
      %v1755 = vpop.f32.mrf.mxu0
      %1756 = vmatprep.mubr.bf16.mxu0 0
      %1757 = vmatmul.mubr.bf16.gmra.mxu0 %v1635
      %v1758 = vpop.f32.mrf.mxu0
      %v1759 = vadd.f32 0.0, %v1758
      %v1760 = vpop.f32.mrf.mxu0
      %v1761 = vpop.f32.mrf.mxu0
      %v1762 = vadd.f32 0.0, %v1761
      %v1763 = vpop.f32.mrf.mxu0
      %1764 = vmatprep.mubr.bf16.mxu0 0
      %1765 = vmatmul.mubr.bf16.gmra.mxu0 %v1638
      %v1766 = vpop.f32.mrf.mxu0
      %v1767 = vadd.f32 0.0, %v1766
      %v1768 = vpop.f32.mrf.mxu0
      %v1769 = vpop.f32.mrf.mxu0
      %v1770 = vadd.f32 0.0, %v1769
      %v1771 = vpop.f32.mrf.mxu0
      %1772 = vmatprep.mubr.bf16.mxu0 0
      %1773 = vmatmul.mubr.bf16.gmra.mxu0 %v1641
      %v1774 = vpop.f32.mrf.mxu0
      %v1775 = vadd.f32 0.0, %v1774
      %v1776 = vpop.f32.mrf.mxu0
      %v1777 = vpop.f32.mrf.mxu0
      %v1778 = vadd.f32 0.0, %v1777
      %v1779 = vpop.f32.mrf.mxu0
      %1780 = vmatprep.mubr.bf16.mxu0 0
      %1781 = vmatmul.mubr.bf16.gmra.mxu0 %v1644
      %v1782 = vpop.f32.mrf.mxu0
      %v1783 = vadd.f32 0.0, %v1782
      %v1784 = vpop.f32.mrf.mxu0
      %v1785 = vpop.f32.mrf.mxu0
      %v1786 = vadd.f32 0.0, %v1785
      %v1787 = vpop.f32.mrf.mxu0
      %1788 = vmatprep.mubr.bf16.mxu0 0
      %1789 = vmatmul.mubr.bf16.gmra.mxu0 %v1647
      %v1790 = vpop.f32.mrf.mxu0
      %v1791 = vadd.f32 0.0, %v1790
      %v1792 = vpop.f32.mrf.mxu0
      %v1793 = vpop.f32.mrf.mxu0
      %v1794 = vadd.f32 0.0, %v1793
      %v1795 = vpop.f32.mrf.mxu0
      %1796 = vdwg.mxu0
      %v1797 = vadd.f32 %v1478, %v1687
      %v1798 = vadd.f32 %v1479, %v1690
      %v1799 = vadd.f32 %v1480, %v1695
      %v1800 = vadd.f32 %v1481, %v1698
      %v1801 = vadd.f32 %v1482, %v1703
      %v1802 = vadd.f32 %v1483, %v1706
      %v1803 = vadd.f32 %v1484, %v1711
      %v1804 = vadd.f32 %v1485, %v1714
      %v1805 = vadd.f32 %v1486, %v1719
      %v1806 = vadd.f32 %v1487, %v1722
      %v1807 = vadd.f32 %v1488, %v1727
      %v1808 = vadd.f32 %v1489, %v1730
      %v1809 = vadd.f32 %v1490, %v1735
      %v1810 = vadd.f32 %v1491, %v1738
      %v1811 = vadd.f32 %v1492, %v1743
      %v1812 = vadd.f32 %v1493, %v1746
      %v1813 = vadd.f32 %v1494, %v1751
      %v1814 = vadd.f32 %v1495, %v1754
      %v1815 = vadd.f32 %v1496, %v1759
      %v1816 = vadd.f32 %v1497, %v1762
      %v1817 = vadd.f32 %v1498, %v1767
      %v1818 = vadd.f32 %v1499, %v1770
      %v1819 = vadd.f32 %v1500, %v1775
      %v1820 = vadd.f32 %v1501, %v1778
      %v1821 = vadd.f32 %v1502, %v1783
      %v1822 = vadd.f32 %v1503, %v1786
      %v1823 = vadd.f32 %v1504, %v1791
      %v1824 = vadd.f32 %v1505, %v1794
      %v1825 = vld [vmem:[%s1506] sm:$0xf]
      %v1826 = vld [vmem:[%s1506 + $0x4] sm:$0xf]
      %v1827 = vld [vmem:[%s1506 + $0x8] sm:$0x1]
      %v1828 = vld [vmem:[%s1506 + $0xc] sm:$0xf]
      %v1829 = vld [vmem:[%s1506 + $0x10] sm:$0xf]
      %v1830 = vld [vmem:[%s1506 + $0x14] sm:$0x1]
      %v1831 = vld [vmem:[%s1506 + $0x18] sm:$0xf]
      %v1832 = vld [vmem:[%s1506 + $0x1c] sm:$0xf]
      %v1833 = vld [vmem:[%s1506 + $0x20] sm:$0x1]
      %v1834 = vld [vmem:[%s1506 + $0x24] sm:$0xf]
      %v1835 = vld [vmem:[%s1506 + $0x28] sm:$0xf]
      %v1836 = vld [vmem:[%s1506 + $0x2c] sm:$0x1]
      %v1837 = vld [vmem:[%s1506 + $0x30] sm:$0xf]
      %v1838 = vld [vmem:[%s1506 + $0x34] sm:$0xf]
      %v1839 = vld [vmem:[%s1506 + $0x38] sm:$0x1]
      %v1840 = vld [vmem:[%s1506 + $0x3c] sm:$0xf]
      %v1841 = vld [vmem:[%s1506 + $0x40] sm:$0xf]
      %v1842 = vld [vmem:[%s1506 + $0x44] sm:$0x1]
      %v1843 = vld [vmem:[%s1506 + $0x48] sm:$0xf]
      %v1844 = vld [vmem:[%s1506 + $0x4c] sm:$0xf]
      %v1845 = vld [vmem:[%s1506 + $0x50] sm:$0x1]
      %v1846 = vld [vmem:[%s1506 + $0x54] sm:$0xf]
      %v1847 = vld [vmem:[%s1506 + $0x58] sm:$0xf]
      %v1848 = vld [vmem:[%s1506 + $0x5c] sm:$0x1]
      %v1849 = vld [vmem:[%s1506 + $0x60] sm:$0xf]
      %v1850 = vld [vmem:[%s1506 + $0x64] sm:$0xf]
      %v1851 = vld [vmem:[%s1506 + $0x68] sm:$0x1]
      %v1852 = vld [vmem:[%s1506 + $0x6c] sm:$0xf]
      %v1853 = vld [vmem:[%s1506 + $0x70] sm:$0xf]
      %v1854 = vld [vmem:[%s1506 + $0x74] sm:$0x1]
      %v1855 = vld [vmem:[%s1506 + $0x78] sm:$0xf]
      %v1856 = vld [vmem:[%s1506 + $0x7c] sm:$0xf]
      %v1857 = vld [vmem:[%s1506 + $0x80] sm:$0x1]
      %v1858 = vld [vmem:[%s1506 + $0x84] sm:$0xf]
      %v1859 = vld [vmem:[%s1506 + $0x88] sm:$0xf]
      %v1860 = vld [vmem:[%s1506 + $0x8c] sm:$0x1]
      %v1861 = vld [vmem:[%s1506 + $0x90] sm:$0xf]
      %v1862 = vld [vmem:[%s1506 + $0x94] sm:$0xf]
      %v1863 = vld [vmem:[%s1506 + $0x98] sm:$0x1]
      %v1864 = vld [vmem:[%s1506 + $0x9c] sm:$0xf]
      %v1865 = vld [vmem:[%s1506 + $0xa0] sm:$0xf]
      %v1866 = vld [vmem:[%s1506 + $0xa4] sm:$0x1]
      %v1868 = vshrl.u32 %v1825, 16
      %v1870 = vrot.slane %v1868, 4
      %v1871 = vshll.u32 %v1825, 16
      %v1873 = vrot.slane %v1871, 5
      %v1874 = vor.u32 %v1870, %v1873
      %v1875 = vrot.slane %v1874, 4
      %v1877 = vshll.u32 %v1826, 16
      %v1879 = vrot.slane %v1877, 5
      %v1880 = vsel %vm268, %v1875, %v1879
      %v1881 = vshrl.u32 %v1826, 16
      %v1883 = vrot.slane %v1881, 4
      %v1884 = vor.u32 %v1883, %v1879
      %v1885 = vrot.slane %v1884, 4
      %v1887 = vshll.u32 %v1827, 16
      %v1889 = vrot.slane %v1887, 5
      %v1890 = vsel %vm268, %v1885, %v1889
      %v1892 = vshrl.u32 %v1828, 16
      %v1894 = vrot.slane %v1892, 4
      %v1895 = vshll.u32 %v1828, 16
      %v1897 = vrot.slane %v1895, 5
      %v1898 = vor.u32 %v1894, %v1897
      %v1899 = vrot.slane %v1898, 4
      %v1901 = vshll.u32 %v1829, 16
      %v1903 = vrot.slane %v1901, 5
      %v1904 = vsel %vm268, %v1899, %v1903
      %v1905 = vshrl.u32 %v1829, 16
      %v1907 = vrot.slane %v1905, 4
      %v1908 = vor.u32 %v1907, %v1903
      %v1909 = vrot.slane %v1908, 4
      %v1911 = vshll.u32 %v1830, 16
      %v1913 = vrot.slane %v1911, 5
      %v1914 = vsel %vm268, %v1909, %v1913
      %v1916 = vshrl.u32 %v1831, 16
      %v1918 = vrot.slane %v1916, 4
      %v1919 = vshll.u32 %v1831, 16
      %v1921 = vrot.slane %v1919, 5
      %v1922 = vor.u32 %v1918, %v1921
      %v1923 = vrot.slane %v1922, 4
      %v1925 = vshll.u32 %v1832, 16
      %v1927 = vrot.slane %v1925, 5
      %v1928 = vsel %vm268, %v1923, %v1927
      %v1929 = vshrl.u32 %v1832, 16
      %v1931 = vrot.slane %v1929, 4
      %v1932 = vor.u32 %v1931, %v1927
      %v1933 = vrot.slane %v1932, 4
      %v1935 = vshll.u32 %v1833, 16
      %v1937 = vrot.slane %v1935, 5
      %v1938 = vsel %vm268, %v1933, %v1937
      %v1940 = vshrl.u32 %v1834, 16
      %v1942 = vrot.slane %v1940, 4
      %v1943 = vshll.u32 %v1834, 16
      %v1945 = vrot.slane %v1943, 5
      %v1946 = vor.u32 %v1942, %v1945
      %v1947 = vrot.slane %v1946, 4
      %v1949 = vshll.u32 %v1835, 16
      %v1951 = vrot.slane %v1949, 5
      %v1952 = vsel %vm268, %v1947, %v1951
      %v1953 = vshrl.u32 %v1835, 16
      %v1955 = vrot.slane %v1953, 4
      %v1956 = vor.u32 %v1955, %v1951
      %v1957 = vrot.slane %v1956, 4
      %v1959 = vshll.u32 %v1836, 16
      %v1961 = vrot.slane %v1959, 5
      %v1962 = vsel %vm268, %v1957, %v1961
      %v1964 = vshrl.u32 %v1837, 16
      %v1966 = vrot.slane %v1964, 4
      %v1967 = vshll.u32 %v1837, 16
      %v1969 = vrot.slane %v1967, 5
      %v1970 = vor.u32 %v1966, %v1969
      %v1971 = vrot.slane %v1970, 4
      %v1973 = vshll.u32 %v1838, 16
      %v1975 = vrot.slane %v1973, 5
      %v1976 = vsel %vm268, %v1971, %v1975
      %v1977 = vshrl.u32 %v1838, 16
      %v1979 = vrot.slane %v1977, 4
      %v1980 = vor.u32 %v1979, %v1975
      %v1981 = vrot.slane %v1980, 4
      %v1983 = vshll.u32 %v1839, 16
      %v1985 = vrot.slane %v1983, 5
      %v1986 = vsel %vm268, %v1981, %v1985
      %v1988 = vshrl.u32 %v1840, 16
      %v1990 = vrot.slane %v1988, 4
      %v1991 = vshll.u32 %v1840, 16
      %v1993 = vrot.slane %v1991, 5
      %v1994 = vor.u32 %v1990, %v1993
      %v1995 = vrot.slane %v1994, 4
      %v1997 = vshll.u32 %v1841, 16
      %v1999 = vrot.slane %v1997, 5
      %v2000 = vsel %vm268, %v1995, %v1999
      %v2001 = vshrl.u32 %v1841, 16
      %v2003 = vrot.slane %v2001, 4
      %v2004 = vor.u32 %v2003, %v1999
      %v2005 = vrot.slane %v2004, 4
      %v2007 = vshll.u32 %v1842, 16
      %v2009 = vrot.slane %v2007, 5
      %v2010 = vsel %vm268, %v2005, %v2009
      %v2012 = vshrl.u32 %v1843, 16
      %v2014 = vrot.slane %v2012, 4
      %v2015 = vshll.u32 %v1843, 16
      %v2017 = vrot.slane %v2015, 5
      %v2018 = vor.u32 %v2014, %v2017
      %v2019 = vrot.slane %v2018, 4
      %v2021 = vshll.u32 %v1844, 16
      %v2023 = vrot.slane %v2021, 5
      %v2024 = vsel %vm268, %v2019, %v2023
      %v2025 = vshrl.u32 %v1844, 16
      %v2027 = vrot.slane %v2025, 4
      %v2028 = vor.u32 %v2027, %v2023
      %v2029 = vrot.slane %v2028, 4
      %v2031 = vshll.u32 %v1845, 16
      %v2033 = vrot.slane %v2031, 5
      %v2034 = vsel %vm268, %v2029, %v2033
      %v2036 = vshrl.u32 %v1846, 16
      %v2038 = vrot.slane %v2036, 4
      %v2039 = vshll.u32 %v1846, 16
      %v2041 = vrot.slane %v2039, 5
      %v2042 = vor.u32 %v2038, %v2041
      %v2043 = vrot.slane %v2042, 4
      %v2045 = vshll.u32 %v1847, 16
      %v2047 = vrot.slane %v2045, 5
      %v2048 = vsel %vm268, %v2043, %v2047
      %v2049 = vshrl.u32 %v1847, 16
      %v2051 = vrot.slane %v2049, 4
      %v2052 = vor.u32 %v2051, %v2047
      %v2053 = vrot.slane %v2052, 4
      %v2055 = vshll.u32 %v1848, 16
      %v2057 = vrot.slane %v2055, 5
      %v2058 = vsel %vm268, %v2053, %v2057
      %v2060 = vshrl.u32 %v1849, 16
      %v2062 = vrot.slane %v2060, 4
      %v2063 = vshll.u32 %v1849, 16
      %v2065 = vrot.slane %v2063, 5
      %v2066 = vor.u32 %v2062, %v2065
      %v2067 = vrot.slane %v2066, 4
      %v2069 = vshll.u32 %v1850, 16
      %v2071 = vrot.slane %v2069, 5
      %v2072 = vsel %vm268, %v2067, %v2071
      %v2073 = vshrl.u32 %v1850, 16
      %v2075 = vrot.slane %v2073, 4
      %v2076 = vor.u32 %v2075, %v2071
      %v2077 = vrot.slane %v2076, 4
      %v2079 = vshll.u32 %v1851, 16
      %v2081 = vrot.slane %v2079, 5
      %v2082 = vsel %vm268, %v2077, %v2081
      %v2084 = vshrl.u32 %v1852, 16
      %v2086 = vrot.slane %v2084, 4
      %v2087 = vshll.u32 %v1852, 16
      %v2089 = vrot.slane %v2087, 5
      %v2090 = vor.u32 %v2086, %v2089
      %v2091 = vrot.slane %v2090, 4
      %v2093 = vshll.u32 %v1853, 16
      %v2095 = vrot.slane %v2093, 5
      %v2096 = vsel %vm268, %v2091, %v2095
      %v2097 = vshrl.u32 %v1853, 16
      %v2099 = vrot.slane %v2097, 4
      %v2100 = vor.u32 %v2099, %v2095
      %v2101 = vrot.slane %v2100, 4
      %v2103 = vshll.u32 %v1854, 16
      %v2105 = vrot.slane %v2103, 5
      %v2106 = vsel %vm268, %v2101, %v2105
      %v2108 = vshrl.u32 %v1855, 16
      %v2110 = vrot.slane %v2108, 4
      %v2111 = vshll.u32 %v1855, 16
      %v2113 = vrot.slane %v2111, 5
      %v2114 = vor.u32 %v2110, %v2113
      %v2115 = vrot.slane %v2114, 4
      %v2117 = vshll.u32 %v1856, 16
      %v2119 = vrot.slane %v2117, 5
      %v2120 = vsel %vm268, %v2115, %v2119
      %v2121 = vshrl.u32 %v1856, 16
      %v2123 = vrot.slane %v2121, 4
      %v2124 = vor.u32 %v2123, %v2119
      %v2125 = vrot.slane %v2124, 4
      %v2127 = vshll.u32 %v1857, 16
      %v2129 = vrot.slane %v2127, 5
      %v2130 = vsel %vm268, %v2125, %v2129
      %v2132 = vshrl.u32 %v1858, 16
      %v2134 = vrot.slane %v2132, 4
      %v2135 = vshll.u32 %v1858, 16
      %v2137 = vrot.slane %v2135, 5
      %v2138 = vor.u32 %v2134, %v2137
      %v2139 = vrot.slane %v2138, 4
      %v2141 = vshll.u32 %v1859, 16
      %v2143 = vrot.slane %v2141, 5
      %v2144 = vsel %vm268, %v2139, %v2143
      %v2145 = vshrl.u32 %v1859, 16
      %v2147 = vrot.slane %v2145, 4
      %v2148 = vor.u32 %v2147, %v2143
      %v2149 = vrot.slane %v2148, 4
      %v2151 = vshll.u32 %v1860, 16
      %v2153 = vrot.slane %v2151, 5
      %v2154 = vsel %vm268, %v2149, %v2153
      %v2156 = vshrl.u32 %v1861, 16
      %v2158 = vrot.slane %v2156, 4
      %v2159 = vshll.u32 %v1861, 16
      %v2161 = vrot.slane %v2159, 5
      %v2162 = vor.u32 %v2158, %v2161
      %v2163 = vrot.slane %v2162, 4
      %v2165 = vshll.u32 %v1862, 16
      %v2167 = vrot.slane %v2165, 5
      %v2168 = vsel %vm268, %v2163, %v2167
      %v2169 = vshrl.u32 %v1862, 16
      %v2171 = vrot.slane %v2169, 4
      %v2172 = vor.u32 %v2171, %v2167
      %v2173 = vrot.slane %v2172, 4
      %v2175 = vshll.u32 %v1863, 16
      %v2177 = vrot.slane %v2175, 5
      %v2178 = vsel %vm268, %v2173, %v2177
      %v2180 = vshrl.u32 %v1864, 16
      %v2182 = vrot.slane %v2180, 4
      %v2183 = vshll.u32 %v1864, 16
      %v2185 = vrot.slane %v2183, 5
      %v2186 = vor.u32 %v2182, %v2185
      %v2187 = vrot.slane %v2186, 4
      %v2189 = vshll.u32 %v1865, 16
      %v2191 = vrot.slane %v2189, 5
      %v2192 = vsel %vm268, %v2187, %v2191
      %v2193 = vshrl.u32 %v1865, 16
      %v2195 = vrot.slane %v2193, 4
      %v2196 = vor.u32 %v2195, %v2191
      %v2197 = vrot.slane %v2196, 4
      %v2199 = vshll.u32 %v1866, 16
      %v2201 = vrot.slane %v2199, 5
      %v2202 = vsel %vm268, %v2197, %v2201
      %s2203 = scalar_lea.vmem %s210, 8
      %v2204 = vld [vmem:[%s2203] sm:$0x3]
      %v2205 = vunpack.c.l.b16 %v1880
      %v2206 = vunpack.c.l.b16 %v1890
      %v2207 = vunpack.c.l.b16 %v1904
      %v2208 = vunpack.c.l.b16 %v1914
      %v2209 = vunpack.c.l.b16 %v1928
      %v2210 = vunpack.c.l.b16 %v1938
      %v2211 = vunpack.c.l.b16 %v1952
      %v2212 = vunpack.c.l.b16 %v1962
      %v2213 = vunpack.c.l.b16 %v1976
      %v2214 = vunpack.c.l.b16 %v1986
      %v2215 = vunpack.c.l.b16 %v2000
      %v2216 = vunpack.c.l.b16 %v2010
      %v2217 = vunpack.c.l.b16 %v2024
      %v2218 = vunpack.c.l.b16 %v2034
      %v2219 = vunpack.c.l.b16 %v2048
      %v2220 = vunpack.c.l.b16 %v2058
      %v2221 = vunpack.c.l.b16 %v2072
      %v2222 = vunpack.c.l.b16 %v2082
      %v2223 = vunpack.c.l.b16 %v2096
      %v2224 = vunpack.c.l.b16 %v2106
      %v2225 = vunpack.c.l.b16 %v2120
      %v2226 = vunpack.c.l.b16 %v2130
      %v2227 = vunpack.c.l.b16 %v2144
      %v2228 = vunpack.c.l.b16 %v2154
      %v2229 = vunpack.c.l.b16 %v2168
      %v2230 = vunpack.c.l.b16 %v2178
      %v2231 = vunpack.c.l.b16 %v2192
      %v2232 = vunpack.c.l.b16 %v2202
      %v2233 = vpack.c.b16 %v2206, %v2205
      %v2234 = vpack.c.b16 %v2208, %v2207
      %v2235 = vpack.c.b16 %v2210, %v2209
      %v2236 = vpack.c.b16 %v2212, %v2211
      %v2237 = vpack.c.b16 %v2214, %v2213
      %v2238 = vpack.c.b16 %v2216, %v2215
      %v2239 = vpack.c.b16 %v2218, %v2217
      %v2240 = vpack.c.b16 %v2220, %v2219
      %v2241 = vpack.c.b16 %v2222, %v2221
      %v2242 = vpack.c.b16 %v2224, %v2223
      %v2243 = vpack.c.b16 %v2226, %v2225
      %v2244 = vpack.c.b16 %v2228, %v2227
      %v2245 = vpack.c.b16 %v2230, %v2229
      %v2246 = vpack.c.b16 %v2232, %v2231
      %v2248 = vsel %vm649, %v2233, 0
      %v2251 = vsel %vm649, %v2234, 0
      %v2254 = vsel %vm649, %v2235, 0
      %v2257 = vsel %vm649, %v2236, 0
      %v2260 = vsel %vm649, %v2237, 0
      %v2263 = vsel %vm649, %v2238, 0
      %v2266 = vsel %vm649, %v2239, 0
      %v2269 = vsel %vm649, %v2240, 0
      %v2272 = vsel %vm649, %v2241, 0
      %v2275 = vsel %vm649, %v2242, 0
      %v2278 = vsel %vm649, %v2243, 0
      %v2281 = vsel %vm649, %v2244, 0
      %v2284 = vsel %vm649, %v2245, 0
      %v2287 = vsel %vm649, %v2246, 0
      %v2290 = vsel %vm692, %v2204, 0
      %2292 = vmatprep.subr.bf16.mxu0 0
      %2293 = vmatpush1.bf16.msra.mxu0 0
      %2294 = vmatprep.subr.bf16.mxu0 0
      %2295 = vmatpush1.bf16.msra.mxu0 0
      %2296 = vmatprep.subr.bf16.mxu0 0
      %2297 = vmatpush1.bf16.msra.mxu0 0
      %2298 = vmatprep.subr.bf16.mxu0 0
      %2299 = vmatpush1.bf16.msra.mxu0 0
      %2300 = vmatprep.subr.bf16.mxu0 0
      %2301 = vmatpush1.bf16.msra.mxu0 0
      %2302 = vmatprep.subr.bf16.mxu0 0
      %2303 = vmatpush1.bf16.msra.mxu0 0
      %2304 = vmatprep.subr.bf16.mxu0 0
      %2305 = vmatpush1.bf16.msra.mxu0 0
      %2306 = vmatprep.subr.bf16.mxu0 0
      %2307 = vmatpush1.bf16.msra.mxu0 %v2290
      %2308 = vmatprep.subr.bf16.mxu0 0
      %2309 = vmatpush2.bf16.msra.mxu0 0
      %2310 = vmatprep.subr.bf16.mxu0 0
      %2311 = vmatpush2.bf16.msra.mxu0 0
      %2312 = vmatprep.subr.bf16.mxu0 0
      %2313 = vmatpush2.bf16.msra.mxu0 0
      %2314 = vmatprep.subr.bf16.mxu0 0
      %2315 = vmatpush2.bf16.msra.mxu0 0
      %2316 = vmatprep.subr.bf16.mxu0 0
      %2317 = vmatpush2.bf16.msra.mxu0 0
      %2318 = vmatprep.subr.bf16.mxu0 0
      %2319 = vmatpush2.bf16.msra.mxu0 0
      %2320 = vmatprep.subr.bf16.mxu0 0
      %2321 = vmatpush2.bf16.msra.mxu0 0
      %2322 = vmatprep.subr.bf16.mxu0 0
      %2323 = vmatpush2.bf16.msra.mxu0 0
      %2324 = vmatprep.mubr.bf16.mxu0 0
      %2325 = vmatmul.mubr.bf16.gmra.mxu0 %v2248
      %v2326 = vpop.f32.mrf.mxu0
      %v2327 = vadd.f32 0.0, %v2326
      %v2328 = vpop.f32.mrf.mxu0
      %v2329 = vpop.f32.mrf.mxu0
      %v2330 = vadd.f32 0.0, %v2329
      %v2331 = vpop.f32.mrf.mxu0
      %2332 = vmatprep.mubr.bf16.mxu0 0
      %2333 = vmatmul.mubr.bf16.gmra.mxu0 %v2251
      %v2334 = vpop.f32.mrf.mxu0
      %v2335 = vadd.f32 0.0, %v2334
      %v2336 = vpop.f32.mrf.mxu0
      %v2337 = vpop.f32.mrf.mxu0
      %v2338 = vadd.f32 0.0, %v2337
      %v2339 = vpop.f32.mrf.mxu0
      %2340 = vmatprep.mubr.bf16.mxu0 0
      %2341 = vmatmul.mubr.bf16.gmra.mxu0 %v2254
      %v2342 = vpop.f32.mrf.mxu0
      %v2343 = vadd.f32 0.0, %v2342
      %v2344 = vpop.f32.mrf.mxu0
      %v2345 = vpop.f32.mrf.mxu0
      %v2346 = vadd.f32 0.0, %v2345
      %v2347 = vpop.f32.mrf.mxu0
      %2348 = vmatprep.mubr.bf16.mxu0 0
      %2349 = vmatmul.mubr.bf16.gmra.mxu0 %v2257
      %v2350 = vpop.f32.mrf.mxu0
      %v2351 = vadd.f32 0.0, %v2350
      %v2352 = vpop.f32.mrf.mxu0
      %v2353 = vpop.f32.mrf.mxu0
      %v2354 = vadd.f32 0.0, %v2353
      %v2355 = vpop.f32.mrf.mxu0
      %2356 = vmatprep.mubr.bf16.mxu0 0
      %2357 = vmatmul.mubr.bf16.gmra.mxu0 %v2260
      %v2358 = vpop.f32.mrf.mxu0
      %v2359 = vadd.f32 0.0, %v2358
      %v2360 = vpop.f32.mrf.mxu0
      %v2361 = vpop.f32.mrf.mxu0
      %v2362 = vadd.f32 0.0, %v2361
      %v2363 = vpop.f32.mrf.mxu0
      %2364 = vmatprep.mubr.bf16.mxu0 0
      %2365 = vmatmul.mubr.bf16.gmra.mxu0 %v2263
      %v2366 = vpop.f32.mrf.mxu0
      %v2367 = vadd.f32 0.0, %v2366
      %v2368 = vpop.f32.mrf.mxu0
      %v2369 = vpop.f32.mrf.mxu0
      %v2370 = vadd.f32 0.0, %v2369
      %v2371 = vpop.f32.mrf.mxu0
      %2372 = vmatprep.mubr.bf16.mxu0 0
      %2373 = vmatmul.mubr.bf16.gmra.mxu0 %v2266
      %v2374 = vpop.f32.mrf.mxu0
      %v2375 = vadd.f32 0.0, %v2374
      %v2376 = vpop.f32.mrf.mxu0
      %v2377 = vpop.f32.mrf.mxu0
      %v2378 = vadd.f32 0.0, %v2377
      %v2379 = vpop.f32.mrf.mxu0
      %2380 = vmatprep.mubr.bf16.mxu0 0
      %2381 = vmatmul.mubr.bf16.gmra.mxu0 %v2269
      %v2382 = vpop.f32.mrf.mxu0
      %v2383 = vadd.f32 0.0, %v2382
      %v2384 = vpop.f32.mrf.mxu0
      %v2385 = vpop.f32.mrf.mxu0
      %v2386 = vadd.f32 0.0, %v2385
      %v2387 = vpop.f32.mrf.mxu0
      %2388 = vmatprep.mubr.bf16.mxu0 0
      %2389 = vmatmul.mubr.bf16.gmra.mxu0 %v2272
      %v2390 = vpop.f32.mrf.mxu0
      %v2391 = vadd.f32 0.0, %v2390
      %v2392 = vpop.f32.mrf.mxu0
      %v2393 = vpop.f32.mrf.mxu0
      %v2394 = vadd.f32 0.0, %v2393
      %v2395 = vpop.f32.mrf.mxu0
      %2396 = vmatprep.mubr.bf16.mxu0 0
      %2397 = vmatmul.mubr.bf16.gmra.mxu0 %v2275
      %v2398 = vpop.f32.mrf.mxu0
      %v2399 = vadd.f32 0.0, %v2398
      %v2400 = vpop.f32.mrf.mxu0
      %v2401 = vpop.f32.mrf.mxu0
      %v2402 = vadd.f32 0.0, %v2401
      %v2403 = vpop.f32.mrf.mxu0
      %2404 = vmatprep.mubr.bf16.mxu0 0
      %2405 = vmatmul.mubr.bf16.gmra.mxu0 %v2278
      %v2406 = vpop.f32.mrf.mxu0
      %v2407 = vadd.f32 0.0, %v2406
      %v2408 = vpop.f32.mrf.mxu0
      %v2409 = vpop.f32.mrf.mxu0
      %v2410 = vadd.f32 0.0, %v2409
      %v2411 = vpop.f32.mrf.mxu0
      %2412 = vmatprep.mubr.bf16.mxu0 0
      %2413 = vmatmul.mubr.bf16.gmra.mxu0 %v2281
      %v2414 = vpop.f32.mrf.mxu0
      %v2415 = vadd.f32 0.0, %v2414
      %v2416 = vpop.f32.mrf.mxu0
      %v2417 = vpop.f32.mrf.mxu0
      %v2418 = vadd.f32 0.0, %v2417
      %v2419 = vpop.f32.mrf.mxu0
      %2420 = vmatprep.mubr.bf16.mxu0 0
      %2421 = vmatmul.mubr.bf16.gmra.mxu0 %v2284
      %v2422 = vpop.f32.mrf.mxu0
      %v2423 = vadd.f32 0.0, %v2422
      %v2424 = vpop.f32.mrf.mxu0
      %v2425 = vpop.f32.mrf.mxu0
      %v2426 = vadd.f32 0.0, %v2425
      %v2427 = vpop.f32.mrf.mxu0
      %2428 = vmatprep.mubr.bf16.mxu0 0
      %2429 = vmatmul.mubr.bf16.gmra.mxu0 %v2287
      %v2430 = vpop.f32.mrf.mxu0
      %v2431 = vadd.f32 0.0, %v2430
      %v2432 = vpop.f32.mrf.mxu0
      %v2433 = vpop.f32.mrf.mxu0
      %v2434 = vadd.f32 0.0, %v2433
      %v2435 = vpop.f32.mrf.mxu0
      %2436 = vdwg.mxu0
      %v2437 = vadd.f32 %v1797, %v2327
      %v2438 = vadd.f32 %v1798, %v2330
      %v2439 = vadd.f32 %v1799, %v2335
      %v2440 = vadd.f32 %v1800, %v2338
      %v2441 = vadd.f32 %v1801, %v2343
      %v2442 = vadd.f32 %v1802, %v2346
      %v2443 = vadd.f32 %v1803, %v2351
      %v2444 = vadd.f32 %v1804, %v2354
      %v2445 = vadd.f32 %v1805, %v2359
      %v2446 = vadd.f32 %v1806, %v2362
      %v2447 = vadd.f32 %v1807, %v2367
      %v2448 = vadd.f32 %v1808, %v2370
      %v2449 = vadd.f32 %v1809, %v2375
      %v2450 = vadd.f32 %v1810, %v2378
      %v2451 = vadd.f32 %v1811, %v2383
      %v2452 = vadd.f32 %v1812, %v2386
      %v2453 = vadd.f32 %v1813, %v2391
      %v2454 = vadd.f32 %v1814, %v2394
      %v2455 = vadd.f32 %v1815, %v2399
      %v2456 = vadd.f32 %v1816, %v2402
      %v2457 = vadd.f32 %v1817, %v2407
      %v2458 = vadd.f32 %v1818, %v2410
      %v2459 = vadd.f32 %v1819, %v2415
      %v2460 = vadd.f32 %v1820, %v2418
      %v2461 = vadd.f32 %v1821, %v2423
      %v2462 = vadd.f32 %v1822, %v2426
      %v2463 = vadd.f32 %v1823, %v2431
      %v2464 = vadd.f32 %v1824, %v2434
      %v2465 = vld [vmem:[%s1506] sm:$0xe]
      %v2466 = vld [vmem:[%s1506 + $0xc] sm:$0xe]
      %v2467 = vld [vmem:[%s1506 + $0x18] sm:$0xe]
      %v2468 = vld [vmem:[%s1506 + $0x24] sm:$0xe]
      %v2469 = vld [vmem:[%s1506 + $0x30] sm:$0xe]
      %v2470 = vld [vmem:[%s1506 + $0x3c] sm:$0xe]
      %v2471 = vld [vmem:[%s1506 + $0x48] sm:$0xe]
      %v2472 = vld [vmem:[%s1506 + $0x54] sm:$0xe]
      %v2473 = vld [vmem:[%s1506 + $0x60] sm:$0xe]
      %v2474 = vld [vmem:[%s1506 + $0x6c] sm:$0xe]
      %v2475 = vld [vmem:[%s1506 + $0x78] sm:$0xe]
      %v2476 = vld [vmem:[%s1506 + $0x84] sm:$0xe]
      %v2477 = vld [vmem:[%s1506 + $0x90] sm:$0xe]
      %v2478 = vld [vmem:[%s1506 + $0x9c] sm:$0xe]
      %v2521 = vrot.slane %v2465, 5
      %v2522 = vrot.slane %v2521, 4
      %v2523 = vrot.slane %v1826, 5
      %v2524 = vsel %vm1145, %v2522, %v2523
      %v2525 = vrot.slane %v2523, 4
      %v2526 = vrot.slane %v1827, 5
      %v2527 = vsel %vm1145, %v2525, %v2526
      %v2528 = vrot.slane %v2466, 5
      %v2529 = vrot.slane %v2528, 4
      %v2530 = vrot.slane %v1829, 5
      %v2531 = vsel %vm1145, %v2529, %v2530
      %v2532 = vrot.slane %v2530, 4
      %v2533 = vrot.slane %v1830, 5
      %v2534 = vsel %vm1145, %v2532, %v2533
      %v2535 = vrot.slane %v2467, 5
      %v2536 = vrot.slane %v2535, 4
      %v2537 = vrot.slane %v1832, 5
      %v2538 = vsel %vm1145, %v2536, %v2537
      %v2539 = vrot.slane %v2537, 4
      %v2540 = vrot.slane %v1833, 5
      %v2541 = vsel %vm1145, %v2539, %v2540
      %v2542 = vrot.slane %v2468, 5
      %v2543 = vrot.slane %v2542, 4
      %v2544 = vrot.slane %v1835, 5
      %v2545 = vsel %vm1145, %v2543, %v2544
      %v2546 = vrot.slane %v2544, 4
      %v2547 = vrot.slane %v1836, 5
      %v2548 = vsel %vm1145, %v2546, %v2547
      %v2549 = vrot.slane %v2469, 5
      %v2550 = vrot.slane %v2549, 4
      %v2551 = vrot.slane %v1838, 5
      %v2552 = vsel %vm1145, %v2550, %v2551
      %v2553 = vrot.slane %v2551, 4
      %v2554 = vrot.slane %v1839, 5
      %v2555 = vsel %vm1145, %v2553, %v2554
      %v2556 = vrot.slane %v2470, 5
      %v2557 = vrot.slane %v2556, 4
      %v2558 = vrot.slane %v1841, 5
      %v2559 = vsel %vm1145, %v2557, %v2558
      %v2560 = vrot.slane %v2558, 4
      %v2561 = vrot.slane %v1842, 5
      %v2562 = vsel %vm1145, %v2560, %v2561
      %v2563 = vrot.slane %v2471, 5
      %v2564 = vrot.slane %v2563, 4
      %v2565 = vrot.slane %v1844, 5
      %v2566 = vsel %vm1145, %v2564, %v2565
      %v2567 = vrot.slane %v2565, 4
      %v2568 = vrot.slane %v1845, 5
      %v2569 = vsel %vm1145, %v2567, %v2568
      %v2570 = vrot.slane %v2472, 5
      %v2571 = vrot.slane %v2570, 4
      %v2572 = vrot.slane %v1847, 5
      %v2573 = vsel %vm1145, %v2571, %v2572
      %v2574 = vrot.slane %v2572, 4
      %v2575 = vrot.slane %v1848, 5
      %v2576 = vsel %vm1145, %v2574, %v2575
      %v2577 = vrot.slane %v2473, 5
      %v2578 = vrot.slane %v2577, 4
      %v2579 = vrot.slane %v1850, 5
      %v2580 = vsel %vm1145, %v2578, %v2579
      %v2581 = vrot.slane %v2579, 4
      %v2582 = vrot.slane %v1851, 5
      %v2583 = vsel %vm1145, %v2581, %v2582
      %v2584 = vrot.slane %v2474, 5
      %v2585 = vrot.slane %v2584, 4
      %v2586 = vrot.slane %v1853, 5
      %v2587 = vsel %vm1145, %v2585, %v2586
      %v2588 = vrot.slane %v2586, 4
      %v2589 = vrot.slane %v1854, 5
      %v2590 = vsel %vm1145, %v2588, %v2589
      %v2591 = vrot.slane %v2475, 5
      %v2592 = vrot.slane %v2591, 4
      %v2593 = vrot.slane %v1856, 5
      %v2594 = vsel %vm1145, %v2592, %v2593
      %v2595 = vrot.slane %v2593, 4
      %v2596 = vrot.slane %v1857, 5
      %v2597 = vsel %vm1145, %v2595, %v2596
      %v2598 = vrot.slane %v2476, 5
      %v2599 = vrot.slane %v2598, 4
      %v2600 = vrot.slane %v1859, 5
      %v2601 = vsel %vm1145, %v2599, %v2600
      %v2602 = vrot.slane %v2600, 4
      %v2603 = vrot.slane %v1860, 5
      %v2604 = vsel %vm1145, %v2602, %v2603
      %v2605 = vrot.slane %v2477, 5
      %v2606 = vrot.slane %v2605, 4
      %v2607 = vrot.slane %v1862, 5
      %v2608 = vsel %vm1145, %v2606, %v2607
      %v2609 = vrot.slane %v2607, 4
      %v2610 = vrot.slane %v1863, 5
      %v2611 = vsel %vm1145, %v2609, %v2610
      %v2612 = vrot.slane %v2478, 5
      %v2613 = vrot.slane %v2612, 4
      %v2614 = vrot.slane %v1865, 5
      %v2615 = vsel %vm1145, %v2613, %v2614
      %v2616 = vrot.slane %v2614, 4
      %v2617 = vrot.slane %v1866, 5
      %v2618 = vsel %vm1145, %v2616, %v2617
      %s2619 = scalar_lea.vmem %s210, 10
      %v2620 = vld [vmem:[%s2619] sm:$0x3]
      %v2621 = vunpack.c.l.b16 %v2524
      %v2622 = vunpack.c.l.b16 %v2527
      %v2623 = vunpack.c.l.b16 %v2531
      %v2624 = vunpack.c.l.b16 %v2534
      %v2625 = vunpack.c.l.b16 %v2538
      %v2626 = vunpack.c.l.b16 %v2541
      %v2627 = vunpack.c.l.b16 %v2545
      %v2628 = vunpack.c.l.b16 %v2548
      %v2629 = vunpack.c.l.b16 %v2552
      %v2630 = vunpack.c.l.b16 %v2555
      %v2631 = vunpack.c.l.b16 %v2559
      %v2632 = vunpack.c.l.b16 %v2562
      %v2633 = vunpack.c.l.b16 %v2566
      %v2634 = vunpack.c.l.b16 %v2569
      %v2635 = vunpack.c.l.b16 %v2573
      %v2636 = vunpack.c.l.b16 %v2576
      %v2637 = vunpack.c.l.b16 %v2580
      %v2638 = vunpack.c.l.b16 %v2583
      %v2639 = vunpack.c.l.b16 %v2587
      %v2640 = vunpack.c.l.b16 %v2590
      %v2641 = vunpack.c.l.b16 %v2594
      %v2642 = vunpack.c.l.b16 %v2597
      %v2643 = vunpack.c.l.b16 %v2601
      %v2644 = vunpack.c.l.b16 %v2604
      %v2645 = vunpack.c.l.b16 %v2608
      %v2646 = vunpack.c.l.b16 %v2611
      %v2647 = vunpack.c.l.b16 %v2615
      %v2648 = vunpack.c.l.b16 %v2618
      %v2649 = vpack.c.b16 %v2622, %v2621
      %v2650 = vpack.c.b16 %v2624, %v2623
      %v2651 = vpack.c.b16 %v2626, %v2625
      %v2652 = vpack.c.b16 %v2628, %v2627
      %v2653 = vpack.c.b16 %v2630, %v2629
      %v2654 = vpack.c.b16 %v2632, %v2631
      %v2655 = vpack.c.b16 %v2634, %v2633
      %v2656 = vpack.c.b16 %v2636, %v2635
      %v2657 = vpack.c.b16 %v2638, %v2637
      %v2658 = vpack.c.b16 %v2640, %v2639
      %v2659 = vpack.c.b16 %v2642, %v2641
      %v2660 = vpack.c.b16 %v2644, %v2643
      %v2661 = vpack.c.b16 %v2646, %v2645
      %v2662 = vpack.c.b16 %v2648, %v2647
      %v2664 = vsel %vm649, %v2649, 0
      %v2667 = vsel %vm649, %v2650, 0
      %v2670 = vsel %vm649, %v2651, 0
      %v2673 = vsel %vm649, %v2652, 0
      %v2676 = vsel %vm649, %v2653, 0
      %v2679 = vsel %vm649, %v2654, 0
      %v2682 = vsel %vm649, %v2655, 0
      %v2685 = vsel %vm649, %v2656, 0
      %v2688 = vsel %vm649, %v2657, 0
      %v2691 = vsel %vm649, %v2658, 0
      %v2694 = vsel %vm649, %v2659, 0
      %v2697 = vsel %vm649, %v2660, 0
      %v2700 = vsel %vm649, %v2661, 0
      %v2703 = vsel %vm649, %v2662, 0
      %v2706 = vsel %vm692, %v2620, 0
      %2708 = vmatprep.subr.bf16.mxu0 0
      %2709 = vmatpush1.bf16.msra.mxu0 0
      %2710 = vmatprep.subr.bf16.mxu0 0
      %2711 = vmatpush1.bf16.msra.mxu0 0
      %2712 = vmatprep.subr.bf16.mxu0 0
      %2713 = vmatpush1.bf16.msra.mxu0 0
      %2714 = vmatprep.subr.bf16.mxu0 0
      %2715 = vmatpush1.bf16.msra.mxu0 0
      %2716 = vmatprep.subr.bf16.mxu0 0
      %2717 = vmatpush1.bf16.msra.mxu0 0
      %2718 = vmatprep.subr.bf16.mxu0 0
      %2719 = vmatpush1.bf16.msra.mxu0 0
      %2720 = vmatprep.subr.bf16.mxu0 0
      %2721 = vmatpush1.bf16.msra.mxu0 0
      %2722 = vmatprep.subr.bf16.mxu0 0
      %2723 = vmatpush1.bf16.msra.mxu0 %v2706
      %2724 = vmatprep.subr.bf16.mxu0 0
      %2725 = vmatpush2.bf16.msra.mxu0 0
      %2726 = vmatprep.subr.bf16.mxu0 0
      %2727 = vmatpush2.bf16.msra.mxu0 0
      %2728 = vmatprep.subr.bf16.mxu0 0
      %2729 = vmatpush2.bf16.msra.mxu0 0
      %2730 = vmatprep.subr.bf16.mxu0 0
      %2731 = vmatpush2.bf16.msra.mxu0 0
      %2732 = vmatprep.subr.bf16.mxu0 0
      %2733 = vmatpush2.bf16.msra.mxu0 0
      %2734 = vmatprep.subr.bf16.mxu0 0
      %2735 = vmatpush2.bf16.msra.mxu0 0
      %2736 = vmatprep.subr.bf16.mxu0 0
      %2737 = vmatpush2.bf16.msra.mxu0 0
      %2738 = vmatprep.subr.bf16.mxu0 0
      %2739 = vmatpush2.bf16.msra.mxu0 0
      %2740 = vmatprep.mubr.bf16.mxu0 0
      %2741 = vmatmul.mubr.bf16.gmra.mxu0 %v2664
      %v2742 = vpop.f32.mrf.mxu0
      %v2743 = vadd.f32 0.0, %v2742
      %v2744 = vpop.f32.mrf.mxu0
      %v2745 = vpop.f32.mrf.mxu0
      %v2746 = vadd.f32 0.0, %v2745
      %v2747 = vpop.f32.mrf.mxu0
      %2748 = vmatprep.mubr.bf16.mxu0 0
      %2749 = vmatmul.mubr.bf16.gmra.mxu0 %v2667
      %v2750 = vpop.f32.mrf.mxu0
      %v2751 = vadd.f32 0.0, %v2750
      %v2752 = vpop.f32.mrf.mxu0
      %v2753 = vpop.f32.mrf.mxu0
      %v2754 = vadd.f32 0.0, %v2753
      %v2755 = vpop.f32.mrf.mxu0
      %2756 = vmatprep.mubr.bf16.mxu0 0
      %2757 = vmatmul.mubr.bf16.gmra.mxu0 %v2670
      %v2758 = vpop.f32.mrf.mxu0
      %v2759 = vadd.f32 0.0, %v2758
      %v2760 = vpop.f32.mrf.mxu0
      %v2761 = vpop.f32.mrf.mxu0
      %v2762 = vadd.f32 0.0, %v2761
      %v2763 = vpop.f32.mrf.mxu0
      %2764 = vmatprep.mubr.bf16.mxu0 0
      %2765 = vmatmul.mubr.bf16.gmra.mxu0 %v2673
      %v2766 = vpop.f32.mrf.mxu0
      %v2767 = vadd.f32 0.0, %v2766
      %v2768 = vpop.f32.mrf.mxu0
      %v2769 = vpop.f32.mrf.mxu0
      %v2770 = vadd.f32 0.0, %v2769
      %v2771 = vpop.f32.mrf.mxu0
      %2772 = vmatprep.mubr.bf16.mxu0 0
      %2773 = vmatmul.mubr.bf16.gmra.mxu0 %v2676
      %v2774 = vpop.f32.mrf.mxu0
      %v2775 = vadd.f32 0.0, %v2774
      %v2776 = vpop.f32.mrf.mxu0
      %v2777 = vpop.f32.mrf.mxu0
      %v2778 = vadd.f32 0.0, %v2777
      %v2779 = vpop.f32.mrf.mxu0
      %2780 = vmatprep.mubr.bf16.mxu0 0
      %2781 = vmatmul.mubr.bf16.gmra.mxu0 %v2679
      %v2782 = vpop.f32.mrf.mxu0
      %v2783 = vadd.f32 0.0, %v2782
      %v2784 = vpop.f32.mrf.mxu0
      %v2785 = vpop.f32.mrf.mxu0
      %v2786 = vadd.f32 0.0, %v2785
      %v2787 = vpop.f32.mrf.mxu0
      %2788 = vmatprep.mubr.bf16.mxu0 0
      %2789 = vmatmul.mubr.bf16.gmra.mxu0 %v2682
      %v2790 = vpop.f32.mrf.mxu0
      %v2791 = vadd.f32 0.0, %v2790
      %v2792 = vpop.f32.mrf.mxu0
      %v2793 = vpop.f32.mrf.mxu0
      %v2794 = vadd.f32 0.0, %v2793
      %v2795 = vpop.f32.mrf.mxu0
      %2796 = vmatprep.mubr.bf16.mxu0 0
      %2797 = vmatmul.mubr.bf16.gmra.mxu0 %v2685
      %v2798 = vpop.f32.mrf.mxu0
      %v2799 = vadd.f32 0.0, %v2798
      %v2800 = vpop.f32.mrf.mxu0
      %v2801 = vpop.f32.mrf.mxu0
      %v2802 = vadd.f32 0.0, %v2801
      %v2803 = vpop.f32.mrf.mxu0
      %2804 = vmatprep.mubr.bf16.mxu0 0
      %2805 = vmatmul.mubr.bf16.gmra.mxu0 %v2688
      %v2806 = vpop.f32.mrf.mxu0
      %v2807 = vadd.f32 0.0, %v2806
      %v2808 = vpop.f32.mrf.mxu0
      %v2809 = vpop.f32.mrf.mxu0
      %v2810 = vadd.f32 0.0, %v2809
      %v2811 = vpop.f32.mrf.mxu0
      %2812 = vmatprep.mubr.bf16.mxu0 0
      %2813 = vmatmul.mubr.bf16.gmra.mxu0 %v2691
      %v2814 = vpop.f32.mrf.mxu0
      %v2815 = vadd.f32 0.0, %v2814
      %v2816 = vpop.f32.mrf.mxu0
      %v2817 = vpop.f32.mrf.mxu0
      %v2818 = vadd.f32 0.0, %v2817
      %v2819 = vpop.f32.mrf.mxu0
      %2820 = vmatprep.mubr.bf16.mxu0 0
      %2821 = vmatmul.mubr.bf16.gmra.mxu0 %v2694
      %v2822 = vpop.f32.mrf.mxu0
      %v2823 = vadd.f32 0.0, %v2822
      %v2824 = vpop.f32.mrf.mxu0
      %v2825 = vpop.f32.mrf.mxu0
      %v2826 = vadd.f32 0.0, %v2825
      %v2827 = vpop.f32.mrf.mxu0
      %2828 = vmatprep.mubr.bf16.mxu0 0
      %2829 = vmatmul.mubr.bf16.gmra.mxu0 %v2697
      %v2830 = vpop.f32.mrf.mxu0
      %v2831 = vadd.f32 0.0, %v2830
      %v2832 = vpop.f32.mrf.mxu0
      %v2833 = vpop.f32.mrf.mxu0
      %v2834 = vadd.f32 0.0, %v2833
      %v2835 = vpop.f32.mrf.mxu0
      %2836 = vmatprep.mubr.bf16.mxu0 0
      %2837 = vmatmul.mubr.bf16.gmra.mxu0 %v2700
      %v2838 = vpop.f32.mrf.mxu0
      %v2839 = vadd.f32 0.0, %v2838
      %v2840 = vpop.f32.mrf.mxu0
      %v2841 = vpop.f32.mrf.mxu0
      %v2842 = vadd.f32 0.0, %v2841
      %v2843 = vpop.f32.mrf.mxu0
      %2844 = vmatprep.mubr.bf16.mxu0 0
      %2845 = vmatmul.mubr.bf16.gmra.mxu0 %v2703
      %v2846 = vpop.f32.mrf.mxu0
      %v2847 = vadd.f32 0.0, %v2846
      %v2848 = vpop.f32.mrf.mxu0
      %v2849 = vpop.f32.mrf.mxu0
      %v2850 = vadd.f32 0.0, %v2849
      %v2851 = vpop.f32.mrf.mxu0
      %2852 = vdwg.mxu0
      %v2853 = vadd.f32 %v2437, %v2743
      %v2854 = vadd.f32 %v2438, %v2746
      %v2855 = vadd.f32 %v2439, %v2751
      %v2856 = vadd.f32 %v2440, %v2754
      %v2857 = vadd.f32 %v2441, %v2759
      %v2858 = vadd.f32 %v2442, %v2762
      %v2859 = vadd.f32 %v2443, %v2767
      %v2860 = vadd.f32 %v2444, %v2770
      %v2861 = vadd.f32 %v2445, %v2775
      %v2862 = vadd.f32 %v2446, %v2778
      %v2863 = vadd.f32 %v2447, %v2783
      %v2864 = vadd.f32 %v2448, %v2786
      %v2865 = vadd.f32 %v2449, %v2791
      %v2866 = vadd.f32 %v2450, %v2794
      %v2867 = vadd.f32 %v2451, %v2799
      %v2868 = vadd.f32 %v2452, %v2802
      %v2869 = vadd.f32 %v2453, %v2807
      %v2870 = vadd.f32 %v2454, %v2810
      %v2871 = vadd.f32 %v2455, %v2815
      %v2872 = vadd.f32 %v2456, %v2818
      %v2873 = vadd.f32 %v2457, %v2823
      %v2874 = vadd.f32 %v2458, %v2826
      %v2875 = vadd.f32 %v2459, %v2831
      %v2876 = vadd.f32 %v2460, %v2834
      %v2877 = vadd.f32 %v2461, %v2839
      %v2878 = vadd.f32 %v2462, %v2842
      %v2879 = vadd.f32 %v2463, %v2847
      %v2880 = vadd.f32 %v2464, %v2850
      %s2881 = scalar_lea.vmem %s206, 24
      %v2882 = vld [vmem:[%s2881] sm:$0xf]
      %v2883 = vld [vmem:[%s2881 + $0x4] sm:$0xf]
      %v2884 = vld [vmem:[%s2881 + $0xc] sm:$0xf]
      %v2885 = vld [vmem:[%s2881 + $0x10] sm:$0xf]
      %v2886 = vld [vmem:[%s2881 + $0x18] sm:$0xf]
      %v2887 = vld [vmem:[%s2881 + $0x1c] sm:$0xf]
      %v2888 = vld [vmem:[%s2881 + $0x24] sm:$0xf]
      %v2889 = vld [vmem:[%s2881 + $0x28] sm:$0xf]
      %v2890 = vld [vmem:[%s2881 + $0x30] sm:$0xf]
      %v2891 = vld [vmem:[%s2881 + $0x34] sm:$0xf]
      %v2892 = vld [vmem:[%s2881 + $0x3c] sm:$0xf]
      %v2893 = vld [vmem:[%s2881 + $0x40] sm:$0xf]
      %v2894 = vld [vmem:[%s2881 + $0x48] sm:$0xf]
      %v2895 = vld [vmem:[%s2881 + $0x4c] sm:$0xf]
      %v2896 = vld [vmem:[%s2881 + $0x54] sm:$0xf]
      %v2897 = vld [vmem:[%s2881 + $0x58] sm:$0xf]
      %v2898 = vld [vmem:[%s2881 + $0x60] sm:$0xf]
      %v2899 = vld [vmem:[%s2881 + $0x64] sm:$0xf]
      %v2900 = vld [vmem:[%s2881 + $0x6c] sm:$0xf]
      %v2901 = vld [vmem:[%s2881 + $0x70] sm:$0xf]
      %v2902 = vld [vmem:[%s2881 + $0x78] sm:$0xf]
      %v2903 = vld [vmem:[%s2881 + $0x7c] sm:$0xf]
      %v2904 = vld [vmem:[%s2881 + $0x84] sm:$0xf]
      %v2905 = vld [vmem:[%s2881 + $0x88] sm:$0xf]
      %v2906 = vld [vmem:[%s2881 + $0x90] sm:$0xf]
      %v2907 = vld [vmem:[%s2881 + $0x94] sm:$0xf]
      %v2908 = vld [vmem:[%s2881 + $0x9c] sm:$0xf]
      %v2909 = vld [vmem:[%s2881 + $0xa0] sm:$0xf]
      %s2910 = scalar_lea.vmem %s210, 12
      %v2911 = vld [vmem:[%s2910] sm:$0x3]
      %v2940 = vunpack.c.l.b16 %v2882
      %v2941 = vunpack.c.l.b16 %v2883
      %v2942 = vunpack.c.l.b16 %v2884
      %v2943 = vunpack.c.l.b16 %v2885
      %v2944 = vunpack.c.l.b16 %v2886
      %v2945 = vunpack.c.l.b16 %v2887
      %v2946 = vunpack.c.l.b16 %v2888
      %v2947 = vunpack.c.l.b16 %v2889
      %v2948 = vunpack.c.l.b16 %v2890
      %v2949 = vunpack.c.l.b16 %v2891
      %v2950 = vunpack.c.l.b16 %v2892
      %v2951 = vunpack.c.l.b16 %v2893
      %v2952 = vunpack.c.l.b16 %v2894
      %v2953 = vunpack.c.l.b16 %v2895
      %v2954 = vunpack.c.l.b16 %v2896
      %v2955 = vunpack.c.l.b16 %v2897
      %v2956 = vunpack.c.l.b16 %v2898
      %v2957 = vunpack.c.l.b16 %v2899
      %v2958 = vunpack.c.l.b16 %v2900
      %v2959 = vunpack.c.l.b16 %v2901
      %v2960 = vunpack.c.l.b16 %v2902
      %v2961 = vunpack.c.l.b16 %v2903
      %v2962 = vunpack.c.l.b16 %v2904
      %v2963 = vunpack.c.l.b16 %v2905
      %v2964 = vunpack.c.l.b16 %v2906
      %v2965 = vunpack.c.l.b16 %v2907
      %v2966 = vunpack.c.l.b16 %v2908
      %v2967 = vunpack.c.l.b16 %v2909
      %v2968 = vpack.c.b16 %v2941, %v2940
      %v2969 = vpack.c.b16 %v2943, %v2942
      %v2970 = vpack.c.b16 %v2945, %v2944
      %v2971 = vpack.c.b16 %v2947, %v2946
      %v2972 = vpack.c.b16 %v2949, %v2948
      %v2973 = vpack.c.b16 %v2951, %v2950
      %v2974 = vpack.c.b16 %v2953, %v2952
      %v2975 = vpack.c.b16 %v2955, %v2954
      %v2976 = vpack.c.b16 %v2957, %v2956
      %v2977 = vpack.c.b16 %v2959, %v2958
      %v2978 = vpack.c.b16 %v2961, %v2960
      %v2979 = vpack.c.b16 %v2963, %v2962
      %v2980 = vpack.c.b16 %v2965, %v2964
      %v2981 = vpack.c.b16 %v2967, %v2966
      %v2983 = vsel %vm649, %v2968, 0
      %v2986 = vsel %vm649, %v2969, 0
      %v2989 = vsel %vm649, %v2970, 0
      %v2992 = vsel %vm649, %v2971, 0
      %v2995 = vsel %vm649, %v2972, 0
      %v2998 = vsel %vm649, %v2973, 0
      %v3001 = vsel %vm649, %v2974, 0
      %v3004 = vsel %vm649, %v2975, 0
      %v3007 = vsel %vm649, %v2976, 0
      %v3010 = vsel %vm649, %v2977, 0
      %v3013 = vsel %vm649, %v2978, 0
      %v3016 = vsel %vm649, %v2979, 0
      %v3019 = vsel %vm649, %v2980, 0
      %v3022 = vsel %vm649, %v2981, 0
      %v3025 = vsel %vm692, %v2911, 0
      %3027 = vmatprep.subr.bf16.mxu0 0
      %3028 = vmatpush1.bf16.msra.mxu0 0
      %3029 = vmatprep.subr.bf16.mxu0 0
      %3030 = vmatpush1.bf16.msra.mxu0 0
      %3031 = vmatprep.subr.bf16.mxu0 0
      %3032 = vmatpush1.bf16.msra.mxu0 0
      %3033 = vmatprep.subr.bf16.mxu0 0
      %3034 = vmatpush1.bf16.msra.mxu0 0
      %3035 = vmatprep.subr.bf16.mxu0 0
      %3036 = vmatpush1.bf16.msra.mxu0 0
      %3037 = vmatprep.subr.bf16.mxu0 0
      %3038 = vmatpush1.bf16.msra.mxu0 0
      %3039 = vmatprep.subr.bf16.mxu0 0
      %3040 = vmatpush1.bf16.msra.mxu0 0
      %3041 = vmatprep.subr.bf16.mxu0 0
      %3042 = vmatpush1.bf16.msra.mxu0 %v3025
      %3043 = vmatprep.subr.bf16.mxu0 0
      %3044 = vmatpush2.bf16.msra.mxu0 0
      %3045 = vmatprep.subr.bf16.mxu0 0
      %3046 = vmatpush2.bf16.msra.mxu0 0
      %3047 = vmatprep.subr.bf16.mxu0 0
      %3048 = vmatpush2.bf16.msra.mxu0 0
      %3049 = vmatprep.subr.bf16.mxu0 0
      %3050 = vmatpush2.bf16.msra.mxu0 0
      %3051 = vmatprep.subr.bf16.mxu0 0
      %3052 = vmatpush2.bf16.msra.mxu0 0
      %3053 = vmatprep.subr.bf16.mxu0 0
      %3054 = vmatpush2.bf16.msra.mxu0 0
      %3055 = vmatprep.subr.bf16.mxu0 0
      %3056 = vmatpush2.bf16.msra.mxu0 0
      %3057 = vmatprep.subr.bf16.mxu0 0
      %3058 = vmatpush2.bf16.msra.mxu0 0
      %3059 = vmatprep.mubr.bf16.mxu0 0
      %3060 = vmatmul.mubr.bf16.gmra.mxu0 %v2983
      %v3061 = vpop.f32.mrf.mxu0
      %v3062 = vadd.f32 0.0, %v3061
      %v3063 = vpop.f32.mrf.mxu0
      %v3064 = vpop.f32.mrf.mxu0
      %v3065 = vadd.f32 0.0, %v3064
      %v3066 = vpop.f32.mrf.mxu0
      %3067 = vmatprep.mubr.bf16.mxu0 0
      %3068 = vmatmul.mubr.bf16.gmra.mxu0 %v2986
      %v3069 = vpop.f32.mrf.mxu0
      %v3070 = vadd.f32 0.0, %v3069
      %v3071 = vpop.f32.mrf.mxu0
      %v3072 = vpop.f32.mrf.mxu0
      %v3073 = vadd.f32 0.0, %v3072
      %v3074 = vpop.f32.mrf.mxu0
      %3075 = vmatprep.mubr.bf16.mxu0 0
      %3076 = vmatmul.mubr.bf16.gmra.mxu0 %v2989
      %v3077 = vpop.f32.mrf.mxu0
      %v3078 = vadd.f32 0.0, %v3077
      %v3079 = vpop.f32.mrf.mxu0
      %v3080 = vpop.f32.mrf.mxu0
      %v3081 = vadd.f32 0.0, %v3080
      %v3082 = vpop.f32.mrf.mxu0
      %3083 = vmatprep.mubr.bf16.mxu0 0
      %3084 = vmatmul.mubr.bf16.gmra.mxu0 %v2992
      %v3085 = vpop.f32.mrf.mxu0
      %v3086 = vadd.f32 0.0, %v3085
      %v3087 = vpop.f32.mrf.mxu0
      %v3088 = vpop.f32.mrf.mxu0
      %v3089 = vadd.f32 0.0, %v3088
      %v3090 = vpop.f32.mrf.mxu0
      %3091 = vmatprep.mubr.bf16.mxu0 0
      %3092 = vmatmul.mubr.bf16.gmra.mxu0 %v2995
      %v3093 = vpop.f32.mrf.mxu0
      %v3094 = vadd.f32 0.0, %v3093
      %v3095 = vpop.f32.mrf.mxu0
      %v3096 = vpop.f32.mrf.mxu0
      %v3097 = vadd.f32 0.0, %v3096
      %v3098 = vpop.f32.mrf.mxu0
      %3099 = vmatprep.mubr.bf16.mxu0 0
      %3100 = vmatmul.mubr.bf16.gmra.mxu0 %v2998
      %v3101 = vpop.f32.mrf.mxu0
      %v3102 = vadd.f32 0.0, %v3101
      %v3103 = vpop.f32.mrf.mxu0
      %v3104 = vpop.f32.mrf.mxu0
      %v3105 = vadd.f32 0.0, %v3104
      %v3106 = vpop.f32.mrf.mxu0
      %3107 = vmatprep.mubr.bf16.mxu0 0
      %3108 = vmatmul.mubr.bf16.gmra.mxu0 %v3001
      %v3109 = vpop.f32.mrf.mxu0
      %v3110 = vadd.f32 0.0, %v3109
      %v3111 = vpop.f32.mrf.mxu0
      %v3112 = vpop.f32.mrf.mxu0
      %v3113 = vadd.f32 0.0, %v3112
      %v3114 = vpop.f32.mrf.mxu0
      %3115 = vmatprep.mubr.bf16.mxu0 0
      %3116 = vmatmul.mubr.bf16.gmra.mxu0 %v3004
      %v3117 = vpop.f32.mrf.mxu0
      %v3118 = vadd.f32 0.0, %v3117
      %v3119 = vpop.f32.mrf.mxu0
      %v3120 = vpop.f32.mrf.mxu0
      %v3121 = vadd.f32 0.0, %v3120
      %v3122 = vpop.f32.mrf.mxu0
      %3123 = vmatprep.mubr.bf16.mxu0 0
      %3124 = vmatmul.mubr.bf16.gmra.mxu0 %v3007
      %v3125 = vpop.f32.mrf.mxu0
      %v3126 = vadd.f32 0.0, %v3125
      %v3127 = vpop.f32.mrf.mxu0
      %v3128 = vpop.f32.mrf.mxu0
      %v3129 = vadd.f32 0.0, %v3128
      %v3130 = vpop.f32.mrf.mxu0
      %3131 = vmatprep.mubr.bf16.mxu0 0
      %3132 = vmatmul.mubr.bf16.gmra.mxu0 %v3010
      %v3133 = vpop.f32.mrf.mxu0
      %v3134 = vadd.f32 0.0, %v3133
      %v3135 = vpop.f32.mrf.mxu0
      %v3136 = vpop.f32.mrf.mxu0
      %v3137 = vadd.f32 0.0, %v3136
      %v3138 = vpop.f32.mrf.mxu0
      %3139 = vmatprep.mubr.bf16.mxu0 0
      %3140 = vmatmul.mubr.bf16.gmra.mxu0 %v3013
      %v3141 = vpop.f32.mrf.mxu0
      %v3142 = vadd.f32 0.0, %v3141
      %v3143 = vpop.f32.mrf.mxu0
      %v3144 = vpop.f32.mrf.mxu0
      %v3145 = vadd.f32 0.0, %v3144
      %v3146 = vpop.f32.mrf.mxu0
      %3147 = vmatprep.mubr.bf16.mxu0 0
      %3148 = vmatmul.mubr.bf16.gmra.mxu0 %v3016
      %v3149 = vpop.f32.mrf.mxu0
      %v3150 = vadd.f32 0.0, %v3149
      %v3151 = vpop.f32.mrf.mxu0
      %v3152 = vpop.f32.mrf.mxu0
      %v3153 = vadd.f32 0.0, %v3152
      %v3154 = vpop.f32.mrf.mxu0
      %3155 = vmatprep.mubr.bf16.mxu0 0
      %3156 = vmatmul.mubr.bf16.gmra.mxu0 %v3019
      %v3157 = vpop.f32.mrf.mxu0
      %v3158 = vadd.f32 0.0, %v3157
      %v3159 = vpop.f32.mrf.mxu0
      %v3160 = vpop.f32.mrf.mxu0
      %v3161 = vadd.f32 0.0, %v3160
      %v3162 = vpop.f32.mrf.mxu0
      %3163 = vmatprep.mubr.bf16.mxu0 0
      %3164 = vmatmul.mubr.bf16.gmra.mxu0 %v3022
      %v3165 = vpop.f32.mrf.mxu0
      %v3166 = vadd.f32 0.0, %v3165
      %v3167 = vpop.f32.mrf.mxu0
      %v3168 = vpop.f32.mrf.mxu0
      %v3169 = vadd.f32 0.0, %v3168
      %v3170 = vpop.f32.mrf.mxu0
      %3171 = vdwg.mxu0
      %v3172 = vadd.f32 %v2853, %v3062
      %v3173 = vadd.f32 %v2854, %v3065
      %v3174 = vadd.f32 %v2855, %v3070
      %v3175 = vadd.f32 %v2856, %v3073
      %v3176 = vadd.f32 %v2857, %v3078
      %v3177 = vadd.f32 %v2858, %v3081
      %v3178 = vadd.f32 %v2859, %v3086
      %v3179 = vadd.f32 %v2860, %v3089
      %v3180 = vadd.f32 %v2861, %v3094
      %v3181 = vadd.f32 %v2862, %v3097
      %v3182 = vadd.f32 %v2863, %v3102
      %v3183 = vadd.f32 %v2864, %v3105
      %v3184 = vadd.f32 %v2865, %v3110
      %v3185 = vadd.f32 %v2866, %v3113
      %v3186 = vadd.f32 %v2867, %v3118
      %v3187 = vadd.f32 %v2868, %v3121
      %v3188 = vadd.f32 %v2869, %v3126
      %v3189 = vadd.f32 %v2870, %v3129
      %v3190 = vadd.f32 %v2871, %v3134
      %v3191 = vadd.f32 %v2872, %v3137
      %v3192 = vadd.f32 %v2873, %v3142
      %v3193 = vadd.f32 %v2874, %v3145
      %v3194 = vadd.f32 %v2875, %v3150
      %v3195 = vadd.f32 %v2876, %v3153
      %v3196 = vadd.f32 %v2877, %v3158
      %v3197 = vadd.f32 %v2878, %v3161
      %v3198 = vadd.f32 %v2879, %v3166
      %v3199 = vadd.f32 %v2880, %v3169
      %v3200 = vld [vmem:[%s2881] sm:$0xf]
      %v3201 = vld [vmem:[%s2881 + $0x4] sm:$0xf]
      %v3202 = vld [vmem:[%s2881 + $0x8] sm:$0x1]
      %v3203 = vld [vmem:[%s2881 + $0xc] sm:$0xf]
      %v3204 = vld [vmem:[%s2881 + $0x10] sm:$0xf]
      %v3205 = vld [vmem:[%s2881 + $0x14] sm:$0x1]
      %v3206 = vld [vmem:[%s2881 + $0x18] sm:$0xf]
      %v3207 = vld [vmem:[%s2881 + $0x1c] sm:$0xf]
      %v3208 = vld [vmem:[%s2881 + $0x20] sm:$0x1]
      %v3209 = vld [vmem:[%s2881 + $0x24] sm:$0xf]
      %v3210 = vld [vmem:[%s2881 + $0x28] sm:$0xf]
      %v3211 = vld [vmem:[%s2881 + $0x2c] sm:$0x1]
      %v3212 = vld [vmem:[%s2881 + $0x30] sm:$0xf]
      %v3213 = vld [vmem:[%s2881 + $0x34] sm:$0xf]
      %v3214 = vld [vmem:[%s2881 + $0x38] sm:$0x1]
      %v3215 = vld [vmem:[%s2881 + $0x3c] sm:$0xf]
      %v3216 = vld [vmem:[%s2881 + $0x40] sm:$0xf]
      %v3217 = vld [vmem:[%s2881 + $0x44] sm:$0x1]
      %v3218 = vld [vmem:[%s2881 + $0x48] sm:$0xf]
      %v3219 = vld [vmem:[%s2881 + $0x4c] sm:$0xf]
      %v3220 = vld [vmem:[%s2881 + $0x50] sm:$0x1]
      %v3221 = vld [vmem:[%s2881 + $0x54] sm:$0xf]
      %v3222 = vld [vmem:[%s2881 + $0x58] sm:$0xf]
      %v3223 = vld [vmem:[%s2881 + $0x5c] sm:$0x1]
      %v3224 = vld [vmem:[%s2881 + $0x60] sm:$0xf]
      %v3225 = vld [vmem:[%s2881 + $0x64] sm:$0xf]
      %v3226 = vld [vmem:[%s2881 + $0x68] sm:$0x1]
      %v3227 = vld [vmem:[%s2881 + $0x6c] sm:$0xf]
      %v3228 = vld [vmem:[%s2881 + $0x70] sm:$0xf]
      %v3229 = vld [vmem:[%s2881 + $0x74] sm:$0x1]
      %v3230 = vld [vmem:[%s2881 + $0x78] sm:$0xf]
      %v3231 = vld [vmem:[%s2881 + $0x7c] sm:$0xf]
      %v3232 = vld [vmem:[%s2881 + $0x80] sm:$0x1]
      %v3233 = vld [vmem:[%s2881 + $0x84] sm:$0xf]
      %v3234 = vld [vmem:[%s2881 + $0x88] sm:$0xf]
      %v3235 = vld [vmem:[%s2881 + $0x8c] sm:$0x1]
      %v3236 = vld [vmem:[%s2881 + $0x90] sm:$0xf]
      %v3237 = vld [vmem:[%s2881 + $0x94] sm:$0xf]
      %v3238 = vld [vmem:[%s2881 + $0x98] sm:$0x1]
      %v3239 = vld [vmem:[%s2881 + $0x9c] sm:$0xf]
      %v3240 = vld [vmem:[%s2881 + $0xa0] sm:$0xf]
      %v3241 = vld [vmem:[%s2881 + $0xa4] sm:$0x1]
      %v3243 = vshrl.u32 %v3200, 16
      %v3245 = vrot.slane %v3243, 4
      %v3246 = vshll.u32 %v3200, 16
      %v3248 = vrot.slane %v3246, 5
      %v3249 = vor.u32 %v3245, %v3248
      %v3250 = vrot.slane %v3249, 4
      %v3252 = vshll.u32 %v3201, 16
      %v3254 = vrot.slane %v3252, 5
      %v3255 = vsel %vm268, %v3250, %v3254
      %v3256 = vshrl.u32 %v3201, 16
      %v3258 = vrot.slane %v3256, 4
      %v3259 = vor.u32 %v3258, %v3254
      %v3260 = vrot.slane %v3259, 4
      %v3262 = vshll.u32 %v3202, 16
      %v3264 = vrot.slane %v3262, 5
      %v3265 = vsel %vm268, %v3260, %v3264
      %v3267 = vshrl.u32 %v3203, 16
      %v3269 = vrot.slane %v3267, 4
      %v3270 = vshll.u32 %v3203, 16
      %v3272 = vrot.slane %v3270, 5
      %v3273 = vor.u32 %v3269, %v3272
      %v3274 = vrot.slane %v3273, 4
      %v3276 = vshll.u32 %v3204, 16
      %v3278 = vrot.slane %v3276, 5
      %v3279 = vsel %vm268, %v3274, %v3278
      %v3280 = vshrl.u32 %v3204, 16
      %v3282 = vrot.slane %v3280, 4
      %v3283 = vor.u32 %v3282, %v3278
      %v3284 = vrot.slane %v3283, 4
      %v3286 = vshll.u32 %v3205, 16
      %v3288 = vrot.slane %v3286, 5
      %v3289 = vsel %vm268, %v3284, %v3288
      %v3291 = vshrl.u32 %v3206, 16
      %v3293 = vrot.slane %v3291, 4
      %v3294 = vshll.u32 %v3206, 16
      %v3296 = vrot.slane %v3294, 5
      %v3297 = vor.u32 %v3293, %v3296
      %v3298 = vrot.slane %v3297, 4
      %v3300 = vshll.u32 %v3207, 16
      %v3302 = vrot.slane %v3300, 5
      %v3303 = vsel %vm268, %v3298, %v3302
      %v3304 = vshrl.u32 %v3207, 16
      %v3306 = vrot.slane %v3304, 4
      %v3307 = vor.u32 %v3306, %v3302
      %v3308 = vrot.slane %v3307, 4
      %v3310 = vshll.u32 %v3208, 16
      %v3312 = vrot.slane %v3310, 5
      %v3313 = vsel %vm268, %v3308, %v3312
      %v3315 = vshrl.u32 %v3209, 16
      %v3317 = vrot.slane %v3315, 4
      %v3318 = vshll.u32 %v3209, 16
      %v3320 = vrot.slane %v3318, 5
      %v3321 = vor.u32 %v3317, %v3320
      %v3322 = vrot.slane %v3321, 4
      %v3324 = vshll.u32 %v3210, 16
      %v3326 = vrot.slane %v3324, 5
      %v3327 = vsel %vm268, %v3322, %v3326
      %v3328 = vshrl.u32 %v3210, 16
      %v3330 = vrot.slane %v3328, 4
      %v3331 = vor.u32 %v3330, %v3326
      %v3332 = vrot.slane %v3331, 4
      %v3334 = vshll.u32 %v3211, 16
      %v3336 = vrot.slane %v3334, 5
      %v3337 = vsel %vm268, %v3332, %v3336
      %v3339 = vshrl.u32 %v3212, 16
      %v3341 = vrot.slane %v3339, 4
      %v3342 = vshll.u32 %v3212, 16
      %v3344 = vrot.slane %v3342, 5
      %v3345 = vor.u32 %v3341, %v3344
      %v3346 = vrot.slane %v3345, 4
      %v3348 = vshll.u32 %v3213, 16
      %v3350 = vrot.slane %v3348, 5
      %v3351 = vsel %vm268, %v3346, %v3350
      %v3352 = vshrl.u32 %v3213, 16
      %v3354 = vrot.slane %v3352, 4
      %v3355 = vor.u32 %v3354, %v3350
      %v3356 = vrot.slane %v3355, 4
      %v3358 = vshll.u32 %v3214, 16
      %v3360 = vrot.slane %v3358, 5
      %v3361 = vsel %vm268, %v3356, %v3360
      %v3363 = vshrl.u32 %v3215, 16
      %v3365 = vrot.slane %v3363, 4
      %v3366 = vshll.u32 %v3215, 16
      %v3368 = vrot.slane %v3366, 5
      %v3369 = vor.u32 %v3365, %v3368
      %v3370 = vrot.slane %v3369, 4
      %v3372 = vshll.u32 %v3216, 16
      %v3374 = vrot.slane %v3372, 5
      %v3375 = vsel %vm268, %v3370, %v3374
      %v3376 = vshrl.u32 %v3216, 16
      %v3378 = vrot.slane %v3376, 4
      %v3379 = vor.u32 %v3378, %v3374
      %v3380 = vrot.slane %v3379, 4
      %v3382 = vshll.u32 %v3217, 16
      %v3384 = vrot.slane %v3382, 5
      %v3385 = vsel %vm268, %v3380, %v3384
      %v3387 = vshrl.u32 %v3218, 16
      %v3389 = vrot.slane %v3387, 4
      %v3390 = vshll.u32 %v3218, 16
      %v3392 = vrot.slane %v3390, 5
      %v3393 = vor.u32 %v3389, %v3392
      %v3394 = vrot.slane %v3393, 4
      %v3396 = vshll.u32 %v3219, 16
      %v3398 = vrot.slane %v3396, 5
      %v3399 = vsel %vm268, %v3394, %v3398
      %v3400 = vshrl.u32 %v3219, 16
      %v3402 = vrot.slane %v3400, 4
      %v3403 = vor.u32 %v3402, %v3398
      %v3404 = vrot.slane %v3403, 4
      %v3406 = vshll.u32 %v3220, 16
      %v3408 = vrot.slane %v3406, 5
      %v3409 = vsel %vm268, %v3404, %v3408
      %v3411 = vshrl.u32 %v3221, 16
      %v3413 = vrot.slane %v3411, 4
      %v3414 = vshll.u32 %v3221, 16
      %v3416 = vrot.slane %v3414, 5
      %v3417 = vor.u32 %v3413, %v3416
      %v3418 = vrot.slane %v3417, 4
      %v3420 = vshll.u32 %v3222, 16
      %v3422 = vrot.slane %v3420, 5
      %v3423 = vsel %vm268, %v3418, %v3422
      %v3424 = vshrl.u32 %v3222, 16
      %v3426 = vrot.slane %v3424, 4
      %v3427 = vor.u32 %v3426, %v3422
      %v3428 = vrot.slane %v3427, 4
      %v3430 = vshll.u32 %v3223, 16
      %v3432 = vrot.slane %v3430, 5
      %v3433 = vsel %vm268, %v3428, %v3432
      %v3435 = vshrl.u32 %v3224, 16
      %v3437 = vrot.slane %v3435, 4
      %v3438 = vshll.u32 %v3224, 16
      %v3440 = vrot.slane %v3438, 5
      %v3441 = vor.u32 %v3437, %v3440
      %v3442 = vrot.slane %v3441, 4
      %v3444 = vshll.u32 %v3225, 16
      %v3446 = vrot.slane %v3444, 5
      %v3447 = vsel %vm268, %v3442, %v3446
      %v3448 = vshrl.u32 %v3225, 16
      %v3450 = vrot.slane %v3448, 4
      %v3451 = vor.u32 %v3450, %v3446
      %v3452 = vrot.slane %v3451, 4
      %v3454 = vshll.u32 %v3226, 16
      %v3456 = vrot.slane %v3454, 5
      %v3457 = vsel %vm268, %v3452, %v3456
      %v3459 = vshrl.u32 %v3227, 16
      %v3461 = vrot.slane %v3459, 4
      %v3462 = vshll.u32 %v3227, 16
      %v3464 = vrot.slane %v3462, 5
      %v3465 = vor.u32 %v3461, %v3464
      %v3466 = vrot.slane %v3465, 4
      %v3468 = vshll.u32 %v3228, 16
      %v3470 = vrot.slane %v3468, 5
      %v3471 = vsel %vm268, %v3466, %v3470
      %v3472 = vshrl.u32 %v3228, 16
      %v3474 = vrot.slane %v3472, 4
      %v3475 = vor.u32 %v3474, %v3470
      %v3476 = vrot.slane %v3475, 4
      %v3478 = vshll.u32 %v3229, 16
      %v3480 = vrot.slane %v3478, 5
      %v3481 = vsel %vm268, %v3476, %v3480
      %v3483 = vshrl.u32 %v3230, 16
      %v3485 = vrot.slane %v3483, 4
      %v3486 = vshll.u32 %v3230, 16
      %v3488 = vrot.slane %v3486, 5
      %v3489 = vor.u32 %v3485, %v3488
      %v3490 = vrot.slane %v3489, 4
      %v3492 = vshll.u32 %v3231, 16
      %v3494 = vrot.slane %v3492, 5
      %v3495 = vsel %vm268, %v3490, %v3494
      %v3496 = vshrl.u32 %v3231, 16
      %v3498 = vrot.slane %v3496, 4
      %v3499 = vor.u32 %v3498, %v3494
      %v3500 = vrot.slane %v3499, 4
      %v3502 = vshll.u32 %v3232, 16
      %v3504 = vrot.slane %v3502, 5
      %v3505 = vsel %vm268, %v3500, %v3504
      %v3507 = vshrl.u32 %v3233, 16
      %v3509 = vrot.slane %v3507, 4
      %v3510 = vshll.u32 %v3233, 16
      %v3512 = vrot.slane %v3510, 5
      %v3513 = vor.u32 %v3509, %v3512
      %v3514 = vrot.slane %v3513, 4
      %v3516 = vshll.u32 %v3234, 16
      %v3518 = vrot.slane %v3516, 5
      %v3519 = vsel %vm268, %v3514, %v3518
      %v3520 = vshrl.u32 %v3234, 16
      %v3522 = vrot.slane %v3520, 4
      %v3523 = vor.u32 %v3522, %v3518
      %v3524 = vrot.slane %v3523, 4
      %v3526 = vshll.u32 %v3235, 16
      %v3528 = vrot.slane %v3526, 5
      %v3529 = vsel %vm268, %v3524, %v3528
      %v3531 = vshrl.u32 %v3236, 16
      %v3533 = vrot.slane %v3531, 4
      %v3534 = vshll.u32 %v3236, 16
      %v3536 = vrot.slane %v3534, 5
      %v3537 = vor.u32 %v3533, %v3536
      %v3538 = vrot.slane %v3537, 4
      %v3540 = vshll.u32 %v3237, 16
      %v3542 = vrot.slane %v3540, 5
      %v3543 = vsel %vm268, %v3538, %v3542
      %v3544 = vshrl.u32 %v3237, 16
      %v3546 = vrot.slane %v3544, 4
      %v3547 = vor.u32 %v3546, %v3542
      %v3548 = vrot.slane %v3547, 4
      %v3550 = vshll.u32 %v3238, 16
      %v3552 = vrot.slane %v3550, 5
      %v3553 = vsel %vm268, %v3548, %v3552
      %v3555 = vshrl.u32 %v3239, 16
      %v3557 = vrot.slane %v3555, 4
      %v3558 = vshll.u32 %v3239, 16
      %v3560 = vrot.slane %v3558, 5
      %v3561 = vor.u32 %v3557, %v3560
      %v3562 = vrot.slane %v3561, 4
      %v3564 = vshll.u32 %v3240, 16
      %v3566 = vrot.slane %v3564, 5
      %v3567 = vsel %vm268, %v3562, %v3566
      %v3568 = vshrl.u32 %v3240, 16
      %v3570 = vrot.slane %v3568, 4
      %v3571 = vor.u32 %v3570, %v3566
      %v3572 = vrot.slane %v3571, 4
      %v3574 = vshll.u32 %v3241, 16
      %v3576 = vrot.slane %v3574, 5
      %v3577 = vsel %vm268, %v3572, %v3576
      %s3578 = scalar_lea.vmem %s210, 14
      %v3579 = vld [vmem:[%s3578] sm:$0x3]
      %v3580 = vunpack.c.l.b16 %v3255
      %v3581 = vunpack.c.l.b16 %v3265
      %v3582 = vunpack.c.l.b16 %v3279
      %v3583 = vunpack.c.l.b16 %v3289
      %v3584 = vunpack.c.l.b16 %v3303
      %v3585 = vunpack.c.l.b16 %v3313
      %v3586 = vunpack.c.l.b16 %v3327
      %v3587 = vunpack.c.l.b16 %v3337
      %v3588 = vunpack.c.l.b16 %v3351
      %v3589 = vunpack.c.l.b16 %v3361
      %v3590 = vunpack.c.l.b16 %v3375
      %v3591 = vunpack.c.l.b16 %v3385
      %v3592 = vunpack.c.l.b16 %v3399
      %v3593 = vunpack.c.l.b16 %v3409
      %v3594 = vunpack.c.l.b16 %v3423
      %v3595 = vunpack.c.l.b16 %v3433
      %v3596 = vunpack.c.l.b16 %v3447
      %v3597 = vunpack.c.l.b16 %v3457
      %v3598 = vunpack.c.l.b16 %v3471
      %v3599 = vunpack.c.l.b16 %v3481
      %v3600 = vunpack.c.l.b16 %v3495
      %v3601 = vunpack.c.l.b16 %v3505
      %v3602 = vunpack.c.l.b16 %v3519
      %v3603 = vunpack.c.l.b16 %v3529
      %v3604 = vunpack.c.l.b16 %v3543
      %v3605 = vunpack.c.l.b16 %v3553
      %v3606 = vunpack.c.l.b16 %v3567
      %v3607 = vunpack.c.l.b16 %v3577
      %v3608 = vpack.c.b16 %v3581, %v3580
      %v3609 = vpack.c.b16 %v3583, %v3582
      %v3610 = vpack.c.b16 %v3585, %v3584
      %v3611 = vpack.c.b16 %v3587, %v3586
      %v3612 = vpack.c.b16 %v3589, %v3588
      %v3613 = vpack.c.b16 %v3591, %v3590
      %v3614 = vpack.c.b16 %v3593, %v3592
      %v3615 = vpack.c.b16 %v3595, %v3594
      %v3616 = vpack.c.b16 %v3597, %v3596
      %v3617 = vpack.c.b16 %v3599, %v3598
      %v3618 = vpack.c.b16 %v3601, %v3600
      %v3619 = vpack.c.b16 %v3603, %v3602
      %v3620 = vpack.c.b16 %v3605, %v3604
      %v3621 = vpack.c.b16 %v3607, %v3606
      %v3623 = vsel %vm649, %v3608, 0
      %v3626 = vsel %vm649, %v3609, 0
      %v3629 = vsel %vm649, %v3610, 0
      %v3632 = vsel %vm649, %v3611, 0
      %v3635 = vsel %vm649, %v3612, 0
      %v3638 = vsel %vm649, %v3613, 0
      %v3641 = vsel %vm649, %v3614, 0
      %v3644 = vsel %vm649, %v3615, 0
      %v3647 = vsel %vm649, %v3616, 0
      %v3650 = vsel %vm649, %v3617, 0
      %v3653 = vsel %vm649, %v3618, 0
      %v3656 = vsel %vm649, %v3619, 0
      %v3659 = vsel %vm649, %v3620, 0
      %v3662 = vsel %vm649, %v3621, 0
      %v3665 = vsel %vm692, %v3579, 0
      %3667 = vmatprep.subr.bf16.mxu0 0
      %3668 = vmatpush1.bf16.msra.mxu0 0
      %3669 = vmatprep.subr.bf16.mxu0 0
      %3670 = vmatpush1.bf16.msra.mxu0 0
      %3671 = vmatprep.subr.bf16.mxu0 0
      %3672 = vmatpush1.bf16.msra.mxu0 0
      %3673 = vmatprep.subr.bf16.mxu0 0
      %3674 = vmatpush1.bf16.msra.mxu0 0
      %3675 = vmatprep.subr.bf16.mxu0 0
      %3676 = vmatpush1.bf16.msra.mxu0 0
      %3677 = vmatprep.subr.bf16.mxu0 0
      %3678 = vmatpush1.bf16.msra.mxu0 0
      %3679 = vmatprep.subr.bf16.mxu0 0
      %3680 = vmatpush1.bf16.msra.mxu0 0
      %3681 = vmatprep.subr.bf16.mxu0 0
      %3682 = vmatpush1.bf16.msra.mxu0 %v3665
      %3683 = vmatprep.subr.bf16.mxu0 0
      %3684 = vmatpush2.bf16.msra.mxu0 0
      %3685 = vmatprep.subr.bf16.mxu0 0
      %3686 = vmatpush2.bf16.msra.mxu0 0
      %3687 = vmatprep.subr.bf16.mxu0 0
      %3688 = vmatpush2.bf16.msra.mxu0 0
      %3689 = vmatprep.subr.bf16.mxu0 0
      %3690 = vmatpush2.bf16.msra.mxu0 0
      %3691 = vmatprep.subr.bf16.mxu0 0
      %3692 = vmatpush2.bf16.msra.mxu0 0
      %3693 = vmatprep.subr.bf16.mxu0 0
      %3694 = vmatpush2.bf16.msra.mxu0 0
      %3695 = vmatprep.subr.bf16.mxu0 0
      %3696 = vmatpush2.bf16.msra.mxu0 0
      %3697 = vmatprep.subr.bf16.mxu0 0
      %3698 = vmatpush2.bf16.msra.mxu0 0
      %3699 = vmatprep.mubr.bf16.mxu0 0
      %3700 = vmatmul.mubr.bf16.gmra.mxu0 %v3623
      %v3701 = vpop.f32.mrf.mxu0
      %v3702 = vadd.f32 0.0, %v3701
      %v3703 = vpop.f32.mrf.mxu0
      %v3704 = vpop.f32.mrf.mxu0
      %v3705 = vadd.f32 0.0, %v3704
      %v3706 = vpop.f32.mrf.mxu0
      %3707 = vmatprep.mubr.bf16.mxu0 0
      %3708 = vmatmul.mubr.bf16.gmra.mxu0 %v3626
      %v3709 = vpop.f32.mrf.mxu0
      %v3710 = vadd.f32 0.0, %v3709
      %v3711 = vpop.f32.mrf.mxu0
      %v3712 = vpop.f32.mrf.mxu0
      %v3713 = vadd.f32 0.0, %v3712
      %v3714 = vpop.f32.mrf.mxu0
      %3715 = vmatprep.mubr.bf16.mxu0 0
      %3716 = vmatmul.mubr.bf16.gmra.mxu0 %v3629
      %v3717 = vpop.f32.mrf.mxu0
      %v3718 = vadd.f32 0.0, %v3717
      %v3719 = vpop.f32.mrf.mxu0
      %v3720 = vpop.f32.mrf.mxu0
      %v3721 = vadd.f32 0.0, %v3720
      %v3722 = vpop.f32.mrf.mxu0
      %3723 = vmatprep.mubr.bf16.mxu0 0
      %3724 = vmatmul.mubr.bf16.gmra.mxu0 %v3632
      %v3725 = vpop.f32.mrf.mxu0
      %v3726 = vadd.f32 0.0, %v3725
      %v3727 = vpop.f32.mrf.mxu0
      %v3728 = vpop.f32.mrf.mxu0
      %v3729 = vadd.f32 0.0, %v3728
      %v3730 = vpop.f32.mrf.mxu0
      %3731 = vmatprep.mubr.bf16.mxu0 0
      %3732 = vmatmul.mubr.bf16.gmra.mxu0 %v3635
      %v3733 = vpop.f32.mrf.mxu0
      %v3734 = vadd.f32 0.0, %v3733
      %v3735 = vpop.f32.mrf.mxu0
      %v3736 = vpop.f32.mrf.mxu0
      %v3737 = vadd.f32 0.0, %v3736
      %v3738 = vpop.f32.mrf.mxu0
      %3739 = vmatprep.mubr.bf16.mxu0 0
      %3740 = vmatmul.mubr.bf16.gmra.mxu0 %v3638
      %v3741 = vpop.f32.mrf.mxu0
      %v3742 = vadd.f32 0.0, %v3741
      %v3743 = vpop.f32.mrf.mxu0
      %v3744 = vpop.f32.mrf.mxu0
      %v3745 = vadd.f32 0.0, %v3744
      %v3746 = vpop.f32.mrf.mxu0
      %3747 = vmatprep.mubr.bf16.mxu0 0
      %3748 = vmatmul.mubr.bf16.gmra.mxu0 %v3641
      %v3749 = vpop.f32.mrf.mxu0
      %v3750 = vadd.f32 0.0, %v3749
      %v3751 = vpop.f32.mrf.mxu0
      %v3752 = vpop.f32.mrf.mxu0
      %v3753 = vadd.f32 0.0, %v3752
      %v3754 = vpop.f32.mrf.mxu0
      %3755 = vmatprep.mubr.bf16.mxu0 0
      %3756 = vmatmul.mubr.bf16.gmra.mxu0 %v3644
      %v3757 = vpop.f32.mrf.mxu0
      %v3758 = vadd.f32 0.0, %v3757
      %v3759 = vpop.f32.mrf.mxu0
      %v3760 = vpop.f32.mrf.mxu0
      %v3761 = vadd.f32 0.0, %v3760
      %v3762 = vpop.f32.mrf.mxu0
      %3763 = vmatprep.mubr.bf16.mxu0 0
      %3764 = vmatmul.mubr.bf16.gmra.mxu0 %v3647
      %v3765 = vpop.f32.mrf.mxu0
      %v3766 = vadd.f32 0.0, %v3765
      %v3767 = vpop.f32.mrf.mxu0
      %v3768 = vpop.f32.mrf.mxu0
      %v3769 = vadd.f32 0.0, %v3768
      %v3770 = vpop.f32.mrf.mxu0
      %3771 = vmatprep.mubr.bf16.mxu0 0
      %3772 = vmatmul.mubr.bf16.gmra.mxu0 %v3650
      %v3773 = vpop.f32.mrf.mxu0
      %v3774 = vadd.f32 0.0, %v3773
      %v3775 = vpop.f32.mrf.mxu0
      %v3776 = vpop.f32.mrf.mxu0
      %v3777 = vadd.f32 0.0, %v3776
      %v3778 = vpop.f32.mrf.mxu0
      %3779 = vmatprep.mubr.bf16.mxu0 0
      %3780 = vmatmul.mubr.bf16.gmra.mxu0 %v3653
      %v3781 = vpop.f32.mrf.mxu0
      %v3782 = vadd.f32 0.0, %v3781
      %v3783 = vpop.f32.mrf.mxu0
      %v3784 = vpop.f32.mrf.mxu0
      %v3785 = vadd.f32 0.0, %v3784
      %v3786 = vpop.f32.mrf.mxu0
      %3787 = vmatprep.mubr.bf16.mxu0 0
      %3788 = vmatmul.mubr.bf16.gmra.mxu0 %v3656
      %v3789 = vpop.f32.mrf.mxu0
      %v3790 = vadd.f32 0.0, %v3789
      %v3791 = vpop.f32.mrf.mxu0
      %v3792 = vpop.f32.mrf.mxu0
      %v3793 = vadd.f32 0.0, %v3792
      %v3794 = vpop.f32.mrf.mxu0
      %3795 = vmatprep.mubr.bf16.mxu0 0
      %3796 = vmatmul.mubr.bf16.gmra.mxu0 %v3659
      %v3797 = vpop.f32.mrf.mxu0
      %v3798 = vadd.f32 0.0, %v3797
      %v3799 = vpop.f32.mrf.mxu0
      %v3800 = vpop.f32.mrf.mxu0
      %v3801 = vadd.f32 0.0, %v3800
      %v3802 = vpop.f32.mrf.mxu0
      %3803 = vmatprep.mubr.bf16.mxu0 0
      %3804 = vmatmul.mubr.bf16.gmra.mxu0 %v3662
      %v3805 = vpop.f32.mrf.mxu0
      %v3806 = vadd.f32 0.0, %v3805
      %v3807 = vpop.f32.mrf.mxu0
      %v3808 = vpop.f32.mrf.mxu0
      %v3809 = vadd.f32 0.0, %v3808
      %v3810 = vpop.f32.mrf.mxu0
      %3811 = vdwg.mxu0
      %v3812 = vadd.f32 %v3172, %v3702
      %v3813 = vadd.f32 %v3173, %v3705
      %v3814 = vadd.f32 %v3174, %v3710
      %v3815 = vadd.f32 %v3175, %v3713
      %v3816 = vadd.f32 %v3176, %v3718
      %v3817 = vadd.f32 %v3177, %v3721
      %v3818 = vadd.f32 %v3178, %v3726
      %v3819 = vadd.f32 %v3179, %v3729
      %v3820 = vadd.f32 %v3180, %v3734
      %v3821 = vadd.f32 %v3181, %v3737
      %v3822 = vadd.f32 %v3182, %v3742
      %v3823 = vadd.f32 %v3183, %v3745
      %v3824 = vadd.f32 %v3184, %v3750
      %v3825 = vadd.f32 %v3185, %v3753
      %v3826 = vadd.f32 %v3186, %v3758
      %v3827 = vadd.f32 %v3187, %v3761
      %v3828 = vadd.f32 %v3188, %v3766
      %v3829 = vadd.f32 %v3189, %v3769
      %v3830 = vadd.f32 %v3190, %v3774
      %v3831 = vadd.f32 %v3191, %v3777
      %v3832 = vadd.f32 %v3192, %v3782
      %v3833 = vadd.f32 %v3193, %v3785
      %v3834 = vadd.f32 %v3194, %v3790
      %v3835 = vadd.f32 %v3195, %v3793
      %v3836 = vadd.f32 %v3196, %v3798
      %v3837 = vadd.f32 %v3197, %v3801
      %v3838 = vadd.f32 %v3198, %v3806
      %v3839 = vadd.f32 %v3199, %v3809
      %v3840 = vld [vmem:[%s2881] sm:$0xe]
      %v3841 = vld [vmem:[%s2881 + $0xc] sm:$0xe]
      %v3842 = vld [vmem:[%s2881 + $0x18] sm:$0xe]
      %v3843 = vld [vmem:[%s2881 + $0x24] sm:$0xe]
      %v3844 = vld [vmem:[%s2881 + $0x30] sm:$0xe]
      %v3845 = vld [vmem:[%s2881 + $0x3c] sm:$0xe]
      %v3846 = vld [vmem:[%s2881 + $0x48] sm:$0xe]
      %v3847 = vld [vmem:[%s2881 + $0x54] sm:$0xe]
      %v3848 = vld [vmem:[%s2881 + $0x60] sm:$0xe]
      %v3849 = vld [vmem:[%s2881 + $0x6c] sm:$0xe]
      %v3850 = vld [vmem:[%s2881 + $0x78] sm:$0xe]
      %v3851 = vld [vmem:[%s2881 + $0x84] sm:$0xe]
      %v3852 = vld [vmem:[%s2881 + $0x90] sm:$0xe]
      %v3853 = vld [vmem:[%s2881 + $0x9c] sm:$0xe]
      %v3896 = vrot.slane %v3840, 5
      %v3897 = vrot.slane %v3896, 4
      %v3898 = vrot.slane %v3201, 5
      %v3899 = vsel %vm1145, %v3897, %v3898
      %v3900 = vrot.slane %v3898, 4
      %v3901 = vrot.slane %v3202, 5
      %v3902 = vsel %vm1145, %v3900, %v3901
      %v3903 = vrot.slane %v3841, 5
      %v3904 = vrot.slane %v3903, 4
      %v3905 = vrot.slane %v3204, 5
      %v3906 = vsel %vm1145, %v3904, %v3905
      %v3907 = vrot.slane %v3905, 4
      %v3908 = vrot.slane %v3205, 5
      %v3909 = vsel %vm1145, %v3907, %v3908
      %v3910 = vrot.slane %v3842, 5
      %v3911 = vrot.slane %v3910, 4
      %v3912 = vrot.slane %v3207, 5
      %v3913 = vsel %vm1145, %v3911, %v3912
      %v3914 = vrot.slane %v3912, 4
      %v3915 = vrot.slane %v3208, 5
      %v3916 = vsel %vm1145, %v3914, %v3915
      %v3917 = vrot.slane %v3843, 5
      %v3918 = vrot.slane %v3917, 4
      %v3919 = vrot.slane %v3210, 5
      %v3920 = vsel %vm1145, %v3918, %v3919
      %v3921 = vrot.slane %v3919, 4
      %v3922 = vrot.slane %v3211, 5
      %v3923 = vsel %vm1145, %v3921, %v3922
      %v3924 = vrot.slane %v3844, 5
      %v3925 = vrot.slane %v3924, 4
      %v3926 = vrot.slane %v3213, 5
      %v3927 = vsel %vm1145, %v3925, %v3926
      %v3928 = vrot.slane %v3926, 4
      %v3929 = vrot.slane %v3214, 5
      %v3930 = vsel %vm1145, %v3928, %v3929
      %v3931 = vrot.slane %v3845, 5
      %v3932 = vrot.slane %v3931, 4
      %v3933 = vrot.slane %v3216, 5
      %v3934 = vsel %vm1145, %v3932, %v3933
      %v3935 = vrot.slane %v3933, 4
      %v3936 = vrot.slane %v3217, 5
      %v3937 = vsel %vm1145, %v3935, %v3936
      %v3938 = vrot.slane %v3846, 5
      %v3939 = vrot.slane %v3938, 4
      %v3940 = vrot.slane %v3219, 5
      %v3941 = vsel %vm1145, %v3939, %v3940
      %v3942 = vrot.slane %v3940, 4
      %v3943 = vrot.slane %v3220, 5
      %v3944 = vsel %vm1145, %v3942, %v3943
      %v3945 = vrot.slane %v3847, 5
      %v3946 = vrot.slane %v3945, 4
      %v3947 = vrot.slane %v3222, 5
      %v3948 = vsel %vm1145, %v3946, %v3947
      %v3949 = vrot.slane %v3947, 4
      %v3950 = vrot.slane %v3223, 5
      %v3951 = vsel %vm1145, %v3949, %v3950
      %v3952 = vrot.slane %v3848, 5
      %v3953 = vrot.slane %v3952, 4
      %v3954 = vrot.slane %v3225, 5
      %v3955 = vsel %vm1145, %v3953, %v3954
      %v3956 = vrot.slane %v3954, 4
      %v3957 = vrot.slane %v3226, 5
      %v3958 = vsel %vm1145, %v3956, %v3957
      %v3959 = vrot.slane %v3849, 5
      %v3960 = vrot.slane %v3959, 4
      %v3961 = vrot.slane %v3228, 5
      %v3962 = vsel %vm1145, %v3960, %v3961
      %v3963 = vrot.slane %v3961, 4
      %v3964 = vrot.slane %v3229, 5
      %v3965 = vsel %vm1145, %v3963, %v3964
      %v3966 = vrot.slane %v3850, 5
      %v3967 = vrot.slane %v3966, 4
      %v3968 = vrot.slane %v3231, 5
      %v3969 = vsel %vm1145, %v3967, %v3968
      %v3970 = vrot.slane %v3968, 4
      %v3971 = vrot.slane %v3232, 5
      %v3972 = vsel %vm1145, %v3970, %v3971
      %v3973 = vrot.slane %v3851, 5
      %v3974 = vrot.slane %v3973, 4
      %v3975 = vrot.slane %v3234, 5
      %v3976 = vsel %vm1145, %v3974, %v3975
      %v3977 = vrot.slane %v3975, 4
      %v3978 = vrot.slane %v3235, 5
      %v3979 = vsel %vm1145, %v3977, %v3978
      %v3980 = vrot.slane %v3852, 5
      %v3981 = vrot.slane %v3980, 4
      %v3982 = vrot.slane %v3237, 5
      %v3983 = vsel %vm1145, %v3981, %v3982
      %v3984 = vrot.slane %v3982, 4
      %v3985 = vrot.slane %v3238, 5
      %v3986 = vsel %vm1145, %v3984, %v3985
      %v3987 = vrot.slane %v3853, 5
      %v3988 = vrot.slane %v3987, 4
      %v3989 = vrot.slane %v3240, 5
      %v3990 = vsel %vm1145, %v3988, %v3989
      %v3991 = vrot.slane %v3989, 4
      %v3992 = vrot.slane %v3241, 5
      %v3993 = vsel %vm1145, %v3991, %v3992
      %s3994 = scalar_lea.vmem %s210, 16
      %v3995 = vld [vmem:[%s3994] sm:$0x3]
      %v3996 = vunpack.c.l.b16 %v3899
      %v3997 = vunpack.c.l.b16 %v3902
      %v3998 = vunpack.c.l.b16 %v3906
      %v3999 = vunpack.c.l.b16 %v3909
      %v4000 = vunpack.c.l.b16 %v3913
      %v4001 = vunpack.c.l.b16 %v3916
      %v4002 = vunpack.c.l.b16 %v3920
      %v4003 = vunpack.c.l.b16 %v3923
      %v4004 = vunpack.c.l.b16 %v3927
      %v4005 = vunpack.c.l.b16 %v3930
      %v4006 = vunpack.c.l.b16 %v3934
      %v4007 = vunpack.c.l.b16 %v3937
      %v4008 = vunpack.c.l.b16 %v3941
      %v4009 = vunpack.c.l.b16 %v3944
      %v4010 = vunpack.c.l.b16 %v3948
      %v4011 = vunpack.c.l.b16 %v3951
      %v4012 = vunpack.c.l.b16 %v3955
      %v4013 = vunpack.c.l.b16 %v3958
      %v4014 = vunpack.c.l.b16 %v3962
      %v4015 = vunpack.c.l.b16 %v3965
      %v4016 = vunpack.c.l.b16 %v3969
      %v4017 = vunpack.c.l.b16 %v3972
      %v4018 = vunpack.c.l.b16 %v3976
      %v4019 = vunpack.c.l.b16 %v3979
      %v4020 = vunpack.c.l.b16 %v3983
      %v4021 = vunpack.c.l.b16 %v3986
      %v4022 = vunpack.c.l.b16 %v3990
      %v4023 = vunpack.c.l.b16 %v3993
      %v4024 = vpack.c.b16 %v3997, %v3996
      %v4025 = vpack.c.b16 %v3999, %v3998
      %v4026 = vpack.c.b16 %v4001, %v4000
      %v4027 = vpack.c.b16 %v4003, %v4002
      %v4028 = vpack.c.b16 %v4005, %v4004
      %v4029 = vpack.c.b16 %v4007, %v4006
      %v4030 = vpack.c.b16 %v4009, %v4008
      %v4031 = vpack.c.b16 %v4011, %v4010
      %v4032 = vpack.c.b16 %v4013, %v4012
      %v4033 = vpack.c.b16 %v4015, %v4014
      %v4034 = vpack.c.b16 %v4017, %v4016
      %v4035 = vpack.c.b16 %v4019, %v4018
      %v4036 = vpack.c.b16 %v4021, %v4020
      %v4037 = vpack.c.b16 %v4023, %v4022
      %v4039 = vsel %vm649, %v4024, 0
      %v4042 = vsel %vm649, %v4025, 0
      %v4045 = vsel %vm649, %v4026, 0
      %v4048 = vsel %vm649, %v4027, 0
      %v4051 = vsel %vm649, %v4028, 0
      %v4054 = vsel %vm649, %v4029, 0
      %v4057 = vsel %vm649, %v4030, 0
      %v4060 = vsel %vm649, %v4031, 0
      %v4063 = vsel %vm649, %v4032, 0
      %v4066 = vsel %vm649, %v4033, 0
      %v4069 = vsel %vm649, %v4034, 0
      %v4072 = vsel %vm649, %v4035, 0
      %v4075 = vsel %vm649, %v4036, 0
      %v4078 = vsel %vm649, %v4037, 0
      %v4081 = vsel %vm692, %v3995, 0
      %4083 = vmatprep.subr.bf16.mxu0 0
      %4084 = vmatpush1.bf16.msra.mxu0 0
      %4085 = vmatprep.subr.bf16.mxu0 0
      %4086 = vmatpush1.bf16.msra.mxu0 0
      %4087 = vmatprep.subr.bf16.mxu0 0
      %4088 = vmatpush1.bf16.msra.mxu0 0
      %4089 = vmatprep.subr.bf16.mxu0 0
      %4090 = vmatpush1.bf16.msra.mxu0 0
      %4091 = vmatprep.subr.bf16.mxu0 0
      %4092 = vmatpush1.bf16.msra.mxu0 0
      %4093 = vmatprep.subr.bf16.mxu0 0
      %4094 = vmatpush1.bf16.msra.mxu0 0
      %4095 = vmatprep.subr.bf16.mxu0 0
      %4096 = vmatpush1.bf16.msra.mxu0 0
      %4097 = vmatprep.subr.bf16.mxu0 0
      %4098 = vmatpush1.bf16.msra.mxu0 %v4081
      %4099 = vmatprep.subr.bf16.mxu0 0
      %4100 = vmatpush2.bf16.msra.mxu0 0
      %4101 = vmatprep.subr.bf16.mxu0 0
      %4102 = vmatpush2.bf16.msra.mxu0 0
      %4103 = vmatprep.subr.bf16.mxu0 0
      %4104 = vmatpush2.bf16.msra.mxu0 0
      %4105 = vmatprep.subr.bf16.mxu0 0
      %4106 = vmatpush2.bf16.msra.mxu0 0
      %4107 = vmatprep.subr.bf16.mxu0 0
      %4108 = vmatpush2.bf16.msra.mxu0 0
      %4109 = vmatprep.subr.bf16.mxu0 0
      %4110 = vmatpush2.bf16.msra.mxu0 0
      %4111 = vmatprep.subr.bf16.mxu0 0
      %4112 = vmatpush2.bf16.msra.mxu0 0
      %4113 = vmatprep.subr.bf16.mxu0 0
      %4114 = vmatpush2.bf16.msra.mxu0 0
      %4115 = vmatprep.mubr.bf16.mxu0 0
      %4116 = vmatmul.mubr.bf16.gmra.mxu0 %v4039
      %v4117 = vpop.f32.mrf.mxu0
      %v4118 = vadd.f32 0.0, %v4117
      %v4119 = vpop.f32.mrf.mxu0
      %v4120 = vpop.f32.mrf.mxu0
      %v4121 = vadd.f32 0.0, %v4120
      %v4122 = vpop.f32.mrf.mxu0
      %4123 = vmatprep.mubr.bf16.mxu0 0
      %4124 = vmatmul.mubr.bf16.gmra.mxu0 %v4042
      %v4125 = vpop.f32.mrf.mxu0
      %v4126 = vadd.f32 0.0, %v4125
      %v4127 = vpop.f32.mrf.mxu0
      %v4128 = vpop.f32.mrf.mxu0
      %v4129 = vadd.f32 0.0, %v4128
      %v4130 = vpop.f32.mrf.mxu0
      %4131 = vmatprep.mubr.bf16.mxu0 0
      %4132 = vmatmul.mubr.bf16.gmra.mxu0 %v4045
      %v4133 = vpop.f32.mrf.mxu0
      %v4134 = vadd.f32 0.0, %v4133
      %v4135 = vpop.f32.mrf.mxu0
      %v4136 = vpop.f32.mrf.mxu0
      %v4137 = vadd.f32 0.0, %v4136
      %v4138 = vpop.f32.mrf.mxu0
      %4139 = vmatprep.mubr.bf16.mxu0 0
      %4140 = vmatmul.mubr.bf16.gmra.mxu0 %v4048
      %v4141 = vpop.f32.mrf.mxu0
      %v4142 = vadd.f32 0.0, %v4141
      %v4143 = vpop.f32.mrf.mxu0
      %v4144 = vpop.f32.mrf.mxu0
      %v4145 = vadd.f32 0.0, %v4144
      %v4146 = vpop.f32.mrf.mxu0
      %4147 = vmatprep.mubr.bf16.mxu0 0
      %4148 = vmatmul.mubr.bf16.gmra.mxu0 %v4051
      %v4149 = vpop.f32.mrf.mxu0
      %v4150 = vadd.f32 0.0, %v4149
      %v4151 = vpop.f32.mrf.mxu0
      %v4152 = vpop.f32.mrf.mxu0
      %v4153 = vadd.f32 0.0, %v4152
      %v4154 = vpop.f32.mrf.mxu0
      %4155 = vmatprep.mubr.bf16.mxu0 0
      %4156 = vmatmul.mubr.bf16.gmra.mxu0 %v4054
      %v4157 = vpop.f32.mrf.mxu0
      %v4158 = vadd.f32 0.0, %v4157
      %v4159 = vpop.f32.mrf.mxu0
      %v4160 = vpop.f32.mrf.mxu0
      %v4161 = vadd.f32 0.0, %v4160
      %v4162 = vpop.f32.mrf.mxu0
      %4163 = vmatprep.mubr.bf16.mxu0 0
      %4164 = vmatmul.mubr.bf16.gmra.mxu0 %v4057
      %v4165 = vpop.f32.mrf.mxu0
      %v4166 = vadd.f32 0.0, %v4165
      %v4167 = vpop.f32.mrf.mxu0
      %v4168 = vpop.f32.mrf.mxu0
      %v4169 = vadd.f32 0.0, %v4168
      %v4170 = vpop.f32.mrf.mxu0
      %4171 = vmatprep.mubr.bf16.mxu0 0
      %4172 = vmatmul.mubr.bf16.gmra.mxu0 %v4060
      %v4173 = vpop.f32.mrf.mxu0
      %v4174 = vadd.f32 0.0, %v4173
      %v4175 = vpop.f32.mrf.mxu0
      %v4176 = vpop.f32.mrf.mxu0
      %v4177 = vadd.f32 0.0, %v4176
      %v4178 = vpop.f32.mrf.mxu0
      %4179 = vmatprep.mubr.bf16.mxu0 0
      %4180 = vmatmul.mubr.bf16.gmra.mxu0 %v4063
      %v4181 = vpop.f32.mrf.mxu0
      %v4182 = vadd.f32 0.0, %v4181
      %v4183 = vpop.f32.mrf.mxu0
      %v4184 = vpop.f32.mrf.mxu0
      %v4185 = vadd.f32 0.0, %v4184
      %v4186 = vpop.f32.mrf.mxu0
      %4187 = vmatprep.mubr.bf16.mxu0 0
      %4188 = vmatmul.mubr.bf16.gmra.mxu0 %v4066
      %v4189 = vpop.f32.mrf.mxu0
      %v4190 = vadd.f32 0.0, %v4189
      %v4191 = vpop.f32.mrf.mxu0
      %v4192 = vpop.f32.mrf.mxu0
      %v4193 = vadd.f32 0.0, %v4192
      %v4194 = vpop.f32.mrf.mxu0
      %4195 = vmatprep.mubr.bf16.mxu0 0
      %4196 = vmatmul.mubr.bf16.gmra.mxu0 %v4069
      %v4197 = vpop.f32.mrf.mxu0
      %v4198 = vadd.f32 0.0, %v4197
      %v4199 = vpop.f32.mrf.mxu0
      %v4200 = vpop.f32.mrf.mxu0
      %v4201 = vadd.f32 0.0, %v4200
      %v4202 = vpop.f32.mrf.mxu0
      %4203 = vmatprep.mubr.bf16.mxu0 0
      %4204 = vmatmul.mubr.bf16.gmra.mxu0 %v4072
      %v4205 = vpop.f32.mrf.mxu0
      %v4206 = vadd.f32 0.0, %v4205
      %v4207 = vpop.f32.mrf.mxu0
      %v4208 = vpop.f32.mrf.mxu0
      %v4209 = vadd.f32 0.0, %v4208
      %v4210 = vpop.f32.mrf.mxu0
      %4211 = vmatprep.mubr.bf16.mxu0 0
      %4212 = vmatmul.mubr.bf16.gmra.mxu0 %v4075
      %v4213 = vpop.f32.mrf.mxu0
      %v4214 = vadd.f32 0.0, %v4213
      %v4215 = vpop.f32.mrf.mxu0
      %v4216 = vpop.f32.mrf.mxu0
      %v4217 = vadd.f32 0.0, %v4216
      %v4218 = vpop.f32.mrf.mxu0
      %4219 = vmatprep.mubr.bf16.mxu0 0
      %4220 = vmatmul.mubr.bf16.gmra.mxu0 %v4078
      %v4221 = vpop.f32.mrf.mxu0
      %v4222 = vadd.f32 0.0, %v4221
      %v4223 = vpop.f32.mrf.mxu0
      %v4224 = vpop.f32.mrf.mxu0
      %v4225 = vadd.f32 0.0, %v4224
      %v4226 = vpop.f32.mrf.mxu0
      %4227 = vdwg.mxu0
      %v4228 = vadd.f32 %v3812, %v4118
      %v4229 = vadd.f32 %v3813, %v4121
      %v4230 = vadd.f32 %v3814, %v4126
      %v4231 = vadd.f32 %v3815, %v4129
      %v4232 = vadd.f32 %v3816, %v4134
      %v4233 = vadd.f32 %v3817, %v4137
      %v4234 = vadd.f32 %v3818, %v4142
      %v4235 = vadd.f32 %v3819, %v4145
      %v4236 = vadd.f32 %v3820, %v4150
      %v4237 = vadd.f32 %v3821, %v4153
      %v4238 = vadd.f32 %v3822, %v4158
      %v4239 = vadd.f32 %v3823, %v4161
      %v4240 = vadd.f32 %v3824, %v4166
      %v4241 = vadd.f32 %v3825, %v4169
      %v4242 = vadd.f32 %v3826, %v4174
      %v4243 = vadd.f32 %v3827, %v4177
      %v4244 = vadd.f32 %v3828, %v4182
      %v4245 = vadd.f32 %v3829, %v4185
      %v4246 = vadd.f32 %v3830, %v4190
      %v4247 = vadd.f32 %v3831, %v4193
      %v4248 = vadd.f32 %v3832, %v4198
      %v4249 = vadd.f32 %v3833, %v4201
      %v4250 = vadd.f32 %v3834, %v4206
      %v4251 = vadd.f32 %v3835, %v4209
      %v4252 = vadd.f32 %v3836, %v4214
      %v4253 = vadd.f32 %v3837, %v4217
      %v4254 = vadd.f32 %v3838, %v4222
      %v4255 = vadd.f32 %v3839, %v4225
      %v4256 = vld [vmem:[%s213] sm:$0x1]
      %v4258 = vlaneseq
      %v4259 = vshrl.u32 %v4258, 7
      %v4260 = vsub.s32 0, %v4259
      %v4261 = vrot.slane %v4256, %v4260
      %v4263 = vadd.f32 %v4228, %v4261
      %v4264 = vadd.f32 %v4229, %v4261
      %v4265 = vadd.f32 %v4230, %v4261
      %v4266 = vadd.f32 %v4231, %v4261
      %v4267 = vadd.f32 %v4232, %v4261
      %v4268 = vadd.f32 %v4233, %v4261
      %v4269 = vadd.f32 %v4234, %v4261
      %v4270 = vadd.f32 %v4235, %v4261
      %v4271 = vadd.f32 %v4236, %v4261
      %v4272 = vadd.f32 %v4237, %v4261
      %v4273 = vadd.f32 %v4238, %v4261
      %v4274 = vadd.f32 %v4239, %v4261
      %v4275 = vadd.f32 %v4240, %v4261
      %v4276 = vadd.f32 %v4241, %v4261
      %v4277 = vadd.f32 %v4242, %v4261
      %v4278 = vadd.f32 %v4243, %v4261
      %v4279 = vadd.f32 %v4244, %v4261
      %v4280 = vadd.f32 %v4245, %v4261
      %v4281 = vadd.f32 %v4246, %v4261
      %v4282 = vadd.f32 %v4247, %v4261
      %v4283 = vadd.f32 %v4248, %v4261
      %v4284 = vadd.f32 %v4249, %v4261
      %v4285 = vadd.f32 %v4250, %v4261
      %v4286 = vadd.f32 %v4251, %v4261
      %v4287 = vadd.f32 %v4252, %v4261
      %v4288 = vadd.f32 %v4253, %v4261
      %v4289 = vadd.f32 %v4254, %v4261
      %v4290 = vadd.f32 %v4255, %v4261
      %v4291 = vpack.c.bf16 %v4264, %v4263
      %v4292 = vpack.c.bf16 %v4266, %v4265
      %v4293 = vpack.c.bf16 %v4268, %v4267
      %v4294 = vpack.c.bf16 %v4270, %v4269
      %v4295 = vpack.c.bf16 %v4272, %v4271
      %v4296 = vpack.c.bf16 %v4274, %v4273
      %v4297 = vpack.c.bf16 %v4276, %v4275
      %v4298 = vpack.c.bf16 %v4278, %v4277
      %v4299 = vpack.c.bf16 %v4280, %v4279
      %v4300 = vpack.c.bf16 %v4282, %v4281
      %v4301 = vpack.c.bf16 %v4284, %v4283
      %v4302 = vpack.c.bf16 %v4286, %v4285
      %v4303 = vpack.c.bf16 %v4288, %v4287
      %v4304 = vpack.c.bf16 %v4290, %v4289
      %v4319 = vunpack.c.l.b16 %v4291
      %v4320 = vunpack.c.h.b16 %v4291
      %v4321 = vunpack.c.l.b16 %v4292
      %v4322 = vunpack.c.h.b16 %v4292
      %v4323 = vunpack.c.l.b16 %v4293
      %v4324 = vunpack.c.h.b16 %v4293
      %v4325 = vunpack.c.l.b16 %v4294
      %v4326 = vunpack.c.h.b16 %v4294
      %v4327 = vunpack.c.l.b16 %v4295
      %v4328 = vunpack.c.h.b16 %v4295
      %v4329 = vunpack.c.l.b16 %v4296
      %v4330 = vunpack.c.h.b16 %v4296
      %v4331 = vunpack.c.l.b16 %v4297
      %v4332 = vunpack.c.h.b16 %v4297
      %v4333 = vunpack.c.l.b16 %v4298
      %v4334 = vunpack.c.h.b16 %v4298
      %v4335 = vunpack.c.l.b16 %v4299
      %v4336 = vunpack.c.h.b16 %v4299
      %v4337 = vunpack.c.l.b16 %v4300
      %v4338 = vunpack.c.h.b16 %v4300
      %v4339 = vunpack.c.l.b16 %v4301
      %v4340 = vunpack.c.h.b16 %v4301
      %v4341 = vunpack.c.l.b16 %v4302
      %v4342 = vunpack.c.h.b16 %v4302
      %v4343 = vunpack.c.l.b16 %v4303
      %v4344 = vunpack.c.h.b16 %v4303
      %v4345 = vunpack.c.l.b16 %v4304
      %v4346 = vunpack.c.h.b16 %v4304
      %v4347 = vpack.c.b16 %v4319, %v4319
      %v4348 = vpack.c.b16 %v4320, %v4320
      %v4349 = vpack.c.b16 %v4321, %v4321
      %v4350 = vpack.c.b16 %v4322, %v4322
      %v4351 = vpack.c.b16 %v4323, %v4323
      %v4352 = vpack.c.b16 %v4324, %v4324
      %v4353 = vpack.c.b16 %v4325, %v4325
      %v4354 = vpack.c.b16 %v4326, %v4326
      %v4355 = vpack.c.b16 %v4327, %v4327
      %v4356 = vpack.c.b16 %v4328, %v4328
      %v4357 = vpack.c.b16 %v4329, %v4329
      %v4358 = vpack.c.b16 %v4330, %v4330
      %v4359 = vpack.c.b16 %v4331, %v4331
      %v4360 = vpack.c.b16 %v4332, %v4332
      %v4361 = vpack.c.b16 %v4333, %v4333
      %v4362 = vpack.c.b16 %v4334, %v4334
      %v4363 = vpack.c.b16 %v4335, %v4335
      %v4364 = vpack.c.b16 %v4336, %v4336
      %v4365 = vpack.c.b16 %v4337, %v4337
      %v4366 = vpack.c.b16 %v4338, %v4338
      %v4367 = vpack.c.b16 %v4339, %v4339
      %v4368 = vpack.c.b16 %v4340, %v4340
      %v4369 = vpack.c.b16 %v4341, %v4341
      %v4370 = vpack.c.b16 %v4342, %v4342
      %v4371 = vpack.c.b16 %v4343, %v4343
      %v4372 = vpack.c.b16 %v4344, %v4344
      %v4373 = vpack.c.b16 %v4345, %v4345
      %v4374 = vpack.c.b16 %v4346, %v4346
      %vm4403 = vcmask 60416
      %4404 = vst.msk [vmem:[%s221] sm:$0xf] %vm4403, %v4347
      %vm4405 = vcmask 59392
      %4406 = vst.msk [vmem:[%s221 + $0x4] sm:$0x7] %vm4405, %v4348
      %4407 = vst.msk [vmem:[%s221 + $0x8] sm:$0xf] %vm4403, %v4349
      %4408 = vst.msk [vmem:[%s221 + $0xc] sm:$0x7] %vm4405, %v4350
      %4409 = vst.msk [vmem:[%s221 + $0x10] sm:$0xf] %vm4403, %v4351
      %4410 = vst.msk [vmem:[%s221 + $0x14] sm:$0x7] %vm4405, %v4352
      %4411 = vst.msk [vmem:[%s221 + $0x18] sm:$0xf] %vm4403, %v4353
      %4412 = vst.msk [vmem:[%s221 + $0x1c] sm:$0x7] %vm4405, %v4354
      %4413 = vst.msk [vmem:[%s221 + $0x20] sm:$0xf] %vm4403, %v4355
      %4414 = vst.msk [vmem:[%s221 + $0x24] sm:$0x7] %vm4405, %v4356
      %4415 = vst.msk [vmem:[%s221 + $0x28] sm:$0xf] %vm4403, %v4357
      %4416 = vst.msk [vmem:[%s221 + $0x2c] sm:$0x7] %vm4405, %v4358
      %4417 = vst.msk [vmem:[%s221 + $0x30] sm:$0xf] %vm4403, %v4359
      %4418 = vst.msk [vmem:[%s221 + $0x34] sm:$0x7] %vm4405, %v4360
      %4419 = vst.msk [vmem:[%s221 + $0x38] sm:$0xf] %vm4403, %v4361
      %4420 = vst.msk [vmem:[%s221 + $0x3c] sm:$0x7] %vm4405, %v4362
      %4421 = vst.msk [vmem:[%s221 + $0x40] sm:$0xf] %vm4403, %v4363
      %4422 = vst.msk [vmem:[%s221 + $0x44] sm:$0x7] %vm4405, %v4364
      %4423 = vst.msk [vmem:[%s221 + $0x48] sm:$0xf] %vm4403, %v4365
      %4424 = vst.msk [vmem:[%s221 + $0x4c] sm:$0x7] %vm4405, %v4366
      %4425 = vst.msk [vmem:[%s221 + $0x50] sm:$0xf] %vm4403, %v4367
      %4426 = vst.msk [vmem:[%s221 + $0x54] sm:$0x7] %vm4405, %v4368
      %4427 = vst.msk [vmem:[%s221 + $0x58] sm:$0xf] %vm4403, %v4369
      %4428 = vst.msk [vmem:[%s221 + $0x5c] sm:$0x7] %vm4405, %v4370
      %4429 = vst.msk [vmem:[%s221 + $0x60] sm:$0xf] %vm4403, %v4371
      %4430 = vst.msk [vmem:[%s221 + $0x64] sm:$0x7] %vm4405, %v4372
      %4431 = vst.msk [vmem:[%s221 + $0x68] sm:$0xf] %vm4403, %v4373
      %4432 = vst.msk [vmem:[%s221 + $0x6c] sm:$0x7] %vm4405, %v4374
      %p4433 = scmp.lt.s32.totalorder %s18, 1
      %s4434 = scalar_select %p4433, %s18, 1
      %p4435 = scmp.lt.s32.totalorder %s19, 0
      %s4436 = scalar_select %p4435, %s19, 0
      %s4437 = smul.addr %s4434, 28
      %s4438 = sadd.s32 %s4436, %s4437
      %s4439 = smul.addr %s4438, 4
      %s4440 = scalar_lea.vmem %s3, %s4439
      // Predicated region
      $region33: #{forward.2} parent=31 // pred_check
        %p4441 = pneg %p124
      $region34: #{forward.2} parent=31 // pred_check_branch
        %4443 = sbr.rel (%p4441) target = $region36
      $region35: #{forward.2} parent=31 // pred_region
        _
      $region36: #{forward.2} parent=31 // pred_fallthru
        _
    $region32: #{forward.2} parent=5 // pred_fallthru
      _
    %p4444 = scmp.le.s32.totalorder 2, %s9
    // Predicated region
    $region37: #{forward.2} parent=5 // pred_check
      %p4445 = pneg %p4444
    $region38: #{forward.2} parent=5 // pred_check_branch
      %4447 = sbr.rel (%p4445) target = $region40
    $region39: #{forward.2} parent=5 // pred_region
      %s4448 = ssub.s32 %s9, 2
      // Predicated region
      $region41: #{forward.2} parent=39 // pred_check
        %p4449 = pneg %p130
      $region42: #{forward.2} parent=39 // pred_check_branch
        %4451 = sbr.rel (%p4449) target = $region44
      $region43: #{forward.2} parent=39 // pred_region
        %p4452 = scmp.lt.s32.totalorder %s20, 1
        %s4453 = scalar_select %p4452, %s20, 1
        %p4454 = scmp.lt.s32.totalorder %s21, 0
        %s4455 = scalar_select %p4454, %s21, 0
        %s4456 = smul.addr %s4453, 28
        %s4457 = sadd.s32 %s4455, %s4456
        %s4458 = smul.addr %s4457, 4
        %s4459 = scalar_lea.vmem %s3, %s4458
      $region44: #{forward.2} parent=39 // pred_fallthru
        _
    $region40: #{forward.2} parent=5 // pred_fallthru
      _
  $region6: #{forward.2} parent=0 // loop_footer
    %s13 = sadd.s32 1, %s9
  $region7: #{forward.2} parent=0 // loop_footer_branch
    %8 = sbr.rel target = $region3
  $region8: #{forward.2} parent=0 // loop_exit
    _

// kernel: forward.3
$region0: #{forward.3}
  #allocation0 [shape = 'u32[]', space=smem, size = 0x4, offset = 0x4, fixed_abs, tag = 'smem constant byte address 0x4 - core index']
  #allocation1 [shape = 'u32[144,128]{1,0:T(1,128)}', space=vmem, size = 0x12000, scoped, tag = 'internal scratch']
  %s0 = inlined_call_operand.vmem [shape: bf16[2,14,18,8], index: 0, kind: input, shape index: {}]
  %s1 = inlined_call_operand.vmem [shape: bf16[3,3,8,8], index: 1, kind: input, shape index: {}]
  %s2 = inlined_call_operand.vmem [shape: f32[1,8], index: 2, kind: input, shape index: {}]
  %s3 = inlined_call_operand.vmem [shape: f32[2,12,12,8], index: 3, kind: output, shape index: {}]
  %s4 = sld [smem:[#allocation0]]
  $region45: #{forward.3} parent=0
    _
  %s6 = ssub.s32 1, %s4
  %s7 = scalar_select 0, %s6, %s4
  loop: start=0, step=1, limit=4
  $region2: #{forward.3} parent=0 // loop_pre_header
    _
  $region3: #{forward.3} parent=0 // loop_header
    %s9 = sphi 0, %s13
    %p10 = scmp.ge.s32.totalorder %s9, 4
    %s16 = sphi 0, %s28
    %s17 = sphi 0, %s24
    %s18 = sphi 0, %s16
    %s19 = sphi 0, %s17
    %s20 = sphi 0, %s18
    %s21 = sphi 0, %s19
    %s31 = sphi 0, %s33
    %s34 = sphi 0, %s31
    %s35 = sphi 0, %s34
    %s51 = sphi 0, %s35
    %s57 = sphi 0, %s59
    %s60 = sphi 0, %s57
    %s61 = sphi 0, %s60
    %s77 = sphi 0, %s61
    %s83 = sphi 0, %s85
    %s86 = sphi 0, %s83
    %s87 = sphi 0, %s86
    %s103 = sphi 0, %s87
    %s111 = sphi 0, %s113
    %s114 = sphi 0, %s111
    %s115 = sphi 0, %s114
    %s131 = sphi 0, %s115
  $region4: #{forward.3} parent=0 // loop_header_branch
    %12 = sbr.rel (%p10) target = $region8
  $region5: #{forward.3} parent=0 // loop_body
    %s14 = ssub.s32 %s9, 1
    %s15 = ssub.s32 %s9, 2
    %s22 = sadd.s32 1, %s17
    %p23 = scmp.ge.s32.totalorder %s22, 1
    %s24 = scalar_select %p23, 0, %s22
    %s25 = sadd.s32 1, %s16
    %s26 = scalar_select %p23, %s25, %s16
    %p27 = scmp.ge.s32.totalorder %s26, 2
    %s28 = scalar_select %p27, 0, %s26
    %s29 = ssub.s32 %s16, %s28
    %p30 = scmp.eq.s32.totalorder %s29, 0
    %s32 = sadd.s32 %s31, 1
    %s33 = scalar_select %p30, %s31, %s32
    %p36 = pneg %p30
    %p37 = scmp.eq.s32.totalorder %s9, 1
    %p38 = por %p36, %p37
    %p39 = scmp.ne.s32.totalorder %s31, %s34
    %p40 = scmp.eq.s32.totalorder %s9, 0
    %p41 = por %p39, %p40
    %p42 = scmp.ne.s32.totalorder %s31, %s34
    %p43 = scmp.eq.s32.totalorder %s14, 1
    %p44 = por %p42, %p43
    %p45 = scmp.ne.s32.totalorder %s34, %s35
    %p46 = scmp.eq.s32.totalorder %s14, 0
    %p47 = por %p45, %p46
    %p48 = scmp.ne.s32.totalorder %s34, %s35
    %p49 = scmp.eq.s32.totalorder %s15, 1
    %p50 = por %p48, %p49
    %p52 = scmp.ne.s32.totalorder %s35, %s51
    %p53 = scmp.eq.s32.totalorder %s15, 0
    %p54 = por %p52, %p53
    %s55 = ssub.s32 %s17, %s24
    %p56 = scmp.eq.s32.totalorder %s55, 0
    %s58 = sadd.s32 %s57, 1
    %s59 = scalar_select %p56, %s57, %s58
    %p62 = pneg %p56
    %p63 = scmp.eq.s32.totalorder %s9, 1
    %p64 = por %p62, %p63
    %p65 = scmp.ne.s32.totalorder %s57, %s60
    %p66 = scmp.eq.s32.totalorder %s9, 0
    %p67 = por %p65, %p66
    %p68 = scmp.ne.s32.totalorder %s57, %s60
    %p69 = scmp.eq.s32.totalorder %s14, 1
    %p70 = por %p68, %p69
    %p71 = scmp.ne.s32.totalorder %s60, %s61
    %p72 = scmp.eq.s32.totalorder %s14, 0
    %p73 = por %p71, %p72
    %p74 = scmp.ne.s32.totalorder %s60, %s61
    %p75 = scmp.eq.s32.totalorder %s15, 1
    %p76 = por %p74, %p75
    %p78 = scmp.ne.s32.totalorder %s61, %s77
    %p79 = scmp.eq.s32.totalorder %s15, 0
    %p80 = por %p78, %p79
    %s81 = ssub.s32 %s17, %s24
    %p82 = scmp.eq.s32.totalorder %s81, 0
    %s84 = sadd.s32 %s83, 1
    %s85 = scalar_select %p82, %s83, %s84
    %p88 = pneg %p82
    %p89 = scmp.eq.s32.totalorder %s9, 1
    %p90 = por %p88, %p89
    %p91 = scmp.ne.s32.totalorder %s83, %s86
    %p92 = scmp.eq.s32.totalorder %s9, 0
    %p93 = por %p91, %p92
    %p94 = scmp.ne.s32.totalorder %s83, %s86
    %p95 = scmp.eq.s32.totalorder %s14, 1
    %p96 = por %p94, %p95
    %p97 = scmp.ne.s32.totalorder %s86, %s87
    %p98 = scmp.eq.s32.totalorder %s14, 0
    %p99 = por %p97, %p98
    %p100 = scmp.ne.s32.totalorder %s86, %s87
    %p101 = scmp.eq.s32.totalorder %s15, 1
    %p102 = por %p100, %p101
    %p104 = scmp.ne.s32.totalorder %s87, %s103
    %p105 = scmp.eq.s32.totalorder %s15, 0
    %p106 = por %p104, %p105
    %s107 = ssub.s32 %s16, %s28
    %s108 = ssub.s32 %s17, %s24
    %s109 = sor.u32 %s107, %s108
    %p110 = scmp.eq.s32.totalorder %s109, 0
    %s112 = sadd.s32 %s111, 1
    %s113 = scalar_select %p110, %s111, %s112
    %p116 = pneg %p110
    %p117 = scmp.eq.s32.totalorder %s9, 1
    %p118 = por %p116, %p117
    %p119 = scmp.ne.s32.totalorder %s111, %s114
    %p120 = scmp.eq.s32.totalorder %s9, 0
    %p121 = por %p119, %p120
    %p122 = scmp.ne.s32.totalorder %s111, %s114
    %p123 = scmp.eq.s32.totalorder %s14, 1
    %p124 = por %p122, %p123
    %p125 = scmp.ne.s32.totalorder %s114, %s115
    %p126 = scmp.eq.s32.totalorder %s14, 0
    %p127 = por %p125, %p126
    %p128 = scmp.ne.s32.totalorder %s114, %s115
    %p129 = scmp.eq.s32.totalorder %s15, 1
    %p130 = por %p128, %p129
    %p132 = scmp.ne.s32.totalorder %s115, %s131
    %p133 = scmp.eq.s32.totalorder %s15, 0
    %p134 = por %p132, %p133
    %p135 = scmp.le.s32.totalorder 1, %s9
    %p136 = scmp.lt.s32.totalorder %s9, 3
    %p137 = pnand %p135, %p136
    %p138 = pneg %p137
    // Predicated region
    $region9: #{forward.3} parent=5 // pred_check
      _
    $region10: #{forward.3} parent=5 // pred_check_branch
      %140 = sbr.rel (%p137) target = $region12
    $region11: #{forward.3} parent=5 // pred_region
      %s141 = ssub.s32 %s9, 1
      // Predicated region
      $region13: #{forward.3} parent=11 // pred_check
        %p142 = pneg %p73
      $region14: #{forward.3} parent=11 // pred_check_branch
        %144 = sbr.rel (%p142) target = $region16
      $region15: #{forward.3} parent=11 // pred_region
        %p145 = scmp.lt.s32.totalorder %s19, 0
        %s146 = scalar_select %p145, %s19, 0
        %s147 = smul.addr %s146, 4
        %s148 = scalar_lea.vmem %s1, %s147
      $region16: #{forward.3} parent=11 // pred_fallthru
        _
      // Predicated region
      $region17: #{forward.3} parent=11 // pred_check
        %p149 = pneg %p99
      $region18: #{forward.3} parent=11 // pred_check_branch
        %151 = sbr.rel (%p149) target = $region20
      $region19: #{forward.3} parent=11 // pred_region
        %p152 = scmp.lt.s32.totalorder %s19, 0
        %s153 = scalar_select %p152, %s19, 0
        %s154 = scalar_lea.vmem %s2, %s153
      $region20: #{forward.3} parent=11 // pred_fallthru
        _
    $region12: #{forward.3} parent=5 // pred_fallthru
      _
    %p155 = scmp.lt.s32.totalorder %s9, 2
    // Predicated region
    $region21: #{forward.3} parent=5 // pred_check
      %p156 = pneg %p155
    $region22: #{forward.3} parent=5 // pred_check_branch
      %158 = sbr.rel (%p156) target = $region24
    $region23: #{forward.3} parent=5 // pred_region
      // Predicated region
      $region25: #{forward.3} parent=23 // pred_check
        %p159 = pneg %p41
      $region26: #{forward.3} parent=23 // pred_check_branch
        %161 = sbr.rel (%p159) target = $region28
      $region27: #{forward.3} parent=23 // pred_region
        %p162 = scmp.lt.s32.totalorder %s16, 1
        %s163 = scalar_select %p162, %s16, 1
        %s164 = smul.addr %s163, 42
        %s165 = smul.addr %s164, 4
        %s166 = scalar_lea.vmem %s0, %s165
      $region28: #{forward.3} parent=23 // pred_fallthru
        _
    $region24: #{forward.3} parent=5 // pred_fallthru
      _
    %p167 = scmp.le.s32.totalorder 1, %s9
    %p168 = scmp.lt.s32.totalorder %s9, 3
    %p169 = pnand %p167, %p168
    %p170 = pneg %p169
    // Predicated region
    $region29: #{forward.3} parent=5 // pred_check
      _
    $region30: #{forward.3} parent=5 // pred_check_branch
      %172 = sbr.rel (%p169) target = $region32
    $region31: #{forward.3} parent=5 // pred_region
      %s173 = ssub.s32 %s9, 1
      %p174 = scmp.lt.s32.totalorder %s18, 1
      %s175 = scalar_select %p174, %s18, 1
      %s176 = smul.addr %s175, 42
      %s177 = smul.addr %s176, 4
      %s178 = scalar_lea.vmem %s0, %s177
      %p179 = pneg %p47
      %p180 = pneg %p44
      %p181 = scmp.lt.s32.totalorder %s19, 0
      %s182 = scalar_select %p181, %s19, 0
      %s183 = smul.addr %s182, 4
      %s184 = scalar_lea.vmem %s1, %s183
      %p185 = pneg %p73
      %p186 = pneg %p70
      %p187 = scmp.lt.s32.totalorder %s19, 0
      %s188 = scalar_select %p187, %s19, 0
      %s189 = scalar_lea.vmem %s2, %s188
      %p190 = pneg %p99
      %p191 = pneg %p96
      %p192 = pneg %p127
      %p193 = pneg %p124
      %p194 = scmp.lt.s32.totalorder %s18, 1
      %s195 = scalar_select %p194, %s18, 1
      %p196 = scmp.lt.s32.totalorder %s19, 0
      %s197 = scalar_select %p196, %s19, 0
      %s198 = smul.addr %s195, 24
      %s199 = sadd.s32 %s197, %s198
      %s200 = smul.addr %s199, 8
      %s201 = scalar_lea.vmem %s3, %s200
      %p202 = scmp.lt.s32.totalorder %s18, 1
      %s203 = scalar_select %p202, %s18, 1
      %s204 = smul.addr %s203, 42
      %s205 = smul.addr %s204, 4
      %s206 = scalar_lea.vmem %s0, %s205
      %p207 = scmp.lt.s32.totalorder %s19, 0
      %s208 = scalar_select %p207, %s19, 0
      %s209 = smul.addr %s208, 4
      %s210 = scalar_lea.vmem %s1, %s209
      %p211 = scmp.lt.s32.totalorder %s19, 0
      %s212 = scalar_select %p211, %s19, 0
      %s213 = scalar_lea.vmem %s2, %s212
      %p214 = scmp.lt.s32.totalorder %s18, 1
      %s215 = scalar_select %p214, %s18, 1
      %p216 = scmp.lt.s32.totalorder %s19, 0
      %s217 = scalar_select %p216, %s19, 0
      %s218 = smul.addr %s215, 24
      %s219 = sadd.s32 %s217, %s218
      %s220 = smul.addr %s219, 8
      %s221 = scalar_lea.vmem %s3, %s220
      %v223 = vld [vmem:[%s206] sm:$0xf]
      %v224 = vld [vmem:[%s206 + $0x4] sm:$0xf]
      %v225 = vld [vmem:[%s206 + $0xc] sm:$0xf]
      %v226 = vld [vmem:[%s206 + $0x10] sm:$0xf]
      %v227 = vld [vmem:[%s206 + $0x18] sm:$0xf]
      %v228 = vld [vmem:[%s206 + $0x1c] sm:$0xf]
      %v229 = vld [vmem:[%s206 + $0x24] sm:$0xf]
      %v230 = vld [vmem:[%s206 + $0x28] sm:$0xf]
      %v231 = vld [vmem:[%s206 + $0x30] sm:$0xf]
      %v232 = vld [vmem:[%s206 + $0x34] sm:$0xf]
      %v233 = vld [vmem:[%s206 + $0x3c] sm:$0xf]
      %v234 = vld [vmem:[%s206 + $0x40] sm:$0xf]
      %v235 = vld [vmem:[%s206 + $0x48] sm:$0xf]
      %v236 = vld [vmem:[%s206 + $0x4c] sm:$0xf]
      %v237 = vld [vmem:[%s206 + $0x54] sm:$0xf]
      %v238 = vld [vmem:[%s206 + $0x58] sm:$0xf]
      %v239 = vld [vmem:[%s206 + $0x60] sm:$0xf]
      %v240 = vld [vmem:[%s206 + $0x64] sm:$0xf]
      %v241 = vld [vmem:[%s206 + $0x6c] sm:$0xf]
      %v242 = vld [vmem:[%s206 + $0x70] sm:$0xf]
      %v243 = vld [vmem:[%s206 + $0x78] sm:$0xf]
      %v244 = vld [vmem:[%s206 + $0x7c] sm:$0xf]
      %v245 = vld [vmem:[%s206 + $0x84] sm:$0xf]
      %v246 = vld [vmem:[%s206 + $0x88] sm:$0xf]
      %v247 = vld [vmem:[%s210] sm:$0xf]
      %v248 = vld [vmem:[%s206 + $0x8] sm:$0x1]
      %v249 = vld [vmem:[%s206 + $0x14] sm:$0x1]
      %v250 = vld [vmem:[%s206 + $0x20] sm:$0x1]
      %v251 = vld [vmem:[%s206 + $0x2c] sm:$0x1]
      %v252 = vld [vmem:[%s206 + $0x38] sm:$0x1]
      %v253 = vld [vmem:[%s206 + $0x44] sm:$0x1]
      %v254 = vld [vmem:[%s206 + $0x50] sm:$0x1]
      %v255 = vld [vmem:[%s206 + $0x5c] sm:$0x1]
      %v256 = vld [vmem:[%s206 + $0x68] sm:$0x1]
      %v257 = vld [vmem:[%s206 + $0x74] sm:$0x1]
      %v258 = vld [vmem:[%s206 + $0x80] sm:$0x1]
      %v259 = vld [vmem:[%s206 + $0x8c] sm:$0x1]
      %vm260 = vsmask.f32 3328
      %vm261 = vsmask.f32 7440
      %vm262 = vmor %vm260, %vm261
      %v264 = vshrl.u32 %v223, 16
      %v266 = vrot.slane %v264, 4
      %v267 = vshll.u32 %v223, 16
      %v269 = vrot.slane %v267, 5
      %v270 = vor.u32 %v266, %v269
      %v271 = vrot.slane %v270, 4
      %v273 = vshll.u32 %v224, 16
      %v275 = vrot.slane %v273, 5
      %v276 = vsel %vm262, %v271, %v275
      %v277 = vshrl.u32 %v224, 16
      %v279 = vrot.slane %v277, 4
      %v280 = vor.u32 %v279, %v275
      %v281 = vrot.slane %v280, 4
      %v283 = vshll.u32 %v248, 16
      %v285 = vrot.slane %v283, 5
      %v286 = vsel %vm262, %v281, %v285
      %v288 = vshrl.u32 %v225, 16
      %v290 = vrot.slane %v288, 4
      %v291 = vshll.u32 %v225, 16
      %v293 = vrot.slane %v291, 5
      %v294 = vor.u32 %v290, %v293
      %v295 = vrot.slane %v294, 4
      %v297 = vshll.u32 %v226, 16
      %v299 = vrot.slane %v297, 5
      %v300 = vsel %vm262, %v295, %v299
      %v301 = vshrl.u32 %v226, 16
      %v303 = vrot.slane %v301, 4
      %v304 = vor.u32 %v303, %v299
      %v305 = vrot.slane %v304, 4
      %v307 = vshll.u32 %v249, 16
      %v309 = vrot.slane %v307, 5
      %v310 = vsel %vm262, %v305, %v309
      %v312 = vshrl.u32 %v227, 16
      %v314 = vrot.slane %v312, 4
      %v315 = vshll.u32 %v227, 16
      %v317 = vrot.slane %v315, 5
      %v318 = vor.u32 %v314, %v317
      %v319 = vrot.slane %v318, 4
      %v321 = vshll.u32 %v228, 16
      %v323 = vrot.slane %v321, 5
      %v324 = vsel %vm262, %v319, %v323
      %v325 = vshrl.u32 %v228, 16
      %v327 = vrot.slane %v325, 4
      %v328 = vor.u32 %v327, %v323
      %v329 = vrot.slane %v328, 4
      %v331 = vshll.u32 %v250, 16
      %v333 = vrot.slane %v331, 5
      %v334 = vsel %vm262, %v329, %v333
      %v336 = vshrl.u32 %v229, 16
      %v338 = vrot.slane %v336, 4
      %v339 = vshll.u32 %v229, 16
      %v341 = vrot.slane %v339, 5
      %v342 = vor.u32 %v338, %v341
      %v343 = vrot.slane %v342, 4
      %v345 = vshll.u32 %v230, 16
      %v347 = vrot.slane %v345, 5
      %v348 = vsel %vm262, %v343, %v347
      %v349 = vshrl.u32 %v230, 16
      %v351 = vrot.slane %v349, 4
      %v352 = vor.u32 %v351, %v347
      %v353 = vrot.slane %v352, 4
      %v355 = vshll.u32 %v251, 16
      %v357 = vrot.slane %v355, 5
      %v358 = vsel %vm262, %v353, %v357
      %v360 = vshrl.u32 %v231, 16
      %v362 = vrot.slane %v360, 4
      %v363 = vshll.u32 %v231, 16
      %v365 = vrot.slane %v363, 5
      %v366 = vor.u32 %v362, %v365
      %v367 = vrot.slane %v366, 4
      %v369 = vshll.u32 %v232, 16
      %v371 = vrot.slane %v369, 5
      %v372 = vsel %vm262, %v367, %v371
      %v373 = vshrl.u32 %v232, 16
      %v375 = vrot.slane %v373, 4
      %v376 = vor.u32 %v375, %v371
      %v377 = vrot.slane %v376, 4
      %v379 = vshll.u32 %v252, 16
      %v381 = vrot.slane %v379, 5
      %v382 = vsel %vm262, %v377, %v381
      %v384 = vshrl.u32 %v233, 16
      %v386 = vrot.slane %v384, 4
      %v387 = vshll.u32 %v233, 16
      %v389 = vrot.slane %v387, 5
      %v390 = vor.u32 %v386, %v389
      %v391 = vrot.slane %v390, 4
      %v393 = vshll.u32 %v234, 16
      %v395 = vrot.slane %v393, 5
      %v396 = vsel %vm262, %v391, %v395
      %v397 = vshrl.u32 %v234, 16
      %v399 = vrot.slane %v397, 4
      %v400 = vor.u32 %v399, %v395
      %v401 = vrot.slane %v400, 4
      %v403 = vshll.u32 %v253, 16
      %v405 = vrot.slane %v403, 5
      %v406 = vsel %vm262, %v401, %v405
      %v408 = vshrl.u32 %v235, 16
      %v410 = vrot.slane %v408, 4
      %v411 = vshll.u32 %v235, 16
      %v413 = vrot.slane %v411, 5
      %v414 = vor.u32 %v410, %v413
      %v415 = vrot.slane %v414, 4
      %v417 = vshll.u32 %v236, 16
      %v419 = vrot.slane %v417, 5
      %v420 = vsel %vm262, %v415, %v419
      %v421 = vshrl.u32 %v236, 16
      %v423 = vrot.slane %v421, 4
      %v424 = vor.u32 %v423, %v419
      %v425 = vrot.slane %v424, 4
      %v427 = vshll.u32 %v254, 16
      %v429 = vrot.slane %v427, 5
      %v430 = vsel %vm262, %v425, %v429
      %v432 = vshrl.u32 %v237, 16
      %v434 = vrot.slane %v432, 4
      %v435 = vshll.u32 %v237, 16
      %v437 = vrot.slane %v435, 5
      %v438 = vor.u32 %v434, %v437
      %v439 = vrot.slane %v438, 4
      %v441 = vshll.u32 %v238, 16
      %v443 = vrot.slane %v441, 5
      %v444 = vsel %vm262, %v439, %v443
      %v445 = vshrl.u32 %v238, 16
      %v447 = vrot.slane %v445, 4
      %v448 = vor.u32 %v447, %v443
      %v449 = vrot.slane %v448, 4
      %v451 = vshll.u32 %v255, 16
      %v453 = vrot.slane %v451, 5
      %v454 = vsel %vm262, %v449, %v453
      %v456 = vshrl.u32 %v239, 16
      %v458 = vrot.slane %v456, 4
      %v459 = vshll.u32 %v239, 16
      %v461 = vrot.slane %v459, 5
      %v462 = vor.u32 %v458, %v461
      %v463 = vrot.slane %v462, 4
      %v465 = vshll.u32 %v240, 16
      %v467 = vrot.slane %v465, 5
      %v468 = vsel %vm262, %v463, %v467
      %v469 = vshrl.u32 %v240, 16
      %v471 = vrot.slane %v469, 4
      %v472 = vor.u32 %v471, %v467
      %v473 = vrot.slane %v472, 4
      %v475 = vshll.u32 %v256, 16
      %v477 = vrot.slane %v475, 5
      %v478 = vsel %vm262, %v473, %v477
      %v480 = vshrl.u32 %v241, 16
      %v482 = vrot.slane %v480, 4
      %v483 = vshll.u32 %v241, 16
      %v485 = vrot.slane %v483, 5
      %v486 = vor.u32 %v482, %v485
      %v487 = vrot.slane %v486, 4
      %v489 = vshll.u32 %v242, 16
      %v491 = vrot.slane %v489, 5
      %v492 = vsel %vm262, %v487, %v491
      %v493 = vshrl.u32 %v242, 16
      %v495 = vrot.slane %v493, 4
      %v496 = vor.u32 %v495, %v491
      %v497 = vrot.slane %v496, 4
      %v499 = vshll.u32 %v257, 16
      %v501 = vrot.slane %v499, 5
      %v502 = vsel %vm262, %v497, %v501
      %v504 = vshrl.u32 %v243, 16
      %v506 = vrot.slane %v504, 4
      %v507 = vshll.u32 %v243, 16
      %v509 = vrot.slane %v507, 5
      %v510 = vor.u32 %v506, %v509
      %v511 = vrot.slane %v510, 4
      %v513 = vshll.u32 %v244, 16
      %v515 = vrot.slane %v513, 5
      %v516 = vsel %vm262, %v511, %v515
      %v517 = vshrl.u32 %v244, 16
      %v519 = vrot.slane %v517, 4
      %v520 = vor.u32 %v519, %v515
      %v521 = vrot.slane %v520, 4
      %v523 = vshll.u32 %v258, 16
      %v525 = vrot.slane %v523, 5
      %v526 = vsel %vm262, %v521, %v525
      %v528 = vshrl.u32 %v245, 16
      %v530 = vrot.slane %v528, 4
      %v531 = vshll.u32 %v245, 16
      %v533 = vrot.slane %v531, 5
      %v534 = vor.u32 %v530, %v533
      %v535 = vrot.slane %v534, 4
      %v537 = vshll.u32 %v246, 16
      %v539 = vrot.slane %v537, 5
      %v540 = vsel %vm262, %v535, %v539
      %v541 = vshrl.u32 %v246, 16
      %v543 = vrot.slane %v541, 4
      %v544 = vor.u32 %v543, %v539
      %v545 = vrot.slane %v544, 4
      %v547 = vshll.u32 %v259, 16
      %v549 = vrot.slane %v547, 5
      %v550 = vsel %vm262, %v545, %v549
      %s551 = scalar_lea.vmem %s210, 4
      %v552 = vld [vmem:[%s551] sm:$0xf]
      %v553 = vunpack.c.l.b16 %v276
      %v554 = vunpack.c.l.b16 %v286
      %v555 = vunpack.c.l.b16 %v300
      %v556 = vunpack.c.l.b16 %v310
      %v557 = vunpack.c.l.b16 %v324
      %v558 = vunpack.c.l.b16 %v334
      %v559 = vunpack.c.l.b16 %v348
      %v560 = vunpack.c.l.b16 %v358
      %v561 = vunpack.c.l.b16 %v372
      %v562 = vunpack.c.l.b16 %v382
      %v563 = vunpack.c.l.b16 %v396
      %v564 = vunpack.c.l.b16 %v406
      %v565 = vunpack.c.l.b16 %v420
      %v566 = vunpack.c.l.b16 %v430
      %v567 = vunpack.c.l.b16 %v444
      %v568 = vunpack.c.l.b16 %v454
      %v569 = vunpack.c.l.b16 %v468
      %v570 = vunpack.c.l.b16 %v478
      %v571 = vunpack.c.l.b16 %v492
      %v572 = vunpack.c.l.b16 %v502
      %v573 = vunpack.c.l.b16 %v516
      %v574 = vunpack.c.l.b16 %v526
      %v575 = vunpack.c.l.b16 %v540
      %v576 = vunpack.c.l.b16 %v550
      %v577 = vpack.c.b16 %v554, %v553
      %v578 = vpack.c.b16 %v556, %v555
      %v579 = vpack.c.b16 %v558, %v557
      %v580 = vpack.c.b16 %v560, %v559
      %v581 = vpack.c.b16 %v562, %v561
      %v582 = vpack.c.b16 %v564, %v563
      %v583 = vpack.c.b16 %v566, %v565
      %v584 = vpack.c.b16 %v568, %v567
      %v585 = vpack.c.b16 %v570, %v569
      %v586 = vpack.c.b16 %v572, %v571
      %v587 = vpack.c.b16 %v574, %v573
      %v588 = vpack.c.b16 %v576, %v575
      %vm589 = vcmask 64512
      %v591 = vsel %vm589, %v577, 0
      %v594 = vsel %vm589, %v578, 0
      %v597 = vsel %vm589, %v579, 0
      %v600 = vsel %vm589, %v580, 0
      %v603 = vsel %vm589, %v581, 0
      %v606 = vsel %vm589, %v582, 0
      %v609 = vsel %vm589, %v583, 0
      %v612 = vsel %vm589, %v584, 0
      %v615 = vsel %vm589, %v585, 0
      %v618 = vsel %vm589, %v586, 0
      %v621 = vsel %vm589, %v587, 0
      %v624 = vsel %vm589, %v588, 0
      %vm626 = vcmask 1043456
      %v628 = vsel %vm626, %v552, 0
      %630 = vmatprep.subr.bf16.mxu0 0
      %631 = vmatpush1.bf16.msra.mxu0 0
      %632 = vmatprep.subr.bf16.mxu0 0
      %633 = vmatpush1.bf16.msra.mxu0 0
      %634 = vmatprep.subr.bf16.mxu0 0
      %635 = vmatpush1.bf16.msra.mxu0 0
      %636 = vmatprep.subr.bf16.mxu0 0
      %637 = vmatpush1.bf16.msra.mxu0 0
      %638 = vmatprep.subr.bf16.mxu0 0
      %639 = vmatpush1.bf16.msra.mxu0 0
      %640 = vmatprep.subr.bf16.mxu0 0
      %641 = vmatpush1.bf16.msra.mxu0 0
      %642 = vmatprep.subr.bf16.mxu0 0
      %643 = vmatpush1.bf16.msra.mxu0 0
      %644 = vmatprep.subr.bf16.mxu0 0
      %645 = vmatpush1.bf16.msra.mxu0 %v628
      %646 = vmatprep.subr.bf16.mxu0 0
      %647 = vmatpush2.bf16.msra.mxu0 0
      %648 = vmatprep.subr.bf16.mxu0 0
      %649 = vmatpush2.bf16.msra.mxu0 0
      %650 = vmatprep.subr.bf16.mxu0 0
      %651 = vmatpush2.bf16.msra.mxu0 0
      %652 = vmatprep.subr.bf16.mxu0 0
      %653 = vmatpush2.bf16.msra.mxu0 0
      %654 = vmatprep.subr.bf16.mxu0 0
      %655 = vmatpush2.bf16.msra.mxu0 0
      %656 = vmatprep.subr.bf16.mxu0 0
      %657 = vmatpush2.bf16.msra.mxu0 0
      %658 = vmatprep.subr.bf16.mxu0 0
      %659 = vmatpush2.bf16.msra.mxu0 0
      %660 = vmatprep.subr.bf16.mxu0 0
      %661 = vmatpush2.bf16.msra.mxu0 0
      %662 = vmatprep.mubr.bf16.mxu0 0
      %663 = vmatmul.mubr.bf16.gmra.mxu0 %v591
      %v664 = vpop.f32.mrf.mxu0
      %v665 = vadd.f32 0.0, %v664
      %v666 = vpop.f32.mrf.mxu0
      %v667 = vpop.f32.mrf.mxu0
      %v668 = vadd.f32 0.0, %v667
      %v669 = vpop.f32.mrf.mxu0
      %670 = vmatprep.mubr.bf16.mxu0 0
      %671 = vmatmul.mubr.bf16.gmra.mxu0 %v594
      %v672 = vpop.f32.mrf.mxu0
      %v673 = vadd.f32 0.0, %v672
      %v674 = vpop.f32.mrf.mxu0
      %v675 = vpop.f32.mrf.mxu0
      %v676 = vadd.f32 0.0, %v675
      %v677 = vpop.f32.mrf.mxu0
      %678 = vmatprep.mubr.bf16.mxu0 0
      %679 = vmatmul.mubr.bf16.gmra.mxu0 %v597
      %v680 = vpop.f32.mrf.mxu0
      %v681 = vadd.f32 0.0, %v680
      %v682 = vpop.f32.mrf.mxu0
      %v683 = vpop.f32.mrf.mxu0
      %v684 = vadd.f32 0.0, %v683
      %v685 = vpop.f32.mrf.mxu0
      %686 = vmatprep.mubr.bf16.mxu0 0
      %687 = vmatmul.mubr.bf16.gmra.mxu0 %v600
      %v688 = vpop.f32.mrf.mxu0
      %v689 = vadd.f32 0.0, %v688
      %v690 = vpop.f32.mrf.mxu0
      %v691 = vpop.f32.mrf.mxu0
      %v692 = vadd.f32 0.0, %v691
      %v693 = vpop.f32.mrf.mxu0
      %694 = vmatprep.mubr.bf16.mxu0 0
      %695 = vmatmul.mubr.bf16.gmra.mxu0 %v603
      %v696 = vpop.f32.mrf.mxu0
      %v697 = vadd.f32 0.0, %v696
      %v698 = vpop.f32.mrf.mxu0
      %v699 = vpop.f32.mrf.mxu0
      %v700 = vadd.f32 0.0, %v699
      %v701 = vpop.f32.mrf.mxu0
      %702 = vmatprep.mubr.bf16.mxu0 0
      %703 = vmatmul.mubr.bf16.gmra.mxu0 %v606
      %v704 = vpop.f32.mrf.mxu0
      %v705 = vadd.f32 0.0, %v704
      %v706 = vpop.f32.mrf.mxu0
      %v707 = vpop.f32.mrf.mxu0
      %v708 = vadd.f32 0.0, %v707
      %v709 = vpop.f32.mrf.mxu0
      %710 = vmatprep.mubr.bf16.mxu0 0
      %711 = vmatmul.mubr.bf16.gmra.mxu0 %v609
      %v712 = vpop.f32.mrf.mxu0
      %v713 = vadd.f32 0.0, %v712
      %v714 = vpop.f32.mrf.mxu0
      %v715 = vpop.f32.mrf.mxu0
      %v716 = vadd.f32 0.0, %v715
      %v717 = vpop.f32.mrf.mxu0
      %718 = vmatprep.mubr.bf16.mxu0 0
      %719 = vmatmul.mubr.bf16.gmra.mxu0 %v612
      %v720 = vpop.f32.mrf.mxu0
      %v721 = vadd.f32 0.0, %v720
      %v722 = vpop.f32.mrf.mxu0
      %v723 = vpop.f32.mrf.mxu0
      %v724 = vadd.f32 0.0, %v723
      %v725 = vpop.f32.mrf.mxu0
      %726 = vmatprep.mubr.bf16.mxu0 0
      %727 = vmatmul.mubr.bf16.gmra.mxu0 %v615
      %v728 = vpop.f32.mrf.mxu0
      %v729 = vadd.f32 0.0, %v728
      %v730 = vpop.f32.mrf.mxu0
      %v731 = vpop.f32.mrf.mxu0
      %v732 = vadd.f32 0.0, %v731
      %v733 = vpop.f32.mrf.mxu0
      %734 = vmatprep.mubr.bf16.mxu0 0
      %735 = vmatmul.mubr.bf16.gmra.mxu0 %v618
      %v736 = vpop.f32.mrf.mxu0
      %v737 = vadd.f32 0.0, %v736
      %v738 = vpop.f32.mrf.mxu0
      %v739 = vpop.f32.mrf.mxu0
      %v740 = vadd.f32 0.0, %v739
      %v741 = vpop.f32.mrf.mxu0
      %742 = vmatprep.mubr.bf16.mxu0 0
      %743 = vmatmul.mubr.bf16.gmra.mxu0 %v621
      %v744 = vpop.f32.mrf.mxu0
      %v745 = vadd.f32 0.0, %v744
      %v746 = vpop.f32.mrf.mxu0
      %v747 = vpop.f32.mrf.mxu0
      %v748 = vadd.f32 0.0, %v747
      %v749 = vpop.f32.mrf.mxu0
      %750 = vmatprep.mubr.bf16.mxu0 0
      %751 = vmatmul.mubr.bf16.gmra.mxu0 %v624
      %v752 = vpop.f32.mrf.mxu0
      %v753 = vadd.f32 0.0, %v752
      %v754 = vpop.f32.mrf.mxu0
      %v755 = vpop.f32.mrf.mxu0
      %v756 = vadd.f32 0.0, %v755
      %v757 = vpop.f32.mrf.mxu0
      %758 = vdwg.mxu0
      %v783 = vunpack.c.l.b16 %v223
      %v784 = vunpack.c.l.b16 %v224
      %v785 = vunpack.c.l.b16 %v225
      %v786 = vunpack.c.l.b16 %v226
      %v787 = vunpack.c.l.b16 %v227
      %v788 = vunpack.c.l.b16 %v228
      %v789 = vunpack.c.l.b16 %v229
      %v790 = vunpack.c.l.b16 %v230
      %v791 = vunpack.c.l.b16 %v231
      %v792 = vunpack.c.l.b16 %v232
      %v793 = vunpack.c.l.b16 %v233
      %v794 = vunpack.c.l.b16 %v234
      %v795 = vunpack.c.l.b16 %v235
      %v796 = vunpack.c.l.b16 %v236
      %v797 = vunpack.c.l.b16 %v237
      %v798 = vunpack.c.l.b16 %v238
      %v799 = vunpack.c.l.b16 %v239
      %v800 = vunpack.c.l.b16 %v240
      %v801 = vunpack.c.l.b16 %v241
      %v802 = vunpack.c.l.b16 %v242
      %v803 = vunpack.c.l.b16 %v243
      %v804 = vunpack.c.l.b16 %v244
      %v805 = vunpack.c.l.b16 %v245
      %v806 = vunpack.c.l.b16 %v246
      %v807 = vpack.c.b16 %v784, %v783
      %v808 = vpack.c.b16 %v786, %v785
      %v809 = vpack.c.b16 %v788, %v787
      %v810 = vpack.c.b16 %v790, %v789
      %v811 = vpack.c.b16 %v792, %v791
      %v812 = vpack.c.b16 %v794, %v793
      %v813 = vpack.c.b16 %v796, %v795
      %v814 = vpack.c.b16 %v798, %v797
      %v815 = vpack.c.b16 %v800, %v799
      %v816 = vpack.c.b16 %v802, %v801
      %v817 = vpack.c.b16 %v804, %v803
      %v818 = vpack.c.b16 %v806, %v805
      %v820 = vsel %vm589, %v807, 0
      %v823 = vsel %vm589, %v808, 0
      %v826 = vsel %vm589, %v809, 0
      %v829 = vsel %vm589, %v810, 0
      %v832 = vsel %vm589, %v811, 0
      %v835 = vsel %vm589, %v812, 0
      %v838 = vsel %vm589, %v813, 0
      %v841 = vsel %vm589, %v814, 0
      %v844 = vsel %vm589, %v815, 0
      %v847 = vsel %vm589, %v816, 0
      %v850 = vsel %vm589, %v817, 0
      %v853 = vsel %vm589, %v818, 0
      %v856 = vsel %vm626, %v247, 0
      %858 = vmatprep.subr.bf16.mxu0 0
      %859 = vmatpush1.bf16.msra.mxu0 0
      %860 = vmatprep.subr.bf16.mxu0 0
      %861 = vmatpush1.bf16.msra.mxu0 0
      %862 = vmatprep.subr.bf16.mxu0 0
      %863 = vmatpush1.bf16.msra.mxu0 0
      %864 = vmatprep.subr.bf16.mxu0 0
      %865 = vmatpush1.bf16.msra.mxu0 0
      %866 = vmatprep.subr.bf16.mxu0 0
      %867 = vmatpush1.bf16.msra.mxu0 0
      %868 = vmatprep.subr.bf16.mxu0 0
      %869 = vmatpush1.bf16.msra.mxu0 0
      %870 = vmatprep.subr.bf16.mxu0 0
      %871 = vmatpush1.bf16.msra.mxu0 0
      %872 = vmatprep.subr.bf16.mxu0 0
      %873 = vmatpush1.bf16.msra.mxu0 %v856
      %874 = vmatprep.subr.bf16.mxu0 0
      %875 = vmatpush2.bf16.msra.mxu0 0
      %876 = vmatprep.subr.bf16.mxu0 0
      %877 = vmatpush2.bf16.msra.mxu0 0
      %878 = vmatprep.subr.bf16.mxu0 0
      %879 = vmatpush2.bf16.msra.mxu0 0
      %880 = vmatprep.subr.bf16.mxu0 0
      %881 = vmatpush2.bf16.msra.mxu0 0
      %882 = vmatprep.subr.bf16.mxu0 0
      %883 = vmatpush2.bf16.msra.mxu0 0
      %884 = vmatprep.subr.bf16.mxu0 0
      %885 = vmatpush2.bf16.msra.mxu0 0
      %886 = vmatprep.subr.bf16.mxu0 0
      %887 = vmatpush2.bf16.msra.mxu0 0
      %888 = vmatprep.subr.bf16.mxu0 0
      %889 = vmatpush2.bf16.msra.mxu0 0
      %890 = vmatprep.mubr.bf16.mxu0 0
      %891 = vmatmul.mubr.bf16.gmra.mxu0 %v820
      %v892 = vpop.f32.mrf.mxu0
      %v893 = vadd.f32 %v665, %v892
      %v894 = vpop.f32.mrf.mxu0
      %v895 = vpop.f32.mrf.mxu0
      %v896 = vadd.f32 %v668, %v895
      %v897 = vpop.f32.mrf.mxu0
      %898 = vmatprep.mubr.bf16.mxu0 0
      %899 = vmatmul.mubr.bf16.gmra.mxu0 %v823
      %v900 = vpop.f32.mrf.mxu0
      %v901 = vadd.f32 %v673, %v900
      %v902 = vpop.f32.mrf.mxu0
      %v903 = vpop.f32.mrf.mxu0
      %v904 = vadd.f32 %v676, %v903
      %v905 = vpop.f32.mrf.mxu0
      %906 = vmatprep.mubr.bf16.mxu0 0
      %907 = vmatmul.mubr.bf16.gmra.mxu0 %v826
      %v908 = vpop.f32.mrf.mxu0
      %v909 = vadd.f32 %v681, %v908
      %v910 = vpop.f32.mrf.mxu0
      %v911 = vpop.f32.mrf.mxu0
      %v912 = vadd.f32 %v684, %v911
      %v913 = vpop.f32.mrf.mxu0
      %914 = vmatprep.mubr.bf16.mxu0 0
      %915 = vmatmul.mubr.bf16.gmra.mxu0 %v829
      %v916 = vpop.f32.mrf.mxu0
      %v917 = vadd.f32 %v689, %v916
      %v918 = vpop.f32.mrf.mxu0
      %v919 = vpop.f32.mrf.mxu0
      %v920 = vadd.f32 %v692, %v919
      %v921 = vpop.f32.mrf.mxu0
      %922 = vmatprep.mubr.bf16.mxu0 0
      %923 = vmatmul.mubr.bf16.gmra.mxu0 %v832
      %v924 = vpop.f32.mrf.mxu0
      %v925 = vadd.f32 %v697, %v924
      %v926 = vpop.f32.mrf.mxu0
      %v927 = vpop.f32.mrf.mxu0
      %v928 = vadd.f32 %v700, %v927
      %v929 = vpop.f32.mrf.mxu0
      %930 = vmatprep.mubr.bf16.mxu0 0
      %931 = vmatmul.mubr.bf16.gmra.mxu0 %v835
      %v932 = vpop.f32.mrf.mxu0
      %v933 = vadd.f32 %v705, %v932
      %v934 = vpop.f32.mrf.mxu0
      %v935 = vpop.f32.mrf.mxu0
      %v936 = vadd.f32 %v708, %v935
      %v937 = vpop.f32.mrf.mxu0
      %938 = vmatprep.mubr.bf16.mxu0 0
      %939 = vmatmul.mubr.bf16.gmra.mxu0 %v838
      %v940 = vpop.f32.mrf.mxu0
      %v941 = vadd.f32 %v713, %v940
      %v942 = vpop.f32.mrf.mxu0
      %v943 = vpop.f32.mrf.mxu0
      %v944 = vadd.f32 %v716, %v943
      %v945 = vpop.f32.mrf.mxu0
      %946 = vmatprep.mubr.bf16.mxu0 0
      %947 = vmatmul.mubr.bf16.gmra.mxu0 %v841
      %v948 = vpop.f32.mrf.mxu0
      %v949 = vadd.f32 %v721, %v948
      %v950 = vpop.f32.mrf.mxu0
      %v951 = vpop.f32.mrf.mxu0
      %v952 = vadd.f32 %v724, %v951
      %v953 = vpop.f32.mrf.mxu0
      %954 = vmatprep.mubr.bf16.mxu0 0
      %955 = vmatmul.mubr.bf16.gmra.mxu0 %v844
      %v956 = vpop.f32.mrf.mxu0
      %v957 = vadd.f32 %v729, %v956
      %v958 = vpop.f32.mrf.mxu0
      %v959 = vpop.f32.mrf.mxu0
      %v960 = vadd.f32 %v732, %v959
      %v961 = vpop.f32.mrf.mxu0
      %962 = vmatprep.mubr.bf16.mxu0 0
      %963 = vmatmul.mubr.bf16.gmra.mxu0 %v847
      %v964 = vpop.f32.mrf.mxu0
      %v965 = vadd.f32 %v737, %v964
      %v966 = vpop.f32.mrf.mxu0
      %v967 = vpop.f32.mrf.mxu0
      %v968 = vadd.f32 %v740, %v967
      %v969 = vpop.f32.mrf.mxu0
      %970 = vmatprep.mubr.bf16.mxu0 0
      %971 = vmatmul.mubr.bf16.gmra.mxu0 %v850
      %v972 = vpop.f32.mrf.mxu0
      %v973 = vadd.f32 %v745, %v972
      %v974 = vpop.f32.mrf.mxu0
      %v975 = vpop.f32.mrf.mxu0
      %v976 = vadd.f32 %v748, %v975
      %v977 = vpop.f32.mrf.mxu0
      %978 = vmatprep.mubr.bf16.mxu0 0
      %979 = vmatmul.mubr.bf16.gmra.mxu0 %v853
      %v980 = vpop.f32.mrf.mxu0
      %v981 = vadd.f32 %v753, %v980
      %v982 = vpop.f32.mrf.mxu0
      %v983 = vpop.f32.mrf.mxu0
      %v984 = vadd.f32 %v756, %v983
      %v985 = vpop.f32.mrf.mxu0
      %986 = vdwg.mxu0
      %v987 = vld [vmem:[%s206] sm:$0xe]
      %v988 = vld [vmem:[%s206 + $0xc] sm:$0xe]
      %v989 = vld [vmem:[%s206 + $0x18] sm:$0xe]
      %v990 = vld [vmem:[%s206 + $0x24] sm:$0xe]
      %v991 = vld [vmem:[%s206 + $0x30] sm:$0xe]
      %v992 = vld [vmem:[%s206 + $0x3c] sm:$0xe]
      %v993 = vld [vmem:[%s206 + $0x48] sm:$0xe]
      %v994 = vld [vmem:[%s206 + $0x54] sm:$0xe]
      %v995 = vld [vmem:[%s206 + $0x60] sm:$0xe]
      %v996 = vld [vmem:[%s206 + $0x6c] sm:$0xe]
      %v997 = vld [vmem:[%s206 + $0x78] sm:$0xe]
      %v998 = vld [vmem:[%s206 + $0x84] sm:$0xe]
      %vm1023 = vcmask 1042432
      %vm1024 = vcmask 1046532
      %vm1025 = vmor %vm1023, %vm1024
      %v1026 = vrot.slane %v987, 5
      %v1027 = vrot.slane %v1026, 4
      %v1028 = vrot.slane %v224, 5
      %v1029 = vsel %vm1025, %v1027, %v1028
      %v1030 = vrot.slane %v1028, 4
      %v1031 = vrot.slane %v248, 5
      %v1032 = vsel %vm1025, %v1030, %v1031
      %v1033 = vrot.slane %v988, 5
      %v1034 = vrot.slane %v1033, 4
      %v1035 = vrot.slane %v226, 5
      %v1036 = vsel %vm1025, %v1034, %v1035
      %v1037 = vrot.slane %v1035, 4
      %v1038 = vrot.slane %v249, 5
      %v1039 = vsel %vm1025, %v1037, %v1038
      %v1040 = vrot.slane %v989, 5
      %v1041 = vrot.slane %v1040, 4
      %v1042 = vrot.slane %v228, 5
      %v1043 = vsel %vm1025, %v1041, %v1042
      %v1044 = vrot.slane %v1042, 4
      %v1045 = vrot.slane %v250, 5
      %v1046 = vsel %vm1025, %v1044, %v1045
      %v1047 = vrot.slane %v990, 5
      %v1048 = vrot.slane %v1047, 4
      %v1049 = vrot.slane %v230, 5
      %v1050 = vsel %vm1025, %v1048, %v1049
      %v1051 = vrot.slane %v1049, 4
      %v1052 = vrot.slane %v251, 5
      %v1053 = vsel %vm1025, %v1051, %v1052
      %v1054 = vrot.slane %v991, 5
      %v1055 = vrot.slane %v1054, 4
      %v1056 = vrot.slane %v232, 5
      %v1057 = vsel %vm1025, %v1055, %v1056
      %v1058 = vrot.slane %v1056, 4
      %v1059 = vrot.slane %v252, 5
      %v1060 = vsel %vm1025, %v1058, %v1059
      %v1061 = vrot.slane %v992, 5
      %v1062 = vrot.slane %v1061, 4
      %v1063 = vrot.slane %v234, 5
      %v1064 = vsel %vm1025, %v1062, %v1063
      %v1065 = vrot.slane %v1063, 4
      %v1066 = vrot.slane %v253, 5
      %v1067 = vsel %vm1025, %v1065, %v1066
      %v1068 = vrot.slane %v993, 5
      %v1069 = vrot.slane %v1068, 4
      %v1070 = vrot.slane %v236, 5
      %v1071 = vsel %vm1025, %v1069, %v1070
      %v1072 = vrot.slane %v1070, 4
      %v1073 = vrot.slane %v254, 5
      %v1074 = vsel %vm1025, %v1072, %v1073
      %v1075 = vrot.slane %v994, 5
      %v1076 = vrot.slane %v1075, 4
      %v1077 = vrot.slane %v238, 5
      %v1078 = vsel %vm1025, %v1076, %v1077
      %v1079 = vrot.slane %v1077, 4
      %v1080 = vrot.slane %v255, 5
      %v1081 = vsel %vm1025, %v1079, %v1080
      %v1082 = vrot.slane %v995, 5
      %v1083 = vrot.slane %v1082, 4
      %v1084 = vrot.slane %v240, 5
      %v1085 = vsel %vm1025, %v1083, %v1084
      %v1086 = vrot.slane %v1084, 4
      %v1087 = vrot.slane %v256, 5
      %v1088 = vsel %vm1025, %v1086, %v1087
      %v1089 = vrot.slane %v996, 5
      %v1090 = vrot.slane %v1089, 4
      %v1091 = vrot.slane %v242, 5
      %v1092 = vsel %vm1025, %v1090, %v1091
      %v1093 = vrot.slane %v1091, 4
      %v1094 = vrot.slane %v257, 5
      %v1095 = vsel %vm1025, %v1093, %v1094
      %v1096 = vrot.slane %v997, 5
      %v1097 = vrot.slane %v1096, 4
      %v1098 = vrot.slane %v244, 5
      %v1099 = vsel %vm1025, %v1097, %v1098
      %v1100 = vrot.slane %v1098, 4
      %v1101 = vrot.slane %v258, 5
      %v1102 = vsel %vm1025, %v1100, %v1101
      %v1103 = vrot.slane %v998, 5
      %v1104 = vrot.slane %v1103, 4
      %v1105 = vrot.slane %v246, 5
      %v1106 = vsel %vm1025, %v1104, %v1105
      %v1107 = vrot.slane %v1105, 4
      %v1108 = vrot.slane %v259, 5
      %v1109 = vsel %vm1025, %v1107, %v1108
      %s1110 = scalar_lea.vmem %s210, 8
      %v1111 = vld [vmem:[%s1110] sm:$0xf]
      %v1112 = vunpack.c.l.b16 %v1029
      %v1113 = vunpack.c.l.b16 %v1032
      %v1114 = vunpack.c.l.b16 %v1036
      %v1115 = vunpack.c.l.b16 %v1039
      %v1116 = vunpack.c.l.b16 %v1043
      %v1117 = vunpack.c.l.b16 %v1046
      %v1118 = vunpack.c.l.b16 %v1050
      %v1119 = vunpack.c.l.b16 %v1053
      %v1120 = vunpack.c.l.b16 %v1057
      %v1121 = vunpack.c.l.b16 %v1060
      %v1122 = vunpack.c.l.b16 %v1064
      %v1123 = vunpack.c.l.b16 %v1067
      %v1124 = vunpack.c.l.b16 %v1071
      %v1125 = vunpack.c.l.b16 %v1074
      %v1126 = vunpack.c.l.b16 %v1078
      %v1127 = vunpack.c.l.b16 %v1081
      %v1128 = vunpack.c.l.b16 %v1085
      %v1129 = vunpack.c.l.b16 %v1088
      %v1130 = vunpack.c.l.b16 %v1092
      %v1131 = vunpack.c.l.b16 %v1095
      %v1132 = vunpack.c.l.b16 %v1099
      %v1133 = vunpack.c.l.b16 %v1102
      %v1134 = vunpack.c.l.b16 %v1106
      %v1135 = vunpack.c.l.b16 %v1109
      %v1136 = vpack.c.b16 %v1113, %v1112
      %v1137 = vpack.c.b16 %v1115, %v1114
      %v1138 = vpack.c.b16 %v1117, %v1116
      %v1139 = vpack.c.b16 %v1119, %v1118
      %v1140 = vpack.c.b16 %v1121, %v1120
      %v1141 = vpack.c.b16 %v1123, %v1122
      %v1142 = vpack.c.b16 %v1125, %v1124
      %v1143 = vpack.c.b16 %v1127, %v1126
      %v1144 = vpack.c.b16 %v1129, %v1128
      %v1145 = vpack.c.b16 %v1131, %v1130
      %v1146 = vpack.c.b16 %v1133, %v1132
      %v1147 = vpack.c.b16 %v1135, %v1134
      %v1149 = vsel %vm589, %v1136, 0
      %v1152 = vsel %vm589, %v1137, 0
      %v1155 = vsel %vm589, %v1138, 0
      %v1158 = vsel %vm589, %v1139, 0
      %v1161 = vsel %vm589, %v1140, 0
      %v1164 = vsel %vm589, %v1141, 0
      %v1167 = vsel %vm589, %v1142, 0
      %v1170 = vsel %vm589, %v1143, 0
      %v1173 = vsel %vm589, %v1144, 0
      %v1176 = vsel %vm589, %v1145, 0
      %v1179 = vsel %vm589, %v1146, 0
      %v1182 = vsel %vm589, %v1147, 0
      %v1185 = vsel %vm626, %v1111, 0
      %1187 = vmatprep.subr.bf16.mxu0 0
      %1188 = vmatpush1.bf16.msra.mxu0 0
      %1189 = vmatprep.subr.bf16.mxu0 0
      %1190 = vmatpush1.bf16.msra.mxu0 0
      %1191 = vmatprep.subr.bf16.mxu0 0
      %1192 = vmatpush1.bf16.msra.mxu0 0
      %1193 = vmatprep.subr.bf16.mxu0 0
      %1194 = vmatpush1.bf16.msra.mxu0 0
      %1195 = vmatprep.subr.bf16.mxu0 0
      %1196 = vmatpush1.bf16.msra.mxu0 0
      %1197 = vmatprep.subr.bf16.mxu0 0
      %1198 = vmatpush1.bf16.msra.mxu0 0
      %1199 = vmatprep.subr.bf16.mxu0 0
      %1200 = vmatpush1.bf16.msra.mxu0 0
      %1201 = vmatprep.subr.bf16.mxu0 0
      %1202 = vmatpush1.bf16.msra.mxu0 %v1185
      %1203 = vmatprep.subr.bf16.mxu0 0
      %1204 = vmatpush2.bf16.msra.mxu0 0
      %1205 = vmatprep.subr.bf16.mxu0 0
      %1206 = vmatpush2.bf16.msra.mxu0 0
      %1207 = vmatprep.subr.bf16.mxu0 0
      %1208 = vmatpush2.bf16.msra.mxu0 0
      %1209 = vmatprep.subr.bf16.mxu0 0
      %1210 = vmatpush2.bf16.msra.mxu0 0
      %1211 = vmatprep.subr.bf16.mxu0 0
      %1212 = vmatpush2.bf16.msra.mxu0 0
      %1213 = vmatprep.subr.bf16.mxu0 0
      %1214 = vmatpush2.bf16.msra.mxu0 0
      %1215 = vmatprep.subr.bf16.mxu0 0
      %1216 = vmatpush2.bf16.msra.mxu0 0
      %1217 = vmatprep.subr.bf16.mxu0 0
      %1218 = vmatpush2.bf16.msra.mxu0 0
      %1219 = vmatprep.mubr.bf16.mxu0 0
      %1220 = vmatmul.mubr.bf16.gmra.mxu0 %v1149
      %v1221 = vpop.f32.mrf.mxu0
      %v1222 = vadd.f32 0.0, %v1221
      %v1223 = vpop.f32.mrf.mxu0
      %v1224 = vpop.f32.mrf.mxu0
      %v1225 = vadd.f32 0.0, %v1224
      %v1226 = vpop.f32.mrf.mxu0
      %1227 = vmatprep.mubr.bf16.mxu0 0
      %1228 = vmatmul.mubr.bf16.gmra.mxu0 %v1152
      %v1229 = vpop.f32.mrf.mxu0
      %v1230 = vadd.f32 0.0, %v1229
      %v1231 = vpop.f32.mrf.mxu0
      %v1232 = vpop.f32.mrf.mxu0
      %v1233 = vadd.f32 0.0, %v1232
      %v1234 = vpop.f32.mrf.mxu0
      %1235 = vmatprep.mubr.bf16.mxu0 0
      %1236 = vmatmul.mubr.bf16.gmra.mxu0 %v1155
      %v1237 = vpop.f32.mrf.mxu0
      %v1238 = vadd.f32 0.0, %v1237
      %v1239 = vpop.f32.mrf.mxu0
      %v1240 = vpop.f32.mrf.mxu0
      %v1241 = vadd.f32 0.0, %v1240
      %v1242 = vpop.f32.mrf.mxu0
      %1243 = vmatprep.mubr.bf16.mxu0 0
      %1244 = vmatmul.mubr.bf16.gmra.mxu0 %v1158
      %v1245 = vpop.f32.mrf.mxu0
      %v1246 = vadd.f32 0.0, %v1245
      %v1247 = vpop.f32.mrf.mxu0
      %v1248 = vpop.f32.mrf.mxu0
      %v1249 = vadd.f32 0.0, %v1248
      %v1250 = vpop.f32.mrf.mxu0
      %1251 = vmatprep.mubr.bf16.mxu0 0
      %1252 = vmatmul.mubr.bf16.gmra.mxu0 %v1161
      %v1253 = vpop.f32.mrf.mxu0
      %v1254 = vadd.f32 0.0, %v1253
      %v1255 = vpop.f32.mrf.mxu0
      %v1256 = vpop.f32.mrf.mxu0
      %v1257 = vadd.f32 0.0, %v1256
      %v1258 = vpop.f32.mrf.mxu0
      %1259 = vmatprep.mubr.bf16.mxu0 0
      %1260 = vmatmul.mubr.bf16.gmra.mxu0 %v1164
      %v1261 = vpop.f32.mrf.mxu0
      %v1262 = vadd.f32 0.0, %v1261
      %v1263 = vpop.f32.mrf.mxu0
      %v1264 = vpop.f32.mrf.mxu0
      %v1265 = vadd.f32 0.0, %v1264
      %v1266 = vpop.f32.mrf.mxu0
      %1267 = vmatprep.mubr.bf16.mxu0 0
      %1268 = vmatmul.mubr.bf16.gmra.mxu0 %v1167
      %v1269 = vpop.f32.mrf.mxu0
      %v1270 = vadd.f32 0.0, %v1269
      %v1271 = vpop.f32.mrf.mxu0
      %v1272 = vpop.f32.mrf.mxu0
      %v1273 = vadd.f32 0.0, %v1272
      %v1274 = vpop.f32.mrf.mxu0
      %1275 = vmatprep.mubr.bf16.mxu0 0
      %1276 = vmatmul.mubr.bf16.gmra.mxu0 %v1170
      %v1277 = vpop.f32.mrf.mxu0
      %v1278 = vadd.f32 0.0, %v1277
      %v1279 = vpop.f32.mrf.mxu0
      %v1280 = vpop.f32.mrf.mxu0
      %v1281 = vadd.f32 0.0, %v1280
      %v1282 = vpop.f32.mrf.mxu0
      %1283 = vmatprep.mubr.bf16.mxu0 0
      %1284 = vmatmul.mubr.bf16.gmra.mxu0 %v1173
      %v1285 = vpop.f32.mrf.mxu0
      %v1286 = vadd.f32 0.0, %v1285
      %v1287 = vpop.f32.mrf.mxu0
      %v1288 = vpop.f32.mrf.mxu0
      %v1289 = vadd.f32 0.0, %v1288
      %v1290 = vpop.f32.mrf.mxu0
      %1291 = vmatprep.mubr.bf16.mxu0 0
      %1292 = vmatmul.mubr.bf16.gmra.mxu0 %v1176
      %v1293 = vpop.f32.mrf.mxu0
      %v1294 = vadd.f32 0.0, %v1293
      %v1295 = vpop.f32.mrf.mxu0
      %v1296 = vpop.f32.mrf.mxu0
      %v1297 = vadd.f32 0.0, %v1296
      %v1298 = vpop.f32.mrf.mxu0
      %1299 = vmatprep.mubr.bf16.mxu0 0
      %1300 = vmatmul.mubr.bf16.gmra.mxu0 %v1179
      %v1301 = vpop.f32.mrf.mxu0
      %v1302 = vadd.f32 0.0, %v1301
      %v1303 = vpop.f32.mrf.mxu0
      %v1304 = vpop.f32.mrf.mxu0
      %v1305 = vadd.f32 0.0, %v1304
      %v1306 = vpop.f32.mrf.mxu0
      %1307 = vmatprep.mubr.bf16.mxu0 0
      %1308 = vmatmul.mubr.bf16.gmra.mxu0 %v1182
      %v1309 = vpop.f32.mrf.mxu0
      %v1310 = vadd.f32 0.0, %v1309
      %v1311 = vpop.f32.mrf.mxu0
      %v1312 = vpop.f32.mrf.mxu0
      %v1313 = vadd.f32 0.0, %v1312
      %v1314 = vpop.f32.mrf.mxu0
      %1315 = vdwg.mxu0
      %v1316 = vadd.f32 %v893, %v1222
      %v1317 = vadd.f32 %v896, %v1225
      %v1318 = vadd.f32 %v901, %v1230
      %v1319 = vadd.f32 %v904, %v1233
      %v1320 = vadd.f32 %v909, %v1238
      %v1321 = vadd.f32 %v912, %v1241
      %v1322 = vadd.f32 %v917, %v1246
      %v1323 = vadd.f32 %v920, %v1249
      %v1324 = vadd.f32 %v925, %v1254
      %v1325 = vadd.f32 %v928, %v1257
      %v1326 = vadd.f32 %v933, %v1262
      %v1327 = vadd.f32 %v936, %v1265
      %v1328 = vadd.f32 %v941, %v1270
      %v1329 = vadd.f32 %v944, %v1273
      %v1330 = vadd.f32 %v949, %v1278
      %v1331 = vadd.f32 %v952, %v1281
      %v1332 = vadd.f32 %v957, %v1286
      %v1333 = vadd.f32 %v960, %v1289
      %v1334 = vadd.f32 %v965, %v1294
      %v1335 = vadd.f32 %v968, %v1297
      %v1336 = vadd.f32 %v973, %v1302
      %v1337 = vadd.f32 %v976, %v1305
      %v1338 = vadd.f32 %v981, %v1310
      %v1339 = vadd.f32 %v984, %v1313
      %s1340 = scalar_lea.vmem %s206, 12
      %v1341 = vld [vmem:[%s1340] sm:$0xf]
      %v1342 = vld [vmem:[%s1340 + $0x4] sm:$0xf]
      %v1343 = vld [vmem:[%s1340 + $0xc] sm:$0xf]
      %v1344 = vld [vmem:[%s1340 + $0x10] sm:$0xf]
      %v1345 = vld [vmem:[%s1340 + $0x18] sm:$0xf]
      %v1346 = vld [vmem:[%s1340 + $0x1c] sm:$0xf]
      %v1347 = vld [vmem:[%s1340 + $0x24] sm:$0xf]
      %v1348 = vld [vmem:[%s1340 + $0x28] sm:$0xf]
      %v1349 = vld [vmem:[%s1340 + $0x30] sm:$0xf]
      %v1350 = vld [vmem:[%s1340 + $0x34] sm:$0xf]
      %v1351 = vld [vmem:[%s1340 + $0x3c] sm:$0xf]
      %v1352 = vld [vmem:[%s1340 + $0x40] sm:$0xf]
      %v1353 = vld [vmem:[%s1340 + $0x48] sm:$0xf]
      %v1354 = vld [vmem:[%s1340 + $0x4c] sm:$0xf]
      %v1355 = vld [vmem:[%s1340 + $0x54] sm:$0xf]
      %v1356 = vld [vmem:[%s1340 + $0x58] sm:$0xf]
      %v1357 = vld [vmem:[%s1340 + $0x60] sm:$0xf]
      %v1358 = vld [vmem:[%s1340 + $0x64] sm:$0xf]
      %v1359 = vld [vmem:[%s1340 + $0x6c] sm:$0xf]
      %v1360 = vld [vmem:[%s1340 + $0x70] sm:$0xf]
      %v1361 = vld [vmem:[%s1340 + $0x78] sm:$0xf]
      %v1362 = vld [vmem:[%s1340 + $0x7c] sm:$0xf]
      %v1363 = vld [vmem:[%s1340 + $0x84] sm:$0xf]
      %v1364 = vld [vmem:[%s1340 + $0x88] sm:$0xf]
      %s1365 = scalar_lea.vmem %s210, 12
      %v1366 = vld [vmem:[%s1365] sm:$0xf]
      %v1391 = vunpack.c.l.b16 %v1341
      %v1392 = vunpack.c.l.b16 %v1342
      %v1393 = vunpack.c.l.b16 %v1343
      %v1394 = vunpack.c.l.b16 %v1344
      %v1395 = vunpack.c.l.b16 %v1345
      %v1396 = vunpack.c.l.b16 %v1346
      %v1397 = vunpack.c.l.b16 %v1347
      %v1398 = vunpack.c.l.b16 %v1348
      %v1399 = vunpack.c.l.b16 %v1349
      %v1400 = vunpack.c.l.b16 %v1350
      %v1401 = vunpack.c.l.b16 %v1351
      %v1402 = vunpack.c.l.b16 %v1352
      %v1403 = vunpack.c.l.b16 %v1353
      %v1404 = vunpack.c.l.b16 %v1354
      %v1405 = vunpack.c.l.b16 %v1355
      %v1406 = vunpack.c.l.b16 %v1356
      %v1407 = vunpack.c.l.b16 %v1357
      %v1408 = vunpack.c.l.b16 %v1358
      %v1409 = vunpack.c.l.b16 %v1359
      %v1410 = vunpack.c.l.b16 %v1360
      %v1411 = vunpack.c.l.b16 %v1361
      %v1412 = vunpack.c.l.b16 %v1362
      %v1413 = vunpack.c.l.b16 %v1363
      %v1414 = vunpack.c.l.b16 %v1364
      %v1415 = vpack.c.b16 %v1392, %v1391
      %v1416 = vpack.c.b16 %v1394, %v1393
      %v1417 = vpack.c.b16 %v1396, %v1395
      %v1418 = vpack.c.b16 %v1398, %v1397
      %v1419 = vpack.c.b16 %v1400, %v1399
      %v1420 = vpack.c.b16 %v1402, %v1401
      %v1421 = vpack.c.b16 %v1404, %v1403
      %v1422 = vpack.c.b16 %v1406, %v1405
      %v1423 = vpack.c.b16 %v1408, %v1407
      %v1424 = vpack.c.b16 %v1410, %v1409
      %v1425 = vpack.c.b16 %v1412, %v1411
      %v1426 = vpack.c.b16 %v1414, %v1413
      %v1428 = vsel %vm589, %v1415, 0
      %v1431 = vsel %vm589, %v1416, 0
      %v1434 = vsel %vm589, %v1417, 0
      %v1437 = vsel %vm589, %v1418, 0
      %v1440 = vsel %vm589, %v1419, 0
      %v1443 = vsel %vm589, %v1420, 0
      %v1446 = vsel %vm589, %v1421, 0
      %v1449 = vsel %vm589, %v1422, 0
      %v1452 = vsel %vm589, %v1423, 0
      %v1455 = vsel %vm589, %v1424, 0
      %v1458 = vsel %vm589, %v1425, 0
      %v1461 = vsel %vm589, %v1426, 0
      %v1464 = vsel %vm626, %v1366, 0
      %1466 = vmatprep.subr.bf16.mxu0 0
      %1467 = vmatpush1.bf16.msra.mxu0 0
      %1468 = vmatprep.subr.bf16.mxu0 0
      %1469 = vmatpush1.bf16.msra.mxu0 0
      %1470 = vmatprep.subr.bf16.mxu0 0
      %1471 = vmatpush1.bf16.msra.mxu0 0
      %1472 = vmatprep.subr.bf16.mxu0 0
      %1473 = vmatpush1.bf16.msra.mxu0 0
      %1474 = vmatprep.subr.bf16.mxu0 0
      %1475 = vmatpush1.bf16.msra.mxu0 0
      %1476 = vmatprep.subr.bf16.mxu0 0
      %1477 = vmatpush1.bf16.msra.mxu0 0
      %1478 = vmatprep.subr.bf16.mxu0 0
      %1479 = vmatpush1.bf16.msra.mxu0 0
      %1480 = vmatprep.subr.bf16.mxu0 0
      %1481 = vmatpush1.bf16.msra.mxu0 %v1464
      %1482 = vmatprep.subr.bf16.mxu0 0
      %1483 = vmatpush2.bf16.msra.mxu0 0
      %1484 = vmatprep.subr.bf16.mxu0 0
      %1485 = vmatpush2.bf16.msra.mxu0 0
      %1486 = vmatprep.subr.bf16.mxu0 0
      %1487 = vmatpush2.bf16.msra.mxu0 0
      %1488 = vmatprep.subr.bf16.mxu0 0
      %1489 = vmatpush2.bf16.msra.mxu0 0
      %1490 = vmatprep.subr.bf16.mxu0 0
      %1491 = vmatpush2.bf16.msra.mxu0 0
      %1492 = vmatprep.subr.bf16.mxu0 0
      %1493 = vmatpush2.bf16.msra.mxu0 0
      %1494 = vmatprep.subr.bf16.mxu0 0
      %1495 = vmatpush2.bf16.msra.mxu0 0
      %1496 = vmatprep.subr.bf16.mxu0 0
      %1497 = vmatpush2.bf16.msra.mxu0 0
      %1498 = vmatprep.mubr.bf16.mxu0 0
      %1499 = vmatmul.mubr.bf16.gmra.mxu0 %v1428
      %v1500 = vpop.f32.mrf.mxu0
      %v1501 = vadd.f32 0.0, %v1500
      %v1502 = vpop.f32.mrf.mxu0
      %v1503 = vpop.f32.mrf.mxu0
      %v1504 = vadd.f32 0.0, %v1503
      %v1505 = vpop.f32.mrf.mxu0
      %1506 = vmatprep.mubr.bf16.mxu0 0
      %1507 = vmatmul.mubr.bf16.gmra.mxu0 %v1431
      %v1508 = vpop.f32.mrf.mxu0
      %v1509 = vadd.f32 0.0, %v1508
      %v1510 = vpop.f32.mrf.mxu0
      %v1511 = vpop.f32.mrf.mxu0
      %v1512 = vadd.f32 0.0, %v1511
      %v1513 = vpop.f32.mrf.mxu0
      %1514 = vmatprep.mubr.bf16.mxu0 0
      %1515 = vmatmul.mubr.bf16.gmra.mxu0 %v1434
      %v1516 = vpop.f32.mrf.mxu0
      %v1517 = vadd.f32 0.0, %v1516
      %v1518 = vpop.f32.mrf.mxu0
      %v1519 = vpop.f32.mrf.mxu0
      %v1520 = vadd.f32 0.0, %v1519
      %v1521 = vpop.f32.mrf.mxu0
      %1522 = vmatprep.mubr.bf16.mxu0 0
      %1523 = vmatmul.mubr.bf16.gmra.mxu0 %v1437
      %v1524 = vpop.f32.mrf.mxu0
      %v1525 = vadd.f32 0.0, %v1524
      %v1526 = vpop.f32.mrf.mxu0
      %v1527 = vpop.f32.mrf.mxu0
      %v1528 = vadd.f32 0.0, %v1527
      %v1529 = vpop.f32.mrf.mxu0
      %1530 = vmatprep.mubr.bf16.mxu0 0
      %1531 = vmatmul.mubr.bf16.gmra.mxu0 %v1440
      %v1532 = vpop.f32.mrf.mxu0
      %v1533 = vadd.f32 0.0, %v1532
      %v1534 = vpop.f32.mrf.mxu0
      %v1535 = vpop.f32.mrf.mxu0
      %v1536 = vadd.f32 0.0, %v1535
      %v1537 = vpop.f32.mrf.mxu0
      %1538 = vmatprep.mubr.bf16.mxu0 0
      %1539 = vmatmul.mubr.bf16.gmra.mxu0 %v1443
      %v1540 = vpop.f32.mrf.mxu0
      %v1541 = vadd.f32 0.0, %v1540
      %v1542 = vpop.f32.mrf.mxu0
      %v1543 = vpop.f32.mrf.mxu0
      %v1544 = vadd.f32 0.0, %v1543
      %v1545 = vpop.f32.mrf.mxu0
      %1546 = vmatprep.mubr.bf16.mxu0 0
      %1547 = vmatmul.mubr.bf16.gmra.mxu0 %v1446
      %v1548 = vpop.f32.mrf.mxu0
      %v1549 = vadd.f32 0.0, %v1548
      %v1550 = vpop.f32.mrf.mxu0
      %v1551 = vpop.f32.mrf.mxu0
      %v1552 = vadd.f32 0.0, %v1551
      %v1553 = vpop.f32.mrf.mxu0
      %1554 = vmatprep.mubr.bf16.mxu0 0
      %1555 = vmatmul.mubr.bf16.gmra.mxu0 %v1449
      %v1556 = vpop.f32.mrf.mxu0
      %v1557 = vadd.f32 0.0, %v1556
      %v1558 = vpop.f32.mrf.mxu0
      %v1559 = vpop.f32.mrf.mxu0
      %v1560 = vadd.f32 0.0, %v1559
      %v1561 = vpop.f32.mrf.mxu0
      %1562 = vmatprep.mubr.bf16.mxu0 0
      %1563 = vmatmul.mubr.bf16.gmra.mxu0 %v1452
      %v1564 = vpop.f32.mrf.mxu0
      %v1565 = vadd.f32 0.0, %v1564
      %v1566 = vpop.f32.mrf.mxu0
      %v1567 = vpop.f32.mrf.mxu0
      %v1568 = vadd.f32 0.0, %v1567
      %v1569 = vpop.f32.mrf.mxu0
      %1570 = vmatprep.mubr.bf16.mxu0 0
      %1571 = vmatmul.mubr.bf16.gmra.mxu0 %v1455
      %v1572 = vpop.f32.mrf.mxu0
      %v1573 = vadd.f32 0.0, %v1572
      %v1574 = vpop.f32.mrf.mxu0
      %v1575 = vpop.f32.mrf.mxu0
      %v1576 = vadd.f32 0.0, %v1575
      %v1577 = vpop.f32.mrf.mxu0
      %1578 = vmatprep.mubr.bf16.mxu0 0
      %1579 = vmatmul.mubr.bf16.gmra.mxu0 %v1458
      %v1580 = vpop.f32.mrf.mxu0
      %v1581 = vadd.f32 0.0, %v1580
      %v1582 = vpop.f32.mrf.mxu0
      %v1583 = vpop.f32.mrf.mxu0
      %v1584 = vadd.f32 0.0, %v1583
      %v1585 = vpop.f32.mrf.mxu0
      %1586 = vmatprep.mubr.bf16.mxu0 0
      %1587 = vmatmul.mubr.bf16.gmra.mxu0 %v1461
      %v1588 = vpop.f32.mrf.mxu0
      %v1589 = vadd.f32 0.0, %v1588
      %v1590 = vpop.f32.mrf.mxu0
      %v1591 = vpop.f32.mrf.mxu0
      %v1592 = vadd.f32 0.0, %v1591
      %v1593 = vpop.f32.mrf.mxu0
      %1594 = vdwg.mxu0
      %v1595 = vadd.f32 %v1316, %v1501
      %v1596 = vadd.f32 %v1317, %v1504
      %v1597 = vadd.f32 %v1318, %v1509
      %v1598 = vadd.f32 %v1319, %v1512
      %v1599 = vadd.f32 %v1320, %v1517
      %v1600 = vadd.f32 %v1321, %v1520
      %v1601 = vadd.f32 %v1322, %v1525
      %v1602 = vadd.f32 %v1323, %v1528
      %v1603 = vadd.f32 %v1324, %v1533
      %v1604 = vadd.f32 %v1325, %v1536
      %v1605 = vadd.f32 %v1326, %v1541
      %v1606 = vadd.f32 %v1327, %v1544
      %v1607 = vadd.f32 %v1328, %v1549
      %v1608 = vadd.f32 %v1329, %v1552
      %v1609 = vadd.f32 %v1330, %v1557
      %v1610 = vadd.f32 %v1331, %v1560
      %v1611 = vadd.f32 %v1332, %v1565
      %v1612 = vadd.f32 %v1333, %v1568
      %v1613 = vadd.f32 %v1334, %v1573
      %v1614 = vadd.f32 %v1335, %v1576
      %v1615 = vadd.f32 %v1336, %v1581
      %v1616 = vadd.f32 %v1337, %v1584
      %v1617 = vadd.f32 %v1338, %v1589
      %v1618 = vadd.f32 %v1339, %v1592
      %v1619 = vld [vmem:[%s1340] sm:$0xf]
      %v1620 = vld [vmem:[%s1340 + $0x4] sm:$0xf]
      %v1621 = vld [vmem:[%s1340 + $0x8] sm:$0x1]
      %v1622 = vld [vmem:[%s1340 + $0xc] sm:$0xf]
      %v1623 = vld [vmem:[%s1340 + $0x10] sm:$0xf]
      %v1624 = vld [vmem:[%s1340 + $0x14] sm:$0x1]
      %v1625 = vld [vmem:[%s1340 + $0x18] sm:$0xf]
      %v1626 = vld [vmem:[%s1340 + $0x1c] sm:$0xf]
      %v1627 = vld [vmem:[%s1340 + $0x20] sm:$0x1]
      %v1628 = vld [vmem:[%s1340 + $0x24] sm:$0xf]
      %v1629 = vld [vmem:[%s1340 + $0x28] sm:$0xf]
      %v1630 = vld [vmem:[%s1340 + $0x2c] sm:$0x1]
      %v1631 = vld [vmem:[%s1340 + $0x30] sm:$0xf]
      %v1632 = vld [vmem:[%s1340 + $0x34] sm:$0xf]
      %v1633 = vld [vmem:[%s1340 + $0x38] sm:$0x1]
      %v1634 = vld [vmem:[%s1340 + $0x3c] sm:$0xf]
      %v1635 = vld [vmem:[%s1340 + $0x40] sm:$0xf]
      %v1636 = vld [vmem:[%s1340 + $0x44] sm:$0x1]
      %v1637 = vld [vmem:[%s1340 + $0x48] sm:$0xf]
      %v1638 = vld [vmem:[%s1340 + $0x4c] sm:$0xf]
      %v1639 = vld [vmem:[%s1340 + $0x50] sm:$0x1]
      %v1640 = vld [vmem:[%s1340 + $0x54] sm:$0xf]
      %v1641 = vld [vmem:[%s1340 + $0x58] sm:$0xf]
      %v1642 = vld [vmem:[%s1340 + $0x5c] sm:$0x1]
      %v1643 = vld [vmem:[%s1340 + $0x60] sm:$0xf]
      %v1644 = vld [vmem:[%s1340 + $0x64] sm:$0xf]
      %v1645 = vld [vmem:[%s1340 + $0x68] sm:$0x1]
      %v1646 = vld [vmem:[%s1340 + $0x6c] sm:$0xf]
      %v1647 = vld [vmem:[%s1340 + $0x70] sm:$0xf]
      %v1648 = vld [vmem:[%s1340 + $0x74] sm:$0x1]
      %v1649 = vld [vmem:[%s1340 + $0x78] sm:$0xf]
      %v1650 = vld [vmem:[%s1340 + $0x7c] sm:$0xf]
      %v1651 = vld [vmem:[%s1340 + $0x80] sm:$0x1]
      %v1652 = vld [vmem:[%s1340 + $0x84] sm:$0xf]
      %v1653 = vld [vmem:[%s1340 + $0x88] sm:$0xf]
      %v1654 = vld [vmem:[%s1340 + $0x8c] sm:$0x1]
      %v1656 = vshrl.u32 %v1619, 16
      %v1658 = vrot.slane %v1656, 4
      %v1659 = vshll.u32 %v1619, 16
      %v1661 = vrot.slane %v1659, 5
      %v1662 = vor.u32 %v1658, %v1661
      %v1663 = vrot.slane %v1662, 4
      %v1665 = vshll.u32 %v1620, 16
      %v1667 = vrot.slane %v1665, 5
      %v1668 = vsel %vm262, %v1663, %v1667
      %v1669 = vshrl.u32 %v1620, 16
      %v1671 = vrot.slane %v1669, 4
      %v1672 = vor.u32 %v1671, %v1667
      %v1673 = vrot.slane %v1672, 4
      %v1675 = vshll.u32 %v1621, 16
      %v1677 = vrot.slane %v1675, 5
      %v1678 = vsel %vm262, %v1673, %v1677
      %v1680 = vshrl.u32 %v1622, 16
      %v1682 = vrot.slane %v1680, 4
      %v1683 = vshll.u32 %v1622, 16
      %v1685 = vrot.slane %v1683, 5
      %v1686 = vor.u32 %v1682, %v1685
      %v1687 = vrot.slane %v1686, 4
      %v1689 = vshll.u32 %v1623, 16
      %v1691 = vrot.slane %v1689, 5
      %v1692 = vsel %vm262, %v1687, %v1691
      %v1693 = vshrl.u32 %v1623, 16
      %v1695 = vrot.slane %v1693, 4
      %v1696 = vor.u32 %v1695, %v1691
      %v1697 = vrot.slane %v1696, 4
      %v1699 = vshll.u32 %v1624, 16
      %v1701 = vrot.slane %v1699, 5
      %v1702 = vsel %vm262, %v1697, %v1701
      %v1704 = vshrl.u32 %v1625, 16
      %v1706 = vrot.slane %v1704, 4
      %v1707 = vshll.u32 %v1625, 16
      %v1709 = vrot.slane %v1707, 5
      %v1710 = vor.u32 %v1706, %v1709
      %v1711 = vrot.slane %v1710, 4
      %v1713 = vshll.u32 %v1626, 16
      %v1715 = vrot.slane %v1713, 5
      %v1716 = vsel %vm262, %v1711, %v1715
      %v1717 = vshrl.u32 %v1626, 16
      %v1719 = vrot.slane %v1717, 4
      %v1720 = vor.u32 %v1719, %v1715
      %v1721 = vrot.slane %v1720, 4
      %v1723 = vshll.u32 %v1627, 16
      %v1725 = vrot.slane %v1723, 5
      %v1726 = vsel %vm262, %v1721, %v1725
      %v1728 = vshrl.u32 %v1628, 16
      %v1730 = vrot.slane %v1728, 4
      %v1731 = vshll.u32 %v1628, 16
      %v1733 = vrot.slane %v1731, 5
      %v1734 = vor.u32 %v1730, %v1733
      %v1735 = vrot.slane %v1734, 4
      %v1737 = vshll.u32 %v1629, 16
      %v1739 = vrot.slane %v1737, 5
      %v1740 = vsel %vm262, %v1735, %v1739
      %v1741 = vshrl.u32 %v1629, 16
      %v1743 = vrot.slane %v1741, 4
      %v1744 = vor.u32 %v1743, %v1739
      %v1745 = vrot.slane %v1744, 4
      %v1747 = vshll.u32 %v1630, 16
      %v1749 = vrot.slane %v1747, 5
      %v1750 = vsel %vm262, %v1745, %v1749
      %v1752 = vshrl.u32 %v1631, 16
      %v1754 = vrot.slane %v1752, 4
      %v1755 = vshll.u32 %v1631, 16
      %v1757 = vrot.slane %v1755, 5
      %v1758 = vor.u32 %v1754, %v1757
      %v1759 = vrot.slane %v1758, 4
      %v1761 = vshll.u32 %v1632, 16
      %v1763 = vrot.slane %v1761, 5
      %v1764 = vsel %vm262, %v1759, %v1763
      %v1765 = vshrl.u32 %v1632, 16
      %v1767 = vrot.slane %v1765, 4
      %v1768 = vor.u32 %v1767, %v1763
      %v1769 = vrot.slane %v1768, 4
      %v1771 = vshll.u32 %v1633, 16
      %v1773 = vrot.slane %v1771, 5
      %v1774 = vsel %vm262, %v1769, %v1773
      %v1776 = vshrl.u32 %v1634, 16
      %v1778 = vrot.slane %v1776, 4
      %v1779 = vshll.u32 %v1634, 16
      %v1781 = vrot.slane %v1779, 5
      %v1782 = vor.u32 %v1778, %v1781
      %v1783 = vrot.slane %v1782, 4
      %v1785 = vshll.u32 %v1635, 16
      %v1787 = vrot.slane %v1785, 5
      %v1788 = vsel %vm262, %v1783, %v1787
      %v1789 = vshrl.u32 %v1635, 16
      %v1791 = vrot.slane %v1789, 4
      %v1792 = vor.u32 %v1791, %v1787
      %v1793 = vrot.slane %v1792, 4
      %v1795 = vshll.u32 %v1636, 16
      %v1797 = vrot.slane %v1795, 5
      %v1798 = vsel %vm262, %v1793, %v1797
      %v1800 = vshrl.u32 %v1637, 16
      %v1802 = vrot.slane %v1800, 4
      %v1803 = vshll.u32 %v1637, 16
      %v1805 = vrot.slane %v1803, 5
      %v1806 = vor.u32 %v1802, %v1805
      %v1807 = vrot.slane %v1806, 4
      %v1809 = vshll.u32 %v1638, 16
      %v1811 = vrot.slane %v1809, 5
      %v1812 = vsel %vm262, %v1807, %v1811
      %v1813 = vshrl.u32 %v1638, 16
      %v1815 = vrot.slane %v1813, 4
      %v1816 = vor.u32 %v1815, %v1811
      %v1817 = vrot.slane %v1816, 4
      %v1819 = vshll.u32 %v1639, 16
      %v1821 = vrot.slane %v1819, 5
      %v1822 = vsel %vm262, %v1817, %v1821
      %v1824 = vshrl.u32 %v1640, 16
      %v1826 = vrot.slane %v1824, 4
      %v1827 = vshll.u32 %v1640, 16
      %v1829 = vrot.slane %v1827, 5
      %v1830 = vor.u32 %v1826, %v1829
      %v1831 = vrot.slane %v1830, 4
      %v1833 = vshll.u32 %v1641, 16
      %v1835 = vrot.slane %v1833, 5
      %v1836 = vsel %vm262, %v1831, %v1835
      %v1837 = vshrl.u32 %v1641, 16
      %v1839 = vrot.slane %v1837, 4
      %v1840 = vor.u32 %v1839, %v1835
      %v1841 = vrot.slane %v1840, 4
      %v1843 = vshll.u32 %v1642, 16
      %v1845 = vrot.slane %v1843, 5
      %v1846 = vsel %vm262, %v1841, %v1845
      %v1848 = vshrl.u32 %v1643, 16
      %v1850 = vrot.slane %v1848, 4
      %v1851 = vshll.u32 %v1643, 16
      %v1853 = vrot.slane %v1851, 5
      %v1854 = vor.u32 %v1850, %v1853
      %v1855 = vrot.slane %v1854, 4
      %v1857 = vshll.u32 %v1644, 16
      %v1859 = vrot.slane %v1857, 5
      %v1860 = vsel %vm262, %v1855, %v1859
      %v1861 = vshrl.u32 %v1644, 16
      %v1863 = vrot.slane %v1861, 4
      %v1864 = vor.u32 %v1863, %v1859
      %v1865 = vrot.slane %v1864, 4
      %v1867 = vshll.u32 %v1645, 16
      %v1869 = vrot.slane %v1867, 5
      %v1870 = vsel %vm262, %v1865, %v1869
      %v1872 = vshrl.u32 %v1646, 16
      %v1874 = vrot.slane %v1872, 4
      %v1875 = vshll.u32 %v1646, 16
      %v1877 = vrot.slane %v1875, 5
      %v1878 = vor.u32 %v1874, %v1877
      %v1879 = vrot.slane %v1878, 4
      %v1881 = vshll.u32 %v1647, 16
      %v1883 = vrot.slane %v1881, 5
      %v1884 = vsel %vm262, %v1879, %v1883
      %v1885 = vshrl.u32 %v1647, 16
      %v1887 = vrot.slane %v1885, 4
      %v1888 = vor.u32 %v1887, %v1883
      %v1889 = vrot.slane %v1888, 4
      %v1891 = vshll.u32 %v1648, 16
      %v1893 = vrot.slane %v1891, 5
      %v1894 = vsel %vm262, %v1889, %v1893
      %v1896 = vshrl.u32 %v1649, 16
      %v1898 = vrot.slane %v1896, 4
      %v1899 = vshll.u32 %v1649, 16
      %v1901 = vrot.slane %v1899, 5
      %v1902 = vor.u32 %v1898, %v1901
      %v1903 = vrot.slane %v1902, 4
      %v1905 = vshll.u32 %v1650, 16
      %v1907 = vrot.slane %v1905, 5
      %v1908 = vsel %vm262, %v1903, %v1907
      %v1909 = vshrl.u32 %v1650, 16
      %v1911 = vrot.slane %v1909, 4
      %v1912 = vor.u32 %v1911, %v1907
      %v1913 = vrot.slane %v1912, 4
      %v1915 = vshll.u32 %v1651, 16
      %v1917 = vrot.slane %v1915, 5
      %v1918 = vsel %vm262, %v1913, %v1917
      %v1920 = vshrl.u32 %v1652, 16
      %v1922 = vrot.slane %v1920, 4
      %v1923 = vshll.u32 %v1652, 16
      %v1925 = vrot.slane %v1923, 5
      %v1926 = vor.u32 %v1922, %v1925
      %v1927 = vrot.slane %v1926, 4
      %v1929 = vshll.u32 %v1653, 16
      %v1931 = vrot.slane %v1929, 5
      %v1932 = vsel %vm262, %v1927, %v1931
      %v1933 = vshrl.u32 %v1653, 16
      %v1935 = vrot.slane %v1933, 4
      %v1936 = vor.u32 %v1935, %v1931
      %v1937 = vrot.slane %v1936, 4
      %v1939 = vshll.u32 %v1654, 16
      %v1941 = vrot.slane %v1939, 5
      %v1942 = vsel %vm262, %v1937, %v1941
      %s1943 = scalar_lea.vmem %s210, 16
      %v1944 = vld [vmem:[%s1943] sm:$0xf]
      %v1945 = vunpack.c.l.b16 %v1668
      %v1946 = vunpack.c.l.b16 %v1678
      %v1947 = vunpack.c.l.b16 %v1692
      %v1948 = vunpack.c.l.b16 %v1702
      %v1949 = vunpack.c.l.b16 %v1716
      %v1950 = vunpack.c.l.b16 %v1726
      %v1951 = vunpack.c.l.b16 %v1740
      %v1952 = vunpack.c.l.b16 %v1750
      %v1953 = vunpack.c.l.b16 %v1764
      %v1954 = vunpack.c.l.b16 %v1774
      %v1955 = vunpack.c.l.b16 %v1788
      %v1956 = vunpack.c.l.b16 %v1798
      %v1957 = vunpack.c.l.b16 %v1812
      %v1958 = vunpack.c.l.b16 %v1822
      %v1959 = vunpack.c.l.b16 %v1836
      %v1960 = vunpack.c.l.b16 %v1846
      %v1961 = vunpack.c.l.b16 %v1860
      %v1962 = vunpack.c.l.b16 %v1870
      %v1963 = vunpack.c.l.b16 %v1884
      %v1964 = vunpack.c.l.b16 %v1894
      %v1965 = vunpack.c.l.b16 %v1908
      %v1966 = vunpack.c.l.b16 %v1918
      %v1967 = vunpack.c.l.b16 %v1932
      %v1968 = vunpack.c.l.b16 %v1942
      %v1969 = vpack.c.b16 %v1946, %v1945
      %v1970 = vpack.c.b16 %v1948, %v1947
      %v1971 = vpack.c.b16 %v1950, %v1949
      %v1972 = vpack.c.b16 %v1952, %v1951
      %v1973 = vpack.c.b16 %v1954, %v1953
      %v1974 = vpack.c.b16 %v1956, %v1955
      %v1975 = vpack.c.b16 %v1958, %v1957
      %v1976 = vpack.c.b16 %v1960, %v1959
      %v1977 = vpack.c.b16 %v1962, %v1961
      %v1978 = vpack.c.b16 %v1964, %v1963
      %v1979 = vpack.c.b16 %v1966, %v1965
      %v1980 = vpack.c.b16 %v1968, %v1967
      %v1982 = vsel %vm589, %v1969, 0
      %v1985 = vsel %vm589, %v1970, 0
      %v1988 = vsel %vm589, %v1971, 0
      %v1991 = vsel %vm589, %v1972, 0
      %v1994 = vsel %vm589, %v1973, 0
      %v1997 = vsel %vm589, %v1974, 0
      %v2000 = vsel %vm589, %v1975, 0
      %v2003 = vsel %vm589, %v1976, 0
      %v2006 = vsel %vm589, %v1977, 0
      %v2009 = vsel %vm589, %v1978, 0
      %v2012 = vsel %vm589, %v1979, 0
      %v2015 = vsel %vm589, %v1980, 0
      %v2018 = vsel %vm626, %v1944, 0
      %2020 = vmatprep.subr.bf16.mxu0 0
      %2021 = vmatpush1.bf16.msra.mxu0 0
      %2022 = vmatprep.subr.bf16.mxu0 0
      %2023 = vmatpush1.bf16.msra.mxu0 0
      %2024 = vmatprep.subr.bf16.mxu0 0
      %2025 = vmatpush1.bf16.msra.mxu0 0
      %2026 = vmatprep.subr.bf16.mxu0 0
      %2027 = vmatpush1.bf16.msra.mxu0 0
      %2028 = vmatprep.subr.bf16.mxu0 0
      %2029 = vmatpush1.bf16.msra.mxu0 0
      %2030 = vmatprep.subr.bf16.mxu0 0
      %2031 = vmatpush1.bf16.msra.mxu0 0
      %2032 = vmatprep.subr.bf16.mxu0 0
      %2033 = vmatpush1.bf16.msra.mxu0 0
      %2034 = vmatprep.subr.bf16.mxu0 0
      %2035 = vmatpush1.bf16.msra.mxu0 %v2018
      %2036 = vmatprep.subr.bf16.mxu0 0
      %2037 = vmatpush2.bf16.msra.mxu0 0
      %2038 = vmatprep.subr.bf16.mxu0 0
      %2039 = vmatpush2.bf16.msra.mxu0 0
      %2040 = vmatprep.subr.bf16.mxu0 0
      %2041 = vmatpush2.bf16.msra.mxu0 0
      %2042 = vmatprep.subr.bf16.mxu0 0
      %2043 = vmatpush2.bf16.msra.mxu0 0
      %2044 = vmatprep.subr.bf16.mxu0 0
      %2045 = vmatpush2.bf16.msra.mxu0 0
      %2046 = vmatprep.subr.bf16.mxu0 0
      %2047 = vmatpush2.bf16.msra.mxu0 0
      %2048 = vmatprep.subr.bf16.mxu0 0
      %2049 = vmatpush2.bf16.msra.mxu0 0
      %2050 = vmatprep.subr.bf16.mxu0 0
      %2051 = vmatpush2.bf16.msra.mxu0 0
      %2052 = vmatprep.mubr.bf16.mxu0 0
      %2053 = vmatmul.mubr.bf16.gmra.mxu0 %v1982
      %v2054 = vpop.f32.mrf.mxu0
      %v2055 = vadd.f32 0.0, %v2054
      %v2056 = vpop.f32.mrf.mxu0
      %v2057 = vpop.f32.mrf.mxu0
      %v2058 = vadd.f32 0.0, %v2057
      %v2059 = vpop.f32.mrf.mxu0
      %2060 = vmatprep.mubr.bf16.mxu0 0
      %2061 = vmatmul.mubr.bf16.gmra.mxu0 %v1985
      %v2062 = vpop.f32.mrf.mxu0
      %v2063 = vadd.f32 0.0, %v2062
      %v2064 = vpop.f32.mrf.mxu0
      %v2065 = vpop.f32.mrf.mxu0
      %v2066 = vadd.f32 0.0, %v2065
      %v2067 = vpop.f32.mrf.mxu0
      %2068 = vmatprep.mubr.bf16.mxu0 0
      %2069 = vmatmul.mubr.bf16.gmra.mxu0 %v1988
      %v2070 = vpop.f32.mrf.mxu0
      %v2071 = vadd.f32 0.0, %v2070
      %v2072 = vpop.f32.mrf.mxu0
      %v2073 = vpop.f32.mrf.mxu0
      %v2074 = vadd.f32 0.0, %v2073
      %v2075 = vpop.f32.mrf.mxu0
      %2076 = vmatprep.mubr.bf16.mxu0 0
      %2077 = vmatmul.mubr.bf16.gmra.mxu0 %v1991
      %v2078 = vpop.f32.mrf.mxu0
      %v2079 = vadd.f32 0.0, %v2078
      %v2080 = vpop.f32.mrf.mxu0
      %v2081 = vpop.f32.mrf.mxu0
      %v2082 = vadd.f32 0.0, %v2081
      %v2083 = vpop.f32.mrf.mxu0
      %2084 = vmatprep.mubr.bf16.mxu0 0
      %2085 = vmatmul.mubr.bf16.gmra.mxu0 %v1994
      %v2086 = vpop.f32.mrf.mxu0
      %v2087 = vadd.f32 0.0, %v2086
      %v2088 = vpop.f32.mrf.mxu0
      %v2089 = vpop.f32.mrf.mxu0
      %v2090 = vadd.f32 0.0, %v2089
      %v2091 = vpop.f32.mrf.mxu0
      %2092 = vmatprep.mubr.bf16.mxu0 0
      %2093 = vmatmul.mubr.bf16.gmra.mxu0 %v1997
      %v2094 = vpop.f32.mrf.mxu0
      %v2095 = vadd.f32 0.0, %v2094
      %v2096 = vpop.f32.mrf.mxu0
      %v2097 = vpop.f32.mrf.mxu0
      %v2098 = vadd.f32 0.0, %v2097
      %v2099 = vpop.f32.mrf.mxu0
      %2100 = vmatprep.mubr.bf16.mxu0 0
      %2101 = vmatmul.mubr.bf16.gmra.mxu0 %v2000
      %v2102 = vpop.f32.mrf.mxu0
      %v2103 = vadd.f32 0.0, %v2102
      %v2104 = vpop.f32.mrf.mxu0
      %v2105 = vpop.f32.mrf.mxu0
      %v2106 = vadd.f32 0.0, %v2105
      %v2107 = vpop.f32.mrf.mxu0
      %2108 = vmatprep.mubr.bf16.mxu0 0
      %2109 = vmatmul.mubr.bf16.gmra.mxu0 %v2003
      %v2110 = vpop.f32.mrf.mxu0
      %v2111 = vadd.f32 0.0, %v2110
      %v2112 = vpop.f32.mrf.mxu0
      %v2113 = vpop.f32.mrf.mxu0
      %v2114 = vadd.f32 0.0, %v2113
      %v2115 = vpop.f32.mrf.mxu0
      %2116 = vmatprep.mubr.bf16.mxu0 0
      %2117 = vmatmul.mubr.bf16.gmra.mxu0 %v2006
      %v2118 = vpop.f32.mrf.mxu0
      %v2119 = vadd.f32 0.0, %v2118
      %v2120 = vpop.f32.mrf.mxu0
      %v2121 = vpop.f32.mrf.mxu0
      %v2122 = vadd.f32 0.0, %v2121
      %v2123 = vpop.f32.mrf.mxu0
      %2124 = vmatprep.mubr.bf16.mxu0 0
      %2125 = vmatmul.mubr.bf16.gmra.mxu0 %v2009
      %v2126 = vpop.f32.mrf.mxu0
      %v2127 = vadd.f32 0.0, %v2126
      %v2128 = vpop.f32.mrf.mxu0
      %v2129 = vpop.f32.mrf.mxu0
      %v2130 = vadd.f32 0.0, %v2129
      %v2131 = vpop.f32.mrf.mxu0
      %2132 = vmatprep.mubr.bf16.mxu0 0
      %2133 = vmatmul.mubr.bf16.gmra.mxu0 %v2012
      %v2134 = vpop.f32.mrf.mxu0
      %v2135 = vadd.f32 0.0, %v2134
      %v2136 = vpop.f32.mrf.mxu0
      %v2137 = vpop.f32.mrf.mxu0
      %v2138 = vadd.f32 0.0, %v2137
      %v2139 = vpop.f32.mrf.mxu0
      %2140 = vmatprep.mubr.bf16.mxu0 0
      %2141 = vmatmul.mubr.bf16.gmra.mxu0 %v2015
      %v2142 = vpop.f32.mrf.mxu0
      %v2143 = vadd.f32 0.0, %v2142
      %v2144 = vpop.f32.mrf.mxu0
      %v2145 = vpop.f32.mrf.mxu0
      %v2146 = vadd.f32 0.0, %v2145
      %v2147 = vpop.f32.mrf.mxu0
      %2148 = vdwg.mxu0
      %v2149 = vadd.f32 %v1595, %v2055
      %v2150 = vadd.f32 %v1596, %v2058
      %v2151 = vadd.f32 %v1597, %v2063
      %v2152 = vadd.f32 %v1598, %v2066
      %v2153 = vadd.f32 %v1599, %v2071
      %v2154 = vadd.f32 %v1600, %v2074
      %v2155 = vadd.f32 %v1601, %v2079
      %v2156 = vadd.f32 %v1602, %v2082
      %v2157 = vadd.f32 %v1603, %v2087
      %v2158 = vadd.f32 %v1604, %v2090
      %v2159 = vadd.f32 %v1605, %v2095
      %v2160 = vadd.f32 %v1606, %v2098
      %v2161 = vadd.f32 %v1607, %v2103
      %v2162 = vadd.f32 %v1608, %v2106
      %v2163 = vadd.f32 %v1609, %v2111
      %v2164 = vadd.f32 %v1610, %v2114
      %v2165 = vadd.f32 %v1611, %v2119
      %v2166 = vadd.f32 %v1612, %v2122
      %v2167 = vadd.f32 %v1613, %v2127
      %v2168 = vadd.f32 %v1614, %v2130
      %v2169 = vadd.f32 %v1615, %v2135
      %v2170 = vadd.f32 %v1616, %v2138
      %v2171 = vadd.f32 %v1617, %v2143
      %v2172 = vadd.f32 %v1618, %v2146
      %v2173 = vld [vmem:[%s1340] sm:$0xe]
      %v2174 = vld [vmem:[%s1340 + $0xc] sm:$0xe]
      %v2175 = vld [vmem:[%s1340 + $0x18] sm:$0xe]
      %v2176 = vld [vmem:[%s1340 + $0x24] sm:$0xe]
      %v2177 = vld [vmem:[%s1340 + $0x30] sm:$0xe]
      %v2178 = vld [vmem:[%s1340 + $0x3c] sm:$0xe]
      %v2179 = vld [vmem:[%s1340 + $0x48] sm:$0xe]
      %v2180 = vld [vmem:[%s1340 + $0x54] sm:$0xe]
      %v2181 = vld [vmem:[%s1340 + $0x60] sm:$0xe]
      %v2182 = vld [vmem:[%s1340 + $0x6c] sm:$0xe]
      %v2183 = vld [vmem:[%s1340 + $0x78] sm:$0xe]
      %v2184 = vld [vmem:[%s1340 + $0x84] sm:$0xe]
      %v2221 = vrot.slane %v2173, 5
      %v2222 = vrot.slane %v2221, 4
      %v2223 = vrot.slane %v1620, 5
      %v2224 = vsel %vm1025, %v2222, %v2223
      %v2225 = vrot.slane %v2223, 4
      %v2226 = vrot.slane %v1621, 5
      %v2227 = vsel %vm1025, %v2225, %v2226
      %v2228 = vrot.slane %v2174, 5
      %v2229 = vrot.slane %v2228, 4
      %v2230 = vrot.slane %v1623, 5
      %v2231 = vsel %vm1025, %v2229, %v2230
      %v2232 = vrot.slane %v2230, 4
      %v2233 = vrot.slane %v1624, 5
      %v2234 = vsel %vm1025, %v2232, %v2233
      %v2235 = vrot.slane %v2175, 5
      %v2236 = vrot.slane %v2235, 4
      %v2237 = vrot.slane %v1626, 5
      %v2238 = vsel %vm1025, %v2236, %v2237
      %v2239 = vrot.slane %v2237, 4
      %v2240 = vrot.slane %v1627, 5
      %v2241 = vsel %vm1025, %v2239, %v2240
      %v2242 = vrot.slane %v2176, 5
      %v2243 = vrot.slane %v2242, 4
      %v2244 = vrot.slane %v1629, 5
      %v2245 = vsel %vm1025, %v2243, %v2244
      %v2246 = vrot.slane %v2244, 4
      %v2247 = vrot.slane %v1630, 5
      %v2248 = vsel %vm1025, %v2246, %v2247
      %v2249 = vrot.slane %v2177, 5
      %v2250 = vrot.slane %v2249, 4
      %v2251 = vrot.slane %v1632, 5
      %v2252 = vsel %vm1025, %v2250, %v2251
      %v2253 = vrot.slane %v2251, 4
      %v2254 = vrot.slane %v1633, 5
      %v2255 = vsel %vm1025, %v2253, %v2254
      %v2256 = vrot.slane %v2178, 5
      %v2257 = vrot.slane %v2256, 4
      %v2258 = vrot.slane %v1635, 5
      %v2259 = vsel %vm1025, %v2257, %v2258
      %v2260 = vrot.slane %v2258, 4
      %v2261 = vrot.slane %v1636, 5
      %v2262 = vsel %vm1025, %v2260, %v2261
      %v2263 = vrot.slane %v2179, 5
      %v2264 = vrot.slane %v2263, 4
      %v2265 = vrot.slane %v1638, 5
      %v2266 = vsel %vm1025, %v2264, %v2265
      %v2267 = vrot.slane %v2265, 4
      %v2268 = vrot.slane %v1639, 5
      %v2269 = vsel %vm1025, %v2267, %v2268
      %v2270 = vrot.slane %v2180, 5
      %v2271 = vrot.slane %v2270, 4
      %v2272 = vrot.slane %v1641, 5
      %v2273 = vsel %vm1025, %v2271, %v2272
      %v2274 = vrot.slane %v2272, 4
      %v2275 = vrot.slane %v1642, 5
      %v2276 = vsel %vm1025, %v2274, %v2275
      %v2277 = vrot.slane %v2181, 5
      %v2278 = vrot.slane %v2277, 4
      %v2279 = vrot.slane %v1644, 5
      %v2280 = vsel %vm1025, %v2278, %v2279
      %v2281 = vrot.slane %v2279, 4
      %v2282 = vrot.slane %v1645, 5
      %v2283 = vsel %vm1025, %v2281, %v2282
      %v2284 = vrot.slane %v2182, 5
      %v2285 = vrot.slane %v2284, 4
      %v2286 = vrot.slane %v1647, 5
      %v2287 = vsel %vm1025, %v2285, %v2286
      %v2288 = vrot.slane %v2286, 4
      %v2289 = vrot.slane %v1648, 5
      %v2290 = vsel %vm1025, %v2288, %v2289
      %v2291 = vrot.slane %v2183, 5
      %v2292 = vrot.slane %v2291, 4
      %v2293 = vrot.slane %v1650, 5
      %v2294 = vsel %vm1025, %v2292, %v2293
      %v2295 = vrot.slane %v2293, 4
      %v2296 = vrot.slane %v1651, 5
      %v2297 = vsel %vm1025, %v2295, %v2296
      %v2298 = vrot.slane %v2184, 5
      %v2299 = vrot.slane %v2298, 4
      %v2300 = vrot.slane %v1653, 5
      %v2301 = vsel %vm1025, %v2299, %v2300
      %v2302 = vrot.slane %v2300, 4
      %v2303 = vrot.slane %v1654, 5
      %v2304 = vsel %vm1025, %v2302, %v2303
      %s2305 = scalar_lea.vmem %s210, 20
      %v2306 = vld [vmem:[%s2305] sm:$0xf]
      %v2307 = vunpack.c.l.b16 %v2224
      %v2308 = vunpack.c.l.b16 %v2227
      %v2309 = vunpack.c.l.b16 %v2231
      %v2310 = vunpack.c.l.b16 %v2234
      %v2311 = vunpack.c.l.b16 %v2238
      %v2312 = vunpack.c.l.b16 %v2241
      %v2313 = vunpack.c.l.b16 %v2245
      %v2314 = vunpack.c.l.b16 %v2248
      %v2315 = vunpack.c.l.b16 %v2252
      %v2316 = vunpack.c.l.b16 %v2255
      %v2317 = vunpack.c.l.b16 %v2259
      %v2318 = vunpack.c.l.b16 %v2262
      %v2319 = vunpack.c.l.b16 %v2266
      %v2320 = vunpack.c.l.b16 %v2269
      %v2321 = vunpack.c.l.b16 %v2273
      %v2322 = vunpack.c.l.b16 %v2276
      %v2323 = vunpack.c.l.b16 %v2280
      %v2324 = vunpack.c.l.b16 %v2283
      %v2325 = vunpack.c.l.b16 %v2287
      %v2326 = vunpack.c.l.b16 %v2290
      %v2327 = vunpack.c.l.b16 %v2294
      %v2328 = vunpack.c.l.b16 %v2297
      %v2329 = vunpack.c.l.b16 %v2301
      %v2330 = vunpack.c.l.b16 %v2304
      %v2331 = vpack.c.b16 %v2308, %v2307
      %v2332 = vpack.c.b16 %v2310, %v2309
      %v2333 = vpack.c.b16 %v2312, %v2311
      %v2334 = vpack.c.b16 %v2314, %v2313
      %v2335 = vpack.c.b16 %v2316, %v2315
      %v2336 = vpack.c.b16 %v2318, %v2317
      %v2337 = vpack.c.b16 %v2320, %v2319
      %v2338 = vpack.c.b16 %v2322, %v2321
      %v2339 = vpack.c.b16 %v2324, %v2323
      %v2340 = vpack.c.b16 %v2326, %v2325
      %v2341 = vpack.c.b16 %v2328, %v2327
      %v2342 = vpack.c.b16 %v2330, %v2329
      %v2344 = vsel %vm589, %v2331, 0
      %v2347 = vsel %vm589, %v2332, 0
      %v2350 = vsel %vm589, %v2333, 0
      %v2353 = vsel %vm589, %v2334, 0
      %v2356 = vsel %vm589, %v2335, 0
      %v2359 = vsel %vm589, %v2336, 0
      %v2362 = vsel %vm589, %v2337, 0
      %v2365 = vsel %vm589, %v2338, 0
      %v2368 = vsel %vm589, %v2339, 0
      %v2371 = vsel %vm589, %v2340, 0
      %v2374 = vsel %vm589, %v2341, 0
      %v2377 = vsel %vm589, %v2342, 0
      %v2380 = vsel %vm626, %v2306, 0
      %2382 = vmatprep.subr.bf16.mxu0 0
      %2383 = vmatpush1.bf16.msra.mxu0 0
      %2384 = vmatprep.subr.bf16.mxu0 0
      %2385 = vmatpush1.bf16.msra.mxu0 0
      %2386 = vmatprep.subr.bf16.mxu0 0
      %2387 = vmatpush1.bf16.msra.mxu0 0
      %2388 = vmatprep.subr.bf16.mxu0 0
      %2389 = vmatpush1.bf16.msra.mxu0 0
      %2390 = vmatprep.subr.bf16.mxu0 0
      %2391 = vmatpush1.bf16.msra.mxu0 0
      %2392 = vmatprep.subr.bf16.mxu0 0
      %2393 = vmatpush1.bf16.msra.mxu0 0
      %2394 = vmatprep.subr.bf16.mxu0 0
      %2395 = vmatpush1.bf16.msra.mxu0 0
      %2396 = vmatprep.subr.bf16.mxu0 0
      %2397 = vmatpush1.bf16.msra.mxu0 %v2380
      %2398 = vmatprep.subr.bf16.mxu0 0
      %2399 = vmatpush2.bf16.msra.mxu0 0
      %2400 = vmatprep.subr.bf16.mxu0 0
      %2401 = vmatpush2.bf16.msra.mxu0 0
      %2402 = vmatprep.subr.bf16.mxu0 0
      %2403 = vmatpush2.bf16.msra.mxu0 0
      %2404 = vmatprep.subr.bf16.mxu0 0
      %2405 = vmatpush2.bf16.msra.mxu0 0
      %2406 = vmatprep.subr.bf16.mxu0 0
      %2407 = vmatpush2.bf16.msra.mxu0 0
      %2408 = vmatprep.subr.bf16.mxu0 0
      %2409 = vmatpush2.bf16.msra.mxu0 0
      %2410 = vmatprep.subr.bf16.mxu0 0
      %2411 = vmatpush2.bf16.msra.mxu0 0
      %2412 = vmatprep.subr.bf16.mxu0 0
      %2413 = vmatpush2.bf16.msra.mxu0 0
      %2414 = vmatprep.mubr.bf16.mxu0 0
      %2415 = vmatmul.mubr.bf16.gmra.mxu0 %v2344
      %v2416 = vpop.f32.mrf.mxu0
      %v2417 = vadd.f32 0.0, %v2416
      %v2418 = vpop.f32.mrf.mxu0
      %v2419 = vpop.f32.mrf.mxu0
      %v2420 = vadd.f32 0.0, %v2419
      %v2421 = vpop.f32.mrf.mxu0
      %2422 = vmatprep.mubr.bf16.mxu0 0
      %2423 = vmatmul.mubr.bf16.gmra.mxu0 %v2347
      %v2424 = vpop.f32.mrf.mxu0
      %v2425 = vadd.f32 0.0, %v2424
      %v2426 = vpop.f32.mrf.mxu0
      %v2427 = vpop.f32.mrf.mxu0
      %v2428 = vadd.f32 0.0, %v2427
      %v2429 = vpop.f32.mrf.mxu0
      %2430 = vmatprep.mubr.bf16.mxu0 0
      %2431 = vmatmul.mubr.bf16.gmra.mxu0 %v2350
      %v2432 = vpop.f32.mrf.mxu0
      %v2433 = vadd.f32 0.0, %v2432
      %v2434 = vpop.f32.mrf.mxu0
      %v2435 = vpop.f32.mrf.mxu0
      %v2436 = vadd.f32 0.0, %v2435
      %v2437 = vpop.f32.mrf.mxu0
      %2438 = vmatprep.mubr.bf16.mxu0 0
      %2439 = vmatmul.mubr.bf16.gmra.mxu0 %v2353
      %v2440 = vpop.f32.mrf.mxu0
      %v2441 = vadd.f32 0.0, %v2440
      %v2442 = vpop.f32.mrf.mxu0
      %v2443 = vpop.f32.mrf.mxu0
      %v2444 = vadd.f32 0.0, %v2443
      %v2445 = vpop.f32.mrf.mxu0
      %2446 = vmatprep.mubr.bf16.mxu0 0
      %2447 = vmatmul.mubr.bf16.gmra.mxu0 %v2356
      %v2448 = vpop.f32.mrf.mxu0
      %v2449 = vadd.f32 0.0, %v2448
      %v2450 = vpop.f32.mrf.mxu0
      %v2451 = vpop.f32.mrf.mxu0
      %v2452 = vadd.f32 0.0, %v2451
      %v2453 = vpop.f32.mrf.mxu0
      %2454 = vmatprep.mubr.bf16.mxu0 0
      %2455 = vmatmul.mubr.bf16.gmra.mxu0 %v2359
      %v2456 = vpop.f32.mrf.mxu0
      %v2457 = vadd.f32 0.0, %v2456
      %v2458 = vpop.f32.mrf.mxu0
      %v2459 = vpop.f32.mrf.mxu0
      %v2460 = vadd.f32 0.0, %v2459
      %v2461 = vpop.f32.mrf.mxu0
      %2462 = vmatprep.mubr.bf16.mxu0 0
      %2463 = vmatmul.mubr.bf16.gmra.mxu0 %v2362
      %v2464 = vpop.f32.mrf.mxu0
      %v2465 = vadd.f32 0.0, %v2464
      %v2466 = vpop.f32.mrf.mxu0
      %v2467 = vpop.f32.mrf.mxu0
      %v2468 = vadd.f32 0.0, %v2467
      %v2469 = vpop.f32.mrf.mxu0
      %2470 = vmatprep.mubr.bf16.mxu0 0
      %2471 = vmatmul.mubr.bf16.gmra.mxu0 %v2365
      %v2472 = vpop.f32.mrf.mxu0
      %v2473 = vadd.f32 0.0, %v2472
      %v2474 = vpop.f32.mrf.mxu0
      %v2475 = vpop.f32.mrf.mxu0
      %v2476 = vadd.f32 0.0, %v2475
      %v2477 = vpop.f32.mrf.mxu0
      %2478 = vmatprep.mubr.bf16.mxu0 0
      %2479 = vmatmul.mubr.bf16.gmra.mxu0 %v2368
      %v2480 = vpop.f32.mrf.mxu0
      %v2481 = vadd.f32 0.0, %v2480
      %v2482 = vpop.f32.mrf.mxu0
      %v2483 = vpop.f32.mrf.mxu0
      %v2484 = vadd.f32 0.0, %v2483
      %v2485 = vpop.f32.mrf.mxu0
      %2486 = vmatprep.mubr.bf16.mxu0 0
      %2487 = vmatmul.mubr.bf16.gmra.mxu0 %v2371
      %v2488 = vpop.f32.mrf.mxu0
      %v2489 = vadd.f32 0.0, %v2488
      %v2490 = vpop.f32.mrf.mxu0
      %v2491 = vpop.f32.mrf.mxu0
      %v2492 = vadd.f32 0.0, %v2491
      %v2493 = vpop.f32.mrf.mxu0
      %2494 = vmatprep.mubr.bf16.mxu0 0
      %2495 = vmatmul.mubr.bf16.gmra.mxu0 %v2374
      %v2496 = vpop.f32.mrf.mxu0
      %v2497 = vadd.f32 0.0, %v2496
      %v2498 = vpop.f32.mrf.mxu0
      %v2499 = vpop.f32.mrf.mxu0
      %v2500 = vadd.f32 0.0, %v2499
      %v2501 = vpop.f32.mrf.mxu0
      %2502 = vmatprep.mubr.bf16.mxu0 0
      %2503 = vmatmul.mubr.bf16.gmra.mxu0 %v2377
      %v2504 = vpop.f32.mrf.mxu0
      %v2505 = vadd.f32 0.0, %v2504
      %v2506 = vpop.f32.mrf.mxu0
      %v2507 = vpop.f32.mrf.mxu0
      %v2508 = vadd.f32 0.0, %v2507
      %v2509 = vpop.f32.mrf.mxu0
      %2510 = vdwg.mxu0
      %v2511 = vadd.f32 %v2149, %v2417
      %v2512 = vadd.f32 %v2150, %v2420
      %v2513 = vadd.f32 %v2151, %v2425
      %v2514 = vadd.f32 %v2152, %v2428
      %v2515 = vadd.f32 %v2153, %v2433
      %v2516 = vadd.f32 %v2154, %v2436
      %v2517 = vadd.f32 %v2155, %v2441
      %v2518 = vadd.f32 %v2156, %v2444
      %v2519 = vadd.f32 %v2157, %v2449
      %v2520 = vadd.f32 %v2158, %v2452
      %v2521 = vadd.f32 %v2159, %v2457
      %v2522 = vadd.f32 %v2160, %v2460
      %v2523 = vadd.f32 %v2161, %v2465
      %v2524 = vadd.f32 %v2162, %v2468
      %v2525 = vadd.f32 %v2163, %v2473
      %v2526 = vadd.f32 %v2164, %v2476
      %v2527 = vadd.f32 %v2165, %v2481
      %v2528 = vadd.f32 %v2166, %v2484
      %v2529 = vadd.f32 %v2167, %v2489
      %v2530 = vadd.f32 %v2168, %v2492
      %v2531 = vadd.f32 %v2169, %v2497
      %v2532 = vadd.f32 %v2170, %v2500
      %v2533 = vadd.f32 %v2171, %v2505
      %v2534 = vadd.f32 %v2172, %v2508
      %s2535 = scalar_lea.vmem %s206, 24
      %v2536 = vld [vmem:[%s2535] sm:$0xf]
      %v2537 = vld [vmem:[%s2535 + $0x4] sm:$0xf]
      %v2538 = vld [vmem:[%s2535 + $0xc] sm:$0xf]
      %v2539 = vld [vmem:[%s2535 + $0x10] sm:$0xf]
      %v2540 = vld [vmem:[%s2535 + $0x18] sm:$0xf]
      %v2541 = vld [vmem:[%s2535 + $0x1c] sm:$0xf]
      %v2542 = vld [vmem:[%s2535 + $0x24] sm:$0xf]
      %v2543 = vld [vmem:[%s2535 + $0x28] sm:$0xf]
      %v2544 = vld [vmem:[%s2535 + $0x30] sm:$0xf]
      %v2545 = vld [vmem:[%s2535 + $0x34] sm:$0xf]
      %v2546 = vld [vmem:[%s2535 + $0x3c] sm:$0xf]
      %v2547 = vld [vmem:[%s2535 + $0x40] sm:$0xf]
      %v2548 = vld [vmem:[%s2535 + $0x48] sm:$0xf]
      %v2549 = vld [vmem:[%s2535 + $0x4c] sm:$0xf]
      %v2550 = vld [vmem:[%s2535 + $0x54] sm:$0xf]
      %v2551 = vld [vmem:[%s2535 + $0x58] sm:$0xf]
      %v2552 = vld [vmem:[%s2535 + $0x60] sm:$0xf]
      %v2553 = vld [vmem:[%s2535 + $0x64] sm:$0xf]
      %v2554 = vld [vmem:[%s2535 + $0x6c] sm:$0xf]
      %v2555 = vld [vmem:[%s2535 + $0x70] sm:$0xf]
      %v2556 = vld [vmem:[%s2535 + $0x78] sm:$0xf]
      %v2557 = vld [vmem:[%s2535 + $0x7c] sm:$0xf]
      %v2558 = vld [vmem:[%s2535 + $0x84] sm:$0xf]
      %v2559 = vld [vmem:[%s2535 + $0x88] sm:$0xf]
      %s2560 = scalar_lea.vmem %s210, 24
      %v2561 = vld [vmem:[%s2560] sm:$0xf]
      %v2586 = vunpack.c.l.b16 %v2536
      %v2587 = vunpack.c.l.b16 %v2537
      %v2588 = vunpack.c.l.b16 %v2538
      %v2589 = vunpack.c.l.b16 %v2539
      %v2590 = vunpack.c.l.b16 %v2540
      %v2591 = vunpack.c.l.b16 %v2541
      %v2592 = vunpack.c.l.b16 %v2542
      %v2593 = vunpack.c.l.b16 %v2543
      %v2594 = vunpack.c.l.b16 %v2544
      %v2595 = vunpack.c.l.b16 %v2545
      %v2596 = vunpack.c.l.b16 %v2546
      %v2597 = vunpack.c.l.b16 %v2547
      %v2598 = vunpack.c.l.b16 %v2548
      %v2599 = vunpack.c.l.b16 %v2549
      %v2600 = vunpack.c.l.b16 %v2550
      %v2601 = vunpack.c.l.b16 %v2551
      %v2602 = vunpack.c.l.b16 %v2552
      %v2603 = vunpack.c.l.b16 %v2553
      %v2604 = vunpack.c.l.b16 %v2554
      %v2605 = vunpack.c.l.b16 %v2555
      %v2606 = vunpack.c.l.b16 %v2556
      %v2607 = vunpack.c.l.b16 %v2557
      %v2608 = vunpack.c.l.b16 %v2558
      %v2609 = vunpack.c.l.b16 %v2559
      %v2610 = vpack.c.b16 %v2587, %v2586
      %v2611 = vpack.c.b16 %v2589, %v2588
      %v2612 = vpack.c.b16 %v2591, %v2590
      %v2613 = vpack.c.b16 %v2593, %v2592
      %v2614 = vpack.c.b16 %v2595, %v2594
      %v2615 = vpack.c.b16 %v2597, %v2596
      %v2616 = vpack.c.b16 %v2599, %v2598
      %v2617 = vpack.c.b16 %v2601, %v2600
      %v2618 = vpack.c.b16 %v2603, %v2602
      %v2619 = vpack.c.b16 %v2605, %v2604
      %v2620 = vpack.c.b16 %v2607, %v2606
      %v2621 = vpack.c.b16 %v2609, %v2608
      %v2623 = vsel %vm589, %v2610, 0
      %v2626 = vsel %vm589, %v2611, 0
      %v2629 = vsel %vm589, %v2612, 0
      %v2632 = vsel %vm589, %v2613, 0
      %v2635 = vsel %vm589, %v2614, 0
      %v2638 = vsel %vm589, %v2615, 0
      %v2641 = vsel %vm589, %v2616, 0
      %v2644 = vsel %vm589, %v2617, 0
      %v2647 = vsel %vm589, %v2618, 0
      %v2650 = vsel %vm589, %v2619, 0
      %v2653 = vsel %vm589, %v2620, 0
      %v2656 = vsel %vm589, %v2621, 0
      %v2659 = vsel %vm626, %v2561, 0
      %2661 = vmatprep.subr.bf16.mxu0 0
      %2662 = vmatpush1.bf16.msra.mxu0 0
      %2663 = vmatprep.subr.bf16.mxu0 0
      %2664 = vmatpush1.bf16.msra.mxu0 0
      %2665 = vmatprep.subr.bf16.mxu0 0
      %2666 = vmatpush1.bf16.msra.mxu0 0
      %2667 = vmatprep.subr.bf16.mxu0 0
      %2668 = vmatpush1.bf16.msra.mxu0 0
      %2669 = vmatprep.subr.bf16.mxu0 0
      %2670 = vmatpush1.bf16.msra.mxu0 0
      %2671 = vmatprep.subr.bf16.mxu0 0
      %2672 = vmatpush1.bf16.msra.mxu0 0
      %2673 = vmatprep.subr.bf16.mxu0 0
      %2674 = vmatpush1.bf16.msra.mxu0 0
      %2675 = vmatprep.subr.bf16.mxu0 0
      %2676 = vmatpush1.bf16.msra.mxu0 %v2659
      %2677 = vmatprep.subr.bf16.mxu0 0
      %2678 = vmatpush2.bf16.msra.mxu0 0
      %2679 = vmatprep.subr.bf16.mxu0 0
      %2680 = vmatpush2.bf16.msra.mxu0 0
      %2681 = vmatprep.subr.bf16.mxu0 0
      %2682 = vmatpush2.bf16.msra.mxu0 0
      %2683 = vmatprep.subr.bf16.mxu0 0
      %2684 = vmatpush2.bf16.msra.mxu0 0
      %2685 = vmatprep.subr.bf16.mxu0 0
      %2686 = vmatpush2.bf16.msra.mxu0 0
      %2687 = vmatprep.subr.bf16.mxu0 0
      %2688 = vmatpush2.bf16.msra.mxu0 0
      %2689 = vmatprep.subr.bf16.mxu0 0
      %2690 = vmatpush2.bf16.msra.mxu0 0
      %2691 = vmatprep.subr.bf16.mxu0 0
      %2692 = vmatpush2.bf16.msra.mxu0 0
      %2693 = vmatprep.mubr.bf16.mxu0 0
      %2694 = vmatmul.mubr.bf16.gmra.mxu0 %v2623
      %v2695 = vpop.f32.mrf.mxu0
      %v2696 = vadd.f32 0.0, %v2695
      %v2697 = vpop.f32.mrf.mxu0
      %v2698 = vpop.f32.mrf.mxu0
      %v2699 = vadd.f32 0.0, %v2698
      %v2700 = vpop.f32.mrf.mxu0
      %2701 = vmatprep.mubr.bf16.mxu0 0
      %2702 = vmatmul.mubr.bf16.gmra.mxu0 %v2626
      %v2703 = vpop.f32.mrf.mxu0
      %v2704 = vadd.f32 0.0, %v2703
      %v2705 = vpop.f32.mrf.mxu0
      %v2706 = vpop.f32.mrf.mxu0
      %v2707 = vadd.f32 0.0, %v2706
      %v2708 = vpop.f32.mrf.mxu0
      %2709 = vmatprep.mubr.bf16.mxu0 0
      %2710 = vmatmul.mubr.bf16.gmra.mxu0 %v2629
      %v2711 = vpop.f32.mrf.mxu0
      %v2712 = vadd.f32 0.0, %v2711
      %v2713 = vpop.f32.mrf.mxu0
      %v2714 = vpop.f32.mrf.mxu0
      %v2715 = vadd.f32 0.0, %v2714
      %v2716 = vpop.f32.mrf.mxu0
      %2717 = vmatprep.mubr.bf16.mxu0 0
      %2718 = vmatmul.mubr.bf16.gmra.mxu0 %v2632
      %v2719 = vpop.f32.mrf.mxu0
      %v2720 = vadd.f32 0.0, %v2719
      %v2721 = vpop.f32.mrf.mxu0
      %v2722 = vpop.f32.mrf.mxu0
      %v2723 = vadd.f32 0.0, %v2722
      %v2724 = vpop.f32.mrf.mxu0
      %2725 = vmatprep.mubr.bf16.mxu0 0
      %2726 = vmatmul.mubr.bf16.gmra.mxu0 %v2635
      %v2727 = vpop.f32.mrf.mxu0
      %v2728 = vadd.f32 0.0, %v2727
      %v2729 = vpop.f32.mrf.mxu0
      %v2730 = vpop.f32.mrf.mxu0
      %v2731 = vadd.f32 0.0, %v2730
      %v2732 = vpop.f32.mrf.mxu0
      %2733 = vmatprep.mubr.bf16.mxu0 0
      %2734 = vmatmul.mubr.bf16.gmra.mxu0 %v2638
      %v2735 = vpop.f32.mrf.mxu0
      %v2736 = vadd.f32 0.0, %v2735
      %v2737 = vpop.f32.mrf.mxu0
      %v2738 = vpop.f32.mrf.mxu0
      %v2739 = vadd.f32 0.0, %v2738
      %v2740 = vpop.f32.mrf.mxu0
      %2741 = vmatprep.mubr.bf16.mxu0 0
      %2742 = vmatmul.mubr.bf16.gmra.mxu0 %v2641
      %v2743 = vpop.f32.mrf.mxu0
      %v2744 = vadd.f32 0.0, %v2743
      %v2745 = vpop.f32.mrf.mxu0
      %v2746 = vpop.f32.mrf.mxu0
      %v2747 = vadd.f32 0.0, %v2746
      %v2748 = vpop.f32.mrf.mxu0
      %2749 = vmatprep.mubr.bf16.mxu0 0
      %2750 = vmatmul.mubr.bf16.gmra.mxu0 %v2644
      %v2751 = vpop.f32.mrf.mxu0
      %v2752 = vadd.f32 0.0, %v2751
      %v2753 = vpop.f32.mrf.mxu0
      %v2754 = vpop.f32.mrf.mxu0
      %v2755 = vadd.f32 0.0, %v2754
      %v2756 = vpop.f32.mrf.mxu0
      %2757 = vmatprep.mubr.bf16.mxu0 0
      %2758 = vmatmul.mubr.bf16.gmra.mxu0 %v2647
      %v2759 = vpop.f32.mrf.mxu0
      %v2760 = vadd.f32 0.0, %v2759
      %v2761 = vpop.f32.mrf.mxu0
      %v2762 = vpop.f32.mrf.mxu0
      %v2763 = vadd.f32 0.0, %v2762
      %v2764 = vpop.f32.mrf.mxu0
      %2765 = vmatprep.mubr.bf16.mxu0 0
      %2766 = vmatmul.mubr.bf16.gmra.mxu0 %v2650
      %v2767 = vpop.f32.mrf.mxu0
      %v2768 = vadd.f32 0.0, %v2767
      %v2769 = vpop.f32.mrf.mxu0
      %v2770 = vpop.f32.mrf.mxu0
      %v2771 = vadd.f32 0.0, %v2770
      %v2772 = vpop.f32.mrf.mxu0
      %2773 = vmatprep.mubr.bf16.mxu0 0
      %2774 = vmatmul.mubr.bf16.gmra.mxu0 %v2653
      %v2775 = vpop.f32.mrf.mxu0
      %v2776 = vadd.f32 0.0, %v2775
      %v2777 = vpop.f32.mrf.mxu0
      %v2778 = vpop.f32.mrf.mxu0
      %v2779 = vadd.f32 0.0, %v2778
      %v2780 = vpop.f32.mrf.mxu0
      %2781 = vmatprep.mubr.bf16.mxu0 0
      %2782 = vmatmul.mubr.bf16.gmra.mxu0 %v2656
      %v2783 = vpop.f32.mrf.mxu0
      %v2784 = vadd.f32 0.0, %v2783
      %v2785 = vpop.f32.mrf.mxu0
      %v2786 = vpop.f32.mrf.mxu0
      %v2787 = vadd.f32 0.0, %v2786
      %v2788 = vpop.f32.mrf.mxu0
      %2789 = vdwg.mxu0
      %v2790 = vadd.f32 %v2511, %v2696
      %v2791 = vadd.f32 %v2512, %v2699
      %v2792 = vadd.f32 %v2513, %v2704
      %v2793 = vadd.f32 %v2514, %v2707
      %v2794 = vadd.f32 %v2515, %v2712
      %v2795 = vadd.f32 %v2516, %v2715
      %v2796 = vadd.f32 %v2517, %v2720
      %v2797 = vadd.f32 %v2518, %v2723
      %v2798 = vadd.f32 %v2519, %v2728
      %v2799 = vadd.f32 %v2520, %v2731
      %v2800 = vadd.f32 %v2521, %v2736
      %v2801 = vadd.f32 %v2522, %v2739
      %v2802 = vadd.f32 %v2523, %v2744
      %v2803 = vadd.f32 %v2524, %v2747
      %v2804 = vadd.f32 %v2525, %v2752
      %v2805 = vadd.f32 %v2526, %v2755
      %v2806 = vadd.f32 %v2527, %v2760
      %v2807 = vadd.f32 %v2528, %v2763
      %v2808 = vadd.f32 %v2529, %v2768
      %v2809 = vadd.f32 %v2530, %v2771
      %v2810 = vadd.f32 %v2531, %v2776
      %v2811 = vadd.f32 %v2532, %v2779
      %v2812 = vadd.f32 %v2533, %v2784
      %v2813 = vadd.f32 %v2534, %v2787
      %v2814 = vld [vmem:[%s2535] sm:$0xf]
      %v2815 = vld [vmem:[%s2535 + $0x4] sm:$0xf]
      %v2816 = vld [vmem:[%s2535 + $0x8] sm:$0x1]
      %v2817 = vld [vmem:[%s2535 + $0xc] sm:$0xf]
      %v2818 = vld [vmem:[%s2535 + $0x10] sm:$0xf]
      %v2819 = vld [vmem:[%s2535 + $0x14] sm:$0x1]
      %v2820 = vld [vmem:[%s2535 + $0x18] sm:$0xf]
      %v2821 = vld [vmem:[%s2535 + $0x1c] sm:$0xf]
      %v2822 = vld [vmem:[%s2535 + $0x20] sm:$0x1]
      %v2823 = vld [vmem:[%s2535 + $0x24] sm:$0xf]
      %v2824 = vld [vmem:[%s2535 + $0x28] sm:$0xf]
      %v2825 = vld [vmem:[%s2535 + $0x2c] sm:$0x1]
      %v2826 = vld [vmem:[%s2535 + $0x30] sm:$0xf]
      %v2827 = vld [vmem:[%s2535 + $0x34] sm:$0xf]
      %v2828 = vld [vmem:[%s2535 + $0x38] sm:$0x1]
      %v2829 = vld [vmem:[%s2535 + $0x3c] sm:$0xf]
      %v2830 = vld [vmem:[%s2535 + $0x40] sm:$0xf]
      %v2831 = vld [vmem:[%s2535 + $0x44] sm:$0x1]
      %v2832 = vld [vmem:[%s2535 + $0x48] sm:$0xf]
      %v2833 = vld [vmem:[%s2535 + $0x4c] sm:$0xf]
      %v2834 = vld [vmem:[%s2535 + $0x50] sm:$0x1]
      %v2835 = vld [vmem:[%s2535 + $0x54] sm:$0xf]
      %v2836 = vld [vmem:[%s2535 + $0x58] sm:$0xf]
      %v2837 = vld [vmem:[%s2535 + $0x5c] sm:$0x1]
      %v2838 = vld [vmem:[%s2535 + $0x60] sm:$0xf]
      %v2839 = vld [vmem:[%s2535 + $0x64] sm:$0xf]
      %v2840 = vld [vmem:[%s2535 + $0x68] sm:$0x1]
      %v2841 = vld [vmem:[%s2535 + $0x6c] sm:$0xf]
      %v2842 = vld [vmem:[%s2535 + $0x70] sm:$0xf]
      %v2843 = vld [vmem:[%s2535 + $0x74] sm:$0x1]
      %v2844 = vld [vmem:[%s2535 + $0x78] sm:$0xf]
      %v2845 = vld [vmem:[%s2535 + $0x7c] sm:$0xf]
      %v2846 = vld [vmem:[%s2535 + $0x80] sm:$0x1]
      %v2847 = vld [vmem:[%s2535 + $0x84] sm:$0xf]
      %v2848 = vld [vmem:[%s2535 + $0x88] sm:$0xf]
      %v2849 = vld [vmem:[%s2535 + $0x8c] sm:$0x1]
      %v2851 = vshrl.u32 %v2814, 16
      %v2853 = vrot.slane %v2851, 4
      %v2854 = vshll.u32 %v2814, 16
      %v2856 = vrot.slane %v2854, 5
      %v2857 = vor.u32 %v2853, %v2856
      %v2858 = vrot.slane %v2857, 4
      %v2860 = vshll.u32 %v2815, 16
      %v2862 = vrot.slane %v2860, 5
      %v2863 = vsel %vm262, %v2858, %v2862
      %v2864 = vshrl.u32 %v2815, 16
      %v2866 = vrot.slane %v2864, 4
      %v2867 = vor.u32 %v2866, %v2862
      %v2868 = vrot.slane %v2867, 4
      %v2870 = vshll.u32 %v2816, 16
      %v2872 = vrot.slane %v2870, 5
      %v2873 = vsel %vm262, %v2868, %v2872
      %v2875 = vshrl.u32 %v2817, 16
      %v2877 = vrot.slane %v2875, 4
      %v2878 = vshll.u32 %v2817, 16
      %v2880 = vrot.slane %v2878, 5
      %v2881 = vor.u32 %v2877, %v2880
      %v2882 = vrot.slane %v2881, 4
      %v2884 = vshll.u32 %v2818, 16
      %v2886 = vrot.slane %v2884, 5
      %v2887 = vsel %vm262, %v2882, %v2886
      %v2888 = vshrl.u32 %v2818, 16
      %v2890 = vrot.slane %v2888, 4
      %v2891 = vor.u32 %v2890, %v2886
      %v2892 = vrot.slane %v2891, 4
      %v2894 = vshll.u32 %v2819, 16
      %v2896 = vrot.slane %v2894, 5
      %v2897 = vsel %vm262, %v2892, %v2896
      %v2899 = vshrl.u32 %v2820, 16
      %v2901 = vrot.slane %v2899, 4
      %v2902 = vshll.u32 %v2820, 16
      %v2904 = vrot.slane %v2902, 5
      %v2905 = vor.u32 %v2901, %v2904
      %v2906 = vrot.slane %v2905, 4
      %v2908 = vshll.u32 %v2821, 16
      %v2910 = vrot.slane %v2908, 5
      %v2911 = vsel %vm262, %v2906, %v2910
      %v2912 = vshrl.u32 %v2821, 16
      %v2914 = vrot.slane %v2912, 4
      %v2915 = vor.u32 %v2914, %v2910
      %v2916 = vrot.slane %v2915, 4
      %v2918 = vshll.u32 %v2822, 16
      %v2920 = vrot.slane %v2918, 5
      %v2921 = vsel %vm262, %v2916, %v2920
      %v2923 = vshrl.u32 %v2823, 16
      %v2925 = vrot.slane %v2923, 4
      %v2926 = vshll.u32 %v2823, 16
      %v2928 = vrot.slane %v2926, 5
      %v2929 = vor.u32 %v2925, %v2928
      %v2930 = vrot.slane %v2929, 4
      %v2932 = vshll.u32 %v2824, 16
      %v2934 = vrot.slane %v2932, 5
      %v2935 = vsel %vm262, %v2930, %v2934
      %v2936 = vshrl.u32 %v2824, 16
      %v2938 = vrot.slane %v2936, 4
      %v2939 = vor.u32 %v2938, %v2934
      %v2940 = vrot.slane %v2939, 4
      %v2942 = vshll.u32 %v2825, 16
      %v2944 = vrot.slane %v2942, 5
      %v2945 = vsel %vm262, %v2940, %v2944
      %v2947 = vshrl.u32 %v2826, 16
      %v2949 = vrot.slane %v2947, 4
      %v2950 = vshll.u32 %v2826, 16
      %v2952 = vrot.slane %v2950, 5
      %v2953 = vor.u32 %v2949, %v2952
      %v2954 = vrot.slane %v2953, 4
      %v2956 = vshll.u32 %v2827, 16
      %v2958 = vrot.slane %v2956, 5
      %v2959 = vsel %vm262, %v2954, %v2958
      %v2960 = vshrl.u32 %v2827, 16
      %v2962 = vrot.slane %v2960, 4
      %v2963 = vor.u32 %v2962, %v2958
      %v2964 = vrot.slane %v2963, 4
      %v2966 = vshll.u32 %v2828, 16
      %v2968 = vrot.slane %v2966, 5
      %v2969 = vsel %vm262, %v2964, %v2968
      %v2971 = vshrl.u32 %v2829, 16
      %v2973 = vrot.slane %v2971, 4
      %v2974 = vshll.u32 %v2829, 16
      %v2976 = vrot.slane %v2974, 5
      %v2977 = vor.u32 %v2973, %v2976
      %v2978 = vrot.slane %v2977, 4
      %v2980 = vshll.u32 %v2830, 16
      %v2982 = vrot.slane %v2980, 5
      %v2983 = vsel %vm262, %v2978, %v2982
      %v2984 = vshrl.u32 %v2830, 16
      %v2986 = vrot.slane %v2984, 4
      %v2987 = vor.u32 %v2986, %v2982
      %v2988 = vrot.slane %v2987, 4
      %v2990 = vshll.u32 %v2831, 16
      %v2992 = vrot.slane %v2990, 5
      %v2993 = vsel %vm262, %v2988, %v2992
      %v2995 = vshrl.u32 %v2832, 16
      %v2997 = vrot.slane %v2995, 4
      %v2998 = vshll.u32 %v2832, 16
      %v3000 = vrot.slane %v2998, 5
      %v3001 = vor.u32 %v2997, %v3000
      %v3002 = vrot.slane %v3001, 4
      %v3004 = vshll.u32 %v2833, 16
      %v3006 = vrot.slane %v3004, 5
      %v3007 = vsel %vm262, %v3002, %v3006
      %v3008 = vshrl.u32 %v2833, 16
      %v3010 = vrot.slane %v3008, 4
      %v3011 = vor.u32 %v3010, %v3006
      %v3012 = vrot.slane %v3011, 4
      %v3014 = vshll.u32 %v2834, 16
      %v3016 = vrot.slane %v3014, 5
      %v3017 = vsel %vm262, %v3012, %v3016
      %v3019 = vshrl.u32 %v2835, 16
      %v3021 = vrot.slane %v3019, 4
      %v3022 = vshll.u32 %v2835, 16
      %v3024 = vrot.slane %v3022, 5
      %v3025 = vor.u32 %v3021, %v3024
      %v3026 = vrot.slane %v3025, 4
      %v3028 = vshll.u32 %v2836, 16
      %v3030 = vrot.slane %v3028, 5
      %v3031 = vsel %vm262, %v3026, %v3030
      %v3032 = vshrl.u32 %v2836, 16
      %v3034 = vrot.slane %v3032, 4
      %v3035 = vor.u32 %v3034, %v3030
      %v3036 = vrot.slane %v3035, 4
      %v3038 = vshll.u32 %v2837, 16
      %v3040 = vrot.slane %v3038, 5
      %v3041 = vsel %vm262, %v3036, %v3040
      %v3043 = vshrl.u32 %v2838, 16
      %v3045 = vrot.slane %v3043, 4
      %v3046 = vshll.u32 %v2838, 16
      %v3048 = vrot.slane %v3046, 5
      %v3049 = vor.u32 %v3045, %v3048
      %v3050 = vrot.slane %v3049, 4
      %v3052 = vshll.u32 %v2839, 16
      %v3054 = vrot.slane %v3052, 5
      %v3055 = vsel %vm262, %v3050, %v3054
      %v3056 = vshrl.u32 %v2839, 16
      %v3058 = vrot.slane %v3056, 4
      %v3059 = vor.u32 %v3058, %v3054
      %v3060 = vrot.slane %v3059, 4
      %v3062 = vshll.u32 %v2840, 16
      %v3064 = vrot.slane %v3062, 5
      %v3065 = vsel %vm262, %v3060, %v3064
      %v3067 = vshrl.u32 %v2841, 16
      %v3069 = vrot.slane %v3067, 4
      %v3070 = vshll.u32 %v2841, 16
      %v3072 = vrot.slane %v3070, 5
      %v3073 = vor.u32 %v3069, %v3072
      %v3074 = vrot.slane %v3073, 4
      %v3076 = vshll.u32 %v2842, 16
      %v3078 = vrot.slane %v3076, 5
      %v3079 = vsel %vm262, %v3074, %v3078
      %v3080 = vshrl.u32 %v2842, 16
      %v3082 = vrot.slane %v3080, 4
      %v3083 = vor.u32 %v3082, %v3078
      %v3084 = vrot.slane %v3083, 4
      %v3086 = vshll.u32 %v2843, 16
      %v3088 = vrot.slane %v3086, 5
      %v3089 = vsel %vm262, %v3084, %v3088
      %v3091 = vshrl.u32 %v2844, 16
      %v3093 = vrot.slane %v3091, 4
      %v3094 = vshll.u32 %v2844, 16
      %v3096 = vrot.slane %v3094, 5
      %v3097 = vor.u32 %v3093, %v3096
      %v3098 = vrot.slane %v3097, 4
      %v3100 = vshll.u32 %v2845, 16
      %v3102 = vrot.slane %v3100, 5
      %v3103 = vsel %vm262, %v3098, %v3102
      %v3104 = vshrl.u32 %v2845, 16
      %v3106 = vrot.slane %v3104, 4
      %v3107 = vor.u32 %v3106, %v3102
      %v3108 = vrot.slane %v3107, 4
      %v3110 = vshll.u32 %v2846, 16
      %v3112 = vrot.slane %v3110, 5
      %v3113 = vsel %vm262, %v3108, %v3112
      %v3115 = vshrl.u32 %v2847, 16
      %v3117 = vrot.slane %v3115, 4
      %v3118 = vshll.u32 %v2847, 16
      %v3120 = vrot.slane %v3118, 5
      %v3121 = vor.u32 %v3117, %v3120
      %v3122 = vrot.slane %v3121, 4
      %v3124 = vshll.u32 %v2848, 16
      %v3126 = vrot.slane %v3124, 5
      %v3127 = vsel %vm262, %v3122, %v3126
      %v3128 = vshrl.u32 %v2848, 16
      %v3130 = vrot.slane %v3128, 4
      %v3131 = vor.u32 %v3130, %v3126
      %v3132 = vrot.slane %v3131, 4
      %v3134 = vshll.u32 %v2849, 16
      %v3136 = vrot.slane %v3134, 5
      %v3137 = vsel %vm262, %v3132, %v3136
      %s3138 = scalar_lea.vmem %s210, 28
      %v3139 = vld [vmem:[%s3138] sm:$0xf]
      %v3140 = vunpack.c.l.b16 %v2863
      %v3141 = vunpack.c.l.b16 %v2873
      %v3142 = vunpack.c.l.b16 %v2887
      %v3143 = vunpack.c.l.b16 %v2897
      %v3144 = vunpack.c.l.b16 %v2911
      %v3145 = vunpack.c.l.b16 %v2921
      %v3146 = vunpack.c.l.b16 %v2935
      %v3147 = vunpack.c.l.b16 %v2945
      %v3148 = vunpack.c.l.b16 %v2959
      %v3149 = vunpack.c.l.b16 %v2969
      %v3150 = vunpack.c.l.b16 %v2983
      %v3151 = vunpack.c.l.b16 %v2993
      %v3152 = vunpack.c.l.b16 %v3007
      %v3153 = vunpack.c.l.b16 %v3017
      %v3154 = vunpack.c.l.b16 %v3031
      %v3155 = vunpack.c.l.b16 %v3041
      %v3156 = vunpack.c.l.b16 %v3055
      %v3157 = vunpack.c.l.b16 %v3065
      %v3158 = vunpack.c.l.b16 %v3079
      %v3159 = vunpack.c.l.b16 %v3089
      %v3160 = vunpack.c.l.b16 %v3103
      %v3161 = vunpack.c.l.b16 %v3113
      %v3162 = vunpack.c.l.b16 %v3127
      %v3163 = vunpack.c.l.b16 %v3137
      %v3164 = vpack.c.b16 %v3141, %v3140
      %v3165 = vpack.c.b16 %v3143, %v3142
      %v3166 = vpack.c.b16 %v3145, %v3144
      %v3167 = vpack.c.b16 %v3147, %v3146
      %v3168 = vpack.c.b16 %v3149, %v3148
      %v3169 = vpack.c.b16 %v3151, %v3150
      %v3170 = vpack.c.b16 %v3153, %v3152
      %v3171 = vpack.c.b16 %v3155, %v3154
      %v3172 = vpack.c.b16 %v3157, %v3156
      %v3173 = vpack.c.b16 %v3159, %v3158
      %v3174 = vpack.c.b16 %v3161, %v3160
      %v3175 = vpack.c.b16 %v3163, %v3162
      %v3177 = vsel %vm589, %v3164, 0
      %v3180 = vsel %vm589, %v3165, 0
      %v3183 = vsel %vm589, %v3166, 0
      %v3186 = vsel %vm589, %v3167, 0
      %v3189 = vsel %vm589, %v3168, 0
      %v3192 = vsel %vm589, %v3169, 0
      %v3195 = vsel %vm589, %v3170, 0
      %v3198 = vsel %vm589, %v3171, 0
      %v3201 = vsel %vm589, %v3172, 0
      %v3204 = vsel %vm589, %v3173, 0
      %v3207 = vsel %vm589, %v3174, 0
      %v3210 = vsel %vm589, %v3175, 0
      %v3213 = vsel %vm626, %v3139, 0
      %3215 = vmatprep.subr.bf16.mxu0 0
      %3216 = vmatpush1.bf16.msra.mxu0 0
      %3217 = vmatprep.subr.bf16.mxu0 0
      %3218 = vmatpush1.bf16.msra.mxu0 0
      %3219 = vmatprep.subr.bf16.mxu0 0
      %3220 = vmatpush1.bf16.msra.mxu0 0
      %3221 = vmatprep.subr.bf16.mxu0 0
      %3222 = vmatpush1.bf16.msra.mxu0 0
      %3223 = vmatprep.subr.bf16.mxu0 0
      %3224 = vmatpush1.bf16.msra.mxu0 0
      %3225 = vmatprep.subr.bf16.mxu0 0
      %3226 = vmatpush1.bf16.msra.mxu0 0
      %3227 = vmatprep.subr.bf16.mxu0 0
      %3228 = vmatpush1.bf16.msra.mxu0 0
      %3229 = vmatprep.subr.bf16.mxu0 0
      %3230 = vmatpush1.bf16.msra.mxu0 %v3213
      %3231 = vmatprep.subr.bf16.mxu0 0
      %3232 = vmatpush2.bf16.msra.mxu0 0
      %3233 = vmatprep.subr.bf16.mxu0 0
      %3234 = vmatpush2.bf16.msra.mxu0 0
      %3235 = vmatprep.subr.bf16.mxu0 0
      %3236 = vmatpush2.bf16.msra.mxu0 0
      %3237 = vmatprep.subr.bf16.mxu0 0
      %3238 = vmatpush2.bf16.msra.mxu0 0
      %3239 = vmatprep.subr.bf16.mxu0 0
      %3240 = vmatpush2.bf16.msra.mxu0 0
      %3241 = vmatprep.subr.bf16.mxu0 0
      %3242 = vmatpush2.bf16.msra.mxu0 0
      %3243 = vmatprep.subr.bf16.mxu0 0
      %3244 = vmatpush2.bf16.msra.mxu0 0
      %3245 = vmatprep.subr.bf16.mxu0 0
      %3246 = vmatpush2.bf16.msra.mxu0 0
      %3247 = vmatprep.mubr.bf16.mxu0 0
      %3248 = vmatmul.mubr.bf16.gmra.mxu0 %v3177
      %v3249 = vpop.f32.mrf.mxu0
      %v3250 = vadd.f32 0.0, %v3249
      %v3251 = vpop.f32.mrf.mxu0
      %v3252 = vpop.f32.mrf.mxu0
      %v3253 = vadd.f32 0.0, %v3252
      %v3254 = vpop.f32.mrf.mxu0
      %3255 = vmatprep.mubr.bf16.mxu0 0
      %3256 = vmatmul.mubr.bf16.gmra.mxu0 %v3180
      %v3257 = vpop.f32.mrf.mxu0
      %v3258 = vadd.f32 0.0, %v3257
      %v3259 = vpop.f32.mrf.mxu0
      %v3260 = vpop.f32.mrf.mxu0
      %v3261 = vadd.f32 0.0, %v3260
      %v3262 = vpop.f32.mrf.mxu0
      %3263 = vmatprep.mubr.bf16.mxu0 0
      %3264 = vmatmul.mubr.bf16.gmra.mxu0 %v3183
      %v3265 = vpop.f32.mrf.mxu0
      %v3266 = vadd.f32 0.0, %v3265
      %v3267 = vpop.f32.mrf.mxu0
      %v3268 = vpop.f32.mrf.mxu0
      %v3269 = vadd.f32 0.0, %v3268
      %v3270 = vpop.f32.mrf.mxu0
      %3271 = vmatprep.mubr.bf16.mxu0 0
      %3272 = vmatmul.mubr.bf16.gmra.mxu0 %v3186
      %v3273 = vpop.f32.mrf.mxu0
      %v3274 = vadd.f32 0.0, %v3273
      %v3275 = vpop.f32.mrf.mxu0
      %v3276 = vpop.f32.mrf.mxu0
      %v3277 = vadd.f32 0.0, %v3276
      %v3278 = vpop.f32.mrf.mxu0
      %3279 = vmatprep.mubr.bf16.mxu0 0
      %3280 = vmatmul.mubr.bf16.gmra.mxu0 %v3189
      %v3281 = vpop.f32.mrf.mxu0
      %v3282 = vadd.f32 0.0, %v3281
      %v3283 = vpop.f32.mrf.mxu0
      %v3284 = vpop.f32.mrf.mxu0
      %v3285 = vadd.f32 0.0, %v3284
      %v3286 = vpop.f32.mrf.mxu0
      %3287 = vmatprep.mubr.bf16.mxu0 0
      %3288 = vmatmul.mubr.bf16.gmra.mxu0 %v3192
      %v3289 = vpop.f32.mrf.mxu0
      %v3290 = vadd.f32 0.0, %v3289
      %v3291 = vpop.f32.mrf.mxu0
      %v3292 = vpop.f32.mrf.mxu0
      %v3293 = vadd.f32 0.0, %v3292
      %v3294 = vpop.f32.mrf.mxu0
      %3295 = vmatprep.mubr.bf16.mxu0 0
      %3296 = vmatmul.mubr.bf16.gmra.mxu0 %v3195
      %v3297 = vpop.f32.mrf.mxu0
      %v3298 = vadd.f32 0.0, %v3297
      %v3299 = vpop.f32.mrf.mxu0
      %v3300 = vpop.f32.mrf.mxu0
      %v3301 = vadd.f32 0.0, %v3300
      %v3302 = vpop.f32.mrf.mxu0
      %3303 = vmatprep.mubr.bf16.mxu0 0
      %3304 = vmatmul.mubr.bf16.gmra.mxu0 %v3198
      %v3305 = vpop.f32.mrf.mxu0
      %v3306 = vadd.f32 0.0, %v3305
      %v3307 = vpop.f32.mrf.mxu0
      %v3308 = vpop.f32.mrf.mxu0
      %v3309 = vadd.f32 0.0, %v3308
      %v3310 = vpop.f32.mrf.mxu0
      %3311 = vmatprep.mubr.bf16.mxu0 0
      %3312 = vmatmul.mubr.bf16.gmra.mxu0 %v3201
      %v3313 = vpop.f32.mrf.mxu0
      %v3314 = vadd.f32 0.0, %v3313
      %v3315 = vpop.f32.mrf.mxu0
      %v3316 = vpop.f32.mrf.mxu0
      %v3317 = vadd.f32 0.0, %v3316
      %v3318 = vpop.f32.mrf.mxu0
      %3319 = vmatprep.mubr.bf16.mxu0 0
      %3320 = vmatmul.mubr.bf16.gmra.mxu0 %v3204
      %v3321 = vpop.f32.mrf.mxu0
      %v3322 = vadd.f32 0.0, %v3321
      %v3323 = vpop.f32.mrf.mxu0
      %v3324 = vpop.f32.mrf.mxu0
      %v3325 = vadd.f32 0.0, %v3324
      %v3326 = vpop.f32.mrf.mxu0
      %3327 = vmatprep.mubr.bf16.mxu0 0
      %3328 = vmatmul.mubr.bf16.gmra.mxu0 %v3207
      %v3329 = vpop.f32.mrf.mxu0
      %v3330 = vadd.f32 0.0, %v3329
      %v3331 = vpop.f32.mrf.mxu0
      %v3332 = vpop.f32.mrf.mxu0
      %v3333 = vadd.f32 0.0, %v3332
      %v3334 = vpop.f32.mrf.mxu0
      %3335 = vmatprep.mubr.bf16.mxu0 0
      %3336 = vmatmul.mubr.bf16.gmra.mxu0 %v3210
      %v3337 = vpop.f32.mrf.mxu0
      %v3338 = vadd.f32 0.0, %v3337
      %v3339 = vpop.f32.mrf.mxu0
      %v3340 = vpop.f32.mrf.mxu0
      %v3341 = vadd.f32 0.0, %v3340
      %v3342 = vpop.f32.mrf.mxu0
      %3343 = vdwg.mxu0
      %v3344 = vadd.f32 %v2790, %v3250
      %v3345 = vadd.f32 %v2791, %v3253
      %v3346 = vadd.f32 %v2792, %v3258
      %v3347 = vadd.f32 %v2793, %v3261
      %v3348 = vadd.f32 %v2794, %v3266
      %v3349 = vadd.f32 %v2795, %v3269
      %v3350 = vadd.f32 %v2796, %v3274
      %v3351 = vadd.f32 %v2797, %v3277
      %v3352 = vadd.f32 %v2798, %v3282
      %v3353 = vadd.f32 %v2799, %v3285
      %v3354 = vadd.f32 %v2800, %v3290
      %v3355 = vadd.f32 %v2801, %v3293
      %v3356 = vadd.f32 %v2802, %v3298
      %v3357 = vadd.f32 %v2803, %v3301
      %v3358 = vadd.f32 %v2804, %v3306
      %v3359 = vadd.f32 %v2805, %v3309
      %v3360 = vadd.f32 %v2806, %v3314
      %v3361 = vadd.f32 %v2807, %v3317
      %v3362 = vadd.f32 %v2808, %v3322
      %v3363 = vadd.f32 %v2809, %v3325
      %v3364 = vadd.f32 %v2810, %v3330
      %v3365 = vadd.f32 %v2811, %v3333
      %v3366 = vadd.f32 %v2812, %v3338
      %v3367 = vadd.f32 %v2813, %v3341
      %v3368 = vld [vmem:[%s2535] sm:$0xe]
      %v3369 = vld [vmem:[%s2535 + $0xc] sm:$0xe]
      %v3370 = vld [vmem:[%s2535 + $0x18] sm:$0xe]
      %v3371 = vld [vmem:[%s2535 + $0x24] sm:$0xe]
      %v3372 = vld [vmem:[%s2535 + $0x30] sm:$0xe]
      %v3373 = vld [vmem:[%s2535 + $0x3c] sm:$0xe]
      %v3374 = vld [vmem:[%s2535 + $0x48] sm:$0xe]
      %v3375 = vld [vmem:[%s2535 + $0x54] sm:$0xe]
      %v3376 = vld [vmem:[%s2535 + $0x60] sm:$0xe]
      %v3377 = vld [vmem:[%s2535 + $0x6c] sm:$0xe]
      %v3378 = vld [vmem:[%s2535 + $0x78] sm:$0xe]
      %v3379 = vld [vmem:[%s2535 + $0x84] sm:$0xe]
      %v3416 = vrot.slane %v3368, 5
      %v3417 = vrot.slane %v3416, 4
      %v3418 = vrot.slane %v2815, 5
      %v3419 = vsel %vm1025, %v3417, %v3418
      %v3420 = vrot.slane %v3418, 4
      %v3421 = vrot.slane %v2816, 5
      %v3422 = vsel %vm1025, %v3420, %v3421
      %v3423 = vrot.slane %v3369, 5
      %v3424 = vrot.slane %v3423, 4
      %v3425 = vrot.slane %v2818, 5
      %v3426 = vsel %vm1025, %v3424, %v3425
      %v3427 = vrot.slane %v3425, 4
      %v3428 = vrot.slane %v2819, 5
      %v3429 = vsel %vm1025, %v3427, %v3428
      %v3430 = vrot.slane %v3370, 5
      %v3431 = vrot.slane %v3430, 4
      %v3432 = vrot.slane %v2821, 5
      %v3433 = vsel %vm1025, %v3431, %v3432
      %v3434 = vrot.slane %v3432, 4
      %v3435 = vrot.slane %v2822, 5
      %v3436 = vsel %vm1025, %v3434, %v3435
      %v3437 = vrot.slane %v3371, 5
      %v3438 = vrot.slane %v3437, 4
      %v3439 = vrot.slane %v2824, 5
      %v3440 = vsel %vm1025, %v3438, %v3439
      %v3441 = vrot.slane %v3439, 4
      %v3442 = vrot.slane %v2825, 5
      %v3443 = vsel %vm1025, %v3441, %v3442
      %v3444 = vrot.slane %v3372, 5
      %v3445 = vrot.slane %v3444, 4
      %v3446 = vrot.slane %v2827, 5
      %v3447 = vsel %vm1025, %v3445, %v3446
      %v3448 = vrot.slane %v3446, 4
      %v3449 = vrot.slane %v2828, 5
      %v3450 = vsel %vm1025, %v3448, %v3449
      %v3451 = vrot.slane %v3373, 5
      %v3452 = vrot.slane %v3451, 4
      %v3453 = vrot.slane %v2830, 5
      %v3454 = vsel %vm1025, %v3452, %v3453
      %v3455 = vrot.slane %v3453, 4
      %v3456 = vrot.slane %v2831, 5
      %v3457 = vsel %vm1025, %v3455, %v3456
      %v3458 = vrot.slane %v3374, 5
      %v3459 = vrot.slane %v3458, 4
      %v3460 = vrot.slane %v2833, 5
      %v3461 = vsel %vm1025, %v3459, %v3460
      %v3462 = vrot.slane %v3460, 4
      %v3463 = vrot.slane %v2834, 5
      %v3464 = vsel %vm1025, %v3462, %v3463
      %v3465 = vrot.slane %v3375, 5
      %v3466 = vrot.slane %v3465, 4
      %v3467 = vrot.slane %v2836, 5
      %v3468 = vsel %vm1025, %v3466, %v3467
      %v3469 = vrot.slane %v3467, 4
      %v3470 = vrot.slane %v2837, 5
      %v3471 = vsel %vm1025, %v3469, %v3470
      %v3472 = vrot.slane %v3376, 5
      %v3473 = vrot.slane %v3472, 4
      %v3474 = vrot.slane %v2839, 5
      %v3475 = vsel %vm1025, %v3473, %v3474
      %v3476 = vrot.slane %v3474, 4
      %v3477 = vrot.slane %v2840, 5
      %v3478 = vsel %vm1025, %v3476, %v3477
      %v3479 = vrot.slane %v3377, 5
      %v3480 = vrot.slane %v3479, 4
      %v3481 = vrot.slane %v2842, 5
      %v3482 = vsel %vm1025, %v3480, %v3481
      %v3483 = vrot.slane %v3481, 4
      %v3484 = vrot.slane %v2843, 5
      %v3485 = vsel %vm1025, %v3483, %v3484
      %v3486 = vrot.slane %v3378, 5
      %v3487 = vrot.slane %v3486, 4
      %v3488 = vrot.slane %v2845, 5
      %v3489 = vsel %vm1025, %v3487, %v3488
      %v3490 = vrot.slane %v3488, 4
      %v3491 = vrot.slane %v2846, 5
      %v3492 = vsel %vm1025, %v3490, %v3491
      %v3493 = vrot.slane %v3379, 5
      %v3494 = vrot.slane %v3493, 4
      %v3495 = vrot.slane %v2848, 5
      %v3496 = vsel %vm1025, %v3494, %v3495
      %v3497 = vrot.slane %v3495, 4
      %v3498 = vrot.slane %v2849, 5
      %v3499 = vsel %vm1025, %v3497, %v3498
      %s3500 = scalar_lea.vmem %s210, 32
      %v3501 = vld [vmem:[%s3500] sm:$0xf]
      %v3502 = vunpack.c.l.b16 %v3419
      %v3503 = vunpack.c.l.b16 %v3422
      %v3504 = vunpack.c.l.b16 %v3426
      %v3505 = vunpack.c.l.b16 %v3429
      %v3506 = vunpack.c.l.b16 %v3433
      %v3507 = vunpack.c.l.b16 %v3436
      %v3508 = vunpack.c.l.b16 %v3440
      %v3509 = vunpack.c.l.b16 %v3443
      %v3510 = vunpack.c.l.b16 %v3447
      %v3511 = vunpack.c.l.b16 %v3450
      %v3512 = vunpack.c.l.b16 %v3454
      %v3513 = vunpack.c.l.b16 %v3457
      %v3514 = vunpack.c.l.b16 %v3461
      %v3515 = vunpack.c.l.b16 %v3464
      %v3516 = vunpack.c.l.b16 %v3468
      %v3517 = vunpack.c.l.b16 %v3471
      %v3518 = vunpack.c.l.b16 %v3475
      %v3519 = vunpack.c.l.b16 %v3478
      %v3520 = vunpack.c.l.b16 %v3482
      %v3521 = vunpack.c.l.b16 %v3485
      %v3522 = vunpack.c.l.b16 %v3489
      %v3523 = vunpack.c.l.b16 %v3492
      %v3524 = vunpack.c.l.b16 %v3496
      %v3525 = vunpack.c.l.b16 %v3499
      %v3526 = vpack.c.b16 %v3503, %v3502
      %v3527 = vpack.c.b16 %v3505, %v3504
      %v3528 = vpack.c.b16 %v3507, %v3506
      %v3529 = vpack.c.b16 %v3509, %v3508
      %v3530 = vpack.c.b16 %v3511, %v3510
      %v3531 = vpack.c.b16 %v3513, %v3512
      %v3532 = vpack.c.b16 %v3515, %v3514
      %v3533 = vpack.c.b16 %v3517, %v3516
      %v3534 = vpack.c.b16 %v3519, %v3518
      %v3535 = vpack.c.b16 %v3521, %v3520
      %v3536 = vpack.c.b16 %v3523, %v3522
      %v3537 = vpack.c.b16 %v3525, %v3524
      %v3539 = vsel %vm589, %v3526, 0
      %v3542 = vsel %vm589, %v3527, 0
      %v3545 = vsel %vm589, %v3528, 0
      %v3548 = vsel %vm589, %v3529, 0
      %v3551 = vsel %vm589, %v3530, 0
      %v3554 = vsel %vm589, %v3531, 0
      %v3557 = vsel %vm589, %v3532, 0
      %v3560 = vsel %vm589, %v3533, 0
      %v3563 = vsel %vm589, %v3534, 0
      %v3566 = vsel %vm589, %v3535, 0
      %v3569 = vsel %vm589, %v3536, 0
      %v3572 = vsel %vm589, %v3537, 0
      %v3575 = vsel %vm626, %v3501, 0
      %3577 = vmatprep.subr.bf16.mxu0 0
      %3578 = vmatpush1.bf16.msra.mxu0 0
      %3579 = vmatprep.subr.bf16.mxu0 0
      %3580 = vmatpush1.bf16.msra.mxu0 0
      %3581 = vmatprep.subr.bf16.mxu0 0
      %3582 = vmatpush1.bf16.msra.mxu0 0
      %3583 = vmatprep.subr.bf16.mxu0 0
      %3584 = vmatpush1.bf16.msra.mxu0 0
      %3585 = vmatprep.subr.bf16.mxu0 0
      %3586 = vmatpush1.bf16.msra.mxu0 0
      %3587 = vmatprep.subr.bf16.mxu0 0
      %3588 = vmatpush1.bf16.msra.mxu0 0
      %3589 = vmatprep.subr.bf16.mxu0 0
      %3590 = vmatpush1.bf16.msra.mxu0 0
      %3591 = vmatprep.subr.bf16.mxu0 0
      %3592 = vmatpush1.bf16.msra.mxu0 %v3575
      %3593 = vmatprep.subr.bf16.mxu0 0
      %3594 = vmatpush2.bf16.msra.mxu0 0
      %3595 = vmatprep.subr.bf16.mxu0 0
      %3596 = vmatpush2.bf16.msra.mxu0 0
      %3597 = vmatprep.subr.bf16.mxu0 0
      %3598 = vmatpush2.bf16.msra.mxu0 0
      %3599 = vmatprep.subr.bf16.mxu0 0
      %3600 = vmatpush2.bf16.msra.mxu0 0
      %3601 = vmatprep.subr.bf16.mxu0 0
      %3602 = vmatpush2.bf16.msra.mxu0 0
      %3603 = vmatprep.subr.bf16.mxu0 0
      %3604 = vmatpush2.bf16.msra.mxu0 0
      %3605 = vmatprep.subr.bf16.mxu0 0
      %3606 = vmatpush2.bf16.msra.mxu0 0
      %3607 = vmatprep.subr.bf16.mxu0 0
      %3608 = vmatpush2.bf16.msra.mxu0 0
      %3609 = vmatprep.mubr.bf16.mxu0 0
      %3610 = vmatmul.mubr.bf16.gmra.mxu0 %v3539
      %v3611 = vpop.f32.mrf.mxu0
      %v3612 = vadd.f32 0.0, %v3611
      %v3613 = vpop.f32.mrf.mxu0
      %v3614 = vpop.f32.mrf.mxu0
      %v3615 = vadd.f32 0.0, %v3614
      %v3616 = vpop.f32.mrf.mxu0
      %3617 = vmatprep.mubr.bf16.mxu0 0
      %3618 = vmatmul.mubr.bf16.gmra.mxu0 %v3542
      %v3619 = vpop.f32.mrf.mxu0
      %v3620 = vadd.f32 0.0, %v3619
      %v3621 = vpop.f32.mrf.mxu0
      %v3622 = vpop.f32.mrf.mxu0
      %v3623 = vadd.f32 0.0, %v3622
      %v3624 = vpop.f32.mrf.mxu0
      %3625 = vmatprep.mubr.bf16.mxu0 0
      %3626 = vmatmul.mubr.bf16.gmra.mxu0 %v3545
      %v3627 = vpop.f32.mrf.mxu0
      %v3628 = vadd.f32 0.0, %v3627
      %v3629 = vpop.f32.mrf.mxu0
      %v3630 = vpop.f32.mrf.mxu0
      %v3631 = vadd.f32 0.0, %v3630
      %v3632 = vpop.f32.mrf.mxu0
      %3633 = vmatprep.mubr.bf16.mxu0 0
      %3634 = vmatmul.mubr.bf16.gmra.mxu0 %v3548
      %v3635 = vpop.f32.mrf.mxu0
      %v3636 = vadd.f32 0.0, %v3635
      %v3637 = vpop.f32.mrf.mxu0
      %v3638 = vpop.f32.mrf.mxu0
      %v3639 = vadd.f32 0.0, %v3638
      %v3640 = vpop.f32.mrf.mxu0
      %3641 = vmatprep.mubr.bf16.mxu0 0
      %3642 = vmatmul.mubr.bf16.gmra.mxu0 %v3551
      %v3643 = vpop.f32.mrf.mxu0
      %v3644 = vadd.f32 0.0, %v3643
      %v3645 = vpop.f32.mrf.mxu0
      %v3646 = vpop.f32.mrf.mxu0
      %v3647 = vadd.f32 0.0, %v3646
      %v3648 = vpop.f32.mrf.mxu0
      %3649 = vmatprep.mubr.bf16.mxu0 0
      %3650 = vmatmul.mubr.bf16.gmra.mxu0 %v3554
      %v3651 = vpop.f32.mrf.mxu0
      %v3652 = vadd.f32 0.0, %v3651
      %v3653 = vpop.f32.mrf.mxu0
      %v3654 = vpop.f32.mrf.mxu0
      %v3655 = vadd.f32 0.0, %v3654
      %v3656 = vpop.f32.mrf.mxu0
      %3657 = vmatprep.mubr.bf16.mxu0 0
      %3658 = vmatmul.mubr.bf16.gmra.mxu0 %v3557
      %v3659 = vpop.f32.mrf.mxu0
      %v3660 = vadd.f32 0.0, %v3659
      %v3661 = vpop.f32.mrf.mxu0
      %v3662 = vpop.f32.mrf.mxu0
      %v3663 = vadd.f32 0.0, %v3662
      %v3664 = vpop.f32.mrf.mxu0
      %3665 = vmatprep.mubr.bf16.mxu0 0
      %3666 = vmatmul.mubr.bf16.gmra.mxu0 %v3560
      %v3667 = vpop.f32.mrf.mxu0
      %v3668 = vadd.f32 0.0, %v3667
      %v3669 = vpop.f32.mrf.mxu0
      %v3670 = vpop.f32.mrf.mxu0
      %v3671 = vadd.f32 0.0, %v3670
      %v3672 = vpop.f32.mrf.mxu0
      %3673 = vmatprep.mubr.bf16.mxu0 0
      %3674 = vmatmul.mubr.bf16.gmra.mxu0 %v3563
      %v3675 = vpop.f32.mrf.mxu0
      %v3676 = vadd.f32 0.0, %v3675
      %v3677 = vpop.f32.mrf.mxu0
      %v3678 = vpop.f32.mrf.mxu0
      %v3679 = vadd.f32 0.0, %v3678
      %v3680 = vpop.f32.mrf.mxu0
      %3681 = vmatprep.mubr.bf16.mxu0 0
      %3682 = vmatmul.mubr.bf16.gmra.mxu0 %v3566
      %v3683 = vpop.f32.mrf.mxu0
      %v3684 = vadd.f32 0.0, %v3683
      %v3685 = vpop.f32.mrf.mxu0
      %v3686 = vpop.f32.mrf.mxu0
      %v3687 = vadd.f32 0.0, %v3686
      %v3688 = vpop.f32.mrf.mxu0
      %3689 = vmatprep.mubr.bf16.mxu0 0
      %3690 = vmatmul.mubr.bf16.gmra.mxu0 %v3569
      %v3691 = vpop.f32.mrf.mxu0
      %v3692 = vadd.f32 0.0, %v3691
      %v3693 = vpop.f32.mrf.mxu0
      %v3694 = vpop.f32.mrf.mxu0
      %v3695 = vadd.f32 0.0, %v3694
      %v3696 = vpop.f32.mrf.mxu0
      %3697 = vmatprep.mubr.bf16.mxu0 0
      %3698 = vmatmul.mubr.bf16.gmra.mxu0 %v3572
      %v3699 = vpop.f32.mrf.mxu0
      %v3700 = vadd.f32 0.0, %v3699
      %v3701 = vpop.f32.mrf.mxu0
      %v3702 = vpop.f32.mrf.mxu0
      %v3703 = vadd.f32 0.0, %v3702
      %v3704 = vpop.f32.mrf.mxu0
      %3705 = vdwg.mxu0
      %v3706 = vadd.f32 %v3344, %v3612
      %v3707 = vadd.f32 %v3345, %v3615
      %v3708 = vadd.f32 %v3346, %v3620
      %v3709 = vadd.f32 %v3347, %v3623
      %v3710 = vadd.f32 %v3348, %v3628
      %v3711 = vadd.f32 %v3349, %v3631
      %v3712 = vadd.f32 %v3350, %v3636
      %v3713 = vadd.f32 %v3351, %v3639
      %v3714 = vadd.f32 %v3352, %v3644
      %v3715 = vadd.f32 %v3353, %v3647
      %v3716 = vadd.f32 %v3354, %v3652
      %v3717 = vadd.f32 %v3355, %v3655
      %v3718 = vadd.f32 %v3356, %v3660
      %v3719 = vadd.f32 %v3357, %v3663
      %v3720 = vadd.f32 %v3358, %v3668
      %v3721 = vadd.f32 %v3359, %v3671
      %v3722 = vadd.f32 %v3360, %v3676
      %v3723 = vadd.f32 %v3361, %v3679
      %v3724 = vadd.f32 %v3362, %v3684
      %v3725 = vadd.f32 %v3363, %v3687
      %v3726 = vadd.f32 %v3364, %v3692
      %v3727 = vadd.f32 %v3365, %v3695
      %v3728 = vadd.f32 %v3366, %v3700
      %v3729 = vadd.f32 %v3367, %v3703
      %v3730 = vld [vmem:[%s213] sm:$0x1]
      %v3732 = vlaneseq
      %v3733 = vshrl.u32 %v3732, 7
      %v3734 = vsub.s32 0, %v3733
      %v3735 = vrot.slane %v3730, %v3734
      %v3737 = vadd.f32 %v3706, %v3735
      %v3738 = vadd.f32 %v3707, %v3735
      %v3739 = vadd.f32 %v3708, %v3735
      %v3740 = vadd.f32 %v3709, %v3735
      %v3741 = vadd.f32 %v3710, %v3735
      %v3742 = vadd.f32 %v3711, %v3735
      %v3743 = vadd.f32 %v3712, %v3735
      %v3744 = vadd.f32 %v3713, %v3735
      %v3745 = vadd.f32 %v3714, %v3735
      %v3746 = vadd.f32 %v3715, %v3735
      %v3747 = vadd.f32 %v3716, %v3735
      %v3748 = vadd.f32 %v3717, %v3735
      %v3749 = vadd.f32 %v3718, %v3735
      %v3750 = vadd.f32 %v3719, %v3735
      %v3751 = vadd.f32 %v3720, %v3735
      %v3752 = vadd.f32 %v3721, %v3735
      %v3753 = vadd.f32 %v3722, %v3735
      %v3754 = vadd.f32 %v3723, %v3735
      %v3755 = vadd.f32 %v3724, %v3735
      %v3756 = vadd.f32 %v3725, %v3735
      %v3757 = vadd.f32 %v3726, %v3735
      %v3758 = vadd.f32 %v3727, %v3735
      %v3759 = vadd.f32 %v3728, %v3735
      %v3760 = vadd.f32 %v3729, %v3735
      %3761 = vst.msk [vmem:[%s221] sm:$0xff] %vm589, %v3737
      %vm3762 = vcmask 60416
      %3763 = vst.msk [vmem:[%s221 + $0x8] sm:$0xf] %vm3762, %v3738
      %3764 = vst.msk [vmem:[%s221 + $0x10] sm:$0xff] %vm589, %v3739
      %3765 = vst.msk [vmem:[%s221 + $0x18] sm:$0xf] %vm3762, %v3740
      %3766 = vst.msk [vmem:[%s221 + $0x20] sm:$0xff] %vm589, %v3741
      %3767 = vst.msk [vmem:[%s221 + $0x28] sm:$0xf] %vm3762, %v3742
      %3768 = vst.msk [vmem:[%s221 + $0x30] sm:$0xff] %vm589, %v3743
      %3769 = vst.msk [vmem:[%s221 + $0x38] sm:$0xf] %vm3762, %v3744
      %3770 = vst.msk [vmem:[%s221 + $0x40] sm:$0xff] %vm589, %v3745
      %3771 = vst.msk [vmem:[%s221 + $0x48] sm:$0xf] %vm3762, %v3746
      %3772 = vst.msk [vmem:[%s221 + $0x50] sm:$0xff] %vm589, %v3747
      %3773 = vst.msk [vmem:[%s221 + $0x58] sm:$0xf] %vm3762, %v3748
      %3774 = vst.msk [vmem:[%s221 + $0x60] sm:$0xff] %vm589, %v3749
      %3775 = vst.msk [vmem:[%s221 + $0x68] sm:$0xf] %vm3762, %v3750
      %3776 = vst.msk [vmem:[%s221 + $0x70] sm:$0xff] %vm589, %v3751
      %3777 = vst.msk [vmem:[%s221 + $0x78] sm:$0xf] %vm3762, %v3752
      %3778 = vst.msk [vmem:[%s221 + $0x80] sm:$0xff] %vm589, %v3753
      %3779 = vst.msk [vmem:[%s221 + $0x88] sm:$0xf] %vm3762, %v3754
      %3780 = vst.msk [vmem:[%s221 + $0x90] sm:$0xff] %vm589, %v3755
      %3781 = vst.msk [vmem:[%s221 + $0x98] sm:$0xf] %vm3762, %v3756
      %3782 = vst.msk [vmem:[%s221 + $0xa0] sm:$0xff] %vm589, %v3757
      %3783 = vst.msk [vmem:[%s221 + $0xa8] sm:$0xf] %vm3762, %v3758
      %3784 = vst.msk [vmem:[%s221 + $0xb0] sm:$0xff] %vm589, %v3759
      %3785 = vst.msk [vmem:[%s221 + $0xb8] sm:$0xf] %vm3762, %v3760
      %p3786 = scmp.lt.s32.totalorder %s18, 1
      %s3787 = scalar_select %p3786, %s18, 1
      %p3788 = scmp.lt.s32.totalorder %s19, 0
      %s3789 = scalar_select %p3788, %s19, 0
      %s3790 = smul.addr %s3787, 24
      %s3791 = sadd.s32 %s3789, %s3790
      %s3792 = smul.addr %s3791, 8
      %s3793 = scalar_lea.vmem %s3, %s3792
      // Predicated region
      $region33: #{forward.3} parent=31 // pred_check
        %p3794 = pneg %p124
      $region34: #{forward.3} parent=31 // pred_check_branch
        %3796 = sbr.rel (%p3794) target = $region36
      $region35: #{forward.3} parent=31 // pred_region
        _
      $region36: #{forward.3} parent=31 // pred_fallthru
        _
    $region32: #{forward.3} parent=5 // pred_fallthru
      _
    %p3797 = scmp.le.s32.totalorder 2, %s9
    // Predicated region
    $region37: #{forward.3} parent=5 // pred_check
      %p3798 = pneg %p3797
    $region38: #{forward.3} parent=5 // pred_check_branch
      %3800 = sbr.rel (%p3798) target = $region40
    $region39: #{forward.3} parent=5 // pred_region
      %s3801 = ssub.s32 %s9, 2
      // Predicated region
      $region41: #{forward.3} parent=39 // pred_check
        %p3802 = pneg %p130
      $region42: #{forward.3} parent=39 // pred_check_branch
        %3804 = sbr.rel (%p3802) target = $region44
      $region43: #{forward.3} parent=39 // pred_region
        %p3805 = scmp.lt.s32.totalorder %s20, 1
        %s3806 = scalar_select %p3805, %s20, 1
        %p3807 = scmp.lt.s32.totalorder %s21, 0
        %s3808 = scalar_select %p3807, %s21, 0
        %s3809 = smul.addr %s3806, 24
        %s3810 = sadd.s32 %s3808, %s3809
        %s3811 = smul.addr %s3810, 8
        %s3812 = scalar_lea.vmem %s3, %s3811
      $region44: #{forward.3} parent=39 // pred_fallthru
        _
    $region40: #{forward.3} parent=5 // pred_fallthru
      _
  $region6: #{forward.3} parent=0 // loop_footer
    %s13 = sadd.s32 1, %s9
  $region7: #{forward.3} parent=0 // loop_footer_branch
    %8 = sbr.rel target = $region3
  $region8: #{forward.3} parent=0 // loop_exit
    _

</llo_original>
